<compile_context>
chip_gen: v7x
topology: tpu7x:2x2x1
jax: 0.10.0
libtpu: 0.0.40
codegen_flags: <defaults>
</compile_context>

<pallas_src>
import functools
import math

import jax
import jax.numpy as jnp
from jax.experimental import pallas as pl
from jax.experimental.pallas import tpu as pltpu


# ----------------------------------------------------------------------------
# Fused ViT kernel: one grid step == NB (batch, frame) token sequences
# ----------------------------------------------------------------------------
def _fused_vit_kernel(patches_ref, pos_ref, w_patch_ref,
                      ln_pre_ref, ln_post_ref, proj_ref,
                      ln1_ref, qkv_w_ref, qkv_b_ref, out_w_ref, out_b_ref,
                      ln2_ref, fc_w_ref, fc_b_ref, cproj_w_ref, cproj_b_ref,
                      out_ref,
                      *, layers, heads, L, Lp, NB):
    f32 = jnp.float32
    bf16 = jnp.bfloat16
    W = pos_ref.shape[1]
    dh = W // heads
    Mb = NB * Lp

    def ln(v, gb):
        g = gb[0:1, :]
        b = gb[1:2, :]
        mu = jnp.mean(v, axis=-1, keepdims=True)
        vc = v - mu
        var = jnp.mean(vc * vc, axis=-1, keepdims=True)
        return vc * jax.lax.rsqrt(var + 1e-5) * g + b

    def mm(a, w_bf16):
        # bf16 MXU inputs (weights pre-cast on host), f32 accumulation.
        return jnp.dot(a.astype(bf16), w_bf16, preferred_element_type=f32)

    # --- patch embedding + cls/pos add + ln_pre ---------------------------------
    # pos_ref is pre-tiled to NB sequences; row 0 of each sequence already holds
    # class_embedding + pos[0]; pad rows (>= L) are zero in both patches and pos.
    x = pos_ref[...] + mm(patches_ref[...], w_patch_ref[...])      # (Mb, W) f32
    x = ln(x, ln_pre_ref[...])

    # key padding mask (key columns >= L are invalid); built once, reused everywhere.
    key_valid = jax.lax.broadcasted_iota(jnp.int32, (NB, Lp, Lp), 2) < L

    cls_tok = None
    for l in range(layers):
        # --- self-attention -------------------------------------------------------
        h = ln(x, ln1_ref[l])
        qkv = mm(h, qkv_w_ref[l]) + qkv_b_ref[l]                   # (Mb, 3W); q pre-scaled
        qkv3 = qkv.reshape(NB, Lp, 3 * W)                          # tile-aligned major split

        pv_heads = []
        for hh in range(heads):
            lo = hh * dh
            q3 = qkv3[:, :, lo:lo + dh].astype(bf16)               # (NB, Lp, dh)
            k3 = qkv3[:, :, W + lo:W + lo + dh].astype(bf16)
            v3 = qkv3[:, :, 2 * W + lo:2 * W + lo + dh].astype(bf16)
            s = jnp.einsum('bqd,bkd->bqk', q3, k3,
                           preferred_element_type=f32)              # (NB, Lp, Lp)
            s = jnp.where(key_valid, s, -1e30)
            s = s - jnp.max(s, axis=-1, keepdims=True)
            p = jnp.exp(s)
            p = p * pl.reciprocal(jnp.sum(p, axis=-1, keepdims=True), approx=True)
            pv = jnp.einsum('bqk,bkd->bqd', p.astype(bf16), v3,
                            preferred_element_type=f32)             # (NB, Lp, dh)
            pv_heads.append(pv)

        # head-concat along lanes -> single out_proj matmul per layer
        attn = jnp.concatenate(pv_heads, axis=-1).reshape(Mb, W)    # (Mb, W)
        x = x + mm(attn, out_w_ref[l]) + out_b_ref[l]

        # --- MLP --------------------------------------------------------------------
        if l < layers - 1:
            h2 = ln(x, ln2_ref[l])
            h2 = mm(h2, fc_w_ref[l]) + fc_b_ref[l]                  # (Mb, 4W)
            h2 = h2 * jax.nn.sigmoid(1.702 * h2)                    # QuickGELU
            x = x + mm(h2, cproj_w_ref[l]) + cproj_b_ref[l]
        else:
            # Only the class-token rows feed the outputs -> skip the last MLP elsewhere.
            xc = x.reshape(NB, Lp, W)[:, 0, :]                      # (NB, W)
            h2 = ln(xc, ln2_ref[l])
            h2 = mm(h2, fc_w_ref[l]) + fc_b_ref[l]
            h2 = h2 * jax.nn.sigmoid(1.702 * h2)
            cls_tok = xc + mm(h2, cproj_w_ref[l]) + cproj_b_ref[l]  # (NB, W)

    # --- epilogue: packed lane-dense single output [cls_raw | ln_post(cls) @ proj] ---
    cls_ln = ln(cls_tok, ln_post_ref[...])
    x1 = mm(cls_ln, proj_ref[...])                                  # (NB, out_dim)
    out_ref[0] = jnp.concatenate([cls_tok, x1], axis=-1).astype(out_ref.dtype)


# ----------------------------------------------------------------------------
# Tiny plain-JAX helpers (few-KFLOP epilogue; cheaper than extra kernel launches)
# ----------------------------------------------------------------------------
def _layernorm_jax(x, g, b, eps=1e-5):
    x32 = x.astype(jnp.float32)
    mu = jnp.mean(x32, axis=-1, keepdims=True)
    xc = x32 - mu
    var = jnp.mean(xc * xc, axis=-1, keepdims=True)
    return (xc * jax.lax.rsqrt(var + eps) * g + b).astype(x.dtype)


def _adapter1_jax(p, x, B, T):
    """Adapter1: fc1 -> depthwise Conv1d over T (k=3, pad=1) -> fc2, residual add."""
    BT, _ = x.shape
    Ca = p["fc1_w"].shape[1]
    x_id = x
    h = x @ p["fc1_w"] + p["fc1_b"]                                # (BT, Ca)
    h = h.reshape(B, T, Ca).transpose(0, 2, 1)                     # (B, Ca, T)
    hp = jnp.pad(h, ((0, 0), (0, 0), (1, 1)))
    w = p["conv_w"]                                                # (Ca, 1, 3)
    k0 = w[:, 0, 0][None, :, None]
    k1 = w[:, 0, 1][None, :, None]
    k2 = w[:, 0, 2][None, :, None]
    h = (k0 * hp[:, :, 0:T] + k1 * hp[:, :, 1:T + 1] + k2 * hp[:, :, 2:T + 2]
         + p["conv_b"][None, :, None])
    h = h.transpose(0, 2, 1).reshape(BT, Ca)
    h = h @ p["fc2_w"] + p["fc2_b"]
    return h + x_id


# ----------------------------------------------------------------------------
# Parameter initialization (deterministic; mirrors the module's __init__ shapes)
# ----------------------------------------------------------------------------
def init_params(key, cfg):
    width = cfg["width"]
    patch = cfg["patch_size"]
    L = (cfg["input_resolution"] // patch) ** 2 + 1
    out_dim = cfg["output_dim"]
    scale = width ** (-0.5)

    keys = iter(jax.random.split(key, 64))

    def nrm(shape, std=0.02):
        return (std * jax.random.normal(next(keys), shape)).astype(jnp.float32)

    params = {
        "conv1_w": nrm((width, 3, patch, patch)),                  # Conv2d(3, width), no bias
        "class_embedding": scale * jax.random.normal(next(keys), (width,), jnp.float32),
        "positional_embedding": scale * jax.random.normal(next(keys), (L, width), jnp.float32),
        "ln_pre": {"g": jnp.ones((width,), jnp.float32), "b": jnp.zeros((width,), jnp.float32)},
        "ln_post": {"g": jnp.ones((width,), jnp.float32), "b": jnp.zeros((width,), jnp.float32)},
        "proj": scale * jax.random.normal(next(keys), (width, out_dim), jnp.float32),
        "blocks": [],
    }
    for _ in range(cfg["layers"]):
        params["blocks"].append({
            "ln_1": {"g": jnp.ones((width,), jnp.float32), "b": jnp.zeros((width,), jnp.float32)},
            "ln_2": {"g": jnp.ones((width,), jnp.float32), "b": jnp.zeros((width,), jnp.float32)},
            "attn": {
                # NOTE: stored (in, out) and applied as y = x @ W (PyTorch stores (out, in);
                # real checkpoints must be transposed on load).
                "in_proj_w": nrm((width, 3 * width)),
                "in_proj_b": nrm((3 * width,)),
                "out_proj_w": nrm((width, width)),
                "out_proj_b": nrm((width,)),
            },
            "mlp": {
                "c_fc_w": nrm((width, 4 * width)),
                "c_fc_b": nrm((4 * width,)),
                "c_proj_w": nrm((4 * width, width)),
                "c_proj_b": nrm((width,)),
            },
        })
    # Adapter1 (t_adapter): conv weight/bias and fc biases are constant 0 per __init__.
    ca = out_dim // 2
    params["t_adapter"] = {
        "fc1_w": nrm((out_dim, ca)), "fc1_b": jnp.zeros((ca,), jnp.float32),
        "conv_w": jnp.zeros((ca, 1, 3), jnp.float32), "conv_b": jnp.zeros((ca,), jnp.float32),
        "fc2_w": nrm((ca, out_dim)), "fc2_b": jnp.zeros((out_dim,), jnp.float32),
    }
    params["adapter_fc"] = {
        "w": nrm((width, cfg["num_classes"]), std=0.02),
        "b": jnp.zeros((cfg["num_classes"],), jnp.float32),
    }
    return params


# ----------------------------------------------------------------------------
# Model forward
# ----------------------------------------------------------------------------
def vision_transformer_forward(params, x, cfg):
    B, C_in, T, H, W_sp = x.shape
    width = cfg["width"]
    p = cfg["patch_size"]
    heads = cfg["heads"]

    Hp, Wp = H // p, W_sp // p
    L = Hp * Wp + 1
    Lp = ((L + 7) // 8) * 8                                        # pad seq to 8-sublane multiple
    BT = B * T
    Cp = C_in * p * p
    out_dim = params["proj"].shape[1]

    # 2-wide "parallel" grid so v7x's dual TensorCores both get work; costs only one
    # extra ~0.35us pipeline step on single-TC v5e/v6e.
    G = 2 if (BT % 2 == 0 and BT >= 2) else 1
    NB = BT // G
    Mb = NB * Lp

    # ---- host-side staging (tiny, one-time XLA ops) ------------------------------
    # (B, 3, T, H, W) -> (B*T, 3, H, W) -> per-frame patch vectors padded to Lp rows,
    # flattened so the kernel does a single M = NB*Lp patch-embed matmul per step.
    xt = jnp.transpose(x, (0, 2, 1, 3, 4)).reshape(BT, C_in, H, W_sp)
    patches = xt.reshape(BT, C_in, Hp, p, Wp, p).transpose(0, 2, 4, 1, 3, 5)
    patches = patches.reshape(BT, Hp * Wp, Cp)
    patches = jnp.pad(patches, ((0, 0), (1, Lp - L), (0, 0)))      # (BT, Lp, Cp)
    patches_flat = patches.reshape(BT * Lp, Cp).astype(jnp.float32)

    pos = params["positional_embedding"]
    pos_full = jnp.concatenate(
        [(pos[0] + params["class_embedding"])[None, :],            # cls + pos[0] in row 0
         pos[1:],
         jnp.zeros((Lp - L, width), pos.dtype)], axis=0)           # (Lp, width)
    pos_tiled = jnp.tile(pos_full, (NB, 1)).astype(jnp.float32)    # (Mb, width)

    bf16 = jnp.bfloat16
    w_patch = params["conv1_w"].reshape(width, Cp).T.astype(bf16)  # (Cp, width) bf16

    ln_pre = jnp.stack([params["ln_pre"]["g"], params["ln_pre"]["b"]])      # (2, W)
    ln_post = jnp.stack([params["ln_post"]["g"], params["ln_post"]["b"]])   # (2, W)
    proj_bf = params["proj"].astype(bf16)

    blocks = params["blocks"][:12]                                 # module runs blocks idx < 12
    layers = len(blocks)
    dh = width // heads
    scale = 1.0 / math.sqrt(dh)

    # fold the attention query scaling 1/sqrt(dh) into the q columns of in_proj.
    def fold_w(w):
        return jnp.concatenate([w[:, :width] * scale, w[:, width:]], axis=-1)

    def fold_b(b):
        return jnp.concatenate([b[:width] * scale, b[width:]], axis=-1)

    ln1 = jnp.stack([jnp.stack([b["ln_1"]["g"], b["ln_1"]["b"]]) for b in blocks])
    ln2 = jnp.stack([jnp.stack([b["ln_2"]["g"], b["ln_2"]["b"]]) for b in blocks])
    qkv_w = jnp.stack([fold_w(b["attn"]["in_proj_w"]) for b in blocks]).astype(bf16)
    qkv_b = jnp.stack([fold_b(b["attn"]["in_proj_b"])[None, :] for b in blocks])
    out_w = jnp.stack([b["attn"]["out_proj_w"] for b in blocks]).astype(bf16)
    out_b = jnp.stack([b["attn"]["out_proj_b"][None, :] for b in blocks])
    fc_w = jnp.stack([b["mlp"]["c_fc_w"] for b in blocks]).astype(bf16)
    fc_b = jnp.stack([b["mlp"]["c_fc_b"][None, :] for b in blocks])
    cproj_w = jnp.stack([b["mlp"]["c_proj_w"] for b in blocks]).astype(bf16)
    cproj_b = jnp.stack([b["mlp"]["c_proj_b"][None, :] for b in blocks])

    def full_spec(arr):
        nd = arr.ndim
        return pl.BlockSpec(arr.shape, lambda i, _nd=nd: (0,) * _nd)

    kernel = functools.partial(_fused_vit_kernel, layers=layers, heads=heads,
                               L=L, Lp=Lp, NB=NB)

    packed = pl.pallas_call(
        kernel,
        out_shape=jax.ShapeDtypeStruct((G, NB, width + out_dim), jnp.float32),
        grid=(G,),
        in_specs=[
            pl.BlockSpec((Mb, Cp), lambda i: (i, 0)),              # patches (per-step block)
            full_spec(pos_tiled), full_spec(w_patch),
            full_spec(ln_pre), full_spec(ln_post), full_spec(proj_bf),
            full_spec(ln1), full_spec(qkv_w), full_spec(qkv_b),
            full_spec(out_w), full_spec(out_b),
            full_spec(ln2), full_spec(fc_w), full_spec(fc_b),
            full_spec(cproj_w), full_spec(cproj_b),
        ],
        out_specs=pl.BlockSpec((1, NB, width + out_dim), lambda i: (i, 0, 0)),
        compiler_params=pltpu.CompilerParams(dimension_semantics=("parallel",)),
    )(patches_flat, pos_tiled, w_patch, ln_pre, ln_post, proj_bf,
      ln1, qkv_w, qkv_b, out_w, out_b, ln2, fc_w, fc_b, cproj_w, cproj_b)

    packed = packed.reshape(BT, width + out_dim)
    cls_raw = packed[:, :width]                                    # post-transformer class tokens
    x1_pre = packed[:, width:width + out_dim]                      # ln_post(cls) @ proj

    # ---- x2 branch: class tokens averaged over T -> ln_post -> dropout -> adapter_fc
    cls_mean = jnp.mean(cls_raw.reshape(B, T, width), axis=1)
    x2 = _layernorm_jax(cls_mean, params["ln_post"]["g"], params["ln_post"]["b"])
    # TODO(synk): nn.Dropout(0.5) treated as eval-mode identity (no stochastic masking).
    x2 = (x2 @ params["adapter_fc"]["w"] + params["adapter_fc"]["b"]).astype(x.dtype)

    # ---- x1 branch: Adapter1 temporal adapter (tiny; plain JAX epilogue)
    x1 = _adapter1_jax(params["t_adapter"], x1_pre, B, T).astype(x.dtype)

    xm = jnp.mean(x1.reshape(B, T, out_dim), axis=1)
    return xm, x1.reshape(B, T, out_dim), x2


# ----------------------------------------------------------------------------
if __name__ == "__main__":
    cfg = dict(
        input_resolution=16, patch_size=4, width=32, layers=2, heads=4,
        output_dim=16, adapter_width=8, num_classes=10, num_frames=4,
    )
    key = jax.random.PRNGKey(0)
    k_params, k_x = jax.random.split(key)
    params = init_params(k_params, cfg)

    B, T = 2, cfg["num_frames"]
    x = jax.random.normal(
        k_x, (B, 3, T, cfg["input_resolution"], cfg["input_resolution"]), dtype=jnp.float32)

    fwd = jax.jit(functools.partial(vision_transformer_forward, cfg=cfg))
    out_mean, out_x1, out_x2 = fwd(params, x)
    jax.block_until_ready((out_mean, out_x1, out_x2))

    assert out_mean.shape == (B, cfg["output_dim"])
    assert out_x1.shape == (B, T, cfg["output_dim"])
    assert out_x2.shape == (B, cfg["num_classes"])
    assert bool(jnp.all(jnp.isfinite(out_mean))) and bool(jnp.all(jnp.isfinite(out_x2)))
    print("KERNEL_OK")
</pallas_src>

<mosaic_0001>
module attributes {stable_mosaic.version = 11 : i64} {
  func.func @_fused_vit_kernel(%arg0: i32, %arg1: memref<96x48xf32, #tpu.memory_space<vmem>>, %arg2: memref<96x32xf32, #tpu.memory_space<vmem>>, %arg3: memref<48x32xbf16, #tpu.memory_space<vmem>>, %arg4: memref<2x32xf32, #tpu.memory_space<vmem>>, %arg5: memref<2x32xf32, #tpu.memory_space<vmem>>, %arg6: memref<32x16xbf16, #tpu.memory_space<vmem>>, %arg7: memref<2x2x32xf32, #tpu.memory_space<vmem>>, %arg8: memref<2x32x96xbf16, #tpu.memory_space<vmem>>, %arg9: memref<2x1x96xf32, #tpu.memory_space<vmem>>, %arg10: memref<2x32x32xbf16, #tpu.memory_space<vmem>>, %arg11: memref<2x1x32xf32, #tpu.memory_space<vmem>>, %arg12: memref<2x2x32xf32, #tpu.memory_space<vmem>>, %arg13: memref<2x32x128xbf16, #tpu.memory_space<vmem>>, %arg14: memref<2x1x128xf32, #tpu.memory_space<vmem>>, %arg15: memref<2x128x32xbf16, #tpu.memory_space<vmem>>, %arg16: memref<2x1x32xf32, #tpu.memory_space<vmem>>, %arg17: memref<1x4x48xf32, #tpu.memory_space<vmem>>) attributes {dimension_semantics = [#tpu.dimension_semantics<parallel>], iteration_bounds = array<i64: 2>, scalar_prefetch = 0 : i64, scratch_operands = 0 : i64, tpu.core_type = #tpu.core_type<tc>, window_params = [{transform_indices = @transform_0, window_bounds = array<i64: 96, 48>}, {pipeline_mode = #tpu.pipeline_mode<synchronous>, transform_indices = @transform_1, window_bounds = array<i64: 96, 32>}, {pipeline_mode = #tpu.pipeline_mode<synchronous>, transform_indices = @transform_2, window_bounds = array<i64: 48, 32>}, {pipeline_mode = #tpu.pipeline_mode<synchronous>, transform_indices = @transform_3, window_bounds = array<i64: 2, 32>}, {pipeline_mode = #tpu.pipeline_mode<synchronous>, transform_indices = @transform_4, window_bounds = array<i64: 2, 32>}, {pipeline_mode = #tpu.pipeline_mode<synchronous>, transform_indices = @transform_5, window_bounds = array<i64: 32, 16>}, {pipeline_mode = #tpu.pipeline_mode<synchronous>, transform_indices = @transform_6, window_bounds = array<i64: 2, 2, 32>}, {pipeline_mode = #tpu.pipeline_mode<synchronous>, transform_indices = @transform_7, window_bounds = array<i64: 2, 32, 96>}, {pipeline_mode = #tpu.pipeline_mode<synchronous>, transform_indices = @transform_8, window_bounds = array<i64: 2, 1, 96>}, {pipeline_mode = #tpu.pipeline_mode<synchronous>, transform_indices = @transform_9, window_bounds = array<i64: 2, 32, 32>}, {pipeline_mode = #tpu.pipeline_mode<synchronous>, transform_indices = @transform_10, window_bounds = array<i64: 2, 1, 32>}, {pipeline_mode = #tpu.pipeline_mode<synchronous>, transform_indices = @transform_11, window_bounds = array<i64: 2, 2, 32>}, {pipeline_mode = #tpu.pipeline_mode<synchronous>, transform_indices = @transform_12, window_bounds = array<i64: 2, 32, 128>}, {pipeline_mode = #tpu.pipeline_mode<synchronous>, transform_indices = @transform_13, window_bounds = array<i64: 2, 1, 128>}, {pipeline_mode = #tpu.pipeline_mode<synchronous>, transform_indices = @transform_14, window_bounds = array<i64: 2, 128, 32>}, {pipeline_mode = #tpu.pipeline_mode<synchronous>, transform_indices = @transform_15, window_bounds = array<i64: 2, 1, 32>}, {transform_indices = @transform_16, window_bounds = array<i64: 1, 4, 48>}]} {
    %c0 = arith.constant 0 : index
    %c0_0 = arith.constant 0 : index
    %0 = vector.load %arg2[%c0, %c0_0] : memref<96x32xf32, #tpu.memory_space<vmem>>, vector<96x32xf32>
    %c0_1 = arith.constant 0 : index
    %c0_2 = arith.constant 0 : index
    %1 = vector.load %arg1[%c0_1, %c0_2] : memref<96x48xf32, #tpu.memory_space<vmem>>, vector<96x48xf32>
    %c0_3 = arith.constant 0 : index
    %c0_4 = arith.constant 0 : index
    %2 = vector.load %arg3[%c0_3, %c0_4] : memref<48x32xbf16, #tpu.memory_space<vmem>>, vector<48x32xbf16>
    %3 = arith.truncf %1 : vector<96x48xf32> to vector<96x48xbf16>
    %cst = arith.constant dense<0.000000e+00> : vector<96x32xf32>
    %4 = tpu.matmul %3, %2, %cst {dimension_numbers = #tpu.dot_dimension_numbers<[1], [0], [0], [1], [0, 0, 1, 1], [], []>} : vector<96x48xbf16>, vector<48x32xbf16>, vector<96x32xf32> -> vector<96x32xf32>
    %5 = arith.addf %0, %4 : vector<96x32xf32>
    %c0_5 = arith.constant 0 : index
    %c0_6 = arith.constant 0 : index
    %6 = vector.load %arg4[%c0_5, %c0_6] : memref<2x32xf32, #tpu.memory_space<vmem>>, vector<2x32xf32>
    %7 = vector.extract_strided_slice %6 {offsets = [0, 0], sizes = [1, 32], strides = [1, 1]} : vector<2x32xf32> to vector<1x32xf32>
    %8 = vector.extract_strided_slice %6 {offsets = [1, 0], sizes = [1, 32], strides = [1, 1]} : vector<2x32xf32> to vector<1x32xf32>
    %cst_7 = arith.constant dense<0.000000e+00> : vector<96xf32>
    %9 = vector.multi_reduction <add>, %5, %cst_7 [1] : vector<96x32xf32> to vector<96xf32>
    %10 = vector.shape_cast %9 : vector<96xf32> to vector<96x1xf32>
    %cst_8 = arith.constant 3.200000e+01 : f32
    %11 = vector.broadcast %cst_8 : f32 to vector<96x1xf32>
    %12 = arith.divf %10, %11 : vector<96x1xf32>
    %13 = vector.broadcast %12 : vector<96x1xf32> to vector<96x32xf32>
    %14 = arith.subf %5, %13 : vector<96x32xf32>
    %15 = arith.mulf %14, %14 : vector<96x32xf32>
    %cst_9 = arith.constant dense<0.000000e+00> : vector<96xf32>
    %16 = vector.multi_reduction <add>, %15, %cst_9 [1] : vector<96x32xf32> to vector<96xf32>
    %17 = vector.shape_cast %16 : vector<96xf32> to vector<96x1xf32>
    %cst_10 = arith.constant 3.200000e+01 : f32
    %18 = vector.broadcast %cst_10 : f32 to vector<96x1xf32>
    %19 = arith.divf %17, %18 : vector<96x1xf32>
    %cst_11 = arith.constant 9.99999974E-6 : f32
    %20 = vector.broadcast %cst_11 : f32 to vector<96x1xf32>
    %21 = arith.addf %19, %20 : vector<96x1xf32>
    %22 = math.rsqrt %21 : vector<96x1xf32>
    %23 = vector.broadcast %22 : vector<96x1xf32> to vector<96x32xf32>
    %24 = arith.mulf %14, %23 : vector<96x32xf32>
    %25 = vector.broadcast %7 : vector<1x32xf32> to vector<96x32xf32>
    %26 = arith.mulf %24, %25 : vector<96x32xf32>
    %27 = vector.broadcast %8 : vector<1x32xf32> to vector<96x32xf32>
    %28 = arith.addf %26, %27 : vector<96x32xf32>
    %29 = tpu.iota {dimensions = array<i32: 2>} : vector<4x24x24xi32>
    %c17_i32 = arith.constant 17 : i32
    %30 = vector.broadcast %c17_i32 : i32 to vector<4x24x24xi32>
    %31 = arith.cmpi slt, %29, %30 : vector<4x24x24xi32>
    %c0_12 = arith.constant 0 : index
    %c0_13 = arith.constant 0 : index
    %c0_14 = arith.constant 0 : index
    %32 = vector.load %arg7[%c0_12, %c0_13, %c0_14] : memref<2x2x32xf32, #tpu.memory_space<vmem>>, vector<1x2x32xf32>
    %33 = vector.shape_cast %32 : vector<1x2x32xf32> to vector<2x32xf32>
    %34 = vector.extract_strided_slice %33 {offsets = [0, 0], sizes = [1, 32], strides = [1, 1]} : vector<2x32xf32> to vector<1x32xf32>
    %35 = vector.extract_strided_slice %33 {offsets = [1, 0], sizes = [1, 32], strides = [1, 1]} : vector<2x32xf32> to vector<1x32xf32>
    %cst_15 = arith.constant dense<0.000000e+00> : vector<96xf32>
    %36 = vector.multi_reduction <add>, %28, %cst_15 [1] : vector<96x32xf32> to vector<96xf32>
    %37 = vector.shape_cast %36 : vector<96xf32> to vector<96x1xf32>
    %cst_16 = arith.constant 3.200000e+01 : f32
    %38 = vector.broadcast %cst_16 : f32 to vector<96x1xf32>
    %39 = arith.divf %37, %38 : vector<96x1xf32>
    %40 = vector.broadcast %39 : vector<96x1xf32> to vector<96x32xf32>
    %41 = arith.subf %28, %40 : vector<96x32xf32>
    %42 = arith.mulf %41, %41 : vector<96x32xf32>
    %cst_17 = arith.constant dense<0.000000e+00> : vector<96xf32>
    %43 = vector.multi_reduction <add>, %42, %cst_17 [1] : vector<96x32xf32> to vector<96xf32>
    %44 = vector.shape_cast %43 : vector<96xf32> to vector<96x1xf32>
    %cst_18 = arith.constant 3.200000e+01 : f32
    %45 = vector.broadcast %cst_18 : f32 to vector<96x1xf32>
    %46 = arith.divf %44, %45 : vector<96x1xf32>
    %cst_19 = arith.constant 9.99999974E-6 : f32
    %47 = vector.broadcast %cst_19 : f32 to vector<96x1xf32>
    %48 = arith.addf %46, %47 : vector<96x1xf32>
    %49 = math.rsqrt %48 : vector<96x1xf32>
    %50 = vector.broadcast %49 : vector<96x1xf32> to vector<96x32xf32>
    %51 = arith.mulf %41, %50 : vector<96x32xf32>
    %52 = vector.broadcast %34 : vector<1x32xf32> to vector<96x32xf32>
    %53 = arith.mulf %51, %52 : vector<96x32xf32>
    %54 = vector.broadcast %35 : vector<1x32xf32> to vector<96x32xf32>
    %55 = arith.addf %53, %54 : vector<96x32xf32>
    %c0_20 = arith.constant 0 : index
    %c0_21 = arith.constant 0 : index
    %c0_22 = arith.constant 0 : index
    %56 = vector.load %arg8[%c0_20, %c0_21, %c0_22] : memref<2x32x96xbf16, #tpu.memory_space<vmem>>, vector<1x32x96xbf16>
    %57 = vector.shape_cast %56 : vector<1x32x96xbf16> to vector<32x96xbf16>
    %58 = arith.truncf %55 : vector<96x32xf32> to vector<96x32xbf16>
    %cst_23 = arith.constant dense<0.000000e+00> : vector<96x96xf32>
    %59 = tpu.matmul %58, %57, %cst_23 {dimension_numbers = #tpu.dot_dimension_numbers<[1], [0], [0], [1], [0, 0, 1, 1], [], []>} : vector<96x32xbf16>, vector<32x96xbf16>, vector<96x96xf32> -> vector<96x96xf32>
    %c0_24 = arith.constant 0 : index
    %c0_25 = arith.constant 0 : index
    %c0_26 = arith.constant 0 : index
    %60 = vector.load %arg9[%c0_24, %c0_25, %c0_26] : memref<2x1x96xf32, #tpu.memory_space<vmem>>, vector<1x1x96xf32>
    %61 = vector.shape_cast %60 : vector<1x1x96xf32> to vector<1x96xf32>
    %62 = vector.broadcast %61 : vector<1x96xf32> to vector<96x96xf32>
    %63 = arith.addf %59, %62 : vector<96x96xf32>
    %64 = vector.shape_cast %63 : vector<96x96xf32> to vector<4x24x96xf32>
    %65 = vector.extract_strided_slice %64 {offsets = [0, 0, 0], sizes = [4, 24, 8], strides = [1, 1, 1]} : vector<4x24x96xf32> to vector<4x24x8xf32>
    %66 = arith.truncf %65 : vector<4x24x8xf32> to vector<4x24x8xbf16>
    %67 = vector.extract_strided_slice %64 {offsets = [0, 0, 32], sizes = [4, 24, 8], strides = [1, 1, 1]} : vector<4x24x96xf32> to vector<4x24x8xf32>
    %68 = arith.truncf %67 : vector<4x24x8xf32> to vector<4x24x8xbf16>
    %69 = vector.extract_strided_slice %64 {offsets = [0, 0, 64], sizes = [4, 24, 8], strides = [1, 1, 1]} : vector<4x24x96xf32> to vector<4x24x8xf32>
    %70 = arith.truncf %69 : vector<4x24x8xf32> to vector<4x24x8xbf16>
    "tpu.trace_start"() <{level = 10 : i32, message = "bqd,bkd->bqk"}> : () -> ()
    %cst_27 = arith.constant dense<0.000000e+00> : vector<4x24x24xf32>
    %71 = tpu.matmul %66, %68, %cst_27 {dimension_numbers = #tpu.dot_dimension_numbers<[2], [2], [1], [1], [0, 0, 0, 1, 1, 1], [0], [0]>} : vector<4x24x8xbf16>, vector<4x24x8xbf16>, vector<4x24x24xf32> -> vector<4x24x24xf32>
    %cst_28 = arith.constant -1.000000e+30 : f32
    "tpu.trace_stop"() : () -> ()
    %72 = vector.broadcast %cst_28 : f32 to vector<4x24x24xf32>
    %73 = arith.select %31, %71, %72 : vector<4x24x24xi1>, vector<4x24x24xf32>
    %cst_29 = arith.constant dense<0xFF800000> : vector<4x24xf32>
    %74 = vector.multi_reduction <maximumf>, %73, %cst_29 [2] : vector<4x24x24xf32> to vector<4x24xf32>
    %75 = vector.shape_cast %74 : vector<4x24xf32> to vector<4x24x1xf32>
    %76 = vector.broadcast %75 : vector<4x24x1xf32> to vector<4x24x24xf32>
    %77 = arith.subf %73, %76 : vector<4x24x24xf32>
    %78 = math.exp %77 : vector<4x24x24xf32>
    %cst_30 = arith.constant dense<0.000000e+00> : vector<4x24xf32>
    %79 = vector.multi_reduction <add>, %78, %cst_30 [2] : vector<4x24x24xf32> to vector<4x24xf32>
    %80 = vector.shape_cast %79 : vector<4x24xf32> to vector<4x24x1xf32>
    %81 = tpu.reciprocal %80 {approx = true} : vector<4x24x1xf32> -> vector<4x24x1xf32>
    %82 = vector.broadcast %81 : vector<4x24x1xf32> to vector<4x24x24xf32>
    %83 = arith.mulf %78, %82 : vector<4x24x24xf32>
    %84 = arith.truncf %83 : vector<4x24x24xf32> to vector<4x24x24xbf16>
    "tpu.trace_start"() <{level = 10 : i32, message = "bqk,bkd->bqd"}> : () -> ()
    %cst_31 = arith.constant dense<0.000000e+00> : vector<4x24x8xf32>
    %85 = tpu.matmul %84, %70, %cst_31 {dimension_numbers = #tpu.dot_dimension_numbers<[2], [1], [1], [2], [0, 0, 0, 1, 1, 2], [0], [0]>} : vector<4x24x24xbf16>, vector<4x24x8xbf16>, vector<4x24x8xf32> -> vector<4x24x8xf32>
    "tpu.trace_stop"() : () -> ()
    %86 = vector.extract_strided_slice %64 {offsets = [0, 0, 8], sizes = [4, 24, 8], strides = [1, 1, 1]} : vector<4x24x96xf32> to vector<4x24x8xf32>
    %87 = arith.truncf %86 : vector<4x24x8xf32> to vector<4x24x8xbf16>
    %88 = vector.extract_strided_slice %64 {offsets = [0, 0, 40], sizes = [4, 24, 8], strides = [1, 1, 1]} : vector<4x24x96xf32> to vector<4x24x8xf32>
    %89 = arith.truncf %88 : vector<4x24x8xf32> to vector<4x24x8xbf16>
    %90 = vector.extract_strided_slice %64 {offsets = [0, 0, 72], sizes = [4, 24, 8], strides = [1, 1, 1]} : vector<4x24x96xf32> to vector<4x24x8xf32>
    %91 = arith.truncf %90 : vector<4x24x8xf32> to vector<4x24x8xbf16>
    "tpu.trace_start"() <{level = 10 : i32, message = "bqd,bkd->bqk"}> : () -> ()
    %cst_32 = arith.constant dense<0.000000e+00> : vector<4x24x24xf32>
    %92 = tpu.matmul %87, %89, %cst_32 {dimension_numbers = #tpu.dot_dimension_numbers<[2], [2], [1], [1], [0, 0, 0, 1, 1, 1], [0], [0]>} : vector<4x24x8xbf16>, vector<4x24x8xbf16>, vector<4x24x24xf32> -> vector<4x24x24xf32>
    %cst_33 = arith.constant -1.000000e+30 : f32
    "tpu.trace_stop"() : () -> ()
    %93 = vector.broadcast %cst_33 : f32 to vector<4x24x24xf32>
    %94 = arith.select %31, %92, %93 : vector<4x24x24xi1>, vector<4x24x24xf32>
    %cst_34 = arith.constant dense<0xFF800000> : vector<4x24xf32>
    %95 = vector.multi_reduction <maximumf>, %94, %cst_34 [2] : vector<4x24x24xf32> to vector<4x24xf32>
    %96 = vector.shape_cast %95 : vector<4x24xf32> to vector<4x24x1xf32>
    %97 = vector.broadcast %96 : vector<4x24x1xf32> to vector<4x24x24xf32>
    %98 = arith.subf %94, %97 : vector<4x24x24xf32>
    %99 = math.exp %98 : vector<4x24x24xf32>
    %cst_35 = arith.constant dense<0.000000e+00> : vector<4x24xf32>
    %100 = vector.multi_reduction <add>, %99, %cst_35 [2] : vector<4x24x24xf32> to vector<4x24xf32>
    %101 = vector.shape_cast %100 : vector<4x24xf32> to vector<4x24x1xf32>
    %102 = tpu.reciprocal %101 {approx = true} : vector<4x24x1xf32> -> vector<4x24x1xf32>
    %103 = vector.broadcast %102 : vector<4x24x1xf32> to vector<4x24x24xf32>
    %104 = arith.mulf %99, %103 : vector<4x24x24xf32>
    %105 = arith.truncf %104 : vector<4x24x24xf32> to vector<4x24x24xbf16>
    "tpu.trace_start"() <{level = 10 : i32, message = "bqk,bkd->bqd"}> : () -> ()
    %cst_36 = arith.constant dense<0.000000e+00> : vector<4x24x8xf32>
    %106 = tpu.matmul %105, %91, %cst_36 {dimension_numbers = #tpu.dot_dimension_numbers<[2], [1], [1], [2], [0, 0, 0, 1, 1, 2], [0], [0]>} : vector<4x24x24xbf16>, vector<4x24x8xbf16>, vector<4x24x8xf32> -> vector<4x24x8xf32>
    "tpu.trace_stop"() : () -> ()
    %107 = vector.extract_strided_slice %64 {offsets = [0, 0, 16], sizes = [4, 24, 8], strides = [1, 1, 1]} : vector<4x24x96xf32> to vector<4x24x8xf32>
    %108 = arith.truncf %107 : vector<4x24x8xf32> to vector<4x24x8xbf16>
    %109 = vector.extract_strided_slice %64 {offsets = [0, 0, 48], sizes = [4, 24, 8], strides = [1, 1, 1]} : vector<4x24x96xf32> to vector<4x24x8xf32>
    %110 = arith.truncf %109 : vector<4x24x8xf32> to vector<4x24x8xbf16>
    %111 = vector.extract_strided_slice %64 {offsets = [0, 0, 80], sizes = [4, 24, 8], strides = [1, 1, 1]} : vector<4x24x96xf32> to vector<4x24x8xf32>
    %112 = arith.truncf %111 : vector<4x24x8xf32> to vector<4x24x8xbf16>
    "tpu.trace_start"() <{level = 10 : i32, message = "bqd,bkd->bqk"}> : () -> ()
    %cst_37 = arith.constant dense<0.000000e+00> : vector<4x24x24xf32>
    %113 = tpu.matmul %108, %110, %cst_37 {dimension_numbers = #tpu.dot_dimension_numbers<[2], [2], [1], [1], [0, 0, 0, 1, 1, 1], [0], [0]>} : vector<4x24x8xbf16>, vector<4x24x8xbf16>, vector<4x24x24xf32> -> vector<4x24x24xf32>
    %cst_38 = arith.constant -1.000000e+30 : f32
    "tpu.trace_stop"() : () -> ()
    %114 = vector.broadcast %cst_38 : f32 to vector<4x24x24xf32>
    %115 = arith.select %31, %113, %114 : vector<4x24x24xi1>, vector<4x24x24xf32>
    %cst_39 = arith.constant dense<0xFF800000> : vector<4x24xf32>
    %116 = vector.multi_reduction <maximumf>, %115, %cst_39 [2] : vector<4x24x24xf32> to vector<4x24xf32>
    %117 = vector.shape_cast %116 : vector<4x24xf32> to vector<4x24x1xf32>
    %118 = vector.broadcast %117 : vector<4x24x1xf32> to vector<4x24x24xf32>
    %119 = arith.subf %115, %118 : vector<4x24x24xf32>
    %120 = math.exp %119 : vector<4x24x24xf32>
    %cst_40 = arith.constant dense<0.000000e+00> : vector<4x24xf32>
    %121 = vector.multi_reduction <add>, %120, %cst_40 [2] : vector<4x24x24xf32> to vector<4x24xf32>
    %122 = vector.shape_cast %121 : vector<4x24xf32> to vector<4x24x1xf32>
    %123 = tpu.reciprocal %122 {approx = true} : vector<4x24x1xf32> -> vector<4x24x1xf32>
    %124 = vector.broadcast %123 : vector<4x24x1xf32> to vector<4x24x24xf32>
    %125 = arith.mulf %120, %124 : vector<4x24x24xf32>
    %126 = arith.truncf %125 : vector<4x24x24xf32> to vector<4x24x24xbf16>
    "tpu.trace_start"() <{level = 10 : i32, message = "bqk,bkd->bqd"}> : () -> ()
    %cst_41 = arith.constant dense<0.000000e+00> : vector<4x24x8xf32>
    %127 = tpu.matmul %126, %112, %cst_41 {dimension_numbers = #tpu.dot_dimension_numbers<[2], [1], [1], [2], [0, 0, 0, 1, 1, 2], [0], [0]>} : vector<4x24x24xbf16>, vector<4x24x8xbf16>, vector<4x24x8xf32> -> vector<4x24x8xf32>
    "tpu.trace_stop"() : () -> ()
    %128 = vector.extract_strided_slice %64 {offsets = [0, 0, 24], sizes = [4, 24, 8], strides = [1, 1, 1]} : vector<4x24x96xf32> to vector<4x24x8xf32>
    %129 = arith.truncf %128 : vector<4x24x8xf32> to vector<4x24x8xbf16>
    %130 = vector.extract_strided_slice %64 {offsets = [0, 0, 56], sizes = [4, 24, 8], strides = [1, 1, 1]} : vector<4x24x96xf32> to vector<4x24x8xf32>
    %131 = arith.truncf %130 : vector<4x24x8xf32> to vector<4x24x8xbf16>
    %132 = vector.extract_strided_slice %64 {offsets = [0, 0, 88], sizes = [4, 24, 8], strides = [1, 1, 1]} : vector<4x24x96xf32> to vector<4x24x8xf32>
    %133 = arith.truncf %132 : vector<4x24x8xf32> to vector<4x24x8xbf16>
    "tpu.trace_start"() <{level = 10 : i32, message = "bqd,bkd->bqk"}> : () -> ()
    %cst_42 = arith.constant dense<0.000000e+00> : vector<4x24x24xf32>
    %134 = tpu.matmul %129, %131, %cst_42 {dimension_numbers = #tpu.dot_dimension_numbers<[2], [2], [1], [1], [0, 0, 0, 1, 1, 1], [0], [0]>} : vector<4x24x8xbf16>, vector<4x24x8xbf16>, vector<4x24x24xf32> -> vector<4x24x24xf32>
    %cst_43 = arith.constant -1.000000e+30 : f32
    "tpu.trace_stop"() : () -> ()
    %135 = vector.broadcast %cst_43 : f32 to vector<4x24x24xf32>
    %136 = arith.select %31, %134, %135 : vector<4x24x24xi1>, vector<4x24x24xf32>
    %cst_44 = arith.constant dense<0xFF800000> : vector<4x24xf32>
    %137 = vector.multi_reduction <maximumf>, %136, %cst_44 [2] : vector<4x24x24xf32> to vector<4x24xf32>
    %138 = vector.shape_cast %137 : vector<4x24xf32> to vector<4x24x1xf32>
    %139 = vector.broadcast %138 : vector<4x24x1xf32> to vector<4x24x24xf32>
    %140 = arith.subf %136, %139 : vector<4x24x24xf32>
    %141 = math.exp %140 : vector<4x24x24xf32>
    %cst_45 = arith.constant dense<0.000000e+00> : vector<4x24xf32>
    %142 = vector.multi_reduction <add>, %141, %cst_45 [2] : vector<4x24x24xf32> to vector<4x24xf32>
    %143 = vector.shape_cast %142 : vector<4x24xf32> to vector<4x24x1xf32>
    %144 = tpu.reciprocal %143 {approx = true} : vector<4x24x1xf32> -> vector<4x24x1xf32>
    %145 = vector.broadcast %144 : vector<4x24x1xf32> to vector<4x24x24xf32>
    %146 = arith.mulf %141, %145 : vector<4x24x24xf32>
    %147 = arith.truncf %146 : vector<4x24x24xf32> to vector<4x24x24xbf16>
    "tpu.trace_start"() <{level = 10 : i32, message = "bqk,bkd->bqd"}> : () -> ()
    %cst_46 = arith.constant dense<0.000000e+00> : vector<4x24x8xf32>
    %148 = tpu.matmul %147, %133, %cst_46 {dimension_numbers = #tpu.dot_dimension_numbers<[2], [1], [1], [2], [0, 0, 0, 1, 1, 2], [0], [0]>} : vector<4x24x24xbf16>, vector<4x24x8xbf16>, vector<4x24x8xf32> -> vector<4x24x8xf32>
    "tpu.trace_stop"() : () -> ()
    %149 = tpu.concatenate %85, %106, %127, %148 in 2 : vector<4x24x8xf32>, vector<4x24x8xf32>, vector<4x24x8xf32>, vector<4x24x8xf32> -> vector<4x24x32xf32>
    %150 = vector.shape_cast %149 : vector<4x24x32xf32> to vector<96x32xf32>
    %c0_47 = arith.constant 0 : index
    %c0_48 = arith.constant 0 : index
    %c0_49 = arith.constant 0 : index
    %151 = vector.load %arg10[%c0_47, %c0_48, %c0_49] : memref<2x32x32xbf16, #tpu.memory_space<vmem>>, vector<1x32x32xbf16>
    %152 = vector.shape_cast %151 : vector<1x32x32xbf16> to vector<32x32xbf16>
    %153 = arith.truncf %150 : vector<96x32xf32> to vector<96x32xbf16>
    %cst_50 = arith.constant dense<0.000000e+00> : vector<96x32xf32>
    %154 = tpu.matmul %153, %152, %cst_50 {dimension_numbers = #tpu.dot_dimension_numbers<[1], [0], [0], [1], [0, 0, 1, 1], [], []>} : vector<96x32xbf16>, vector<32x32xbf16>, vector<96x32xf32> -> vector<96x32xf32>
    %155 = arith.addf %28, %154 : vector<96x32xf32>
    %c0_51 = arith.constant 0 : index
    %c0_52 = arith.constant 0 : index
    %c0_53 = arith.constant 0 : index
    %156 = vector.load %arg11[%c0_51, %c0_52, %c0_53] : memref<2x1x32xf32, #tpu.memory_space<vmem>>, vector<1x1x32xf32>
    %157 = vector.shape_cast %156 : vector<1x1x32xf32> to vector<1x32xf32>
    %158 = vector.broadcast %157 : vector<1x32xf32> to vector<96x32xf32>
    %159 = arith.addf %155, %158 : vector<96x32xf32>
    %c0_54 = arith.constant 0 : index
    %c0_55 = arith.constant 0 : index
    %c0_56 = arith.constant 0 : index
    %160 = vector.load %arg12[%c0_54, %c0_55, %c0_56] : memref<2x2x32xf32, #tpu.memory_space<vmem>>, vector<1x2x32xf32>
    %161 = vector.shape_cast %160 : vector<1x2x32xf32> to vector<2x32xf32>
    %162 = vector.extract_strided_slice %161 {offsets = [0, 0], sizes = [1, 32], strides = [1, 1]} : vector<2x32xf32> to vector<1x32xf32>
    %163 = vector.extract_strided_slice %161 {offsets = [1, 0], sizes = [1, 32], strides = [1, 1]} : vector<2x32xf32> to vector<1x32xf32>
    %cst_57 = arith.constant dense<0.000000e+00> : vector<96xf32>
    %164 = vector.multi_reduction <add>, %159, %cst_57 [1] : vector<96x32xf32> to vector<96xf32>
    %165 = vector.shape_cast %164 : vector<96xf32> to vector<96x1xf32>
    %cst_58 = arith.constant 3.200000e+01 : f32
    %166 = vector.broadcast %cst_58 : f32 to vector<96x1xf32>
    %167 = arith.divf %165, %166 : vector<96x1xf32>
    %168 = vector.broadcast %167 : vector<96x1xf32> to vector<96x32xf32>
    %169 = arith.subf %159, %168 : vector<96x32xf32>
    %170 = arith.mulf %169, %169 : vector<96x32xf32>
    %cst_59 = arith.constant dense<0.000000e+00> : vector<96xf32>
    %171 = vector.multi_reduction <add>, %170, %cst_59 [1] : vector<96x32xf32> to vector<96xf32>
    %172 = vector.shape_cast %171 : vector<96xf32> to vector<96x1xf32>
    %cst_60 = arith.constant 3.200000e+01 : f32
    %173 = vector.broadcast %cst_60 : f32 to vector<96x1xf32>
    %174 = arith.divf %172, %173 : vector<96x1xf32>
    %cst_61 = arith.constant 9.99999974E-6 : f32
    %175 = vector.broadcast %cst_61 : f32 to vector<96x1xf32>
    %176 = arith.addf %174, %175 : vector<96x1xf32>
    %177 = math.rsqrt %176 : vector<96x1xf32>
    %178 = vector.broadcast %177 : vector<96x1xf32> to vector<96x32xf32>
    %179 = arith.mulf %169, %178 : vector<96x32xf32>
    %180 = vector.broadcast %162 : vector<1x32xf32> to vector<96x32xf32>
    %181 = arith.mulf %179, %180 : vector<96x32xf32>
    %182 = vector.broadcast %163 : vector<1x32xf32> to vector<96x32xf32>
    %183 = arith.addf %181, %182 : vector<96x32xf32>
    %c0_62 = arith.constant 0 : index
    %c0_63 = arith.constant 0 : index
    %c0_64 = arith.constant 0 : index
    %184 = vector.load %arg13[%c0_62, %c0_63, %c0_64] : memref<2x32x128xbf16, #tpu.memory_space<vmem>>, vector<1x32x128xbf16>
    %185 = vector.shape_cast %184 : vector<1x32x128xbf16> to vector<32x128xbf16>
    %186 = arith.truncf %183 : vector<96x32xf32> to vector<96x32xbf16>
    %cst_65 = arith.constant dense<0.000000e+00> : vector<96x128xf32>
    %187 = tpu.matmul %186, %185, %cst_65 {dimension_numbers = #tpu.dot_dimension_numbers<[1], [0], [0], [1], [0, 0, 1, 1], [], []>} : vector<96x32xbf16>, vector<32x128xbf16>, vector<96x128xf32> -> vector<96x128xf32>
    %c0_66 = arith.constant 0 : index
    %c0_67 = arith.constant 0 : index
    %c0_68 = arith.constant 0 : index
    %188 = vector.load %arg14[%c0_66, %c0_67, %c0_68] : memref<2x1x128xf32, #tpu.memory_space<vmem>>, vector<1x1x128xf32>
    %189 = vector.shape_cast %188 : vector<1x1x128xf32> to vector<1x128xf32>
    %190 = vector.broadcast %189 : vector<1x128xf32> to vector<96x128xf32>
    %191 = arith.addf %187, %190 : vector<96x128xf32>
    %cst_69 = arith.constant 1.702000e+00 : f32
    %192 = vector.broadcast %cst_69 : f32 to vector<96x128xf32>
    %193 = arith.mulf %192, %191 : vector<96x128xf32>
    %194 = arith.negf %193 : vector<96x128xf32>
    %195 = math.exp %194 : vector<96x128xf32>
    %cst_70 = arith.constant 1.000000e+00 : f32
    %196 = vector.broadcast %cst_70 : f32 to vector<96x128xf32>
    %197 = arith.addf %196, %195 : vector<96x128xf32>
    %198 = arith.divf %196, %197 : vector<96x128xf32>
    %199 = arith.mulf %191, %198 : vector<96x128xf32>
    %c0_71 = arith.constant 0 : index
    %c0_72 = arith.constant 0 : index
    %c0_73 = arith.constant 0 : index
    %200 = vector.load %arg15[%c0_71, %c0_72, %c0_73] : memref<2x128x32xbf16, #tpu.memory_space<vmem>>, vector<1x128x32xbf16>
    %201 = vector.shape_cast %200 : vector<1x128x32xbf16> to vector<128x32xbf16>
    %202 = arith.truncf %199 : vector<96x128xf32> to vector<96x128xbf16>
    %cst_74 = arith.constant dense<0.000000e+00> : vector<96x32xf32>
    %203 = tpu.matmul %202, %201, %cst_74 {dimension_numbers = #tpu.dot_dimension_numbers<[1], [0], [0], [1], [0, 0, 1, 1], [], []>} : vector<96x128xbf16>, vector<128x32xbf16>, vector<96x32xf32> -> vector<96x32xf32>
    %204 = arith.addf %159, %203 : vector<96x32xf32>
    %c0_75 = arith.constant 0 : index
    %c0_76 = arith.constant 0 : index
    %c0_77 = arith.constant 0 : index
    %205 = vector.load %arg16[%c0_75, %c0_76, %c0_77] : memref<2x1x32xf32, #tpu.memory_space<vmem>>, vector<1x1x32xf32>
    %206 = vector.shape_cast %205 : vector<1x1x32xf32> to vector<1x32xf32>
    %207 = vector.broadcast %206 : vector<1x32xf32> to vector<96x32xf32>
    %208 = arith.addf %204, %207 : vector<96x32xf32>
    %c1 = arith.constant 1 : index
    %c0_78 = arith.constant 0 : index
    %c0_79 = arith.constant 0 : index
    %209 = vector.load %arg7[%c1, %c0_78, %c0_79] : memref<2x2x32xf32, #tpu.memory_space<vmem>>, vector<1x2x32xf32>
    %210 = vector.shape_cast %209 : vector<1x2x32xf32> to vector<2x32xf32>
    %211 = vector.extract_strided_slice %210 {offsets = [0, 0], sizes = [1, 32], strides = [1, 1]} : vector<2x32xf32> to vector<1x32xf32>
    %212 = vector.extract_strided_slice %210 {offsets = [1, 0], sizes = [1, 32], strides = [1, 1]} : vector<2x32xf32> to vector<1x32xf32>
    %cst_80 = arith.constant dense<0.000000e+00> : vector<96xf32>
    %213 = vector.multi_reduction <add>, %208, %cst_80 [1] : vector<96x32xf32> to vector<96xf32>
    %214 = vector.shape_cast %213 : vector<96xf32> to vector<96x1xf32>
    %cst_81 = arith.constant 3.200000e+01 : f32
    %215 = vector.broadcast %cst_81 : f32 to vector<96x1xf32>
    %216 = arith.divf %214, %215 : vector<96x1xf32>
    %217 = vector.broadcast %216 : vector<96x1xf32> to vector<96x32xf32>
    %218 = arith.subf %208, %217 : vector<96x32xf32>
    %219 = arith.mulf %218, %218 : vector<96x32xf32>
    %cst_82 = arith.constant dense<0.000000e+00> : vector<96xf32>
    %220 = vector.multi_reduction <add>, %219, %cst_82 [1] : vector<96x32xf32> to vector<96xf32>
    %221 = vector.shape_cast %220 : vector<96xf32> to vector<96x1xf32>
    %cst_83 = arith.constant 3.200000e+01 : f32
    %222 = vector.broadcast %cst_83 : f32 to vector<96x1xf32>
    %223 = arith.divf %221, %222 : vector<96x1xf32>
    %cst_84 = arith.constant 9.99999974E-6 : f32
    %224 = vector.broadcast %cst_84 : f32 to vector<96x1xf32>
    %225 = arith.addf %223, %224 : vector<96x1xf32>
    %226 = math.rsqrt %225 : vector<96x1xf32>
    %227 = vector.broadcast %226 : vector<96x1xf32> to vector<96x32xf32>
    %228 = arith.mulf %218, %227 : vector<96x32xf32>
    %229 = vector.broadcast %211 : vector<1x32xf32> to vector<96x32xf32>
    %230 = arith.mulf %228, %229 : vector<96x32xf32>
    %231 = vector.broadcast %212 : vector<1x32xf32> to vector<96x32xf32>
    %232 = arith.addf %230, %231 : vector<96x32xf32>
    %c1_85 = arith.constant 1 : index
    %c0_86 = arith.constant 0 : index
    %c0_87 = arith.constant 0 : index
    %233 = vector.load %arg8[%c1_85, %c0_86, %c0_87] : memref<2x32x96xbf16, #tpu.memory_space<vmem>>, vector<1x32x96xbf16>
    %234 = vector.shape_cast %233 : vector<1x32x96xbf16> to vector<32x96xbf16>
    %235 = arith.truncf %232 : vector<96x32xf32> to vector<96x32xbf16>
    %cst_88 = arith.constant dense<0.000000e+00> : vector<96x96xf32>
    %236 = tpu.matmul %235, %234, %cst_88 {dimension_numbers = #tpu.dot_dimension_numbers<[1], [0], [0], [1], [0, 0, 1, 1], [], []>} : vector<96x32xbf16>, vector<32x96xbf16>, vector<96x96xf32> -> vector<96x96xf32>
    %c1_89 = arith.constant 1 : index
    %c0_90 = arith.constant 0 : index
    %c0_91 = arith.constant 0 : index
    %237 = vector.load %arg9[%c1_89, %c0_90, %c0_91] : memref<2x1x96xf32, #tpu.memory_space<vmem>>, vector<1x1x96xf32>
    %238 = vector.shape_cast %237 : vector<1x1x96xf32> to vector<1x96xf32>
    %239 = vector.broadcast %238 : vector<1x96xf32> to vector<96x96xf32>
    %240 = arith.addf %236, %239 : vector<96x96xf32>
    %241 = vector.shape_cast %240 : vector<96x96xf32> to vector<4x24x96xf32>
    %242 = vector.extract_strided_slice %241 {offsets = [0, 0, 0], sizes = [4, 24, 8], strides = [1, 1, 1]} : vector<4x24x96xf32> to vector<4x24x8xf32>
    %243 = arith.truncf %242 : vector<4x24x8xf32> to vector<4x24x8xbf16>
    %244 = vector.extract_strided_slice %241 {offsets = [0, 0, 32], sizes = [4, 24, 8], strides = [1, 1, 1]} : vector<4x24x96xf32> to vector<4x24x8xf32>
    %245 = arith.truncf %244 : vector<4x24x8xf32> to vector<4x24x8xbf16>
    %246 = vector.extract_strided_slice %241 {offsets = [0, 0, 64], sizes = [4, 24, 8], strides = [1, 1, 1]} : vector<4x24x96xf32> to vector<4x24x8xf32>
    %247 = arith.truncf %246 : vector<4x24x8xf32> to vector<4x24x8xbf16>
    "tpu.trace_start"() <{level = 10 : i32, message = "bqd,bkd->bqk"}> : () -> ()
    %cst_92 = arith.constant dense<0.000000e+00> : vector<4x24x24xf32>
    %248 = tpu.matmul %243, %245, %cst_92 {dimension_numbers = #tpu.dot_dimension_numbers<[2], [2], [1], [1], [0, 0, 0, 1, 1, 1], [0], [0]>} : vector<4x24x8xbf16>, vector<4x24x8xbf16>, vector<4x24x24xf32> -> vector<4x24x24xf32>
    %cst_93 = arith.constant -1.000000e+30 : f32
    "tpu.trace_stop"() : () -> ()
    %249 = vector.broadcast %cst_93 : f32 to vector<4x24x24xf32>
    %250 = arith.select %31, %248, %249 : vector<4x24x24xi1>, vector<4x24x24xf32>
    %cst_94 = arith.constant dense<0xFF800000> : vector<4x24xf32>
    %251 = vector.multi_reduction <maximumf>, %250, %cst_94 [2] : vector<4x24x24xf32> to vector<4x24xf32>
    %252 = vector.shape_cast %251 : vector<4x24xf32> to vector<4x24x1xf32>
    %253 = vector.broadcast %252 : vector<4x24x1xf32> to vector<4x24x24xf32>
    %254 = arith.subf %250, %253 : vector<4x24x24xf32>
    %255 = math.exp %254 : vector<4x24x24xf32>
    %cst_95 = arith.constant dense<0.000000e+00> : vector<4x24xf32>
    %256 = vector.multi_reduction <add>, %255, %cst_95 [2] : vector<4x24x24xf32> to vector<4x24xf32>
    %257 = vector.shape_cast %256 : vector<4x24xf32> to vector<4x24x1xf32>
    %258 = tpu.reciprocal %257 {approx = true} : vector<4x24x1xf32> -> vector<4x24x1xf32>
    %259 = vector.broadcast %258 : vector<4x24x1xf32> to vector<4x24x24xf32>
    %260 = arith.mulf %255, %259 : vector<4x24x24xf32>
    %261 = arith.truncf %260 : vector<4x24x24xf32> to vector<4x24x24xbf16>
    "tpu.trace_start"() <{level = 10 : i32, message = "bqk,bkd->bqd"}> : () -> ()
    %cst_96 = arith.constant dense<0.000000e+00> : vector<4x24x8xf32>
    %262 = tpu.matmul %261, %247, %cst_96 {dimension_numbers = #tpu.dot_dimension_numbers<[2], [1], [1], [2], [0, 0, 0, 1, 1, 2], [0], [0]>} : vector<4x24x24xbf16>, vector<4x24x8xbf16>, vector<4x24x8xf32> -> vector<4x24x8xf32>
    "tpu.trace_stop"() : () -> ()
    %263 = vector.extract_strided_slice %241 {offsets = [0, 0, 8], sizes = [4, 24, 8], strides = [1, 1, 1]} : vector<4x24x96xf32> to vector<4x24x8xf32>
    %264 = arith.truncf %263 : vector<4x24x8xf32> to vector<4x24x8xbf16>
    %265 = vector.extract_strided_slice %241 {offsets = [0, 0, 40], sizes = [4, 24, 8], strides = [1, 1, 1]} : vector<4x24x96xf32> to vector<4x24x8xf32>
    %266 = arith.truncf %265 : vector<4x24x8xf32> to vector<4x24x8xbf16>
    %267 = vector.extract_strided_slice %241 {offsets = [0, 0, 72], sizes = [4, 24, 8], strides = [1, 1, 1]} : vector<4x24x96xf32> to vector<4x24x8xf32>
    %268 = arith.truncf %267 : vector<4x24x8xf32> to vector<4x24x8xbf16>
    "tpu.trace_start"() <{level = 10 : i32, message = "bqd,bkd->bqk"}> : () -> ()
    %cst_97 = arith.constant dense<0.000000e+00> : vector<4x24x24xf32>
    %269 = tpu.matmul %264, %266, %cst_97 {dimension_numbers = #tpu.dot_dimension_numbers<[2], [2], [1], [1], [0, 0, 0, 1, 1, 1], [0], [0]>} : vector<4x24x8xbf16>, vector<4x24x8xbf16>, vector<4x24x24xf32> -> vector<4x24x24xf32>
    %cst_98 = arith.constant -1.000000e+30 : f32
    "tpu.trace_stop"() : () -> ()
    %270 = vector.broadcast %cst_98 : f32 to vector<4x24x24xf32>
    %271 = arith.select %31, %269, %270 : vector<4x24x24xi1>, vector<4x24x24xf32>
    %cst_99 = arith.constant dense<0xFF800000> : vector<4x24xf32>
    %272 = vector.multi_reduction <maximumf>, %271, %cst_99 [2] : vector<4x24x24xf32> to vector<4x24xf32>
    %273 = vector.shape_cast %272 : vector<4x24xf32> to vector<4x24x1xf32>
    %274 = vector.broadcast %273 : vector<4x24x1xf32> to vector<4x24x24xf32>
    %275 = arith.subf %271, %274 : vector<4x24x24xf32>
    %276 = math.exp %275 : vector<4x24x24xf32>
    %cst_100 = arith.constant dense<0.000000e+00> : vector<4x24xf32>
    %277 = vector.multi_reduction <add>, %276, %cst_100 [2] : vector<4x24x24xf32> to vector<4x24xf32>
    %278 = vector.shape_cast %277 : vector<4x24xf32> to vector<4x24x1xf32>
    %279 = tpu.reciprocal %278 {approx = true} : vector<4x24x1xf32> -> vector<4x24x1xf32>
    %280 = vector.broadcast %279 : vector<4x24x1xf32> to vector<4x24x24xf32>
    %281 = arith.mulf %276, %280 : vector<4x24x24xf32>
    %282 = arith.truncf %281 : vector<4x24x24xf32> to vector<4x24x24xbf16>
    "tpu.trace_start"() <{level = 10 : i32, message = "bqk,bkd->bqd"}> : () -> ()
    %cst_101 = arith.constant dense<0.000000e+00> : vector<4x24x8xf32>
    %283 = tpu.matmul %282, %268, %cst_101 {dimension_numbers = #tpu.dot_dimension_numbers<[2], [1], [1], [2], [0, 0, 0, 1, 1, 2], [0], [0]>} : vector<4x24x24xbf16>, vector<4x24x8xbf16>, vector<4x24x8xf32> -> vector<4x24x8xf32>
    "tpu.trace_stop"() : () -> ()
    %284 = vector.extract_strided_slice %241 {offsets = [0, 0, 16], sizes = [4, 24, 8], strides = [1, 1, 1]} : vector<4x24x96xf32> to vector<4x24x8xf32>
    %285 = arith.truncf %284 : vector<4x24x8xf32> to vector<4x24x8xbf16>
    %286 = vector.extract_strided_slice %241 {offsets = [0, 0, 48], sizes = [4, 24, 8], strides = [1, 1, 1]} : vector<4x24x96xf32> to vector<4x24x8xf32>
    %287 = arith.truncf %286 : vector<4x24x8xf32> to vector<4x24x8xbf16>
    %288 = vector.extract_strided_slice %241 {offsets = [0, 0, 80], sizes = [4, 24, 8], strides = [1, 1, 1]} : vector<4x24x96xf32> to vector<4x24x8xf32>
    %289 = arith.truncf %288 : vector<4x24x8xf32> to vector<4x24x8xbf16>
    "tpu.trace_start"() <{level = 10 : i32, message = "bqd,bkd->bqk"}> : () -> ()
    %cst_102 = arith.constant dense<0.000000e+00> : vector<4x24x24xf32>
    %290 = tpu.matmul %285, %287, %cst_102 {dimension_numbers = #tpu.dot_dimension_numbers<[2], [2], [1], [1], [0, 0, 0, 1, 1, 1], [0], [0]>} : vector<4x24x8xbf16>, vector<4x24x8xbf16>, vector<4x24x24xf32> -> vector<4x24x24xf32>
    %cst_103 = arith.constant -1.000000e+30 : f32
    "tpu.trace_stop"() : () -> ()
    %291 = vector.broadcast %cst_103 : f32 to vector<4x24x24xf32>
    %292 = arith.select %31, %290, %291 : vector<4x24x24xi1>, vector<4x24x24xf32>
    %cst_104 = arith.constant dense<0xFF800000> : vector<4x24xf32>
    %293 = vector.multi_reduction <maximumf>, %292, %cst_104 [2] : vector<4x24x24xf32> to vector<4x24xf32>
    %294 = vector.shape_cast %293 : vector<4x24xf32> to vector<4x24x1xf32>
    %295 = vector.broadcast %294 : vector<4x24x1xf32> to vector<4x24x24xf32>
    %296 = arith.subf %292, %295 : vector<4x24x24xf32>
    %297 = math.exp %296 : vector<4x24x24xf32>
    %cst_105 = arith.constant dense<0.000000e+00> : vector<4x24xf32>
    %298 = vector.multi_reduction <add>, %297, %cst_105 [2] : vector<4x24x24xf32> to vector<4x24xf32>
    %299 = vector.shape_cast %298 : vector<4x24xf32> to vector<4x24x1xf32>
    %300 = tpu.reciprocal %299 {approx = true} : vector<4x24x1xf32> -> vector<4x24x1xf32>
    %301 = vector.broadcast %300 : vector<4x24x1xf32> to vector<4x24x24xf32>
    %302 = arith.mulf %297, %301 : vector<4x24x24xf32>
    %303 = arith.truncf %302 : vector<4x24x24xf32> to vector<4x24x24xbf16>
    "tpu.trace_start"() <{level = 10 : i32, message = "bqk,bkd->bqd"}> : () -> ()
    %cst_106 = arith.constant dense<0.000000e+00> : vector<4x24x8xf32>
    %304 = tpu.matmul %303, %289, %cst_106 {dimension_numbers = #tpu.dot_dimension_numbers<[2], [1], [1], [2], [0, 0, 0, 1, 1, 2], [0], [0]>} : vector<4x24x24xbf16>, vector<4x24x8xbf16>, vector<4x24x8xf32> -> vector<4x24x8xf32>
    "tpu.trace_stop"() : () -> ()
    %305 = vector.extract_strided_slice %241 {offsets = [0, 0, 24], sizes = [4, 24, 8], strides = [1, 1, 1]} : vector<4x24x96xf32> to vector<4x24x8xf32>
    %306 = arith.truncf %305 : vector<4x24x8xf32> to vector<4x24x8xbf16>
    %307 = vector.extract_strided_slice %241 {offsets = [0, 0, 56], sizes = [4, 24, 8], strides = [1, 1, 1]} : vector<4x24x96xf32> to vector<4x24x8xf32>
    %308 = arith.truncf %307 : vector<4x24x8xf32> to vector<4x24x8xbf16>
    %309 = vector.extract_strided_slice %241 {offsets = [0, 0, 88], sizes = [4, 24, 8], strides = [1, 1, 1]} : vector<4x24x96xf32> to vector<4x24x8xf32>
    %310 = arith.truncf %309 : vector<4x24x8xf32> to vector<4x24x8xbf16>
    "tpu.trace_start"() <{level = 10 : i32, message = "bqd,bkd->bqk"}> : () -> ()
    %cst_107 = arith.constant dense<0.000000e+00> : vector<4x24x24xf32>
    %311 = tpu.matmul %306, %308, %cst_107 {dimension_numbers = #tpu.dot_dimension_numbers<[2], [2], [1], [1], [0, 0, 0, 1, 1, 1], [0], [0]>} : vector<4x24x8xbf16>, vector<4x24x8xbf16>, vector<4x24x24xf32> -> vector<4x24x24xf32>
    %cst_108 = arith.constant -1.000000e+30 : f32
    "tpu.trace_stop"() : () -> ()
    %312 = vector.broadcast %cst_108 : f32 to vector<4x24x24xf32>
    %313 = arith.select %31, %311, %312 : vector<4x24x24xi1>, vector<4x24x24xf32>
    %cst_109 = arith.constant dense<0xFF800000> : vector<4x24xf32>
    %314 = vector.multi_reduction <maximumf>, %313, %cst_109 [2] : vector<4x24x24xf32> to vector<4x24xf32>
    %315 = vector.shape_cast %314 : vector<4x24xf32> to vector<4x24x1xf32>
    %316 = vector.broadcast %315 : vector<4x24x1xf32> to vector<4x24x24xf32>
    %317 = arith.subf %313, %316 : vector<4x24x24xf32>
    %318 = math.exp %317 : vector<4x24x24xf32>
    %cst_110 = arith.constant dense<0.000000e+00> : vector<4x24xf32>
    %319 = vector.multi_reduction <add>, %318, %cst_110 [2] : vector<4x24x24xf32> to vector<4x24xf32>
    %320 = vector.shape_cast %319 : vector<4x24xf32> to vector<4x24x1xf32>
    %321 = tpu.reciprocal %320 {approx = true} : vector<4x24x1xf32> -> vector<4x24x1xf32>
    %322 = vector.broadcast %321 : vector<4x24x1xf32> to vector<4x24x24xf32>
    %323 = arith.mulf %318, %322 : vector<4x24x24xf32>
    %324 = arith.truncf %323 : vector<4x24x24xf32> to vector<4x24x24xbf16>
    "tpu.trace_start"() <{level = 10 : i32, message = "bqk,bkd->bqd"}> : () -> ()
    %cst_111 = arith.constant dense<0.000000e+00> : vector<4x24x8xf32>
    %325 = tpu.matmul %324, %310, %cst_111 {dimension_numbers = #tpu.dot_dimension_numbers<[2], [1], [1], [2], [0, 0, 0, 1, 1, 2], [0], [0]>} : vector<4x24x24xbf16>, vector<4x24x8xbf16>, vector<4x24x8xf32> -> vector<4x24x8xf32>
    "tpu.trace_stop"() : () -> ()
    %326 = tpu.concatenate %262, %283, %304, %325 in 2 : vector<4x24x8xf32>, vector<4x24x8xf32>, vector<4x24x8xf32>, vector<4x24x8xf32> -> vector<4x24x32xf32>
    %327 = vector.shape_cast %326 : vector<4x24x32xf32> to vector<96x32xf32>
    %c1_112 = arith.constant 1 : index
    %c0_113 = arith.constant 0 : index
    %c0_114 = arith.constant 0 : index
    %328 = vector.load %arg10[%c1_112, %c0_113, %c0_114] : memref<2x32x32xbf16, #tpu.memory_space<vmem>>, vector<1x32x32xbf16>
    %329 = vector.shape_cast %328 : vector<1x32x32xbf16> to vector<32x32xbf16>
    %330 = arith.truncf %327 : vector<96x32xf32> to vector<96x32xbf16>
    %cst_115 = arith.constant dense<0.000000e+00> : vector<96x32xf32>
    %331 = tpu.matmul %330, %329, %cst_115 {dimension_numbers = #tpu.dot_dimension_numbers<[1], [0], [0], [1], [0, 0, 1, 1], [], []>} : vector<96x32xbf16>, vector<32x32xbf16>, vector<96x32xf32> -> vector<96x32xf32>
    %332 = arith.addf %208, %331 : vector<96x32xf32>
    %c1_116 = arith.constant 1 : index
    %c0_117 = arith.constant 0 : index
    %c0_118 = arith.constant 0 : index
    %333 = vector.load %arg11[%c1_116, %c0_117, %c0_118] : memref<2x1x32xf32, #tpu.memory_space<vmem>>, vector<1x1x32xf32>
    %334 = vector.shape_cast %333 : vector<1x1x32xf32> to vector<1x32xf32>
    %335 = vector.broadcast %334 : vector<1x32xf32> to vector<96x32xf32>
    %336 = arith.addf %332, %335 : vector<96x32xf32>
    %337 = vector.shape_cast %336 : vector<96x32xf32> to vector<4x24x32xf32>
    %338 = vector.extract_strided_slice %337 {offsets = [0, 0, 0], sizes = [4, 1, 32], strides = [1, 1, 1]} : vector<4x24x32xf32> to vector<4x1x32xf32>
    %339 = vector.shape_cast %338 : vector<4x1x32xf32> to vector<4x32xf32>
    %c1_119 = arith.constant 1 : index
    %c0_120 = arith.constant 0 : index
    %c0_121 = arith.constant 0 : index
    %340 = vector.load %arg12[%c1_119, %c0_120, %c0_121] : memref<2x2x32xf32, #tpu.memory_space<vmem>>, vector<1x2x32xf32>
    %341 = vector.shape_cast %340 : vector<1x2x32xf32> to vector<2x32xf32>
    %342 = vector.extract_strided_slice %341 {offsets = [0, 0], sizes = [1, 32], strides = [1, 1]} : vector<2x32xf32> to vector<1x32xf32>
    %343 = vector.extract_strided_slice %341 {offsets = [1, 0], sizes = [1, 32], strides = [1, 1]} : vector<2x32xf32> to vector<1x32xf32>
    %cst_122 = arith.constant dense<0.000000e+00> : vector<4xf32>
    %344 = vector.multi_reduction <add>, %339, %cst_122 [1] : vector<4x32xf32> to vector<4xf32>
    %345 = vector.shape_cast %344 : vector<4xf32> to vector<4x1xf32>
    %cst_123 = arith.constant 3.200000e+01 : f32
    %346 = vector.broadcast %cst_123 : f32 to vector<4x1xf32>
    %347 = arith.divf %345, %346 : vector<4x1xf32>
    %348 = vector.broadcast %347 : vector<4x1xf32> to vector<4x32xf32>
    %349 = arith.subf %339, %348 : vector<4x32xf32>
    %350 = arith.mulf %349, %349 : vector<4x32xf32>
    %cst_124 = arith.constant dense<0.000000e+00> : vector<4xf32>
    %351 = vector.multi_reduction <add>, %350, %cst_124 [1] : vector<4x32xf32> to vector<4xf32>
    %352 = vector.shape_cast %351 : vector<4xf32> to vector<4x1xf32>
    %cst_125 = arith.constant 3.200000e+01 : f32
    %353 = vector.broadcast %cst_125 : f32 to vector<4x1xf32>
    %354 = arith.divf %352, %353 : vector<4x1xf32>
    %cst_126 = arith.constant 9.99999974E-6 : f32
    %355 = vector.broadcast %cst_126 : f32 to vector<4x1xf32>
    %356 = arith.addf %354, %355 : vector<4x1xf32>
    %357 = math.rsqrt %356 : vector<4x1xf32>
    %358 = vector.broadcast %357 : vector<4x1xf32> to vector<4x32xf32>
    %359 = arith.mulf %349, %358 : vector<4x32xf32>
    %360 = vector.broadcast %342 : vector<1x32xf32> to vector<4x32xf32>
    %361 = arith.mulf %359, %360 : vector<4x32xf32>
    %362 = vector.broadcast %343 : vector<1x32xf32> to vector<4x32xf32>
    %363 = arith.addf %361, %362 : vector<4x32xf32>
    %c1_127 = arith.constant 1 : index
    %c0_128 = arith.constant 0 : index
    %c0_129 = arith.constant 0 : index
    %364 = vector.load %arg13[%c1_127, %c0_128, %c0_129] : memref<2x32x128xbf16, #tpu.memory_space<vmem>>, vector<1x32x128xbf16>
    %365 = vector.shape_cast %364 : vector<1x32x128xbf16> to vector<32x128xbf16>
    %366 = arith.truncf %363 : vector<4x32xf32> to vector<4x32xbf16>
    %cst_130 = arith.constant dense<0.000000e+00> : vector<4x128xf32>
    %367 = tpu.matmul %366, %365, %cst_130 {dimension_numbers = #tpu.dot_dimension_numbers<[1], [0], [0], [1], [0, 0, 1, 1], [], []>} : vector<4x32xbf16>, vector<32x128xbf16>, vector<4x128xf32> -> vector<4x128xf32>
    %c1_131 = arith.constant 1 : index
    %c0_132 = arith.constant 0 : index
    %c0_133 = arith.constant 0 : index
    %368 = vector.load %arg14[%c1_131, %c0_132, %c0_133] : memref<2x1x128xf32, #tpu.memory_space<vmem>>, vector<1x1x128xf32>
    %369 = vector.shape_cast %368 : vector<1x1x128xf32> to vector<1x128xf32>
    %370 = vector.broadcast %369 : vector<1x128xf32> to vector<4x128xf32>
    %371 = arith.addf %367, %370 : vector<4x128xf32>
    %cst_134 = arith.constant 1.702000e+00 : f32
    %372 = vector.broadcast %cst_134 : f32 to vector<4x128xf32>
    %373 = arith.mulf %372, %371 : vector<4x128xf32>
    %374 = arith.negf %373 : vector<4x128xf32>
    %375 = math.exp %374 : vector<4x128xf32>
    %cst_135 = arith.constant 1.000000e+00 : f32
    %376 = vector.broadcast %cst_135 : f32 to vector<4x128xf32>
    %377 = arith.addf %376, %375 : vector<4x128xf32>
    %378 = arith.divf %376, %377 : vector<4x128xf32>
    %379 = arith.mulf %371, %378 : vector<4x128xf32>
    %c1_136 = arith.constant 1 : index
    %c0_137 = arith.constant 0 : index
    %c0_138 = arith.constant 0 : index
    %380 = vector.load %arg15[%c1_136, %c0_137, %c0_138] : memref<2x128x32xbf16, #tpu.memory_space<vmem>>, vector<1x128x32xbf16>
    %381 = vector.shape_cast %380 : vector<1x128x32xbf16> to vector<128x32xbf16>
    %382 = arith.truncf %379 : vector<4x128xf32> to vector<4x128xbf16>
    %cst_139 = arith.constant dense<0.000000e+00> : vector<4x32xf32>
    %383 = tpu.matmul %382, %381, %cst_139 {dimension_numbers = #tpu.dot_dimension_numbers<[1], [0], [0], [1], [0, 0, 1, 1], [], []>} : vector<4x128xbf16>, vector<128x32xbf16>, vector<4x32xf32> -> vector<4x32xf32>
    %384 = arith.addf %339, %383 : vector<4x32xf32>
    %c1_140 = arith.constant 1 : index
    %c0_141 = arith.constant 0 : index
    %c0_142 = arith.constant 0 : index
    %385 = vector.load %arg16[%c1_140, %c0_141, %c0_142] : memref<2x1x32xf32, #tpu.memory_space<vmem>>, vector<1x1x32xf32>
    %386 = vector.shape_cast %385 : vector<1x1x32xf32> to vector<1x32xf32>
    %387 = vector.broadcast %386 : vector<1x32xf32> to vector<4x32xf32>
    %388 = arith.addf %384, %387 : vector<4x32xf32>
    %c0_143 = arith.constant 0 : index
    %c0_144 = arith.constant 0 : index
    %389 = vector.load %arg5[%c0_143, %c0_144] : memref<2x32xf32, #tpu.memory_space<vmem>>, vector<2x32xf32>
    %390 = vector.extract_strided_slice %389 {offsets = [0, 0], sizes = [1, 32], strides = [1, 1]} : vector<2x32xf32> to vector<1x32xf32>
    %391 = vector.extract_strided_slice %389 {offsets = [1, 0], sizes = [1, 32], strides = [1, 1]} : vector<2x32xf32> to vector<1x32xf32>
    %cst_145 = arith.constant dense<0.000000e+00> : vector<4xf32>
    %392 = vector.multi_reduction <add>, %388, %cst_145 [1] : vector<4x32xf32> to vector<4xf32>
    %393 = vector.shape_cast %392 : vector<4xf32> to vector<4x1xf32>
    %cst_146 = arith.constant 3.200000e+01 : f32
    %394 = vector.broadcast %cst_146 : f32 to vector<4x1xf32>
    %395 = arith.divf %393, %394 : vector<4x1xf32>
    %396 = vector.broadcast %395 : vector<4x1xf32> to vector<4x32xf32>
    %397 = arith.subf %388, %396 : vector<4x32xf32>
    %398 = arith.mulf %397, %397 : vector<4x32xf32>
    %cst_147 = arith.constant dense<0.000000e+00> : vector<4xf32>
    %399 = vector.multi_reduction <add>, %398, %cst_147 [1] : vector<4x32xf32> to vector<4xf32>
    %400 = vector.shape_cast %399 : vector<4xf32> to vector<4x1xf32>
    %cst_148 = arith.constant 3.200000e+01 : f32
    %401 = vector.broadcast %cst_148 : f32 to vector<4x1xf32>
    %402 = arith.divf %400, %401 : vector<4x1xf32>
    %cst_149 = arith.constant 9.99999974E-6 : f32
    %403 = vector.broadcast %cst_149 : f32 to vector<4x1xf32>
    %404 = arith.addf %402, %403 : vector<4x1xf32>
    %405 = math.rsqrt %404 : vector<4x1xf32>
    %406 = vector.broadcast %405 : vector<4x1xf32> to vector<4x32xf32>
    %407 = arith.mulf %397, %406 : vector<4x32xf32>
    %408 = vector.broadcast %390 : vector<1x32xf32> to vector<4x32xf32>
    %409 = arith.mulf %407, %408 : vector<4x32xf32>
    %410 = vector.broadcast %391 : vector<1x32xf32> to vector<4x32xf32>
    %411 = arith.addf %409, %410 : vector<4x32xf32>
    %c0_150 = arith.constant 0 : index
    %c0_151 = arith.constant 0 : index
    %412 = vector.load %arg6[%c0_150, %c0_151] : memref<32x16xbf16, #tpu.memory_space<vmem>>, vector<32x16xbf16>
    %413 = arith.truncf %411 : vector<4x32xf32> to vector<4x32xbf16>
    %cst_152 = arith.constant dense<0.000000e+00> : vector<4x16xf32>
    %414 = tpu.matmul %413, %412, %cst_152 {dimension_numbers = #tpu.dot_dimension_numbers<[1], [0], [0], [1], [0, 0, 1, 1], [], []>} : vector<4x32xbf16>, vector<32x16xbf16>, vector<4x16xf32> -> vector<4x16xf32>
    %415 = tpu.concatenate %388, %414 in 1 : vector<4x32xf32>, vector<4x16xf32> -> vector<4x48xf32>
    %c0_153 = arith.constant 0 : index
    %c0_154 = arith.constant 0 : index
    %c0_155 = arith.constant 0 : index
    %416 = vector.load %arg17[%c0_153, %c0_154, %c0_155] : memref<1x4x48xf32, #tpu.memory_space<vmem>>, vector<1x4x48xf32>
    %417 = vector.shape_cast %416 : vector<1x4x48xf32> to vector<4x48xf32>
    %418 = vector.shape_cast %415 : vector<4x48xf32> to vector<1x4x48xf32>
    tpu.vector_store %arg17[%c0_153, %c0_154, %c0_155], %418 {strides = array<i32>} : memref<1x4x48xf32, #tpu.memory_space<vmem>>, vector<1x4x48xf32>,
    return
  }
  func.func @transform_0(%arg0: i32) -> (i32, i32) {
    %c0_i32 = arith.constant 0 : i32
    %c0_i32_0 = arith.constant 0 : i32
    return %arg0, %c0_i32 : i32, i32
  }
  func.func @transform_1(%arg0: i32) -> (i32, i32) {
    %c0_i32 = arith.constant 0 : i32
    %c0_i32_0 = arith.constant 0 : i32
    %c0_i32_1 = arith.constant 0 : i32
    return %c0_i32, %c0_i32_0 : i32, i32
  }
  func.func @transform_2(%arg0: i32) -> (i32, i32) {
    %c0_i32 = arith.constant 0 : i32
    %c0_i32_0 = arith.constant 0 : i32
    %c0_i32_1 = arith.constant 0 : i32
    return %c0_i32, %c0_i32_0 : i32, i32
  }
  func.func @transform_3(%arg0: i32) -> (i32, i32) {
    %c0_i32 = arith.constant 0 : i32
    %c0_i32_0 = arith.constant 0 : i32
    %c0_i32_1 = arith.constant 0 : i32
    return %c0_i32, %c0_i32_0 : i32, i32
  }
  func.func @transform_4(%arg0: i32) -> (i32, i32) {
    %c0_i32 = arith.constant 0 : i32
    %c0_i32_0 = arith.constant 0 : i32
    %c0_i32_1 = arith.constant 0 : i32
    return %c0_i32, %c0_i32_0 : i32, i32
  }
  func.func @transform_5(%arg0: i32) -> (i32, i32) {
    %c0_i32 = arith.constant 0 : i32
    %c0_i32_0 = arith.constant 0 : i32
    %c0_i32_1 = arith.constant 0 : i32
    return %c0_i32, %c0_i32_0 : i32, i32
  }
  func.func @transform_6(%arg0: i32) -> (i32, i32, i32) {
    %c0_i32 = arith.constant 0 : i32
    %c0_i32_0 = arith.constant 0 : i32
    %c0_i32_1 = arith.constant 0 : i32
    %c0_i32_2 = arith.constant 0 : i32
    return %c0_i32, %c0_i32_0, %c0_i32_1 : i32, i32, i32
  }
  func.func @transform_7(%arg0: i32) -> (i32, i32, i32) {
    %c0_i32 = arith.constant 0 : i32
    %c0_i32_0 = arith.constant 0 : i32
    %c0_i32_1 = arith.constant 0 : i32
    %c0_i32_2 = arith.constant 0 : i32
    return %c0_i32, %c0_i32_0, %c0_i32_1 : i32, i32, i32
  }
  func.func @transform_8(%arg0: i32) -> (i32, i32, i32) {
    %c0_i32 = arith.constant 0 : i32
    %c0_i32_0 = arith.constant 0 : i32
    %c0_i32_1 = arith.constant 0 : i32
    %c0_i32_2 = arith.constant 0 : i32
    return %c0_i32, %c0_i32_0, %c0_i32_1 : i32, i32, i32
  }
  func.func @transform_9(%arg0: i32) -> (i32, i32, i32) {
    %c0_i32 = arith.constant 0 : i32
    %c0_i32_0 = arith.constant 0 : i32
    %c0_i32_1 = arith.constant 0 : i32
    %c0_i32_2 = arith.constant 0 : i32
    return %c0_i32, %c0_i32_0, %c0_i32_1 : i32, i32, i32
  }
  func.func @transform_10(%arg0: i32) -> (i32, i32, i32) {
    %c0_i32 = arith.constant 0 : i32
    %c0_i32_0 = arith.constant 0 : i32
    %c0_i32_1 = arith.constant 0 : i32
    %c0_i32_2 = arith.constant 0 : i32
    return %c0_i32, %c0_i32_0, %c0_i32_1 : i32, i32, i32
  }
  func.func @transform_11(%arg0: i32) -> (i32, i32, i32) {
    %c0_i32 = arith.constant 0 : i32
    %c0_i32_0 = arith.constant 0 : i32
    %c0_i32_1 = arith.constant 0 : i32
    %c0_i32_2 = arith.constant 0 : i32
    return %c0_i32, %c0_i32_0, %c0_i32_1 : i32, i32, i32
  }
  func.func @transform_12(%arg0: i32) -> (i32, i32, i32) {
    %c0_i32 = arith.constant 0 : i32
    %c0_i32_0 = arith.constant 0 : i32
    %c0_i32_1 = arith.constant 0 : i32
    %c0_i32_2 = arith.constant 0 : i32
    return %c0_i32, %c0_i32_0, %c0_i32_1 : i32, i32, i32
  }
  func.func @transform_13(%arg0: i32) -> (i32, i32, i32) {
    %c0_i32 = arith.constant 0 : i32
    %c0_i32_0 = arith.constant 0 : i32
    %c0_i32_1 = arith.constant 0 : i32
    %c0_i32_2 = arith.constant 0 : i32
    return %c0_i32, %c0_i32_0, %c0_i32_1 : i32, i32, i32
  }
  func.func @transform_14(%arg0: i32) -> (i32, i32, i32) {
    %c0_i32 = arith.constant 0 : i32
    %c0_i32_0 = arith.constant 0 : i32
    %c0_i32_1 = arith.constant 0 : i32
    %c0_i32_2 = arith.constant 0 : i32
    return %c0_i32, %c0_i32_0, %c0_i32_1 : i32, i32, i32
  }
  func.func @transform_15(%arg0: i32) -> (i32, i32, i32) {
    %c0_i32 = arith.constant 0 : i32
    %c0_i32_0 = arith.constant 0 : i32
    %c0_i32_1 = arith.constant 0 : i32
    %c0_i32_2 = arith.constant 0 : i32
    return %c0_i32, %c0_i32_0, %c0_i32_1 : i32, i32, i32
  }
  func.func @transform_16(%arg0: i32) -> (i32, i32, i32) {
    %c0_i32 = arith.constant 0 : i32
    %c0_i32_0 = arith.constant 0 : i32
    %c0_i32_1 = arith.constant 0 : i32
    return %arg0, %c0_i32, %c0_i32_0 : i32, i32, i32
  }
}

</mosaic_0001>

<llo_original>
// kernel: vision_transformer_forward.1
$region0: #{vision_transformer_forward.1}
  #allocation0 [shape = 'u32[]', space=smem, size = 0x4, offset = 0x4, fixed_abs, tag = 'smem constant byte address 0x4 - core index']
  #allocation1 [shape = 'u32[144,128]{1,0:T(1,128)}', space=vmem, size = 0x12000, scoped, tag = 'internal scratch']
  %s0 = inlined_call_operand.vmem [shape: f32[192,48], index: 0, kind: input, shape index: {}]
  %s1 = inlined_call_operand.vmem [shape: f32[96,32], index: 1, kind: input, shape index: {}]
  %s2 = inlined_call_operand.vmem [shape: bf16[48,32], index: 2, kind: input, shape index: {}]
  %s3 = inlined_call_operand.vmem [shape: f32[2,32], index: 3, kind: input, shape index: {}]
  %s4 = inlined_call_operand.vmem [shape: f32[2,32], index: 4, kind: input, shape index: {}]
  %s5 = inlined_call_operand.vmem [shape: bf16[32,16], index: 5, kind: input, shape index: {}]
  %s6 = inlined_call_operand.vmem [shape: f32[2,2,32], index: 6, kind: input, shape index: {}]
  %s7 = inlined_call_operand.vmem [shape: bf16[2,32,96], index: 7, kind: input, shape index: {}]
  %s8 = inlined_call_operand.vmem [shape: f32[2,1,96], index: 8, kind: input, shape index: {}]
  %s9 = inlined_call_operand.vmem [shape: bf16[2,32,32], index: 9, kind: input, shape index: {}]
  %s10 = inlined_call_operand.vmem [shape: f32[2,1,32], index: 10, kind: input, shape index: {}]
  %s11 = inlined_call_operand.vmem [shape: f32[2,2,32], index: 11, kind: input, shape index: {}]
  %s12 = inlined_call_operand.vmem [shape: bf16[2,32,128], index: 12, kind: input, shape index: {}]
  %s13 = inlined_call_operand.vmem [shape: f32[2,1,128], index: 13, kind: input, shape index: {}]
  %s14 = inlined_call_operand.vmem [shape: bf16[2,128,32], index: 14, kind: input, shape index: {}]
  %s15 = inlined_call_operand.vmem [shape: f32[2,1,32], index: 15, kind: input, shape index: {}]
  %s16 = inlined_call_operand.vmem [shape: f32[2,4,48], index: 16, kind: output, shape index: {}]
  %s17 = sld [smem:[#allocation0]]
  $region97: #{vision_transformer_forward.1} parent=0
    _
  %s19 = ssub.s32 1, %s17
  %s20 = scalar_select 0, %s19, %s17
  loop: start=0, step=1, limit=4
  $region2: #{vision_transformer_forward.1} parent=0 // loop_pre_header
    _
  $region3: #{vision_transformer_forward.1} parent=0 // loop_header
    %s22 = sphi 0, %s26
    %p23 = scmp.ge.s32.totalorder %s22, 4
    %s32 = sphi 0, %s34
    %s35 = sphi 0, %s32
    %s36 = sphi 0, %s35
    %s52 = sphi 0, %s36
    %s56 = sphi 0, %s56
    %s58 = sphi 0, %s56
    %s59 = sphi 0, %s58
    %s73 = sphi 0, %s59
    %s77 = sphi 0, %s77
    %s79 = sphi 0, %s77
    %s80 = sphi 0, %s79
    %s94 = sphi 0, %s80
    %s98 = sphi 0, %s98
    %s100 = sphi 0, %s98
    %s101 = sphi 0, %s100
    %s115 = sphi 0, %s101
    %s119 = sphi 0, %s119
    %s121 = sphi 0, %s119
    %s122 = sphi 0, %s121
    %s136 = sphi 0, %s122
    %s140 = sphi 0, %s140
    %s142 = sphi 0, %s140
    %s143 = sphi 0, %s142
    %s157 = sphi 0, %s143
    %s161 = sphi 0, %s161
    %s163 = sphi 0, %s161
    %s164 = sphi 0, %s163
    %s178 = sphi 0, %s164
    %s182 = sphi 0, %s182
    %s184 = sphi 0, %s182
    %s185 = sphi 0, %s184
    %s199 = sphi 0, %s185
    %s203 = sphi 0, %s203
    %s205 = sphi 0, %s203
    %s206 = sphi 0, %s205
    %s220 = sphi 0, %s206
    %s224 = sphi 0, %s224
    %s226 = sphi 0, %s224
    %s227 = sphi 0, %s226
    %s241 = sphi 0, %s227
    %s245 = sphi 0, %s245
    %s247 = sphi 0, %s245
    %s248 = sphi 0, %s247
    %s262 = sphi 0, %s248
    %s266 = sphi 0, %s266
    %s268 = sphi 0, %s266
    %s269 = sphi 0, %s268
    %s283 = sphi 0, %s269
    %s287 = sphi 0, %s287
    %s289 = sphi 0, %s287
    %s290 = sphi 0, %s289
    %s304 = sphi 0, %s290
    %s308 = sphi 0, %s308
    %s310 = sphi 0, %s308
    %s311 = sphi 0, %s310
    %s325 = sphi 0, %s311
    %s329 = sphi 0, %s329
    %s331 = sphi 0, %s329
    %s332 = sphi 0, %s331
    %s346 = sphi 0, %s332
    %s350 = sphi 0, %s350
    %s352 = sphi 0, %s350
    %s353 = sphi 0, %s352
    %s367 = sphi 0, %s353
    %s373 = sphi 0, %s375
    %s376 = sphi 0, %s373
    %s377 = sphi 0, %s376
    %s393 = sphi 0, %s377
  $region4: #{vision_transformer_forward.1} parent=0 // loop_header_branch
    %25 = sbr.rel (%p23) target = $region8
  $region5: #{vision_transformer_forward.1} parent=0 // loop_body
    %s27 = ssub.s32 %s22, 1
    %s28 = ssub.s32 %s22, 2
    %s29 = sadd.s32 %s22, 1
    %s30 = ssub.s32 %s22, %s29
    %p31 = scmp.eq.s32.totalorder %s30, 0
    %s33 = sadd.s32 %s32, 1
    %s34 = scalar_select %p31, %s32, %s33
    %p37 = pneg %p31
    %p38 = scmp.eq.s32.totalorder %s22, 1
    %p39 = por %p37, %p38
    %p40 = scmp.ne.s32.totalorder %s32, %s35
    %p41 = scmp.eq.s32.totalorder %s22, 0
    %p42 = por %p40, %p41
    %p43 = scmp.ne.s32.totalorder %s32, %s35
    %p44 = scmp.eq.s32.totalorder %s27, 1
    %p45 = por %p43, %p44
    %p46 = scmp.ne.s32.totalorder %s35, %s36
    %p47 = scmp.eq.s32.totalorder %s27, 0
    %p48 = por %p46, %p47
    %p49 = scmp.ne.s32.totalorder %s35, %s36
    %p50 = scmp.eq.s32.totalorder %s28, 1
    %p51 = por %p49, %p50
    %p53 = scmp.ne.s32.totalorder %s36, %s52
    %p54 = scmp.eq.s32.totalorder %s28, 0
    %p55 = por %p53, %p54
    %s57 = sadd.s32 %s56, 1
    %p60 = scmp.eq.s32.totalorder %s22, 1
    %p61 = scmp.ne.s32.totalorder %s56, %s58
    %p62 = scmp.eq.s32.totalorder %s22, 0
    %p63 = por %p61, %p62
    %p64 = scmp.ne.s32.totalorder %s56, %s58
    %p65 = scmp.eq.s32.totalorder %s27, 1
    %p66 = por %p64, %p65
    %p67 = scmp.ne.s32.totalorder %s58, %s59
    %p68 = scmp.eq.s32.totalorder %s27, 0
    %p69 = por %p67, %p68
    %p70 = scmp.ne.s32.totalorder %s58, %s59
    %p71 = scmp.eq.s32.totalorder %s28, 1
    %p72 = por %p70, %p71
    %p74 = scmp.ne.s32.totalorder %s59, %s73
    %p75 = scmp.eq.s32.totalorder %s28, 0
    %p76 = por %p74, %p75
    %s78 = sadd.s32 %s77, 1
    %p81 = scmp.eq.s32.totalorder %s22, 1
    %p82 = scmp.ne.s32.totalorder %s77, %s79
    %p83 = scmp.eq.s32.totalorder %s22, 0
    %p84 = por %p82, %p83
    %p85 = scmp.ne.s32.totalorder %s77, %s79
    %p86 = scmp.eq.s32.totalorder %s27, 1
    %p87 = por %p85, %p86
    %p88 = scmp.ne.s32.totalorder %s79, %s80
    %p89 = scmp.eq.s32.totalorder %s27, 0
    %p90 = por %p88, %p89
    %p91 = scmp.ne.s32.totalorder %s79, %s80
    %p92 = scmp.eq.s32.totalorder %s28, 1
    %p93 = por %p91, %p92
    %p95 = scmp.ne.s32.totalorder %s80, %s94
    %p96 = scmp.eq.s32.totalorder %s28, 0
    %p97 = por %p95, %p96
    %s99 = sadd.s32 %s98, 1
    %p102 = scmp.eq.s32.totalorder %s22, 1
    %p103 = scmp.ne.s32.totalorder %s98, %s100
    %p104 = scmp.eq.s32.totalorder %s22, 0
    %p105 = por %p103, %p104
    %p106 = scmp.ne.s32.totalorder %s98, %s100
    %p107 = scmp.eq.s32.totalorder %s27, 1
    %p108 = por %p106, %p107
    %p109 = scmp.ne.s32.totalorder %s100, %s101
    %p110 = scmp.eq.s32.totalorder %s27, 0
    %p111 = por %p109, %p110
    %p112 = scmp.ne.s32.totalorder %s100, %s101
    %p113 = scmp.eq.s32.totalorder %s28, 1
    %p114 = por %p112, %p113
    %p116 = scmp.ne.s32.totalorder %s101, %s115
    %p117 = scmp.eq.s32.totalorder %s28, 0
    %p118 = por %p116, %p117
    %s120 = sadd.s32 %s119, 1
    %p123 = scmp.eq.s32.totalorder %s22, 1
    %p124 = scmp.ne.s32.totalorder %s119, %s121
    %p125 = scmp.eq.s32.totalorder %s22, 0
    %p126 = por %p124, %p125
    %p127 = scmp.ne.s32.totalorder %s119, %s121
    %p128 = scmp.eq.s32.totalorder %s27, 1
    %p129 = por %p127, %p128
    %p130 = scmp.ne.s32.totalorder %s121, %s122
    %p131 = scmp.eq.s32.totalorder %s27, 0
    %p132 = por %p130, %p131
    %p133 = scmp.ne.s32.totalorder %s121, %s122
    %p134 = scmp.eq.s32.totalorder %s28, 1
    %p135 = por %p133, %p134
    %p137 = scmp.ne.s32.totalorder %s122, %s136
    %p138 = scmp.eq.s32.totalorder %s28, 0
    %p139 = por %p137, %p138
    %s141 = sadd.s32 %s140, 1
    %p144 = scmp.eq.s32.totalorder %s22, 1
    %p145 = scmp.ne.s32.totalorder %s140, %s142
    %p146 = scmp.eq.s32.totalorder %s22, 0
    %p147 = por %p145, %p146
    %p148 = scmp.ne.s32.totalorder %s140, %s142
    %p149 = scmp.eq.s32.totalorder %s27, 1
    %p150 = por %p148, %p149
    %p151 = scmp.ne.s32.totalorder %s142, %s143
    %p152 = scmp.eq.s32.totalorder %s27, 0
    %p153 = por %p151, %p152
    %p154 = scmp.ne.s32.totalorder %s142, %s143
    %p155 = scmp.eq.s32.totalorder %s28, 1
    %p156 = por %p154, %p155
    %p158 = scmp.ne.s32.totalorder %s143, %s157
    %p159 = scmp.eq.s32.totalorder %s28, 0
    %p160 = por %p158, %p159
    %s162 = sadd.s32 %s161, 1
    %p165 = scmp.eq.s32.totalorder %s22, 1
    %p166 = scmp.ne.s32.totalorder %s161, %s163
    %p167 = scmp.eq.s32.totalorder %s22, 0
    %p168 = por %p166, %p167
    %p169 = scmp.ne.s32.totalorder %s161, %s163
    %p170 = scmp.eq.s32.totalorder %s27, 1
    %p171 = por %p169, %p170
    %p172 = scmp.ne.s32.totalorder %s163, %s164
    %p173 = scmp.eq.s32.totalorder %s27, 0
    %p174 = por %p172, %p173
    %p175 = scmp.ne.s32.totalorder %s163, %s164
    %p176 = scmp.eq.s32.totalorder %s28, 1
    %p177 = por %p175, %p176
    %p179 = scmp.ne.s32.totalorder %s164, %s178
    %p180 = scmp.eq.s32.totalorder %s28, 0
    %p181 = por %p179, %p180
    %s183 = sadd.s32 %s182, 1
    %p186 = scmp.eq.s32.totalorder %s22, 1
    %p187 = scmp.ne.s32.totalorder %s182, %s184
    %p188 = scmp.eq.s32.totalorder %s22, 0
    %p189 = por %p187, %p188
    %p190 = scmp.ne.s32.totalorder %s182, %s184
    %p191 = scmp.eq.s32.totalorder %s27, 1
    %p192 = por %p190, %p191
    %p193 = scmp.ne.s32.totalorder %s184, %s185
    %p194 = scmp.eq.s32.totalorder %s27, 0
    %p195 = por %p193, %p194
    %p196 = scmp.ne.s32.totalorder %s184, %s185
    %p197 = scmp.eq.s32.totalorder %s28, 1
    %p198 = por %p196, %p197
    %p200 = scmp.ne.s32.totalorder %s185, %s199
    %p201 = scmp.eq.s32.totalorder %s28, 0
    %p202 = por %p200, %p201
    %s204 = sadd.s32 %s203, 1
    %p207 = scmp.eq.s32.totalorder %s22, 1
    %p208 = scmp.ne.s32.totalorder %s203, %s205
    %p209 = scmp.eq.s32.totalorder %s22, 0
    %p210 = por %p208, %p209
    %p211 = scmp.ne.s32.totalorder %s203, %s205
    %p212 = scmp.eq.s32.totalorder %s27, 1
    %p213 = por %p211, %p212
    %p214 = scmp.ne.s32.totalorder %s205, %s206
    %p215 = scmp.eq.s32.totalorder %s27, 0
    %p216 = por %p214, %p215
    %p217 = scmp.ne.s32.totalorder %s205, %s206
    %p218 = scmp.eq.s32.totalorder %s28, 1
    %p219 = por %p217, %p218
    %p221 = scmp.ne.s32.totalorder %s206, %s220
    %p222 = scmp.eq.s32.totalorder %s28, 0
    %p223 = por %p221, %p222
    %s225 = sadd.s32 %s224, 1
    %p228 = scmp.eq.s32.totalorder %s22, 1
    %p229 = scmp.ne.s32.totalorder %s224, %s226
    %p230 = scmp.eq.s32.totalorder %s22, 0
    %p231 = por %p229, %p230
    %p232 = scmp.ne.s32.totalorder %s224, %s226
    %p233 = scmp.eq.s32.totalorder %s27, 1
    %p234 = por %p232, %p233
    %p235 = scmp.ne.s32.totalorder %s226, %s227
    %p236 = scmp.eq.s32.totalorder %s27, 0
    %p237 = por %p235, %p236
    %p238 = scmp.ne.s32.totalorder %s226, %s227
    %p239 = scmp.eq.s32.totalorder %s28, 1
    %p240 = por %p238, %p239
    %p242 = scmp.ne.s32.totalorder %s227, %s241
    %p243 = scmp.eq.s32.totalorder %s28, 0
    %p244 = por %p242, %p243
    %s246 = sadd.s32 %s245, 1
    %p249 = scmp.eq.s32.totalorder %s22, 1
    %p250 = scmp.ne.s32.totalorder %s245, %s247
    %p251 = scmp.eq.s32.totalorder %s22, 0
    %p252 = por %p250, %p251
    %p253 = scmp.ne.s32.totalorder %s245, %s247
    %p254 = scmp.eq.s32.totalorder %s27, 1
    %p255 = por %p253, %p254
    %p256 = scmp.ne.s32.totalorder %s247, %s248
    %p257 = scmp.eq.s32.totalorder %s27, 0
    %p258 = por %p256, %p257
    %p259 = scmp.ne.s32.totalorder %s247, %s248
    %p260 = scmp.eq.s32.totalorder %s28, 1
    %p261 = por %p259, %p260
    %p263 = scmp.ne.s32.totalorder %s248, %s262
    %p264 = scmp.eq.s32.totalorder %s28, 0
    %p265 = por %p263, %p264
    %s267 = sadd.s32 %s266, 1
    %p270 = scmp.eq.s32.totalorder %s22, 1
    %p271 = scmp.ne.s32.totalorder %s266, %s268
    %p272 = scmp.eq.s32.totalorder %s22, 0
    %p273 = por %p271, %p272
    %p274 = scmp.ne.s32.totalorder %s266, %s268
    %p275 = scmp.eq.s32.totalorder %s27, 1
    %p276 = por %p274, %p275
    %p277 = scmp.ne.s32.totalorder %s268, %s269
    %p278 = scmp.eq.s32.totalorder %s27, 0
    %p279 = por %p277, %p278
    %p280 = scmp.ne.s32.totalorder %s268, %s269
    %p281 = scmp.eq.s32.totalorder %s28, 1
    %p282 = por %p280, %p281
    %p284 = scmp.ne.s32.totalorder %s269, %s283
    %p285 = scmp.eq.s32.totalorder %s28, 0
    %p286 = por %p284, %p285
    %s288 = sadd.s32 %s287, 1
    %p291 = scmp.eq.s32.totalorder %s22, 1
    %p292 = scmp.ne.s32.totalorder %s287, %s289
    %p293 = scmp.eq.s32.totalorder %s22, 0
    %p294 = por %p292, %p293
    %p295 = scmp.ne.s32.totalorder %s287, %s289
    %p296 = scmp.eq.s32.totalorder %s27, 1
    %p297 = por %p295, %p296
    %p298 = scmp.ne.s32.totalorder %s289, %s290
    %p299 = scmp.eq.s32.totalorder %s27, 0
    %p300 = por %p298, %p299
    %p301 = scmp.ne.s32.totalorder %s289, %s290
    %p302 = scmp.eq.s32.totalorder %s28, 1
    %p303 = por %p301, %p302
    %p305 = scmp.ne.s32.totalorder %s290, %s304
    %p306 = scmp.eq.s32.totalorder %s28, 0
    %p307 = por %p305, %p306
    %s309 = sadd.s32 %s308, 1
    %p312 = scmp.eq.s32.totalorder %s22, 1
    %p313 = scmp.ne.s32.totalorder %s308, %s310
    %p314 = scmp.eq.s32.totalorder %s22, 0
    %p315 = por %p313, %p314
    %p316 = scmp.ne.s32.totalorder %s308, %s310
    %p317 = scmp.eq.s32.totalorder %s27, 1
    %p318 = por %p316, %p317
    %p319 = scmp.ne.s32.totalorder %s310, %s311
    %p320 = scmp.eq.s32.totalorder %s27, 0
    %p321 = por %p319, %p320
    %p322 = scmp.ne.s32.totalorder %s310, %s311
    %p323 = scmp.eq.s32.totalorder %s28, 1
    %p324 = por %p322, %p323
    %p326 = scmp.ne.s32.totalorder %s311, %s325
    %p327 = scmp.eq.s32.totalorder %s28, 0
    %p328 = por %p326, %p327
    %s330 = sadd.s32 %s329, 1
    %p333 = scmp.eq.s32.totalorder %s22, 1
    %p334 = scmp.ne.s32.totalorder %s329, %s331
    %p335 = scmp.eq.s32.totalorder %s22, 0
    %p336 = por %p334, %p335
    %p337 = scmp.ne.s32.totalorder %s329, %s331
    %p338 = scmp.eq.s32.totalorder %s27, 1
    %p339 = por %p337, %p338
    %p340 = scmp.ne.s32.totalorder %s331, %s332
    %p341 = scmp.eq.s32.totalorder %s27, 0
    %p342 = por %p340, %p341
    %p343 = scmp.ne.s32.totalorder %s331, %s332
    %p344 = scmp.eq.s32.totalorder %s28, 1
    %p345 = por %p343, %p344
    %p347 = scmp.ne.s32.totalorder %s332, %s346
    %p348 = scmp.eq.s32.totalorder %s28, 0
    %p349 = por %p347, %p348
    %s351 = sadd.s32 %s350, 1
    %p354 = scmp.eq.s32.totalorder %s22, 1
    %p355 = scmp.ne.s32.totalorder %s350, %s352
    %p356 = scmp.eq.s32.totalorder %s22, 0
    %p357 = por %p355, %p356
    %p358 = scmp.ne.s32.totalorder %s350, %s352
    %p359 = scmp.eq.s32.totalorder %s27, 1
    %p360 = por %p358, %p359
    %p361 = scmp.ne.s32.totalorder %s352, %s353
    %p362 = scmp.eq.s32.totalorder %s27, 0
    %p363 = por %p361, %p362
    %p364 = scmp.ne.s32.totalorder %s352, %s353
    %p365 = scmp.eq.s32.totalorder %s28, 1
    %p366 = por %p364, %p365
    %p368 = scmp.ne.s32.totalorder %s353, %s367
    %p369 = scmp.eq.s32.totalorder %s28, 0
    %p370 = por %p368, %p369
    %s371 = ssub.s32 %s22, %s29
    %p372 = scmp.eq.s32.totalorder %s371, 0
    %s374 = sadd.s32 %s373, 1
    %s375 = scalar_select %p372, %s373, %s374
    %p378 = pneg %p372
    %p379 = scmp.eq.s32.totalorder %s22, 1
    %p380 = por %p378, %p379
    %p381 = scmp.ne.s32.totalorder %s373, %s376
    %p382 = scmp.eq.s32.totalorder %s22, 0
    %p383 = por %p381, %p382
    %p384 = scmp.ne.s32.totalorder %s373, %s376
    %p385 = scmp.eq.s32.totalorder %s27, 1
    %p386 = por %p384, %p385
    %p387 = scmp.ne.s32.totalorder %s376, %s377
    %p388 = scmp.eq.s32.totalorder %s27, 0
    %p389 = por %p387, %p388
    %p390 = scmp.ne.s32.totalorder %s376, %s377
    %p391 = scmp.eq.s32.totalorder %s28, 1
    %p392 = por %p390, %p391
    %p394 = scmp.ne.s32.totalorder %s377, %s393
    %p395 = scmp.eq.s32.totalorder %s28, 0
    %p396 = por %p394, %p395
    %p397 = scmp.le.s32.totalorder 1, %s22
    %p398 = scmp.lt.s32.totalorder %s22, 3
    %p399 = pnand %p397, %p398
    %p400 = pneg %p399
    // Predicated region
    $region9: #{vision_transformer_forward.1} parent=5 // pred_check
      _
    $region10: #{vision_transformer_forward.1} parent=5 // pred_check_branch
      %402 = sbr.rel (%p399) target = $region12
    $region11: #{vision_transformer_forward.1} parent=5 // pred_region
      %s403 = ssub.s32 %s22, 1
      // Predicated region
      $region13: #{vision_transformer_forward.1} parent=11 // pred_check
        %p404 = pneg %p69
      $region14: #{vision_transformer_forward.1} parent=11 // pred_check_branch
        %406 = sbr.rel (%p404) target = $region16
      $region15: #{vision_transformer_forward.1} parent=11 // pred_region
        _
      $region16: #{vision_transformer_forward.1} parent=11 // pred_fallthru
        _
      // Predicated region
      $region17: #{vision_transformer_forward.1} parent=11 // pred_check
        %p407 = pneg %p90
      $region18: #{vision_transformer_forward.1} parent=11 // pred_check_branch
        %409 = sbr.rel (%p407) target = $region20
      $region19: #{vision_transformer_forward.1} parent=11 // pred_region
        _
      $region20: #{vision_transformer_forward.1} parent=11 // pred_fallthru
        _
      // Predicated region
      $region21: #{vision_transformer_forward.1} parent=11 // pred_check
        %p410 = pneg %p111
      $region22: #{vision_transformer_forward.1} parent=11 // pred_check_branch
        %412 = sbr.rel (%p410) target = $region24
      $region23: #{vision_transformer_forward.1} parent=11 // pred_region
        _
      $region24: #{vision_transformer_forward.1} parent=11 // pred_fallthru
        _
      // Predicated region
      $region25: #{vision_transformer_forward.1} parent=11 // pred_check
        %p413 = pneg %p132
      $region26: #{vision_transformer_forward.1} parent=11 // pred_check_branch
        %415 = sbr.rel (%p413) target = $region28
      $region27: #{vision_transformer_forward.1} parent=11 // pred_region
        _
      $region28: #{vision_transformer_forward.1} parent=11 // pred_fallthru
        _
      // Predicated region
      $region29: #{vision_transformer_forward.1} parent=11 // pred_check
        %p416 = pneg %p153
      $region30: #{vision_transformer_forward.1} parent=11 // pred_check_branch
        %418 = sbr.rel (%p416) target = $region32
      $region31: #{vision_transformer_forward.1} parent=11 // pred_region
        _
      $region32: #{vision_transformer_forward.1} parent=11 // pred_fallthru
        _
      // Predicated region
      $region33: #{vision_transformer_forward.1} parent=11 // pred_check
        %p419 = pneg %p174
      $region34: #{vision_transformer_forward.1} parent=11 // pred_check_branch
        %421 = sbr.rel (%p419) target = $region36
      $region35: #{vision_transformer_forward.1} parent=11 // pred_region
        _
      $region36: #{vision_transformer_forward.1} parent=11 // pred_fallthru
        _
      // Predicated region
      $region37: #{vision_transformer_forward.1} parent=11 // pred_check
        %p422 = pneg %p195
      $region38: #{vision_transformer_forward.1} parent=11 // pred_check_branch
        %424 = sbr.rel (%p422) target = $region40
      $region39: #{vision_transformer_forward.1} parent=11 // pred_region
        _
      $region40: #{vision_transformer_forward.1} parent=11 // pred_fallthru
        _
      // Predicated region
      $region41: #{vision_transformer_forward.1} parent=11 // pred_check
        %p425 = pneg %p216
      $region42: #{vision_transformer_forward.1} parent=11 // pred_check_branch
        %427 = sbr.rel (%p425) target = $region44
      $region43: #{vision_transformer_forward.1} parent=11 // pred_region
        _
      $region44: #{vision_transformer_forward.1} parent=11 // pred_fallthru
        _
      // Predicated region
      $region45: #{vision_transformer_forward.1} parent=11 // pred_check
        %p428 = pneg %p237
      $region46: #{vision_transformer_forward.1} parent=11 // pred_check_branch
        %430 = sbr.rel (%p428) target = $region48
      $region47: #{vision_transformer_forward.1} parent=11 // pred_region
        _
      $region48: #{vision_transformer_forward.1} parent=11 // pred_fallthru
        _
      // Predicated region
      $region49: #{vision_transformer_forward.1} parent=11 // pred_check
        %p431 = pneg %p258
      $region50: #{vision_transformer_forward.1} parent=11 // pred_check_branch
        %433 = sbr.rel (%p431) target = $region52
      $region51: #{vision_transformer_forward.1} parent=11 // pred_region
        _
      $region52: #{vision_transformer_forward.1} parent=11 // pred_fallthru
        _
      // Predicated region
      $region53: #{vision_transformer_forward.1} parent=11 // pred_check
        %p434 = pneg %p279
      $region54: #{vision_transformer_forward.1} parent=11 // pred_check_branch
        %436 = sbr.rel (%p434) target = $region56
      $region55: #{vision_transformer_forward.1} parent=11 // pred_region
        _
      $region56: #{vision_transformer_forward.1} parent=11 // pred_fallthru
        _
      // Predicated region
      $region57: #{vision_transformer_forward.1} parent=11 // pred_check
        %p437 = pneg %p300
      $region58: #{vision_transformer_forward.1} parent=11 // pred_check_branch
        %439 = sbr.rel (%p437) target = $region60
      $region59: #{vision_transformer_forward.1} parent=11 // pred_region
        _
      $region60: #{vision_transformer_forward.1} parent=11 // pred_fallthru
        _
      // Predicated region
      $region61: #{vision_transformer_forward.1} parent=11 // pred_check
        %p440 = pneg %p321
      $region62: #{vision_transformer_forward.1} parent=11 // pred_check_branch
        %442 = sbr.rel (%p440) target = $region64
      $region63: #{vision_transformer_forward.1} parent=11 // pred_region
        _
      $region64: #{vision_transformer_forward.1} parent=11 // pred_fallthru
        _
      // Predicated region
      $region65: #{vision_transformer_forward.1} parent=11 // pred_check
        %p443 = pneg %p342
      $region66: #{vision_transformer_forward.1} parent=11 // pred_check_branch
        %445 = sbr.rel (%p443) target = $region68
      $region67: #{vision_transformer_forward.1} parent=11 // pred_region
        _
      $region68: #{vision_transformer_forward.1} parent=11 // pred_fallthru
        _
      // Predicated region
      $region69: #{vision_transformer_forward.1} parent=11 // pred_check
        %p446 = pneg %p363
      $region70: #{vision_transformer_forward.1} parent=11 // pred_check_branch
        %448 = sbr.rel (%p446) target = $region72
      $region71: #{vision_transformer_forward.1} parent=11 // pred_region
        _
      $region72: #{vision_transformer_forward.1} parent=11 // pred_fallthru
        _
    $region12: #{vision_transformer_forward.1} parent=5 // pred_fallthru
      _
    %p449 = scmp.lt.s32.totalorder %s22, 2
    // Predicated region
    $region73: #{vision_transformer_forward.1} parent=5 // pred_check
      %p450 = pneg %p449
    $region74: #{vision_transformer_forward.1} parent=5 // pred_check_branch
      %452 = sbr.rel (%p450) target = $region76
    $region75: #{vision_transformer_forward.1} parent=5 // pred_region
      // Predicated region
      $region77: #{vision_transformer_forward.1} parent=75 // pred_check
        %p453 = pneg %p42
      $region78: #{vision_transformer_forward.1} parent=75 // pred_check_branch
        %455 = sbr.rel (%p453) target = $region80
      $region79: #{vision_transformer_forward.1} parent=75 // pred_region
        %s456 = smul.u32 12, %s22
        %p457 = scmp.lt.s32.totalorder %s456, 23
        %s458 = scalar_select %p457, %s456, 23
        %s459 = smul.addr %s458, 8
        %s460 = scalar_lea.vmem %s0, %s459
        %s461 = smul.u32 12, %s22
      $region80: #{vision_transformer_forward.1} parent=75 // pred_fallthru
        _
    $region76: #{vision_transformer_forward.1} parent=5 // pred_fallthru
      _
    %p462 = scmp.le.s32.totalorder 1, %s22
    %p463 = scmp.lt.s32.totalorder %s22, 3
    %p464 = pnand %p462, %p463
    %p465 = pneg %p464
    // Predicated region
    $region81: #{vision_transformer_forward.1} parent=5 // pred_check
      _
    $region82: #{vision_transformer_forward.1} parent=5 // pred_check_branch
      %467 = sbr.rel (%p464) target = $region84
    $region83: #{vision_transformer_forward.1} parent=5 // pred_region
      %s468 = ssub.s32 %s22, 1
      %s469 = smul.u32 12, %s27
      %p470 = scmp.lt.s32.totalorder %s469, 23
      %s471 = scalar_select %p470, %s469, 23
      %s472 = smul.addr %s471, 8
      %s473 = scalar_lea.vmem %s0, %s472
      %p474 = pneg %p48
      %p475 = pneg %p45
      %p476 = pneg %p69
      %p477 = pneg %p66
      %p478 = pneg %p90
      %p479 = pneg %p87
      %p480 = pneg %p111
      %p481 = pneg %p108
      %p482 = pneg %p132
      %p483 = pneg %p129
      %p484 = pneg %p153
      %p485 = pneg %p150
      %p486 = pneg %p174
      %p487 = pneg %p171
      %p488 = pneg %p195
      %p489 = pneg %p192
      %p490 = pneg %p216
      %p491 = pneg %p213
      %p492 = pneg %p237
      %p493 = pneg %p234
      %p494 = pneg %p258
      %p495 = pneg %p255
      %p496 = pneg %p279
      %p497 = pneg %p276
      %p498 = pneg %p300
      %p499 = pneg %p297
      %p500 = pneg %p321
      %p501 = pneg %p318
      %p502 = pneg %p342
      %p503 = pneg %p339
      %p504 = pneg %p363
      %p505 = pneg %p360
      %p506 = pneg %p389
      %p507 = pneg %p386
      %p508 = scmp.lt.s32.totalorder %s27, 1
      %s509 = scalar_select %p508, %s27, 1
      %s510 = smul.addr %s509, 4
      %s511 = scalar_lea.vmem %s16, %s510
      %s512 = smul.u32 12, %s27
      %p513 = scmp.lt.s32.totalorder %s512, 23
      %s514 = scalar_select %p513, %s512, 23
      %s515 = smul.addr %s514, 8
      %s516 = scalar_lea.vmem %s0, %s515
      %s517 = smul.u32 12, %s27
      %p518 = scmp.lt.s32.totalorder %s27, 1
      %s519 = scalar_select %p518, %s27, 1
      %s520 = smul.addr %s519, 4
      %s521 = scalar_lea.vmem %s16, %s520
      %v523 = vld [vmem:[%s1] sm:$0xff]
      %v524 = vld [vmem:[%s1 + $0x8] sm:$0xff]
      %v525 = vld [vmem:[%s1 + $0x10] sm:$0xff]
      %v526 = vld [vmem:[%s1 + $0x18] sm:$0xff]
      %v527 = vld [vmem:[%s1 + $0x20] sm:$0xff]
      %v528 = vld [vmem:[%s1 + $0x28] sm:$0xff]
      %v529 = vld [vmem:[%s1 + $0x30] sm:$0xff]
      %v530 = vld [vmem:[%s1 + $0x38] sm:$0xff]
      %v531 = vld [vmem:[%s1 + $0x40] sm:$0xff]
      %v532 = vld [vmem:[%s1 + $0x48] sm:$0xff]
      %v533 = vld [vmem:[%s1 + $0x50] sm:$0xff]
      %v534 = vld [vmem:[%s1 + $0x58] sm:$0xff]
      %v535 = vld [vmem:[%s516] sm:$0xff]
      %v536 = vld [vmem:[%s516 + $0x8] sm:$0xff]
      %v537 = vld [vmem:[%s516 + $0x10] sm:$0xff]
      %v538 = vld [vmem:[%s516 + $0x18] sm:$0xff]
      %v539 = vld [vmem:[%s516 + $0x20] sm:$0xff]
      %v540 = vld [vmem:[%s516 + $0x28] sm:$0xff]
      %v541 = vld [vmem:[%s516 + $0x30] sm:$0xff]
      %v542 = vld [vmem:[%s516 + $0x38] sm:$0xff]
      %v543 = vld [vmem:[%s516 + $0x40] sm:$0xff]
      %v544 = vld [vmem:[%s516 + $0x48] sm:$0xff]
      %v545 = vld [vmem:[%s516 + $0x50] sm:$0xff]
      %v546 = vld [vmem:[%s516 + $0x58] sm:$0xff]
      %v547 = vld [vmem:[%s2] sm:$0xf]
      %v548 = vld [vmem:[%s2 + $0x4] sm:$0xf]
      %v549 = vld [vmem:[%s2 + $0x8] sm:$0xf]
      %v550 = vld [vmem:[%s2 + $0xc] sm:$0xf]
      %v551 = vld [vmem:[%s2 + $0x10] sm:$0xf]
      %v552 = vld [vmem:[%s2 + $0x14] sm:$0xf]
      %v553 = vpack.c.bf16 %v536, %v535
      %v554 = vpack.c.bf16 %v538, %v537
      %v555 = vpack.c.bf16 %v540, %v539
      %v556 = vpack.c.bf16 %v542, %v541
      %v557 = vpack.c.bf16 %v544, %v543
      %v558 = vpack.c.bf16 %v546, %v545
      %v565 = vunpack.c.l.b16 %v547
      %v566 = vunpack.c.l.b16 %v548
      %v567 = vunpack.c.l.b16 %v549
      %v568 = vunpack.c.l.b16 %v550
      %v569 = vunpack.c.l.b16 %v551
      %v570 = vunpack.c.l.b16 %v552
      %v571 = vpack.c.b16 %v566, %v565
      %v572 = vpack.c.b16 %v568, %v567
      %v573 = vpack.c.b16 %v570, %v569
      %vm577 = vcmask 392192
      %v579 = vsel %vm577, %v553, 0
      %v582 = vsel %vm577, %v554, 0
      %v585 = vsel %vm577, %v555, 0
      %v588 = vsel %vm577, %v556, 0
      %v591 = vsel %vm577, %v557, 0
      %v594 = vsel %vm577, %v558, 0
      %596 = vmatprep.subr.bf16.mxu0 0
      %597 = vmatpush1.bf16.msra.mxu0 %v571
      %598 = vmatprep.subr.bf16.mxu0 0
      %599 = vmatpush1.bf16.msra.mxu0 %v572
      %600 = vmatprep.subr.bf16.mxu0 0
      %601 = vmatpush1.bf16.msra.mxu0 %v573
      %602 = vmatprep.subr.bf16.mxu0 0
      %603 = vmatpush1.bf16.msra.mxu0 0
      %604 = vmatprep.subr.bf16.mxu0 0
      %605 = vmatpush1.bf16.msra.mxu0 0
      %606 = vmatprep.subr.bf16.mxu0 0
      %607 = vmatpush1.bf16.msra.mxu0 0
      %608 = vmatprep.subr.bf16.mxu0 0
      %609 = vmatpush1.bf16.msra.mxu0 0
      %610 = vmatprep.subr.bf16.mxu0 0
      %611 = vmatpush1.bf16.msra.mxu0 0
      %612 = vmatprep.subr.bf16.mxu0 0
      %613 = vmatpush1.bf16.msra.mxu0 0
      %614 = vmatprep.subr.bf16.mxu0 0
      %615 = vmatpush1.bf16.msra.mxu0 0
      %616 = vmatprep.subr.bf16.mxu0 0
      %617 = vmatpush1.bf16.msra.mxu0 0
      %618 = vmatprep.subr.bf16.mxu0 0
      %619 = vmatpush1.bf16.msra.mxu0 0
      %620 = vmatprep.subr.bf16.mxu0 0
      %621 = vmatpush1.bf16.msra.mxu0 0
      %622 = vmatprep.subr.bf16.mxu0 0
      %623 = vmatpush1.bf16.msra.mxu0 0
      %624 = vmatprep.subr.bf16.mxu0 0
      %625 = vmatpush1.bf16.msra.mxu0 0
      %626 = vmatprep.subr.bf16.mxu0 0
      %627 = vmatpush1.bf16.msra.mxu0 0
      %628 = vmatprep.mubr.bf16.mxu0 0
      %629 = vmatmul.mubr.bf16.gmra.mrb[0].mxu0 %v579
      %v630 = vpop.f32.mrb[0].mxu0
      %v631 = vadd.f32 0.0, %v630
      %v632 = vpop.f32.mrb[0].mxu0
      %v633 = vpop.f32.mrb[0].mxu0
      %v634 = vadd.f32 0.0, %v633
      %v635 = vpop.f32.mrb[0].mxu0
      %636 = vmatprep.mubr.bf16.mxu0 0
      %637 = vmatmul.mubr.bf16.gmra.mrb[0].mxu0 %v582
      %v638 = vpop.f32.mrb[0].mxu0
      %v639 = vadd.f32 0.0, %v638
      %v640 = vpop.f32.mrb[0].mxu0
      %v641 = vpop.f32.mrb[0].mxu0
      %v642 = vadd.f32 0.0, %v641
      %v643 = vpop.f32.mrb[0].mxu0
      %644 = vmatprep.mubr.bf16.mxu0 0
      %645 = vmatmul.mubr.bf16.gmra.mrb[0].mxu0 %v585
      %v646 = vpop.f32.mrb[0].mxu0
      %v647 = vadd.f32 0.0, %v646
      %v648 = vpop.f32.mrb[0].mxu0
      %v649 = vpop.f32.mrb[0].mxu0
      %v650 = vadd.f32 0.0, %v649
      %v651 = vpop.f32.mrb[0].mxu0
      %652 = vmatprep.mubr.bf16.mxu0 0
      %653 = vmatmul.mubr.bf16.gmra.mrb[0].mxu0 %v588
      %v654 = vpop.f32.mrb[0].mxu0
      %v655 = vadd.f32 0.0, %v654
      %v656 = vpop.f32.mrb[0].mxu0
      %v657 = vpop.f32.mrb[0].mxu0
      %v658 = vadd.f32 0.0, %v657
      %v659 = vpop.f32.mrb[0].mxu0
      %660 = vmatprep.mubr.bf16.mxu0 0
      %661 = vmatmul.mubr.bf16.gmra.mrb[0].mxu0 %v591
      %v662 = vpop.f32.mrb[0].mxu0
      %v663 = vadd.f32 0.0, %v662
      %v664 = vpop.f32.mrb[0].mxu0
      %v665 = vpop.f32.mrb[0].mxu0
      %v666 = vadd.f32 0.0, %v665
      %v667 = vpop.f32.mrb[0].mxu0
      %668 = vmatprep.mubr.bf16.mxu0 0
      %669 = vmatmul.mubr.bf16.gmra.mrb[0].mxu0 %v594
      %v670 = vpop.f32.mrb[0].mxu0
      %v671 = vadd.f32 0.0, %v670
      %v672 = vpop.f32.mrb[0].mxu0
      %v673 = vpop.f32.mrb[0].mxu0
      %v674 = vadd.f32 0.0, %v673
      %v675 = vpop.f32.mrb[0].mxu0
      %676 = vdwg.mxu0
      %v677 = vadd.f32 %v523, %v631
      %v678 = vadd.f32 %v524, %v634
      %v679 = vadd.f32 %v525, %v639
      %v680 = vadd.f32 %v526, %v642
      %v681 = vadd.f32 %v527, %v647
      %v682 = vadd.f32 %v528, %v650
      %v683 = vadd.f32 %v529, %v655
      %v684 = vadd.f32 %v530, %v658
      %v685 = vadd.f32 %v531, %v663
      %v686 = vadd.f32 %v532, %v666
      %v687 = vadd.f32 %v533, %v671
      %v688 = vadd.f32 %v534, %v674
      %v689 = vld [vmem:[%s3] sm:$0x3]
      %vm690 = vcmask 261120
      %v691 = vsel %vm690, %v677, 0.0
      %692 = vadd.xlane.f32.xlu0 %v691
      %v693 = vpop.xlane.xlu0 %692
      %v694 = vsel %vm690, %v678, 0.0
      %695 = vadd.xlane.f32.xlu0 %v694
      %v696 = vpop.xlane.xlu0 %695
      %v697 = vsel %vm690, %v679, 0.0
      %698 = vadd.xlane.f32.xlu0 %v697
      %v699 = vpop.xlane.xlu0 %698
      %v700 = vsel %vm690, %v680, 0.0
      %701 = vadd.xlane.f32.xlu0 %v700
      %v702 = vpop.xlane.xlu0 %701
      %v703 = vsel %vm690, %v681, 0.0
      %704 = vadd.xlane.f32.xlu0 %v703
      %v705 = vpop.xlane.xlu0 %704
      %v706 = vsel %vm690, %v682, 0.0
      %707 = vadd.xlane.f32.xlu0 %v706
      %v708 = vpop.xlane.xlu0 %707
      %v709 = vsel %vm690, %v683, 0.0
      %710 = vadd.xlane.f32.xlu0 %v709
      %v711 = vpop.xlane.xlu0 %710
      %v712 = vsel %vm690, %v684, 0.0
      %713 = vadd.xlane.f32.xlu0 %v712
      %v714 = vpop.xlane.xlu0 %713
      %v715 = vsel %vm690, %v685, 0.0
      %716 = vadd.xlane.f32.xlu0 %v715
      %v717 = vpop.xlane.xlu0 %716
      %v718 = vsel %vm690, %v686, 0.0
      %719 = vadd.xlane.f32.xlu0 %v718
      %v720 = vpop.xlane.xlu0 %719
      %v721 = vsel %vm690, %v687, 0.0
      %722 = vadd.xlane.f32.xlu0 %v721
      %v723 = vpop.xlane.xlu0 %722
      %v724 = vsel %vm690, %v688, 0.0
      %725 = vadd.xlane.f32.xlu0 %v724
      %v726 = vpop.xlane.xlu0 %725
      %v727 = vrcp.pop 32.0
      %v728 = vmul.f32 %v693, %v727
      %v729 = vmul.f32 %v696, %v727
      %v730 = vmul.f32 %v699, %v727
      %v731 = vmul.f32 %v702, %v727
      %v732 = vmul.f32 %v705, %v727
      %v733 = vmul.f32 %v708, %v727
      %v734 = vmul.f32 %v711, %v727
      %v735 = vmul.f32 %v714, %v727
      %v736 = vmul.f32 %v717, %v727
      %v737 = vmul.f32 %v720, %v727
      %v738 = vmul.f32 %v723, %v727
      %v739 = vmul.f32 %v726, %v727
      %v740 = vsub.f32 %v677, %v728
      %v741 = vsub.f32 %v678, %v729
      %v742 = vsub.f32 %v679, %v730
      %v743 = vsub.f32 %v680, %v731
      %v744 = vsub.f32 %v681, %v732
      %v745 = vsub.f32 %v682, %v733
      %v746 = vsub.f32 %v683, %v734
      %v747 = vsub.f32 %v684, %v735
      %v748 = vsub.f32 %v685, %v736
      %v749 = vsub.f32 %v686, %v737
      %v750 = vsub.f32 %v687, %v738
      %v751 = vsub.f32 %v688, %v739
      %v752 = vmul.f32 %v740, %v740
      %v753 = vmul.f32 %v741, %v741
      %v754 = vmul.f32 %v742, %v742
      %v755 = vmul.f32 %v743, %v743
      %v756 = vmul.f32 %v744, %v744
      %v757 = vmul.f32 %v745, %v745
      %v758 = vmul.f32 %v746, %v746
      %v759 = vmul.f32 %v747, %v747
      %v760 = vmul.f32 %v748, %v748
      %v761 = vmul.f32 %v749, %v749
      %v762 = vmul.f32 %v750, %v750
      %v763 = vmul.f32 %v751, %v751
      %v764 = vsel %vm690, %v752, 0.0
      %765 = vadd.xlane.f32.xlu0 %v764
      %v766 = vpop.xlane.xlu0 %765
      %v767 = vsel %vm690, %v753, 0.0
      %768 = vadd.xlane.f32.xlu0 %v767
      %v769 = vpop.xlane.xlu0 %768
      %v770 = vsel %vm690, %v754, 0.0
      %771 = vadd.xlane.f32.xlu0 %v770
      %v772 = vpop.xlane.xlu0 %771
      %v773 = vsel %vm690, %v755, 0.0
      %774 = vadd.xlane.f32.xlu0 %v773
      %v775 = vpop.xlane.xlu0 %774
      %v776 = vsel %vm690, %v756, 0.0
      %777 = vadd.xlane.f32.xlu0 %v776
      %v778 = vpop.xlane.xlu0 %777
      %v779 = vsel %vm690, %v757, 0.0
      %780 = vadd.xlane.f32.xlu0 %v779
      %v781 = vpop.xlane.xlu0 %780
      %v782 = vsel %vm690, %v758, 0.0
      %783 = vadd.xlane.f32.xlu0 %v782
      %v784 = vpop.xlane.xlu0 %783
      %v785 = vsel %vm690, %v759, 0.0
      %786 = vadd.xlane.f32.xlu0 %v785
      %v787 = vpop.xlane.xlu0 %786
      %v788 = vsel %vm690, %v760, 0.0
      %789 = vadd.xlane.f32.xlu0 %v788
      %v790 = vpop.xlane.xlu0 %789
      %v791 = vsel %vm690, %v761, 0.0
      %792 = vadd.xlane.f32.xlu0 %v791
      %v793 = vpop.xlane.xlu0 %792
      %v794 = vsel %vm690, %v762, 0.0
      %795 = vadd.xlane.f32.xlu0 %v794
      %v796 = vpop.xlane.xlu0 %795
      %v797 = vsel %vm690, %v763, 0.0
      %798 = vadd.xlane.f32.xlu0 %v797
      %v799 = vpop.xlane.xlu0 %798
      %v800 = vmul.f32 %v766, %v727
      %v801 = vmul.f32 %v769, %v727
      %v802 = vmul.f32 %v772, %v727
      %v803 = vmul.f32 %v775, %v727
      %v804 = vmul.f32 %v778, %v727
      %v805 = vmul.f32 %v781, %v727
      %v806 = vmul.f32 %v784, %v727
      %v807 = vmul.f32 %v787, %v727
      %v808 = vmul.f32 %v790, %v727
      %v809 = vmul.f32 %v793, %v727
      %v810 = vmul.f32 %v796, %v727
      %v811 = vmul.f32 %v799, %v727
      %v812 = vadd.f32 %v800, 1e-05
      %v813 = vadd.f32 %v801, 1e-05
      %v814 = vadd.f32 %v802, 1e-05
      %v815 = vadd.f32 %v803, 1e-05
      %v816 = vadd.f32 %v804, 1e-05
      %v817 = vadd.f32 %v805, 1e-05
      %v818 = vadd.f32 %v806, 1e-05
      %v819 = vadd.f32 %v807, 1e-05
      %v820 = vadd.f32 %v808, 1e-05
      %v821 = vadd.f32 %v809, 1e-05
      %v822 = vadd.f32 %v810, 1e-05
      %v823 = vadd.f32 %v811, 1e-05
      %v824 = vrsqrt.pop %v812
      %v825 = vrsqrt.pop %v813
      %v826 = vrsqrt.pop %v814
      %v827 = vrsqrt.pop %v815
      %v828 = vrsqrt.pop %v816
      %v829 = vrsqrt.pop %v817
      %v830 = vrsqrt.pop %v818
      %v831 = vrsqrt.pop %v819
      %v832 = vrsqrt.pop %v820
      %v833 = vrsqrt.pop %v821
      %v834 = vrsqrt.pop %v822
      %v835 = vrsqrt.pop %v823
      %v836 = vmul.f32 %v740, %v824
      %v837 = vmul.f32 %v741, %v825
      %v838 = vmul.f32 %v742, %v826
      %v839 = vmul.f32 %v743, %v827
      %v840 = vmul.f32 %v744, %v828
      %v841 = vmul.f32 %v745, %v829
      %v842 = vmul.f32 %v746, %v830
      %v843 = vmul.f32 %v747, %v831
      %v844 = vmul.f32 %v748, %v832
      %v845 = vmul.f32 %v749, %v833
      %v846 = vmul.f32 %v750, %v834
      %v847 = vmul.f32 %v751, %v835
      %v848 = vlaneseq
      %v849 = vshrl.u32 %v848, 7
      %v850 = vsub.s32 0, %v849
      %v851 = vrot.slane %v689, %v850
      %v852 = vmul.f32 %v836, %v851
      %v853 = vmul.f32 %v837, %v851
      %v854 = vmul.f32 %v838, %v851
      %v855 = vmul.f32 %v839, %v851
      %v856 = vmul.f32 %v840, %v851
      %v857 = vmul.f32 %v841, %v851
      %v858 = vmul.f32 %v842, %v851
      %v859 = vmul.f32 %v843, %v851
      %v860 = vmul.f32 %v844, %v851
      %v861 = vmul.f32 %v845, %v851
      %v862 = vmul.f32 %v846, %v851
      %v863 = vmul.f32 %v847, %v851
      %v864 = vlaneseq
      %v865 = vshrl.u32 %v864, 7
      %v866 = vsub.s32 1, %v865
      %v867 = vrot.slane %v689, %v866
      %v868 = vadd.f32 %v852, %v867
      %v869 = vadd.f32 %v853, %v867
      %v870 = vadd.f32 %v854, %v867
      %v871 = vadd.f32 %v855, %v867
      %v872 = vadd.f32 %v856, %v867
      %v873 = vadd.f32 %v857, %v867
      %v874 = vadd.f32 %v858, %v867
      %v875 = vadd.f32 %v859, %v867
      %v876 = vadd.f32 %v860, %v867
      %v877 = vadd.f32 %v861, %v867
      %v878 = vadd.f32 %v862, %v867
      %v879 = vadd.f32 %v863, %v867
      %v880 = vlaneseq
      %v881 = vand.u32 %v880, 127
      %vm882 = vcmp.lt.s32.totalorder %v881, 17
      %v883 = vld [vmem:[%s6] sm:$0x3]
      %v884 = vsel %vm690, %v868, 0.0
      %885 = vadd.xlane.f32.xlu0 %v884
      %v886 = vpop.xlane.xlu0 %885
      %v887 = vsel %vm690, %v869, 0.0
      %888 = vadd.xlane.f32.xlu0 %v887
      %v889 = vpop.xlane.xlu0 %888
      %v890 = vsel %vm690, %v870, 0.0
      %891 = vadd.xlane.f32.xlu0 %v890
      %v892 = vpop.xlane.xlu0 %891
      %v893 = vsel %vm690, %v871, 0.0
      %894 = vadd.xlane.f32.xlu0 %v893
      %v895 = vpop.xlane.xlu0 %894
      %v896 = vsel %vm690, %v872, 0.0
      %897 = vadd.xlane.f32.xlu0 %v896
      %v898 = vpop.xlane.xlu0 %897
      %v899 = vsel %vm690, %v873, 0.0
      %900 = vadd.xlane.f32.xlu0 %v899
      %v901 = vpop.xlane.xlu0 %900
      %v902 = vsel %vm690, %v874, 0.0
      %903 = vadd.xlane.f32.xlu0 %v902
      %v904 = vpop.xlane.xlu0 %903
      %v905 = vsel %vm690, %v875, 0.0
      %906 = vadd.xlane.f32.xlu0 %v905
      %v907 = vpop.xlane.xlu0 %906
      %v908 = vsel %vm690, %v876, 0.0
      %909 = vadd.xlane.f32.xlu0 %v908
      %v910 = vpop.xlane.xlu0 %909
      %v911 = vsel %vm690, %v877, 0.0
      %912 = vadd.xlane.f32.xlu0 %v911
      %v913 = vpop.xlane.xlu0 %912
      %v914 = vsel %vm690, %v878, 0.0
      %915 = vadd.xlane.f32.xlu0 %v914
      %v916 = vpop.xlane.xlu0 %915
      %v917 = vsel %vm690, %v879, 0.0
      %918 = vadd.xlane.f32.xlu0 %v917
      %v919 = vpop.xlane.xlu0 %918
      %v920 = vmul.f32 %v886, %v727
      %v921 = vmul.f32 %v889, %v727
      %v922 = vmul.f32 %v892, %v727
      %v923 = vmul.f32 %v895, %v727
      %v924 = vmul.f32 %v898, %v727
      %v925 = vmul.f32 %v901, %v727
      %v926 = vmul.f32 %v904, %v727
      %v927 = vmul.f32 %v907, %v727
      %v928 = vmul.f32 %v910, %v727
      %v929 = vmul.f32 %v913, %v727
      %v930 = vmul.f32 %v916, %v727
      %v931 = vmul.f32 %v919, %v727
      %v932 = vsub.f32 %v868, %v920
      %v933 = vsub.f32 %v869, %v921
      %v934 = vsub.f32 %v870, %v922
      %v935 = vsub.f32 %v871, %v923
      %v936 = vsub.f32 %v872, %v924
      %v937 = vsub.f32 %v873, %v925
      %v938 = vsub.f32 %v874, %v926
      %v939 = vsub.f32 %v875, %v927
      %v940 = vsub.f32 %v876, %v928
      %v941 = vsub.f32 %v877, %v929
      %v942 = vsub.f32 %v878, %v930
      %v943 = vsub.f32 %v879, %v931
      %v944 = vmul.f32 %v932, %v932
      %v945 = vmul.f32 %v933, %v933
      %v946 = vmul.f32 %v934, %v934
      %v947 = vmul.f32 %v935, %v935
      %v948 = vmul.f32 %v936, %v936
      %v949 = vmul.f32 %v937, %v937
      %v950 = vmul.f32 %v938, %v938
      %v951 = vmul.f32 %v939, %v939
      %v952 = vmul.f32 %v940, %v940
      %v953 = vmul.f32 %v941, %v941
      %v954 = vmul.f32 %v942, %v942
      %v955 = vmul.f32 %v943, %v943
      %v956 = vsel %vm690, %v944, 0.0
      %957 = vadd.xlane.f32.xlu0 %v956
      %v958 = vpop.xlane.xlu0 %957
      %v959 = vsel %vm690, %v945, 0.0
      %960 = vadd.xlane.f32.xlu0 %v959
      %v961 = vpop.xlane.xlu0 %960
      %v962 = vsel %vm690, %v946, 0.0
      %963 = vadd.xlane.f32.xlu0 %v962
      %v964 = vpop.xlane.xlu0 %963
      %v965 = vsel %vm690, %v947, 0.0
      %966 = vadd.xlane.f32.xlu0 %v965
      %v967 = vpop.xlane.xlu0 %966
      %v968 = vsel %vm690, %v948, 0.0
      %969 = vadd.xlane.f32.xlu0 %v968
      %v970 = vpop.xlane.xlu0 %969
      %v971 = vsel %vm690, %v949, 0.0
      %972 = vadd.xlane.f32.xlu0 %v971
      %v973 = vpop.xlane.xlu0 %972
      %v974 = vsel %vm690, %v950, 0.0
      %975 = vadd.xlane.f32.xlu0 %v974
      %v976 = vpop.xlane.xlu0 %975
      %v977 = vsel %vm690, %v951, 0.0
      %978 = vadd.xlane.f32.xlu0 %v977
      %v979 = vpop.xlane.xlu0 %978
      %v980 = vsel %vm690, %v952, 0.0
      %981 = vadd.xlane.f32.xlu0 %v980
      %v982 = vpop.xlane.xlu0 %981
      %v983 = vsel %vm690, %v953, 0.0
      %984 = vadd.xlane.f32.xlu0 %v983
      %v985 = vpop.xlane.xlu0 %984
      %v986 = vsel %vm690, %v954, 0.0
      %987 = vadd.xlane.f32.xlu0 %v986
      %v988 = vpop.xlane.xlu0 %987
      %v989 = vsel %vm690, %v955, 0.0
      %990 = vadd.xlane.f32.xlu0 %v989
      %v991 = vpop.xlane.xlu0 %990
      %v992 = vmul.f32 %v958, %v727
      %v993 = vmul.f32 %v961, %v727
      %v994 = vmul.f32 %v964, %v727
      %v995 = vmul.f32 %v967, %v727
      %v996 = vmul.f32 %v970, %v727
      %v997 = vmul.f32 %v973, %v727
      %v998 = vmul.f32 %v976, %v727
      %v999 = vmul.f32 %v979, %v727
      %v1000 = vmul.f32 %v982, %v727
      %v1001 = vmul.f32 %v985, %v727
      %v1002 = vmul.f32 %v988, %v727
      %v1003 = vmul.f32 %v991, %v727
      %v1004 = vadd.f32 %v992, 1e-05
      %v1005 = vadd.f32 %v993, 1e-05
      %v1006 = vadd.f32 %v994, 1e-05
      %v1007 = vadd.f32 %v995, 1e-05
      %v1008 = vadd.f32 %v996, 1e-05
      %v1009 = vadd.f32 %v997, 1e-05
      %v1010 = vadd.f32 %v998, 1e-05
      %v1011 = vadd.f32 %v999, 1e-05
      %v1012 = vadd.f32 %v1000, 1e-05
      %v1013 = vadd.f32 %v1001, 1e-05
      %v1014 = vadd.f32 %v1002, 1e-05
      %v1015 = vadd.f32 %v1003, 1e-05
      %v1016 = vrsqrt.pop %v1004
      %v1017 = vrsqrt.pop %v1005
      %v1018 = vrsqrt.pop %v1006
      %v1019 = vrsqrt.pop %v1007
      %v1020 = vrsqrt.pop %v1008
      %v1021 = vrsqrt.pop %v1009
      %v1022 = vrsqrt.pop %v1010
      %v1023 = vrsqrt.pop %v1011
      %v1024 = vrsqrt.pop %v1012
      %v1025 = vrsqrt.pop %v1013
      %v1026 = vrsqrt.pop %v1014
      %v1027 = vrsqrt.pop %v1015
      %v1028 = vmul.f32 %v932, %v1016
      %v1029 = vmul.f32 %v933, %v1017
      %v1030 = vmul.f32 %v934, %v1018
      %v1031 = vmul.f32 %v935, %v1019
      %v1032 = vmul.f32 %v936, %v1020
      %v1033 = vmul.f32 %v937, %v1021
      %v1034 = vmul.f32 %v938, %v1022
      %v1035 = vmul.f32 %v939, %v1023
      %v1036 = vmul.f32 %v940, %v1024
      %v1037 = vmul.f32 %v941, %v1025
      %v1038 = vmul.f32 %v942, %v1026
      %v1039 = vmul.f32 %v943, %v1027
      %v1040 = vlaneseq
      %v1041 = vshrl.u32 %v1040, 7
      %v1042 = vsub.s32 0, %v1041
      %v1043 = vrot.slane %v883, %v1042
      %v1044 = vmul.f32 %v1028, %v1043
      %v1045 = vmul.f32 %v1029, %v1043
      %v1046 = vmul.f32 %v1030, %v1043
      %v1047 = vmul.f32 %v1031, %v1043
      %v1048 = vmul.f32 %v1032, %v1043
      %v1049 = vmul.f32 %v1033, %v1043
      %v1050 = vmul.f32 %v1034, %v1043
      %v1051 = vmul.f32 %v1035, %v1043
      %v1052 = vmul.f32 %v1036, %v1043
      %v1053 = vmul.f32 %v1037, %v1043
      %v1054 = vmul.f32 %v1038, %v1043
      %v1055 = vmul.f32 %v1039, %v1043
      %v1056 = vlaneseq
      %v1057 = vshrl.u32 %v1056, 7
      %v1058 = vsub.s32 1, %v1057
      %v1059 = vrot.slane %v883, %v1058
      %v1060 = vadd.f32 %v1044, %v1059
      %v1061 = vadd.f32 %v1045, %v1059
      %v1062 = vadd.f32 %v1046, %v1059
      %v1063 = vadd.f32 %v1047, %v1059
      %v1064 = vadd.f32 %v1048, %v1059
      %v1065 = vadd.f32 %v1049, %v1059
      %v1066 = vadd.f32 %v1050, %v1059
      %v1067 = vadd.f32 %v1051, %v1059
      %v1068 = vadd.f32 %v1052, %v1059
      %v1069 = vadd.f32 %v1053, %v1059
      %v1070 = vadd.f32 %v1054, %v1059
      %v1071 = vadd.f32 %v1055, %v1059
      %v1072 = vld [vmem:[%s7] sm:$0xf]
      %v1073 = vld [vmem:[%s7 + $0x4] sm:$0xf]
      %v1074 = vld [vmem:[%s7 + $0x8] sm:$0xf]
      %v1075 = vld [vmem:[%s7 + $0xc] sm:$0xf]
      %v1076 = vpack.c.bf16 %v1061, %v1060
      %v1077 = vpack.c.bf16 %v1063, %v1062
      %v1078 = vpack.c.bf16 %v1065, %v1064
      %v1079 = vpack.c.bf16 %v1067, %v1066
      %v1080 = vpack.c.bf16 %v1069, %v1068
      %v1081 = vpack.c.bf16 %v1071, %v1070
      %v1082 = vld [vmem:[%s8] sm:$0x1]
      %v1084 = vlaneseq
      %v1085 = vshrl.u32 %v1084, 7
      %v1086 = vsub.s32 0, %v1085
      %v1087 = vrot.slane %v1082, %v1086
      %v1093 = vunpack.c.l.b16 %v1072
      %v1094 = vunpack.c.l.b16 %v1073
      %v1095 = vunpack.c.l.b16 %v1074
      %v1096 = vunpack.c.l.b16 %v1075
      %v1097 = vpack.c.b16 %v1094, %v1093
      %v1098 = vpack.c.b16 %v1096, %v1095
      %v1102 = vsel %vm690, %v1076, 0
      %v1105 = vsel %vm690, %v1077, 0
      %v1108 = vsel %vm690, %v1078, 0
      %v1111 = vsel %vm690, %v1079, 0
      %v1114 = vsel %vm690, %v1080, 0
      %v1117 = vsel %vm690, %v1081, 0
      %1119 = vmatprep.subr.bf16.mxu0 0
      %1120 = vmatpush1.bf16.msra.mxu0 %v1097
      %1121 = vmatprep.subr.bf16.mxu0 0
      %1122 = vmatpush1.bf16.msra.mxu0 %v1098
      %1123 = vmatprep.subr.bf16.mxu0 0
      %1124 = vmatpush1.bf16.msra.mxu0 0
      %1125 = vmatprep.subr.bf16.mxu0 0
      %1126 = vmatpush1.bf16.msra.mxu0 0
      %1127 = vmatprep.subr.bf16.mxu0 0
      %1128 = vmatpush1.bf16.msra.mxu0 0
      %1129 = vmatprep.subr.bf16.mxu0 0
      %1130 = vmatpush1.bf16.msra.mxu0 0
      %1131 = vmatprep.subr.bf16.mxu0 0
      %1132 = vmatpush1.bf16.msra.mxu0 0
      %1133 = vmatprep.subr.bf16.mxu0 0
      %1134 = vmatpush1.bf16.msra.mxu0 0
      %1135 = vmatprep.subr.bf16.mxu0 0
      %1136 = vmatpush1.bf16.msra.mxu0 0
      %1137 = vmatprep.subr.bf16.mxu0 0
      %1138 = vmatpush1.bf16.msra.mxu0 0
      %1139 = vmatprep.subr.bf16.mxu0 0
      %1140 = vmatpush1.bf16.msra.mxu0 0
      %1141 = vmatprep.subr.bf16.mxu0 0
      %1142 = vmatpush1.bf16.msra.mxu0 0
      %1143 = vmatprep.subr.bf16.mxu0 0
      %1144 = vmatpush1.bf16.msra.mxu0 0
      %1145 = vmatprep.subr.bf16.mxu0 0
      %1146 = vmatpush1.bf16.msra.mxu0 0
      %1147 = vmatprep.subr.bf16.mxu0 0
      %1148 = vmatpush1.bf16.msra.mxu0 0
      %1149 = vmatprep.subr.bf16.mxu0 0
      %1150 = vmatpush1.bf16.msra.mxu0 0
      %1151 = vmatprep.mubr.bf16.mxu0 0
      %1152 = vmatmul.mubr.bf16.gmra.mrb[0].mxu0 %v1102
      %v1153 = vpop.f32.mrb[0].mxu0
      %v1154 = vadd.f32 %v1087, %v1153
      %v1155 = vpop.f32.mrb[0].mxu0
      %v1156 = vpop.f32.mrb[0].mxu0
      %v1157 = vadd.f32 %v1087, %v1156
      %v1158 = vpop.f32.mrb[0].mxu0
      %1159 = vmatprep.mubr.bf16.mxu0 0
      %1160 = vmatmul.mubr.bf16.gmra.mrb[0].mxu0 %v1105
      %v1161 = vpop.f32.mrb[0].mxu0
      %v1162 = vadd.f32 %v1087, %v1161
      %v1163 = vpop.f32.mrb[0].mxu0
      %v1164 = vpop.f32.mrb[0].mxu0
      %v1165 = vadd.f32 %v1087, %v1164
      %v1166 = vpop.f32.mrb[0].mxu0
      %1167 = vmatprep.mubr.bf16.mxu0 0
      %1168 = vmatmul.mubr.bf16.gmra.mrb[0].mxu0 %v1108
      %v1169 = vpop.f32.mrb[0].mxu0
      %v1170 = vadd.f32 %v1087, %v1169
      %v1171 = vpop.f32.mrb[0].mxu0
      %v1172 = vpop.f32.mrb[0].mxu0
      %v1173 = vadd.f32 %v1087, %v1172
      %v1174 = vpop.f32.mrb[0].mxu0
      %1175 = vmatprep.mubr.bf16.mxu0 0
      %1176 = vmatmul.mubr.bf16.gmra.mrb[0].mxu0 %v1111
      %v1177 = vpop.f32.mrb[0].mxu0
      %v1178 = vadd.f32 %v1087, %v1177
      %v1179 = vpop.f32.mrb[0].mxu0
      %v1180 = vpop.f32.mrb[0].mxu0
      %v1181 = vadd.f32 %v1087, %v1180
      %v1182 = vpop.f32.mrb[0].mxu0
      %1183 = vmatprep.mubr.bf16.mxu0 0
      %1184 = vmatmul.mubr.bf16.gmra.mrb[0].mxu0 %v1114
      %v1185 = vpop.f32.mrb[0].mxu0
      %v1186 = vadd.f32 %v1087, %v1185
      %v1187 = vpop.f32.mrb[0].mxu0
      %v1188 = vpop.f32.mrb[0].mxu0
      %v1189 = vadd.f32 %v1087, %v1188
      %v1190 = vpop.f32.mrb[0].mxu0
      %1191 = vmatprep.mubr.bf16.mxu0 0
      %1192 = vmatmul.mubr.bf16.gmra.mrb[0].mxu0 %v1117
      %v1193 = vpop.f32.mrb[0].mxu0
      %v1194 = vadd.f32 %v1087, %v1193
      %v1195 = vpop.f32.mrb[0].mxu0
      %v1196 = vpop.f32.mrb[0].mxu0
      %v1197 = vadd.f32 %v1087, %v1196
      %v1198 = vpop.f32.mrb[0].mxu0
      %1199 = vdwg.mxu0
      %v1200 = vpack.c.bf16 %v1157, %v1154
      %v1201 = vpack.c.bf16 %v1162, %v1162
      %v1202 = vpack.c.bf16 %v1170, %v1165
      %v1203 = vpack.c.bf16 %v1173, %v1173
      %v1204 = vpack.c.bf16 %v1181, %v1178
      %v1205 = vpack.c.bf16 %v1186, %v1186
      %v1206 = vpack.c.bf16 %v1194, %v1189
      %v1207 = vpack.c.bf16 %v1197, %v1197
      %1210 = vrot.lane.b32.xlu0 %v1200, 96
      %v1211 = vpop.permute.xlu0 %1210
      %1212 = vrot.lane.b32.xlu0 %v1201, 96
      %v1213 = vpop.permute.xlu0 %1212
      %vm1214 = vcmask 64512
      %v1216 = vsel %vm1214, %v1200, 0
      %v1219 = vsel %vm1214, %v1201, 0
      %v1222 = vsel %vm1214, %v1211, 0
      %v1225 = vsel %vm1214, %v1213, 0
      %1227 = vmatprep.subr.bf16.mxu0 0
      %1228 = vmatpush1.bf16.xpose.msra.mxu0 %v1222
      %1229 = vmatprep.subr.bf16.mxu0 0
      %1230 = vmatpush1.bf16.xpose.msra.mxu0 %v1225
      %1231 = vmatprep.subr.bf16.mxu0 0
      %1232 = vmatpush1.bf16.xpose.msra.mxu0 0
      %1233 = vmatprep.subr.bf16.mxu0 0
      %1234 = vmatpush1.bf16.xpose.msra.mxu0 0
      %1235 = vmatprep.subr.bf16.mxu0 0
      %1236 = vmatpush1.bf16.xpose.msra.mxu0 0
      %1237 = vmatprep.subr.bf16.mxu0 0
      %1238 = vmatpush1.bf16.xpose.msra.mxu0 0
      %1239 = vmatprep.subr.bf16.mxu0 0
      %1240 = vmatpush1.bf16.xpose.msra.mxu0 0
      %1241 = vmatprep.subr.bf16.mxu0 0
      %1242 = vmatpush1.bf16.xpose.msra.mxu0 0
      %1243 = vmatprep.subr.bf16.mxu0 0
      %1244 = vmatpush1.bf16.xpose.msra.mxu0 0
      %1245 = vmatprep.subr.bf16.mxu0 0
      %1246 = vmatpush1.bf16.xpose.msra.mxu0 0
      %1247 = vmatprep.subr.bf16.mxu0 0
      %1248 = vmatpush1.bf16.xpose.msra.mxu0 0
      %1249 = vmatprep.subr.bf16.mxu0 0
      %1250 = vmatpush1.bf16.xpose.msra.mxu0 0
      %1251 = vmatprep.subr.bf16.mxu0 0
      %1252 = vmatpush1.bf16.xpose.msra.mxu0 0
      %1253 = vmatprep.subr.bf16.mxu0 0
      %1254 = vmatpush1.bf16.xpose.msra.mxu0 0
      %1255 = vmatprep.subr.bf16.mxu0 0
      %1256 = vmatpush1.bf16.xpose.msra.mxu0 0
      %1257 = vmatprep.subr.bf16.mxu0 0
      %1258 = vmatpush1.bf16.xpose.msra.mxu0 0
      %1259 = vmatprep.mubr.bf16.mxu0 0
      %1260 = vmatmul.mubr.bf16.gmra.mrb[0].mxu0 %v1216
      %v1261 = vpop.f32.mrb[0].mxu0
      %v1262 = vadd.f32 0.0, %v1261
      %v1263 = vpop.f32.mrb[0].mxu0
      %v1264 = vpop.f32.mrb[0].mxu0
      %v1265 = vadd.f32 0.0, %v1264
      %v1266 = vpop.f32.mrb[0].mxu0
      %1267 = vmatprep.mubr.bf16.mxu0 0
      %1268 = vmatmul.mubr.bf16.gmra.mrb[0].mxu0 %v1219
      %v1269 = vpop.f32.mrb[0].mxu0
      %v1270 = vadd.f32 0.0, %v1269
      %v1271 = vpop.f32.mrb[0].mxu0
      %v1272 = vpop.f32.mrb[0].mxu0
      %v1273 = vpop.f32.mrb[0].mxu0
      %1274 = vdwg.mxu0
      %1277 = vrot.lane.b32.xlu0 %v1202, 96
      %v1278 = vpop.permute.xlu0 %1277
      %1279 = vrot.lane.b32.xlu0 %v1203, 96
      %v1280 = vpop.permute.xlu0 %1279
      %v1282 = vsel %vm1214, %v1202, 0
      %v1285 = vsel %vm1214, %v1203, 0
      %v1288 = vsel %vm1214, %v1278, 0
      %v1291 = vsel %vm1214, %v1280, 0
      %1293 = vmatprep.subr.bf16.mxu0 0
      %1294 = vmatpush1.bf16.xpose.msra.mxu0 %v1288
      %1295 = vmatprep.subr.bf16.mxu0 0
      %1296 = vmatpush1.bf16.xpose.msra.mxu0 %v1291
      %1297 = vmatprep.subr.bf16.mxu0 0
      %1298 = vmatpush1.bf16.xpose.msra.mxu0 0
      %1299 = vmatprep.subr.bf16.mxu0 0
      %1300 = vmatpush1.bf16.xpose.msra.mxu0 0
      %1301 = vmatprep.subr.bf16.mxu0 0
      %1302 = vmatpush1.bf16.xpose.msra.mxu0 0
      %1303 = vmatprep.subr.bf16.mxu0 0
      %1304 = vmatpush1.bf16.xpose.msra.mxu0 0
      %1305 = vmatprep.subr.bf16.mxu0 0
      %1306 = vmatpush1.bf16.xpose.msra.mxu0 0
      %1307 = vmatprep.subr.bf16.mxu0 0
      %1308 = vmatpush1.bf16.xpose.msra.mxu0 0
      %1309 = vmatprep.subr.bf16.mxu0 0
      %1310 = vmatpush1.bf16.xpose.msra.mxu0 0
      %1311 = vmatprep.subr.bf16.mxu0 0
      %1312 = vmatpush1.bf16.xpose.msra.mxu0 0
      %1313 = vmatprep.subr.bf16.mxu0 0
      %1314 = vmatpush1.bf16.xpose.msra.mxu0 0
      %1315 = vmatprep.subr.bf16.mxu0 0
      %1316 = vmatpush1.bf16.xpose.msra.mxu0 0
      %1317 = vmatprep.subr.bf16.mxu0 0
      %1318 = vmatpush1.bf16.xpose.msra.mxu0 0
      %1319 = vmatprep.subr.bf16.mxu0 0
      %1320 = vmatpush1.bf16.xpose.msra.mxu0 0
      %1321 = vmatprep.subr.bf16.mxu0 0
      %1322 = vmatpush1.bf16.xpose.msra.mxu0 0
      %1323 = vmatprep.subr.bf16.mxu0 0
      %1324 = vmatpush1.bf16.xpose.msra.mxu0 0
      %1325 = vmatprep.mubr.bf16.mxu0 0
      %1326 = vmatmul.mubr.bf16.gmra.mrb[0].mxu0 %v1282
      %v1327 = vpop.f32.mrb[0].mxu0
      %v1328 = vadd.f32 0.0, %v1327
      %v1329 = vpop.f32.mrb[0].mxu0
      %v1330 = vpop.f32.mrb[0].mxu0
      %v1331 = vadd.f32 0.0, %v1330
      %v1332 = vpop.f32.mrb[0].mxu0
      %1333 = vmatprep.mubr.bf16.mxu0 0
      %1334 = vmatmul.mubr.bf16.gmra.mrb[0].mxu0 %v1285
      %v1335 = vpop.f32.mrb[0].mxu0
      %v1336 = vadd.f32 0.0, %v1335
      %v1337 = vpop.f32.mrb[0].mxu0
      %v1338 = vpop.f32.mrb[0].mxu0
      %v1339 = vpop.f32.mrb[0].mxu0
      %1340 = vdwg.mxu0
      %1343 = vrot.lane.b32.xlu0 %v1204, 96
      %v1344 = vpop.permute.xlu0 %1343
      %1345 = vrot.lane.b32.xlu0 %v1205, 96
      %v1346 = vpop.permute.xlu0 %1345
      %v1348 = vsel %vm1214, %v1204, 0
      %v1351 = vsel %vm1214, %v1205, 0
      %v1354 = vsel %vm1214, %v1344, 0
      %v1357 = vsel %vm1214, %v1346, 0
      %1359 = vmatprep.subr.bf16.mxu0 0
      %1360 = vmatpush1.bf16.xpose.msra.mxu0 %v1354
      %1361 = vmatprep.subr.bf16.mxu0 0
      %1362 = vmatpush1.bf16.xpose.msra.mxu0 %v1357
      %1363 = vmatprep.subr.bf16.mxu0 0
      %1364 = vmatpush1.bf16.xpose.msra.mxu0 0
      %1365 = vmatprep.subr.bf16.mxu0 0
      %1366 = vmatpush1.bf16.xpose.msra.mxu0 0
      %1367 = vmatprep.subr.bf16.mxu0 0
      %1368 = vmatpush1.bf16.xpose.msra.mxu0 0
      %1369 = vmatprep.subr.bf16.mxu0 0
      %1370 = vmatpush1.bf16.xpose.msra.mxu0 0
      %1371 = vmatprep.subr.bf16.mxu0 0
      %1372 = vmatpush1.bf16.xpose.msra.mxu0 0
      %1373 = vmatprep.subr.bf16.mxu0 0
      %1374 = vmatpush1.bf16.xpose.msra.mxu0 0
      %1375 = vmatprep.subr.bf16.mxu0 0
      %1376 = vmatpush1.bf16.xpose.msra.mxu0 0
      %1377 = vmatprep.subr.bf16.mxu0 0
      %1378 = vmatpush1.bf16.xpose.msra.mxu0 0
      %1379 = vmatprep.subr.bf16.mxu0 0
      %1380 = vmatpush1.bf16.xpose.msra.mxu0 0
      %1381 = vmatprep.subr.bf16.mxu0 0
      %1382 = vmatpush1.bf16.xpose.msra.mxu0 0
      %1383 = vmatprep.subr.bf16.mxu0 0
      %1384 = vmatpush1.bf16.xpose.msra.mxu0 0
      %1385 = vmatprep.subr.bf16.mxu0 0
      %1386 = vmatpush1.bf16.xpose.msra.mxu0 0
      %1387 = vmatprep.subr.bf16.mxu0 0
      %1388 = vmatpush1.bf16.xpose.msra.mxu0 0
      %1389 = vmatprep.subr.bf16.mxu0 0
      %1390 = vmatpush1.bf16.xpose.msra.mxu0 0
      %1391 = vmatprep.mubr.bf16.mxu0 0
      %1392 = vmatmul.mubr.bf16.gmra.mrb[0].mxu0 %v1348
      %v1393 = vpop.f32.mrb[0].mxu0
      %v1394 = vadd.f32 0.0, %v1393
      %v1395 = vpop.f32.mrb[0].mxu0
      %v1396 = vpop.f32.mrb[0].mxu0
      %v1397 = vadd.f32 0.0, %v1396
      %v1398 = vpop.f32.mrb[0].mxu0
      %1399 = vmatprep.mubr.bf16.mxu0 0
      %1400 = vmatmul.mubr.bf16.gmra.mrb[0].mxu0 %v1351
      %v1401 = vpop.f32.mrb[0].mxu0
      %v1402 = vadd.f32 0.0, %v1401
      %v1403 = vpop.f32.mrb[0].mxu0
      %v1404 = vpop.f32.mrb[0].mxu0
      %v1405 = vpop.f32.mrb[0].mxu0
      %1406 = vdwg.mxu0
      %1409 = vrot.lane.b32.xlu0 %v1206, 96
      %v1410 = vpop.permute.xlu0 %1409
      %1411 = vrot.lane.b32.xlu0 %v1207, 96
      %v1412 = vpop.permute.xlu0 %1411
      %v1414 = vsel %vm1214, %v1206, 0
      %v1417 = vsel %vm1214, %v1207, 0
      %v1420 = vsel %vm1214, %v1410, 0
      %v1423 = vsel %vm1214, %v1412, 0
      %1425 = vmatprep.subr.bf16.mxu0 0
      %1426 = vmatpush1.bf16.xpose.msra.mxu0 %v1420
      %1427 = vmatprep.subr.bf16.mxu0 0
      %1428 = vmatpush1.bf16.xpose.msra.mxu0 %v1423
      %1429 = vmatprep.subr.bf16.mxu0 0
      %1430 = vmatpush1.bf16.xpose.msra.mxu0 0
      %1431 = vmatprep.subr.bf16.mxu0 0
      %1432 = vmatpush1.bf16.xpose.msra.mxu0 0
      %1433 = vmatprep.subr.bf16.mxu0 0
      %1434 = vmatpush1.bf16.xpose.msra.mxu0 0
      %1435 = vmatprep.subr.bf16.mxu0 0
      %1436 = vmatpush1.bf16.xpose.msra.mxu0 0
      %1437 = vmatprep.subr.bf16.mxu0 0
      %1438 = vmatpush1.bf16.xpose.msra.mxu0 0
      %1439 = vmatprep.subr.bf16.mxu0 0
      %1440 = vmatpush1.bf16.xpose.msra.mxu0 0
      %1441 = vmatprep.subr.bf16.mxu0 0
      %1442 = vmatpush1.bf16.xpose.msra.mxu0 0
      %1443 = vmatprep.subr.bf16.mxu0 0
      %1444 = vmatpush1.bf16.xpose.msra.mxu0 0
      %1445 = vmatprep.subr.bf16.mxu0 0
      %1446 = vmatpush1.bf16.xpose.msra.mxu0 0
      %1447 = vmatprep.subr.bf16.mxu0 0
      %1448 = vmatpush1.bf16.xpose.msra.mxu0 0
      %1449 = vmatprep.subr.bf16.mxu0 0
      %1450 = vmatpush1.bf16.xpose.msra.mxu0 0
      %1451 = vmatprep.subr.bf16.mxu0 0
      %1452 = vmatpush1.bf16.xpose.msra.mxu0 0
      %1453 = vmatprep.subr.bf16.mxu0 0
      %1454 = vmatpush1.bf16.xpose.msra.mxu0 0
      %1455 = vmatprep.subr.bf16.mxu0 0
      %1456 = vmatpush1.bf16.xpose.msra.mxu0 0
      %1457 = vmatprep.mubr.bf16.mxu0 0
      %1458 = vmatmul.mubr.bf16.gmra.mrb[0].mxu0 %v1414
      %v1459 = vpop.f32.mrb[0].mxu0
      %v1460 = vadd.f32 0.0, %v1459
      %v1461 = vpop.f32.mrb[0].mxu0
      %v1462 = vpop.f32.mrb[0].mxu0
      %v1463 = vadd.f32 0.0, %v1462
      %v1464 = vpop.f32.mrb[0].mxu0
      %1465 = vmatprep.mubr.bf16.mxu0 0
      %1466 = vmatmul.mubr.bf16.gmra.mrb[0].mxu0 %v1417
      %v1467 = vpop.f32.mrb[0].mxu0
      %v1468 = vadd.f32 0.0, %v1467
      %v1469 = vpop.f32.mrb[0].mxu0
      %v1470 = vpop.f32.mrb[0].mxu0
      %v1471 = vpop.f32.mrb[0].mxu0
      %1472 = vdwg.mxu0
      %v1473 = vsel %vm882, %v1262, -1e+30
      %v1474 = vsel %vm882, %v1265, -1e+30
      %v1475 = vsel %vm882, %v1270, -1e+30
      %v1476 = vsel %vm882, %v1328, -1e+30
      %v1477 = vsel %vm882, %v1331, -1e+30
      %v1478 = vsel %vm882, %v1336, -1e+30
      %v1479 = vsel %vm882, %v1394, -1e+30
      %v1480 = vsel %vm882, %v1397, -1e+30
      %v1481 = vsel %vm882, %v1402, -1e+30
      %v1482 = vsel %vm882, %v1460, -1e+30
      %v1483 = vsel %vm882, %v1463, -1e+30
      %v1484 = vsel %vm882, %v1468, -1e+30
      %vm1485 = vcmask 195584
      %v1486 = vsel %vm1485, %v1473, -inf
      %1487 = vmax.xlane.f32.xlu0 %v1486
      %v1488 = vpop.xlane.xlu0 %1487
      %v1489 = vsel %vm1485, %v1474, -inf
      %1490 = vmax.xlane.f32.xlu0 %v1489
      %v1491 = vpop.xlane.xlu0 %1490
      %v1492 = vsel %vm1485, %v1475, -inf
      %1493 = vmax.xlane.f32.xlu0 %v1492
      %v1494 = vpop.xlane.xlu0 %1493
      %v1495 = vsel %vm1485, %v1476, -inf
      %1496 = vmax.xlane.f32.xlu0 %v1495
      %v1497 = vpop.xlane.xlu0 %1496
      %v1498 = vsel %vm1485, %v1477, -inf
      %1499 = vmax.xlane.f32.xlu0 %v1498
      %v1500 = vpop.xlane.xlu0 %1499
      %v1501 = vsel %vm1485, %v1478, -inf
      %1502 = vmax.xlane.f32.xlu0 %v1501
      %v1503 = vpop.xlane.xlu0 %1502
      %v1504 = vsel %vm1485, %v1479, -inf
      %1505 = vmax.xlane.f32.xlu0 %v1504
      %v1506 = vpop.xlane.xlu0 %1505
      %v1507 = vsel %vm1485, %v1480, -inf
      %1508 = vmax.xlane.f32.xlu0 %v1507
      %v1509 = vpop.xlane.xlu0 %1508
      %v1510 = vsel %vm1485, %v1481, -inf
      %1511 = vmax.xlane.f32.xlu0 %v1510
      %v1512 = vpop.xlane.xlu0 %1511
      %v1513 = vsel %vm1485, %v1482, -inf
      %1514 = vmax.xlane.f32.xlu0 %v1513
      %v1515 = vpop.xlane.xlu0 %1514
      %v1516 = vsel %vm1485, %v1483, -inf
      %1517 = vmax.xlane.f32.xlu0 %v1516
      %v1518 = vpop.xlane.xlu0 %1517
      %v1519 = vsel %vm1485, %v1484, -inf
      %1520 = vmax.xlane.f32.xlu0 %v1519
      %v1521 = vpop.xlane.xlu0 %1520
      %v1522 = vsub.f32 %v1473, %v1488
      %v1523 = vsub.f32 %v1474, %v1491
      %v1524 = vsub.f32 %v1475, %v1494
      %v1525 = vsub.f32 %v1476, %v1497
      %v1526 = vsub.f32 %v1477, %v1500
      %v1527 = vsub.f32 %v1478, %v1503
      %v1528 = vsub.f32 %v1479, %v1506
      %v1529 = vsub.f32 %v1480, %v1509
      %v1530 = vsub.f32 %v1481, %v1512
      %v1531 = vsub.f32 %v1482, %v1515
      %v1532 = vsub.f32 %v1483, %v1518
      %v1533 = vsub.f32 %v1484, %v1521
      %v1534 = vmul.f32 %v1522, 1.442695
      %v1535 = vpow.pop %v1534
      %v1536 = vmul.f32 %v1523, 1.442695
      %v1537 = vpow.pop %v1536
      %v1538 = vmul.f32 %v1524, 1.442695
      %v1539 = vpow.pop %v1538
      %v1540 = vmul.f32 %v1525, 1.442695
      %v1541 = vpow.pop %v1540
      %v1542 = vmul.f32 %v1526, 1.442695
      %v1543 = vpow.pop %v1542
      %v1544 = vmul.f32 %v1527, 1.442695
      %v1545 = vpow.pop %v1544
      %v1546 = vmul.f32 %v1528, 1.442695
      %v1547 = vpow.pop %v1546
      %v1548 = vmul.f32 %v1529, 1.442695
      %v1549 = vpow.pop %v1548
      %v1550 = vmul.f32 %v1530, 1.442695
      %v1551 = vpow.pop %v1550
      %v1552 = vmul.f32 %v1531, 1.442695
      %v1553 = vpow.pop %v1552
      %v1554 = vmul.f32 %v1532, 1.442695
      %v1555 = vpow.pop %v1554
      %v1556 = vmul.f32 %v1533, 1.442695
      %v1557 = vpow.pop %v1556
      %v1558 = vsel %vm1485, %v1535, 0.0
      %1559 = vadd.xlane.f32.xlu0 %v1558
      %v1560 = vpop.xlane.xlu0 %1559
      %v1561 = vsel %vm1485, %v1537, 0.0
      %1562 = vadd.xlane.f32.xlu0 %v1561
      %v1563 = vpop.xlane.xlu0 %1562
      %v1564 = vsel %vm1485, %v1539, 0.0
      %1565 = vadd.xlane.f32.xlu0 %v1564
      %v1566 = vpop.xlane.xlu0 %1565
      %v1567 = vsel %vm1485, %v1541, 0.0
      %1568 = vadd.xlane.f32.xlu0 %v1567
      %v1569 = vpop.xlane.xlu0 %1568
      %v1570 = vsel %vm1485, %v1543, 0.0
      %1571 = vadd.xlane.f32.xlu0 %v1570
      %v1572 = vpop.xlane.xlu0 %1571
      %v1573 = vsel %vm1485, %v1545, 0.0
      %1574 = vadd.xlane.f32.xlu0 %v1573
      %v1575 = vpop.xlane.xlu0 %1574
      %v1576 = vsel %vm1485, %v1547, 0.0
      %1577 = vadd.xlane.f32.xlu0 %v1576
      %v1578 = vpop.xlane.xlu0 %1577
      %v1579 = vsel %vm1485, %v1549, 0.0
      %1580 = vadd.xlane.f32.xlu0 %v1579
      %v1581 = vpop.xlane.xlu0 %1580
      %v1582 = vsel %vm1485, %v1551, 0.0
      %1583 = vadd.xlane.f32.xlu0 %v1582
      %v1584 = vpop.xlane.xlu0 %1583
      %v1585 = vsel %vm1485, %v1553, 0.0
      %1586 = vadd.xlane.f32.xlu0 %v1585
      %v1587 = vpop.xlane.xlu0 %1586
      %v1588 = vsel %vm1485, %v1555, 0.0
      %1589 = vadd.xlane.f32.xlu0 %v1588
      %v1590 = vpop.xlane.xlu0 %1589
      %v1591 = vsel %vm1485, %v1557, 0.0
      %1592 = vadd.xlane.f32.xlu0 %v1591
      %v1593 = vpop.xlane.xlu0 %1592
      %v1594 = vrcp.pop %v1560
      %v1595 = vrcp.pop %v1563
      %v1596 = vrcp.pop %v1566
      %v1597 = vrcp.pop %v1569
      %v1598 = vrcp.pop %v1572
      %v1599 = vrcp.pop %v1575
      %v1600 = vrcp.pop %v1578
      %v1601 = vrcp.pop %v1581
      %v1602 = vrcp.pop %v1584
      %v1603 = vrcp.pop %v1587
      %v1604 = vrcp.pop %v1590
      %v1605 = vrcp.pop %v1593
      %v1606 = vmul.f32 %v1535, %v1594
      %v1607 = vmul.f32 %v1537, %v1595
      %v1608 = vmul.f32 %v1539, %v1596
      %v1609 = vmul.f32 %v1541, %v1597
      %v1610 = vmul.f32 %v1543, %v1598
      %v1611 = vmul.f32 %v1545, %v1599
      %v1612 = vmul.f32 %v1547, %v1600
      %v1613 = vmul.f32 %v1549, %v1601
      %v1614 = vmul.f32 %v1551, %v1602
      %v1615 = vmul.f32 %v1553, %v1603
      %v1616 = vmul.f32 %v1555, %v1604
      %v1617 = vmul.f32 %v1557, %v1605
      %v1618 = vpack.c.bf16 %v1607, %v1606
      %v1619 = vpack.c.bf16 %v1608, %v1608
      %v1620 = vpack.c.bf16 %v1610, %v1609
      %v1621 = vpack.c.bf16 %v1611, %v1611
      %v1622 = vpack.c.bf16 %v1613, %v1612
      %v1623 = vpack.c.bf16 %v1614, %v1614
      %v1624 = vpack.c.bf16 %v1616, %v1615
      %v1625 = vpack.c.bf16 %v1617, %v1617
      %1626 = vrot.lane.b32.xlu0 %v1200, 64
      %v1627 = vpop.permute.xlu0 %1626
      %1628 = vrot.lane.b32.xlu0 %v1201, 64
      %v1629 = vpop.permute.xlu0 %1628
      %v1632 = vsel %vm1485, %v1618, 0
      %v1635 = vsel %vm1485, %v1619, 0
      %vm1637 = vcmask 1043456
      %v1639 = vsel %vm1637, %v1629, 0
      %1641 = vmatprep.subr.bf16.mxu0 0
      %1642 = vmatpush1.bf16.msra.mxu0 %v1627
      %1643 = vmatprep.subr.bf16.mxu0 0
      %1644 = vmatpush1.bf16.msra.mxu0 %v1639
      %1645 = vmatprep.subr.bf16.mxu0 0
      %1646 = vmatpush1.bf16.msra.mxu0 0
      %1647 = vmatprep.subr.bf16.mxu0 0
      %1648 = vmatpush1.bf16.msra.mxu0 0
      %1649 = vmatprep.subr.bf16.mxu0 0
      %1650 = vmatpush1.bf16.msra.mxu0 0
      %1651 = vmatprep.subr.bf16.mxu0 0
      %1652 = vmatpush1.bf16.msra.mxu0 0
      %1653 = vmatprep.subr.bf16.mxu0 0
      %1654 = vmatpush1.bf16.msra.mxu0 0
      %1655 = vmatprep.subr.bf16.mxu0 0
      %1656 = vmatpush1.bf16.msra.mxu0 0
      %1657 = vmatprep.subr.bf16.mxu0 0
      %1658 = vmatpush1.bf16.msra.mxu0 0
      %1659 = vmatprep.subr.bf16.mxu0 0
      %1660 = vmatpush1.bf16.msra.mxu0 0
      %1661 = vmatprep.subr.bf16.mxu0 0
      %1662 = vmatpush1.bf16.msra.mxu0 0
      %1663 = vmatprep.subr.bf16.mxu0 0
      %1664 = vmatpush1.bf16.msra.mxu0 0
      %1665 = vmatprep.subr.bf16.mxu0 0
      %1666 = vmatpush1.bf16.msra.mxu0 0
      %1667 = vmatprep.subr.bf16.mxu0 0
      %1668 = vmatpush1.bf16.msra.mxu0 0
      %1669 = vmatprep.subr.bf16.mxu0 0
      %1670 = vmatpush1.bf16.msra.mxu0 0
      %1671 = vmatprep.subr.bf16.mxu0 0
      %1672 = vmatpush1.bf16.msra.mxu0 0
      %1673 = vmatprep.mubr.bf16.mxu0 0
      %1674 = vmatmul.mubr.bf16.gmra.mrb[0].mxu0 %v1632
      %v1675 = vpop.f32.mrb[0].mxu0
      %v1676 = vadd.f32 0.0, %v1675
      %v1677 = vpop.f32.mrb[0].mxu0
      %v1678 = vpop.f32.mrb[0].mxu0
      %v1679 = vadd.f32 0.0, %v1678
      %v1680 = vpop.f32.mrb[0].mxu0
      %1681 = vmatprep.mubr.bf16.mxu0 0
      %1682 = vmatmul.mubr.bf16.gmra.mrb[0].mxu0 %v1635
      %v1683 = vpop.f32.mrb[0].mxu0
      %v1684 = vadd.f32 0.0, %v1683
      %v1685 = vpop.f32.mrb[0].mxu0
      %v1686 = vpop.f32.mrb[0].mxu0
      %v1687 = vpop.f32.mrb[0].mxu0
      %1688 = vdwg.mxu0
      %1689 = vrot.lane.b32.xlu0 %v1202, 64
      %v1690 = vpop.permute.xlu0 %1689
      %1691 = vrot.lane.b32.xlu0 %v1203, 64
      %v1692 = vpop.permute.xlu0 %1691
      %v1695 = vsel %vm1485, %v1620, 0
      %v1698 = vsel %vm1485, %v1621, 0
      %v1701 = vsel %vm1637, %v1692, 0
      %1703 = vmatprep.subr.bf16.mxu0 0
      %1704 = vmatpush1.bf16.msra.mxu0 %v1690
      %1705 = vmatprep.subr.bf16.mxu0 0
      %1706 = vmatpush1.bf16.msra.mxu0 %v1701
      %1707 = vmatprep.subr.bf16.mxu0 0
      %1708 = vmatpush1.bf16.msra.mxu0 0
      %1709 = vmatprep.subr.bf16.mxu0 0
      %1710 = vmatpush1.bf16.msra.mxu0 0
      %1711 = vmatprep.subr.bf16.mxu0 0
      %1712 = vmatpush1.bf16.msra.mxu0 0
      %1713 = vmatprep.subr.bf16.mxu0 0
      %1714 = vmatpush1.bf16.msra.mxu0 0
      %1715 = vmatprep.subr.bf16.mxu0 0
      %1716 = vmatpush1.bf16.msra.mxu0 0
      %1717 = vmatprep.subr.bf16.mxu0 0
      %1718 = vmatpush1.bf16.msra.mxu0 0
      %1719 = vmatprep.subr.bf16.mxu0 0
      %1720 = vmatpush1.bf16.msra.mxu0 0
      %1721 = vmatprep.subr.bf16.mxu0 0
      %1722 = vmatpush1.bf16.msra.mxu0 0
      %1723 = vmatprep.subr.bf16.mxu0 0
      %1724 = vmatpush1.bf16.msra.mxu0 0
      %1725 = vmatprep.subr.bf16.mxu0 0
      %1726 = vmatpush1.bf16.msra.mxu0 0
      %1727 = vmatprep.subr.bf16.mxu0 0
      %1728 = vmatpush1.bf16.msra.mxu0 0
      %1729 = vmatprep.subr.bf16.mxu0 0
      %1730 = vmatpush1.bf16.msra.mxu0 0
      %1731 = vmatprep.subr.bf16.mxu0 0
      %1732 = vmatpush1.bf16.msra.mxu0 0
      %1733 = vmatprep.subr.bf16.mxu0 0
      %1734 = vmatpush1.bf16.msra.mxu0 0
      %1735 = vmatprep.mubr.bf16.mxu0 0
      %1736 = vmatmul.mubr.bf16.gmra.mrb[0].mxu0 %v1695
      %v1737 = vpop.f32.mrb[0].mxu0
      %v1738 = vadd.f32 0.0, %v1737
      %v1739 = vpop.f32.mrb[0].mxu0
      %v1740 = vpop.f32.mrb[0].mxu0
      %v1741 = vadd.f32 0.0, %v1740
      %v1742 = vpop.f32.mrb[0].mxu0
      %1743 = vmatprep.mubr.bf16.mxu0 0
      %1744 = vmatmul.mubr.bf16.gmra.mrb[0].mxu0 %v1698
      %v1745 = vpop.f32.mrb[0].mxu0
      %v1746 = vadd.f32 0.0, %v1745
      %v1747 = vpop.f32.mrb[0].mxu0
      %v1748 = vpop.f32.mrb[0].mxu0
      %v1749 = vpop.f32.mrb[0].mxu0
      %1750 = vdwg.mxu0
      %1751 = vrot.lane.b32.xlu0 %v1204, 64
      %v1752 = vpop.permute.xlu0 %1751
      %1753 = vrot.lane.b32.xlu0 %v1205, 64
      %v1754 = vpop.permute.xlu0 %1753
      %v1757 = vsel %vm1485, %v1622, 0
      %v1760 = vsel %vm1485, %v1623, 0
      %v1763 = vsel %vm1637, %v1754, 0
      %1765 = vmatprep.subr.bf16.mxu0 0
      %1766 = vmatpush1.bf16.msra.mxu0 %v1752
      %1767 = vmatprep.subr.bf16.mxu0 0
      %1768 = vmatpush1.bf16.msra.mxu0 %v1763
      %1769 = vmatprep.subr.bf16.mxu0 0
      %1770 = vmatpush1.bf16.msra.mxu0 0
      %1771 = vmatprep.subr.bf16.mxu0 0
      %1772 = vmatpush1.bf16.msra.mxu0 0
      %1773 = vmatprep.subr.bf16.mxu0 0
      %1774 = vmatpush1.bf16.msra.mxu0 0
      %1775 = vmatprep.subr.bf16.mxu0 0
      %1776 = vmatpush1.bf16.msra.mxu0 0
      %1777 = vmatprep.subr.bf16.mxu0 0
      %1778 = vmatpush1.bf16.msra.mxu0 0
      %1779 = vmatprep.subr.bf16.mxu0 0
      %1780 = vmatpush1.bf16.msra.mxu0 0
      %1781 = vmatprep.subr.bf16.mxu0 0
      %1782 = vmatpush1.bf16.msra.mxu0 0
      %1783 = vmatprep.subr.bf16.mxu0 0
      %1784 = vmatpush1.bf16.msra.mxu0 0
      %1785 = vmatprep.subr.bf16.mxu0 0
      %1786 = vmatpush1.bf16.msra.mxu0 0
      %1787 = vmatprep.subr.bf16.mxu0 0
      %1788 = vmatpush1.bf16.msra.mxu0 0
      %1789 = vmatprep.subr.bf16.mxu0 0
      %1790 = vmatpush1.bf16.msra.mxu0 0
      %1791 = vmatprep.subr.bf16.mxu0 0
      %1792 = vmatpush1.bf16.msra.mxu0 0
      %1793 = vmatprep.subr.bf16.mxu0 0
      %1794 = vmatpush1.bf16.msra.mxu0 0
      %1795 = vmatprep.subr.bf16.mxu0 0
      %1796 = vmatpush1.bf16.msra.mxu0 0
      %1797 = vmatprep.mubr.bf16.mxu0 0
      %1798 = vmatmul.mubr.bf16.gmra.mrb[0].mxu0 %v1757
      %v1799 = vpop.f32.mrb[0].mxu0
      %v1800 = vadd.f32 0.0, %v1799
      %v1801 = vpop.f32.mrb[0].mxu0
      %v1802 = vpop.f32.mrb[0].mxu0
      %v1803 = vadd.f32 0.0, %v1802
      %v1804 = vpop.f32.mrb[0].mxu0
      %1805 = vmatprep.mubr.bf16.mxu0 0
      %1806 = vmatmul.mubr.bf16.gmra.mrb[0].mxu0 %v1760
      %v1807 = vpop.f32.mrb[0].mxu0
      %v1808 = vadd.f32 0.0, %v1807
      %v1809 = vpop.f32.mrb[0].mxu0
      %v1810 = vpop.f32.mrb[0].mxu0
      %v1811 = vpop.f32.mrb[0].mxu0
      %1812 = vdwg.mxu0
      %1813 = vrot.lane.b32.xlu0 %v1206, 64
      %v1814 = vpop.permute.xlu0 %1813
      %1815 = vrot.lane.b32.xlu0 %v1207, 64
      %v1816 = vpop.permute.xlu0 %1815
      %v1819 = vsel %vm1485, %v1624, 0
      %v1822 = vsel %vm1485, %v1625, 0
      %v1825 = vsel %vm1637, %v1816, 0
      %1827 = vmatprep.subr.bf16.mxu0 0
      %1828 = vmatpush1.bf16.msra.mxu0 %v1814
      %1829 = vmatprep.subr.bf16.mxu0 0
      %1830 = vmatpush1.bf16.msra.mxu0 %v1825
      %1831 = vmatprep.subr.bf16.mxu0 0
      %1832 = vmatpush1.bf16.msra.mxu0 0
      %1833 = vmatprep.subr.bf16.mxu0 0
      %1834 = vmatpush1.bf16.msra.mxu0 0
      %1835 = vmatprep.subr.bf16.mxu0 0
      %1836 = vmatpush1.bf16.msra.mxu0 0
      %1837 = vmatprep.subr.bf16.mxu0 0
      %1838 = vmatpush1.bf16.msra.mxu0 0
      %1839 = vmatprep.subr.bf16.mxu0 0
      %1840 = vmatpush1.bf16.msra.mxu0 0
      %1841 = vmatprep.subr.bf16.mxu0 0
      %1842 = vmatpush1.bf16.msra.mxu0 0
      %1843 = vmatprep.subr.bf16.mxu0 0
      %1844 = vmatpush1.bf16.msra.mxu0 0
      %1845 = vmatprep.subr.bf16.mxu0 0
      %1846 = vmatpush1.bf16.msra.mxu0 0
      %1847 = vmatprep.subr.bf16.mxu0 0
      %1848 = vmatpush1.bf16.msra.mxu0 0
      %1849 = vmatprep.subr.bf16.mxu0 0
      %1850 = vmatpush1.bf16.msra.mxu0 0
      %1851 = vmatprep.subr.bf16.mxu0 0
      %1852 = vmatpush1.bf16.msra.mxu0 0
      %1853 = vmatprep.subr.bf16.mxu0 0
      %1854 = vmatpush1.bf16.msra.mxu0 0
      %1855 = vmatprep.subr.bf16.mxu0 0
      %1856 = vmatpush1.bf16.msra.mxu0 0
      %1857 = vmatprep.subr.bf16.mxu0 0
      %1858 = vmatpush1.bf16.msra.mxu0 0
      %1859 = vmatprep.mubr.bf16.mxu0 0
      %1860 = vmatmul.mubr.bf16.gmra.mrb[0].mxu0 %v1819
      %v1861 = vpop.f32.mrb[0].mxu0
      %v1862 = vadd.f32 0.0, %v1861
      %v1863 = vpop.f32.mrb[0].mxu0
      %v1864 = vpop.f32.mrb[0].mxu0
      %v1865 = vadd.f32 0.0, %v1864
      %v1866 = vpop.f32.mrb[0].mxu0
      %1867 = vmatprep.mubr.bf16.mxu0 0
      %1868 = vmatmul.mubr.bf16.gmra.mrb[0].mxu0 %v1822
      %v1869 = vpop.f32.mrb[0].mxu0
      %v1870 = vadd.f32 0.0, %v1869
      %v1871 = vpop.f32.mrb[0].mxu0
      %v1872 = vpop.f32.mrb[0].mxu0
      %v1873 = vpop.f32.mrb[0].mxu0
      %1874 = vdwg.mxu0
      %1875 = vrot.lane.b32.xlu0 %v1200, 120
      %v1876 = vpop.permute.xlu0 %1875
      %1877 = vrot.lane.b32.xlu0 %v1201, 120
      %v1878 = vpop.permute.xlu0 %1877
      %1879 = vrot.lane.b32.xlu0 %v1200, 88
      %v1880 = vpop.permute.xlu0 %1879
      %1881 = vrot.lane.b32.xlu0 %v1201, 88
      %v1882 = vpop.permute.xlu0 %1881
      %v1884 = vsel %vm1214, %v1876, 0
      %v1887 = vsel %vm1214, %v1878, 0
      %v1890 = vsel %vm1214, %v1880, 0
      %v1893 = vsel %vm1214, %v1882, 0
      %1895 = vmatprep.subr.bf16.mxu0 0
      %1896 = vmatpush1.bf16.xpose.msra.mxu0 %v1890
      %1897 = vmatprep.subr.bf16.mxu0 0
      %1898 = vmatpush1.bf16.xpose.msra.mxu0 %v1893
      %1899 = vmatprep.subr.bf16.mxu0 0
      %1900 = vmatpush1.bf16.xpose.msra.mxu0 0
      %1901 = vmatprep.subr.bf16.mxu0 0
      %1902 = vmatpush1.bf16.xpose.msra.mxu0 0
      %1903 = vmatprep.subr.bf16.mxu0 0
      %1904 = vmatpush1.bf16.xpose.msra.mxu0 0
      %1905 = vmatprep.subr.bf16.mxu0 0
      %1906 = vmatpush1.bf16.xpose.msra.mxu0 0
      %1907 = vmatprep.subr.bf16.mxu0 0
      %1908 = vmatpush1.bf16.xpose.msra.mxu0 0
      %1909 = vmatprep.subr.bf16.mxu0 0
      %1910 = vmatpush1.bf16.xpose.msra.mxu0 0
      %1911 = vmatprep.subr.bf16.mxu0 0
      %1912 = vmatpush1.bf16.xpose.msra.mxu0 0
      %1913 = vmatprep.subr.bf16.mxu0 0
      %1914 = vmatpush1.bf16.xpose.msra.mxu0 0
      %1915 = vmatprep.subr.bf16.mxu0 0
      %1916 = vmatpush1.bf16.xpose.msra.mxu0 0
      %1917 = vmatprep.subr.bf16.mxu0 0
      %1918 = vmatpush1.bf16.xpose.msra.mxu0 0
      %1919 = vmatprep.subr.bf16.mxu0 0
      %1920 = vmatpush1.bf16.xpose.msra.mxu0 0
      %1921 = vmatprep.subr.bf16.mxu0 0
      %1922 = vmatpush1.bf16.xpose.msra.mxu0 0
      %1923 = vmatprep.subr.bf16.mxu0 0
      %1924 = vmatpush1.bf16.xpose.msra.mxu0 0
      %1925 = vmatprep.subr.bf16.mxu0 0
      %1926 = vmatpush1.bf16.xpose.msra.mxu0 0
      %1927 = vmatprep.mubr.bf16.mxu0 0
      %1928 = vmatmul.mubr.bf16.gmra.mrb[0].mxu0 %v1884
      %v1929 = vpop.f32.mrb[0].mxu0
      %v1930 = vadd.f32 0.0, %v1929
      %v1931 = vpop.f32.mrb[0].mxu0
      %v1932 = vpop.f32.mrb[0].mxu0
      %v1933 = vadd.f32 0.0, %v1932
      %v1934 = vpop.f32.mrb[0].mxu0
      %1935 = vmatprep.mubr.bf16.mxu0 0
      %1936 = vmatmul.mubr.bf16.gmra.mrb[0].mxu0 %v1887
      %v1937 = vpop.f32.mrb[0].mxu0
      %v1938 = vadd.f32 0.0, %v1937
      %v1939 = vpop.f32.mrb[0].mxu0
      %v1940 = vpop.f32.mrb[0].mxu0
      %v1941 = vpop.f32.mrb[0].mxu0
      %1942 = vdwg.mxu0
      %1943 = vrot.lane.b32.xlu0 %v1202, 120
      %v1944 = vpop.permute.xlu0 %1943
      %1945 = vrot.lane.b32.xlu0 %v1203, 120
      %v1946 = vpop.permute.xlu0 %1945
      %1947 = vrot.lane.b32.xlu0 %v1202, 88
      %v1948 = vpop.permute.xlu0 %1947
      %1949 = vrot.lane.b32.xlu0 %v1203, 88
      %v1950 = vpop.permute.xlu0 %1949
      %v1952 = vsel %vm1214, %v1944, 0
      %v1955 = vsel %vm1214, %v1946, 0
      %v1958 = vsel %vm1214, %v1948, 0
      %v1961 = vsel %vm1214, %v1950, 0
      %1963 = vmatprep.subr.bf16.mxu0 0
      %1964 = vmatpush1.bf16.xpose.msra.mxu0 %v1958
      %1965 = vmatprep.subr.bf16.mxu0 0
      %1966 = vmatpush1.bf16.xpose.msra.mxu0 %v1961
      %1967 = vmatprep.subr.bf16.mxu0 0
      %1968 = vmatpush1.bf16.xpose.msra.mxu0 0
      %1969 = vmatprep.subr.bf16.mxu0 0
      %1970 = vmatpush1.bf16.xpose.msra.mxu0 0
      %1971 = vmatprep.subr.bf16.mxu0 0
      %1972 = vmatpush1.bf16.xpose.msra.mxu0 0
      %1973 = vmatprep.subr.bf16.mxu0 0
      %1974 = vmatpush1.bf16.xpose.msra.mxu0 0
      %1975 = vmatprep.subr.bf16.mxu0 0
      %1976 = vmatpush1.bf16.xpose.msra.mxu0 0
      %1977 = vmatprep.subr.bf16.mxu0 0
      %1978 = vmatpush1.bf16.xpose.msra.mxu0 0
      %1979 = vmatprep.subr.bf16.mxu0 0
      %1980 = vmatpush1.bf16.xpose.msra.mxu0 0
      %1981 = vmatprep.subr.bf16.mxu0 0
      %1982 = vmatpush1.bf16.xpose.msra.mxu0 0
      %1983 = vmatprep.subr.bf16.mxu0 0
      %1984 = vmatpush1.bf16.xpose.msra.mxu0 0
      %1985 = vmatprep.subr.bf16.mxu0 0
      %1986 = vmatpush1.bf16.xpose.msra.mxu0 0
      %1987 = vmatprep.subr.bf16.mxu0 0
      %1988 = vmatpush1.bf16.xpose.msra.mxu0 0
      %1989 = vmatprep.subr.bf16.mxu0 0
      %1990 = vmatpush1.bf16.xpose.msra.mxu0 0
      %1991 = vmatprep.subr.bf16.mxu0 0
      %1992 = vmatpush1.bf16.xpose.msra.mxu0 0
      %1993 = vmatprep.subr.bf16.mxu0 0
      %1994 = vmatpush1.bf16.xpose.msra.mxu0 0
      %1995 = vmatprep.mubr.bf16.mxu0 0
      %1996 = vmatmul.mubr.bf16.gmra.mrb[0].mxu0 %v1952
      %v1997 = vpop.f32.mrb[0].mxu0
      %v1998 = vadd.f32 0.0, %v1997
      %v1999 = vpop.f32.mrb[0].mxu0
      %v2000 = vpop.f32.mrb[0].mxu0
      %v2001 = vadd.f32 0.0, %v2000
      %v2002 = vpop.f32.mrb[0].mxu0
      %2003 = vmatprep.mubr.bf16.mxu0 0
      %2004 = vmatmul.mubr.bf16.gmra.mrb[0].mxu0 %v1955
      %v2005 = vpop.f32.mrb[0].mxu0
      %v2006 = vadd.f32 0.0, %v2005
      %v2007 = vpop.f32.mrb[0].mxu0
      %v2008 = vpop.f32.mrb[0].mxu0
      %v2009 = vpop.f32.mrb[0].mxu0
      %2010 = vdwg.mxu0
      %2011 = vrot.lane.b32.xlu0 %v1204, 120
      %v2012 = vpop.permute.xlu0 %2011
      %2013 = vrot.lane.b32.xlu0 %v1205, 120
      %v2014 = vpop.permute.xlu0 %2013
      %2015 = vrot.lane.b32.xlu0 %v1204, 88
      %v2016 = vpop.permute.xlu0 %2015
      %2017 = vrot.lane.b32.xlu0 %v1205, 88
      %v2018 = vpop.permute.xlu0 %2017
      %v2020 = vsel %vm1214, %v2012, 0
      %v2023 = vsel %vm1214, %v2014, 0
      %v2026 = vsel %vm1214, %v2016, 0
      %v2029 = vsel %vm1214, %v2018, 0
      %2031 = vmatprep.subr.bf16.mxu0 0
      %2032 = vmatpush1.bf16.xpose.msra.mxu0 %v2026
      %2033 = vmatprep.subr.bf16.mxu0 0
      %2034 = vmatpush1.bf16.xpose.msra.mxu0 %v2029
      %2035 = vmatprep.subr.bf16.mxu0 0
      %2036 = vmatpush1.bf16.xpose.msra.mxu0 0
      %2037 = vmatprep.subr.bf16.mxu0 0
      %2038 = vmatpush1.bf16.xpose.msra.mxu0 0
      %2039 = vmatprep.subr.bf16.mxu0 0
      %2040 = vmatpush1.bf16.xpose.msra.mxu0 0
      %2041 = vmatprep.subr.bf16.mxu0 0
      %2042 = vmatpush1.bf16.xpose.msra.mxu0 0
      %2043 = vmatprep.subr.bf16.mxu0 0
      %2044 = vmatpush1.bf16.xpose.msra.mxu0 0
      %2045 = vmatprep.subr.bf16.mxu0 0
      %2046 = vmatpush1.bf16.xpose.msra.mxu0 0
      %2047 = vmatprep.subr.bf16.mxu0 0
      %2048 = vmatpush1.bf16.xpose.msra.mxu0 0
      %2049 = vmatprep.subr.bf16.mxu0 0
      %2050 = vmatpush1.bf16.xpose.msra.mxu0 0
      %2051 = vmatprep.subr.bf16.mxu0 0
      %2052 = vmatpush1.bf16.xpose.msra.mxu0 0
      %2053 = vmatprep.subr.bf16.mxu0 0
      %2054 = vmatpush1.bf16.xpose.msra.mxu0 0
      %2055 = vmatprep.subr.bf16.mxu0 0
      %2056 = vmatpush1.bf16.xpose.msra.mxu0 0
      %2057 = vmatprep.subr.bf16.mxu0 0
      %2058 = vmatpush1.bf16.xpose.msra.mxu0 0
      %2059 = vmatprep.subr.bf16.mxu0 0
      %2060 = vmatpush1.bf16.xpose.msra.mxu0 0
      %2061 = vmatprep.subr.bf16.mxu0 0
      %2062 = vmatpush1.bf16.xpose.msra.mxu0 0
      %2063 = vmatprep.mubr.bf16.mxu0 0
      %2064 = vmatmul.mubr.bf16.gmra.mrb[0].mxu0 %v2020
      %v2065 = vpop.f32.mrb[0].mxu0
      %v2066 = vadd.f32 0.0, %v2065
      %v2067 = vpop.f32.mrb[0].mxu0
      %v2068 = vpop.f32.mrb[0].mxu0
      %v2069 = vadd.f32 0.0, %v2068
      %v2070 = vpop.f32.mrb[0].mxu0
      %2071 = vmatprep.mubr.bf16.mxu0 0
      %2072 = vmatmul.mubr.bf16.gmra.mrb[0].mxu0 %v2023
      %v2073 = vpop.f32.mrb[0].mxu0
      %v2074 = vadd.f32 0.0, %v2073
      %v2075 = vpop.f32.mrb[0].mxu0
      %v2076 = vpop.f32.mrb[0].mxu0
      %v2077 = vpop.f32.mrb[0].mxu0
      %2078 = vdwg.mxu0
      %2079 = vrot.lane.b32.xlu0 %v1206, 120
      %v2080 = vpop.permute.xlu0 %2079
      %2081 = vrot.lane.b32.xlu0 %v1207, 120
      %v2082 = vpop.permute.xlu0 %2081
      %2083 = vrot.lane.b32.xlu0 %v1206, 88
      %v2084 = vpop.permute.xlu0 %2083
      %2085 = vrot.lane.b32.xlu0 %v1207, 88
      %v2086 = vpop.permute.xlu0 %2085
      %v2088 = vsel %vm1214, %v2080, 0
      %v2091 = vsel %vm1214, %v2082, 0
      %v2094 = vsel %vm1214, %v2084, 0
      %v2097 = vsel %vm1214, %v2086, 0
      %2099 = vmatprep.subr.bf16.mxu0 0
      %2100 = vmatpush1.bf16.xpose.msra.mxu0 %v2094
      %2101 = vmatprep.subr.bf16.mxu0 0
      %2102 = vmatpush1.bf16.xpose.msra.mxu0 %v2097
      %2103 = vmatprep.subr.bf16.mxu0 0
      %2104 = vmatpush1.bf16.xpose.msra.mxu0 0
      %2105 = vmatprep.subr.bf16.mxu0 0
      %2106 = vmatpush1.bf16.xpose.msra.mxu0 0
      %2107 = vmatprep.subr.bf16.mxu0 0
      %2108 = vmatpush1.bf16.xpose.msra.mxu0 0
      %2109 = vmatprep.subr.bf16.mxu0 0
      %2110 = vmatpush1.bf16.xpose.msra.mxu0 0
      %2111 = vmatprep.subr.bf16.mxu0 0
      %2112 = vmatpush1.bf16.xpose.msra.mxu0 0
      %2113 = vmatprep.subr.bf16.mxu0 0
      %2114 = vmatpush1.bf16.xpose.msra.mxu0 0
      %2115 = vmatprep.subr.bf16.mxu0 0
      %2116 = vmatpush1.bf16.xpose.msra.mxu0 0
      %2117 = vmatprep.subr.bf16.mxu0 0
      %2118 = vmatpush1.bf16.xpose.msra.mxu0 0
      %2119 = vmatprep.subr.bf16.mxu0 0
      %2120 = vmatpush1.bf16.xpose.msra.mxu0 0
      %2121 = vmatprep.subr.bf16.mxu0 0
      %2122 = vmatpush1.bf16.xpose.msra.mxu0 0
      %2123 = vmatprep.subr.bf16.mxu0 0
      %2124 = vmatpush1.bf16.xpose.msra.mxu0 0
      %2125 = vmatprep.subr.bf16.mxu0 0
      %2126 = vmatpush1.bf16.xpose.msra.mxu0 0
      %2127 = vmatprep.subr.bf16.mxu0 0
      %2128 = vmatpush1.bf16.xpose.msra.mxu0 0
      %2129 = vmatprep.subr.bf16.mxu0 0
      %2130 = vmatpush1.bf16.xpose.msra.mxu0 0
      %2131 = vmatprep.mubr.bf16.mxu0 0
      %2132 = vmatmul.mubr.bf16.gmra.mrb[0].mxu0 %v2088
      %v2133 = vpop.f32.mrb[0].mxu0
      %v2134 = vadd.f32 0.0, %v2133
      %v2135 = vpop.f32.mrb[0].mxu0
      %v2136 = vpop.f32.mrb[0].mxu0
      %v2137 = vadd.f32 0.0, %v2136
      %v2138 = vpop.f32.mrb[0].mxu0
      %2139 = vmatprep.mubr.bf16.mxu0 0
      %2140 = vmatmul.mubr.bf16.gmra.mrb[0].mxu0 %v2091
      %v2141 = vpop.f32.mrb[0].mxu0
      %v2142 = vadd.f32 0.0, %v2141
      %v2143 = vpop.f32.mrb[0].mxu0
      %v2144 = vpop.f32.mrb[0].mxu0
      %v2145 = vpop.f32.mrb[0].mxu0
      %2146 = vdwg.mxu0
      %v2147 = vsel %vm882, %v1930, -1e+30
      %v2148 = vsel %vm882, %v1933, -1e+30
      %v2149 = vsel %vm882, %v1938, -1e+30
      %v2150 = vsel %vm882, %v1998, -1e+30
      %v2151 = vsel %vm882, %v2001, -1e+30
      %v2152 = vsel %vm882, %v2006, -1e+30
      %v2153 = vsel %vm882, %v2066, -1e+30
      %v2154 = vsel %vm882, %v2069, -1e+30
      %v2155 = vsel %vm882, %v2074, -1e+30
      %v2156 = vsel %vm882, %v2134, -1e+30
      %v2157 = vsel %vm882, %v2137, -1e+30
      %v2158 = vsel %vm882, %v2142, -1e+30
      %v2159 = vsel %vm1485, %v2147, -inf
      %2160 = vmax.xlane.f32.xlu0 %v2159
      %v2161 = vpop.xlane.xlu0 %2160
      %v2162 = vsel %vm1485, %v2148, -inf
      %2163 = vmax.xlane.f32.xlu0 %v2162
      %v2164 = vpop.xlane.xlu0 %2163
      %v2165 = vsel %vm1485, %v2149, -inf
      %2166 = vmax.xlane.f32.xlu0 %v2165
      %v2167 = vpop.xlane.xlu0 %2166
      %v2168 = vsel %vm1485, %v2150, -inf
      %2169 = vmax.xlane.f32.xlu0 %v2168
      %v2170 = vpop.xlane.xlu0 %2169
      %v2171 = vsel %vm1485, %v2151, -inf
      %2172 = vmax.xlane.f32.xlu0 %v2171
      %v2173 = vpop.xlane.xlu0 %2172
      %v2174 = vsel %vm1485, %v2152, -inf
      %2175 = vmax.xlane.f32.xlu0 %v2174
      %v2176 = vpop.xlane.xlu0 %2175
      %v2177 = vsel %vm1485, %v2153, -inf
      %2178 = vmax.xlane.f32.xlu0 %v2177
      %v2179 = vpop.xlane.xlu0 %2178
      %v2180 = vsel %vm1485, %v2154, -inf
      %2181 = vmax.xlane.f32.xlu0 %v2180
      %v2182 = vpop.xlane.xlu0 %2181
      %v2183 = vsel %vm1485, %v2155, -inf
      %2184 = vmax.xlane.f32.xlu0 %v2183
      %v2185 = vpop.xlane.xlu0 %2184
      %v2186 = vsel %vm1485, %v2156, -inf
      %2187 = vmax.xlane.f32.xlu0 %v2186
      %v2188 = vpop.xlane.xlu0 %2187
      %v2189 = vsel %vm1485, %v2157, -inf
      %2190 = vmax.xlane.f32.xlu0 %v2189
      %v2191 = vpop.xlane.xlu0 %2190
      %v2192 = vsel %vm1485, %v2158, -inf
      %2193 = vmax.xlane.f32.xlu0 %v2192
      %v2194 = vpop.xlane.xlu0 %2193
      %v2195 = vsub.f32 %v2147, %v2161
      %v2196 = vsub.f32 %v2148, %v2164
      %v2197 = vsub.f32 %v2149, %v2167
      %v2198 = vsub.f32 %v2150, %v2170
      %v2199 = vsub.f32 %v2151, %v2173
      %v2200 = vsub.f32 %v2152, %v2176
      %v2201 = vsub.f32 %v2153, %v2179
      %v2202 = vsub.f32 %v2154, %v2182
      %v2203 = vsub.f32 %v2155, %v2185
      %v2204 = vsub.f32 %v2156, %v2188
      %v2205 = vsub.f32 %v2157, %v2191
      %v2206 = vsub.f32 %v2158, %v2194
      %v2207 = vmul.f32 %v2195, 1.442695
      %v2208 = vpow.pop %v2207
      %v2209 = vmul.f32 %v2196, 1.442695
      %v2210 = vpow.pop %v2209
      %v2211 = vmul.f32 %v2197, 1.442695
      %v2212 = vpow.pop %v2211
      %v2213 = vmul.f32 %v2198, 1.442695
      %v2214 = vpow.pop %v2213
      %v2215 = vmul.f32 %v2199, 1.442695
      %v2216 = vpow.pop %v2215
      %v2217 = vmul.f32 %v2200, 1.442695
      %v2218 = vpow.pop %v2217
      %v2219 = vmul.f32 %v2201, 1.442695
      %v2220 = vpow.pop %v2219
      %v2221 = vmul.f32 %v2202, 1.442695
      %v2222 = vpow.pop %v2221
      %v2223 = vmul.f32 %v2203, 1.442695
      %v2224 = vpow.pop %v2223
      %v2225 = vmul.f32 %v2204, 1.442695
      %v2226 = vpow.pop %v2225
      %v2227 = vmul.f32 %v2205, 1.442695
      %v2228 = vpow.pop %v2227
      %v2229 = vmul.f32 %v2206, 1.442695
      %v2230 = vpow.pop %v2229
      %v2231 = vsel %vm1485, %v2208, 0.0
      %2232 = vadd.xlane.f32.xlu0 %v2231
      %v2233 = vpop.xlane.xlu0 %2232
      %v2234 = vsel %vm1485, %v2210, 0.0
      %2235 = vadd.xlane.f32.xlu0 %v2234
      %v2236 = vpop.xlane.xlu0 %2235
      %v2237 = vsel %vm1485, %v2212, 0.0
      %2238 = vadd.xlane.f32.xlu0 %v2237
      %v2239 = vpop.xlane.xlu0 %2238
      %v2240 = vsel %vm1485, %v2214, 0.0
      %2241 = vadd.xlane.f32.xlu0 %v2240
      %v2242 = vpop.xlane.xlu0 %2241
      %v2243 = vsel %vm1485, %v2216, 0.0
      %2244 = vadd.xlane.f32.xlu0 %v2243
      %v2245 = vpop.xlane.xlu0 %2244
      %v2246 = vsel %vm1485, %v2218, 0.0
      %2247 = vadd.xlane.f32.xlu0 %v2246
      %v2248 = vpop.xlane.xlu0 %2247
      %v2249 = vsel %vm1485, %v2220, 0.0
      %2250 = vadd.xlane.f32.xlu0 %v2249
      %v2251 = vpop.xlane.xlu0 %2250
      %v2252 = vsel %vm1485, %v2222, 0.0
      %2253 = vadd.xlane.f32.xlu0 %v2252
      %v2254 = vpop.xlane.xlu0 %2253
      %v2255 = vsel %vm1485, %v2224, 0.0
      %2256 = vadd.xlane.f32.xlu0 %v2255
      %v2257 = vpop.xlane.xlu0 %2256
      %v2258 = vsel %vm1485, %v2226, 0.0
      %2259 = vadd.xlane.f32.xlu0 %v2258
      %v2260 = vpop.xlane.xlu0 %2259
      %v2261 = vsel %vm1485, %v2228, 0.0
      %2262 = vadd.xlane.f32.xlu0 %v2261
      %v2263 = vpop.xlane.xlu0 %2262
      %v2264 = vsel %vm1485, %v2230, 0.0
      %2265 = vadd.xlane.f32.xlu0 %v2264
      %v2266 = vpop.xlane.xlu0 %2265
      %v2267 = vrcp.pop %v2233
      %v2268 = vrcp.pop %v2236
      %v2269 = vrcp.pop %v2239
      %v2270 = vrcp.pop %v2242
      %v2271 = vrcp.pop %v2245
      %v2272 = vrcp.pop %v2248
      %v2273 = vrcp.pop %v2251
      %v2274 = vrcp.pop %v2254
      %v2275 = vrcp.pop %v2257
      %v2276 = vrcp.pop %v2260
      %v2277 = vrcp.pop %v2263
      %v2278 = vrcp.pop %v2266
      %v2279 = vmul.f32 %v2208, %v2267
      %v2280 = vmul.f32 %v2210, %v2268
      %v2281 = vmul.f32 %v2212, %v2269
      %v2282 = vmul.f32 %v2214, %v2270
      %v2283 = vmul.f32 %v2216, %v2271
      %v2284 = vmul.f32 %v2218, %v2272
      %v2285 = vmul.f32 %v2220, %v2273
      %v2286 = vmul.f32 %v2222, %v2274
      %v2287 = vmul.f32 %v2224, %v2275
      %v2288 = vmul.f32 %v2226, %v2276
      %v2289 = vmul.f32 %v2228, %v2277
      %v2290 = vmul.f32 %v2230, %v2278
      %v2291 = vpack.c.bf16 %v2280, %v2279
      %v2292 = vpack.c.bf16 %v2281, %v2281
      %v2293 = vpack.c.bf16 %v2283, %v2282
      %v2294 = vpack.c.bf16 %v2284, %v2284
      %v2295 = vpack.c.bf16 %v2286, %v2285
      %v2296 = vpack.c.bf16 %v2287, %v2287
      %v2297 = vpack.c.bf16 %v2289, %v2288
      %v2298 = vpack.c.bf16 %v2290, %v2290
      %2299 = vrot.lane.b32.xlu0 %v1200, 56
      %v2300 = vpop.permute.xlu0 %2299
      %2301 = vrot.lane.b32.xlu0 %v1201, 56
      %v2302 = vpop.permute.xlu0 %2301
      %v2305 = vsel %vm1485, %v2291, 0
      %v2308 = vsel %vm1485, %v2292, 0
      %v2311 = vsel %vm1637, %v2302, 0
      %2313 = vmatprep.subr.bf16.mxu0 0
      %2314 = vmatpush1.bf16.msra.mxu0 %v2300
      %2315 = vmatprep.subr.bf16.mxu0 0
      %2316 = vmatpush1.bf16.msra.mxu0 %v2311
      %2317 = vmatprep.subr.bf16.mxu0 0
      %2318 = vmatpush1.bf16.msra.mxu0 0
      %2319 = vmatprep.subr.bf16.mxu0 0
      %2320 = vmatpush1.bf16.msra.mxu0 0
      %2321 = vmatprep.subr.bf16.mxu0 0
      %2322 = vmatpush1.bf16.msra.mxu0 0
      %2323 = vmatprep.subr.bf16.mxu0 0
      %2324 = vmatpush1.bf16.msra.mxu0 0
      %2325 = vmatprep.subr.bf16.mxu0 0
      %2326 = vmatpush1.bf16.msra.mxu0 0
      %2327 = vmatprep.subr.bf16.mxu0 0
      %2328 = vmatpush1.bf16.msra.mxu0 0
      %2329 = vmatprep.subr.bf16.mxu0 0
      %2330 = vmatpush1.bf16.msra.mxu0 0
      %2331 = vmatprep.subr.bf16.mxu0 0
      %2332 = vmatpush1.bf16.msra.mxu0 0
      %2333 = vmatprep.subr.bf16.mxu0 0
      %2334 = vmatpush1.bf16.msra.mxu0 0
      %2335 = vmatprep.subr.bf16.mxu0 0
      %2336 = vmatpush1.bf16.msra.mxu0 0
      %2337 = vmatprep.subr.bf16.mxu0 0
      %2338 = vmatpush1.bf16.msra.mxu0 0
      %2339 = vmatprep.subr.bf16.mxu0 0
      %2340 = vmatpush1.bf16.msra.mxu0 0
      %2341 = vmatprep.subr.bf16.mxu0 0
      %2342 = vmatpush1.bf16.msra.mxu0 0
      %2343 = vmatprep.subr.bf16.mxu0 0
      %2344 = vmatpush1.bf16.msra.mxu0 0
      %2345 = vmatprep.mubr.bf16.mxu0 0
      %2346 = vmatmul.mubr.bf16.gmra.mrb[0].mxu0 %v2305
      %v2347 = vpop.f32.mrb[0].mxu0
      %v2348 = vadd.f32 0.0, %v2347
      %v2349 = vpop.f32.mrb[0].mxu0
      %v2350 = vpop.f32.mrb[0].mxu0
      %v2351 = vadd.f32 0.0, %v2350
      %v2352 = vpop.f32.mrb[0].mxu0
      %2353 = vmatprep.mubr.bf16.mxu0 0
      %2354 = vmatmul.mubr.bf16.gmra.mrb[0].mxu0 %v2308
      %v2355 = vpop.f32.mrb[0].mxu0
      %v2356 = vadd.f32 0.0, %v2355
      %v2357 = vpop.f32.mrb[0].mxu0
      %v2358 = vpop.f32.mrb[0].mxu0
      %v2359 = vpop.f32.mrb[0].mxu0
      %2360 = vdwg.mxu0
      %2361 = vrot.lane.b32.xlu0 %v1202, 56
      %v2362 = vpop.permute.xlu0 %2361
      %2363 = vrot.lane.b32.xlu0 %v1203, 56
      %v2364 = vpop.permute.xlu0 %2363
      %v2367 = vsel %vm1485, %v2293, 0
      %v2370 = vsel %vm1485, %v2294, 0
      %v2373 = vsel %vm1637, %v2364, 0
      %2375 = vmatprep.subr.bf16.mxu0 0
      %2376 = vmatpush1.bf16.msra.mxu0 %v2362
      %2377 = vmatprep.subr.bf16.mxu0 0
      %2378 = vmatpush1.bf16.msra.mxu0 %v2373
      %2379 = vmatprep.subr.bf16.mxu0 0
      %2380 = vmatpush1.bf16.msra.mxu0 0
      %2381 = vmatprep.subr.bf16.mxu0 0
      %2382 = vmatpush1.bf16.msra.mxu0 0
      %2383 = vmatprep.subr.bf16.mxu0 0
      %2384 = vmatpush1.bf16.msra.mxu0 0
      %2385 = vmatprep.subr.bf16.mxu0 0
      %2386 = vmatpush1.bf16.msra.mxu0 0
      %2387 = vmatprep.subr.bf16.mxu0 0
      %2388 = vmatpush1.bf16.msra.mxu0 0
      %2389 = vmatprep.subr.bf16.mxu0 0
      %2390 = vmatpush1.bf16.msra.mxu0 0
      %2391 = vmatprep.subr.bf16.mxu0 0
      %2392 = vmatpush1.bf16.msra.mxu0 0
      %2393 = vmatprep.subr.bf16.mxu0 0
      %2394 = vmatpush1.bf16.msra.mxu0 0
      %2395 = vmatprep.subr.bf16.mxu0 0
      %2396 = vmatpush1.bf16.msra.mxu0 0
      %2397 = vmatprep.subr.bf16.mxu0 0
      %2398 = vmatpush1.bf16.msra.mxu0 0
      %2399 = vmatprep.subr.bf16.mxu0 0
      %2400 = vmatpush1.bf16.msra.mxu0 0
      %2401 = vmatprep.subr.bf16.mxu0 0
      %2402 = vmatpush1.bf16.msra.mxu0 0
      %2403 = vmatprep.subr.bf16.mxu0 0
      %2404 = vmatpush1.bf16.msra.mxu0 0
      %2405 = vmatprep.subr.bf16.mxu0 0
      %2406 = vmatpush1.bf16.msra.mxu0 0
      %2407 = vmatprep.mubr.bf16.mxu0 0
      %2408 = vmatmul.mubr.bf16.gmra.mrb[0].mxu0 %v2367
      %v2409 = vpop.f32.mrb[0].mxu0
      %v2410 = vadd.f32 0.0, %v2409
      %v2411 = vpop.f32.mrb[0].mxu0
      %v2412 = vpop.f32.mrb[0].mxu0
      %v2413 = vadd.f32 0.0, %v2412
      %v2414 = vpop.f32.mrb[0].mxu0
      %2415 = vmatprep.mubr.bf16.mxu0 0
      %2416 = vmatmul.mubr.bf16.gmra.mrb[0].mxu0 %v2370
      %v2417 = vpop.f32.mrb[0].mxu0
      %v2418 = vadd.f32 0.0, %v2417
      %v2419 = vpop.f32.mrb[0].mxu0
      %v2420 = vpop.f32.mrb[0].mxu0
      %v2421 = vpop.f32.mrb[0].mxu0
      %2422 = vdwg.mxu0
      %2423 = vrot.lane.b32.xlu0 %v1204, 56
      %v2424 = vpop.permute.xlu0 %2423
      %2425 = vrot.lane.b32.xlu0 %v1205, 56
      %v2426 = vpop.permute.xlu0 %2425
      %v2429 = vsel %vm1485, %v2295, 0
      %v2432 = vsel %vm1485, %v2296, 0
      %v2435 = vsel %vm1637, %v2426, 0
      %2437 = vmatprep.subr.bf16.mxu0 0
      %2438 = vmatpush1.bf16.msra.mxu0 %v2424
      %2439 = vmatprep.subr.bf16.mxu0 0
      %2440 = vmatpush1.bf16.msra.mxu0 %v2435
      %2441 = vmatprep.subr.bf16.mxu0 0
      %2442 = vmatpush1.bf16.msra.mxu0 0
      %2443 = vmatprep.subr.bf16.mxu0 0
      %2444 = vmatpush1.bf16.msra.mxu0 0
      %2445 = vmatprep.subr.bf16.mxu0 0
      %2446 = vmatpush1.bf16.msra.mxu0 0
      %2447 = vmatprep.subr.bf16.mxu0 0
      %2448 = vmatpush1.bf16.msra.mxu0 0
      %2449 = vmatprep.subr.bf16.mxu0 0
      %2450 = vmatpush1.bf16.msra.mxu0 0
      %2451 = vmatprep.subr.bf16.mxu0 0
      %2452 = vmatpush1.bf16.msra.mxu0 0
      %2453 = vmatprep.subr.bf16.mxu0 0
      %2454 = vmatpush1.bf16.msra.mxu0 0
      %2455 = vmatprep.subr.bf16.mxu0 0
      %2456 = vmatpush1.bf16.msra.mxu0 0
      %2457 = vmatprep.subr.bf16.mxu0 0
      %2458 = vmatpush1.bf16.msra.mxu0 0
      %2459 = vmatprep.subr.bf16.mxu0 0
      %2460 = vmatpush1.bf16.msra.mxu0 0
      %2461 = vmatprep.subr.bf16.mxu0 0
      %2462 = vmatpush1.bf16.msra.mxu0 0
      %2463 = vmatprep.subr.bf16.mxu0 0
      %2464 = vmatpush1.bf16.msra.mxu0 0
      %2465 = vmatprep.subr.bf16.mxu0 0
      %2466 = vmatpush1.bf16.msra.mxu0 0
      %2467 = vmatprep.subr.bf16.mxu0 0
      %2468 = vmatpush1.bf16.msra.mxu0 0
      %2469 = vmatprep.mubr.bf16.mxu0 0
      %2470 = vmatmul.mubr.bf16.gmra.mrb[0].mxu0 %v2429
      %v2471 = vpop.f32.mrb[0].mxu0
      %v2472 = vadd.f32 0.0, %v2471
      %v2473 = vpop.f32.mrb[0].mxu0
      %v2474 = vpop.f32.mrb[0].mxu0
      %v2475 = vadd.f32 0.0, %v2474
      %v2476 = vpop.f32.mrb[0].mxu0
      %2477 = vmatprep.mubr.bf16.mxu0 0
      %2478 = vmatmul.mubr.bf16.gmra.mrb[0].mxu0 %v2432
      %v2479 = vpop.f32.mrb[0].mxu0
      %v2480 = vadd.f32 0.0, %v2479
      %v2481 = vpop.f32.mrb[0].mxu0
      %v2482 = vpop.f32.mrb[0].mxu0
      %v2483 = vpop.f32.mrb[0].mxu0
      %2484 = vdwg.mxu0
      %2485 = vrot.lane.b32.xlu0 %v1206, 56
      %v2486 = vpop.permute.xlu0 %2485
      %2487 = vrot.lane.b32.xlu0 %v1207, 56
      %v2488 = vpop.permute.xlu0 %2487
      %v2491 = vsel %vm1485, %v2297, 0
      %v2494 = vsel %vm1485, %v2298, 0
      %v2497 = vsel %vm1637, %v2488, 0
      %2499 = vmatprep.subr.bf16.mxu0 0
      %2500 = vmatpush1.bf16.msra.mxu0 %v2486
      %2501 = vmatprep.subr.bf16.mxu0 0
      %2502 = vmatpush1.bf16.msra.mxu0 %v2497
      %2503 = vmatprep.subr.bf16.mxu0 0
      %2504 = vmatpush1.bf16.msra.mxu0 0
      %2505 = vmatprep.subr.bf16.mxu0 0
      %2506 = vmatpush1.bf16.msra.mxu0 0
      %2507 = vmatprep.subr.bf16.mxu0 0
      %2508 = vmatpush1.bf16.msra.mxu0 0
      %2509 = vmatprep.subr.bf16.mxu0 0
      %2510 = vmatpush1.bf16.msra.mxu0 0
      %2511 = vmatprep.subr.bf16.mxu0 0
      %2512 = vmatpush1.bf16.msra.mxu0 0
      %2513 = vmatprep.subr.bf16.mxu0 0
      %2514 = vmatpush1.bf16.msra.mxu0 0
      %2515 = vmatprep.subr.bf16.mxu0 0
      %2516 = vmatpush1.bf16.msra.mxu0 0
      %2517 = vmatprep.subr.bf16.mxu0 0
      %2518 = vmatpush1.bf16.msra.mxu0 0
      %2519 = vmatprep.subr.bf16.mxu0 0
      %2520 = vmatpush1.bf16.msra.mxu0 0
      %2521 = vmatprep.subr.bf16.mxu0 0
      %2522 = vmatpush1.bf16.msra.mxu0 0
      %2523 = vmatprep.subr.bf16.mxu0 0
      %2524 = vmatpush1.bf16.msra.mxu0 0
      %2525 = vmatprep.subr.bf16.mxu0 0
      %2526 = vmatpush1.bf16.msra.mxu0 0
      %2527 = vmatprep.subr.bf16.mxu0 0
      %2528 = vmatpush1.bf16.msra.mxu0 0
      %2529 = vmatprep.subr.bf16.mxu0 0
      %2530 = vmatpush1.bf16.msra.mxu0 0
      %2531 = vmatprep.mubr.bf16.mxu0 0
      %2532 = vmatmul.mubr.bf16.gmra.mrb[0].mxu0 %v2491
      %v2533 = vpop.f32.mrb[0].mxu0
      %v2534 = vadd.f32 0.0, %v2533
      %v2535 = vpop.f32.mrb[0].mxu0
      %v2536 = vpop.f32.mrb[0].mxu0
      %v2537 = vadd.f32 0.0, %v2536
      %v2538 = vpop.f32.mrb[0].mxu0
      %2539 = vmatprep.mubr.bf16.mxu0 0
      %2540 = vmatmul.mubr.bf16.gmra.mrb[0].mxu0 %v2494
      %v2541 = vpop.f32.mrb[0].mxu0
      %v2542 = vadd.f32 0.0, %v2541
      %v2543 = vpop.f32.mrb[0].mxu0
      %v2544 = vpop.f32.mrb[0].mxu0
      %v2545 = vpop.f32.mrb[0].mxu0
      %2546 = vdwg.mxu0
      %2547 = vrot.lane.b32.xlu0 %v1200, 112
      %v2548 = vpop.permute.xlu0 %2547
      %2549 = vrot.lane.b32.xlu0 %v1201, 112
      %v2550 = vpop.permute.xlu0 %2549
      %2551 = vrot.lane.b32.xlu0 %v1200, 80
      %v2552 = vpop.permute.xlu0 %2551
      %2553 = vrot.lane.b32.xlu0 %v1201, 80
      %v2554 = vpop.permute.xlu0 %2553
      %v2556 = vsel %vm1214, %v2548, 0
      %v2559 = vsel %vm1214, %v2550, 0
      %v2562 = vsel %vm1214, %v2552, 0
      %v2565 = vsel %vm1214, %v2554, 0
      %2567 = vmatprep.subr.bf16.mxu0 0
      %2568 = vmatpush1.bf16.xpose.msra.mxu0 %v2562
      %2569 = vmatprep.subr.bf16.mxu0 0
      %2570 = vmatpush1.bf16.xpose.msra.mxu0 %v2565
      %2571 = vmatprep.subr.bf16.mxu0 0
      %2572 = vmatpush1.bf16.xpose.msra.mxu0 0
      %2573 = vmatprep.subr.bf16.mxu0 0
      %2574 = vmatpush1.bf16.xpose.msra.mxu0 0
      %2575 = vmatprep.subr.bf16.mxu0 0
      %2576 = vmatpush1.bf16.xpose.msra.mxu0 0
      %2577 = vmatprep.subr.bf16.mxu0 0
      %2578 = vmatpush1.bf16.xpose.msra.mxu0 0
      %2579 = vmatprep.subr.bf16.mxu0 0
      %2580 = vmatpush1.bf16.xpose.msra.mxu0 0
      %2581 = vmatprep.subr.bf16.mxu0 0
      %2582 = vmatpush1.bf16.xpose.msra.mxu0 0
      %2583 = vmatprep.subr.bf16.mxu0 0
      %2584 = vmatpush1.bf16.xpose.msra.mxu0 0
      %2585 = vmatprep.subr.bf16.mxu0 0
      %2586 = vmatpush1.bf16.xpose.msra.mxu0 0
      %2587 = vmatprep.subr.bf16.mxu0 0
      %2588 = vmatpush1.bf16.xpose.msra.mxu0 0
      %2589 = vmatprep.subr.bf16.mxu0 0
      %2590 = vmatpush1.bf16.xpose.msra.mxu0 0
      %2591 = vmatprep.subr.bf16.mxu0 0
      %2592 = vmatpush1.bf16.xpose.msra.mxu0 0
      %2593 = vmatprep.subr.bf16.mxu0 0
      %2594 = vmatpush1.bf16.xpose.msra.mxu0 0
      %2595 = vmatprep.subr.bf16.mxu0 0
      %2596 = vmatpush1.bf16.xpose.msra.mxu0 0
      %2597 = vmatprep.subr.bf16.mxu0 0
      %2598 = vmatpush1.bf16.xpose.msra.mxu0 0
      %2599 = vmatprep.mubr.bf16.mxu0 0
      %2600 = vmatmul.mubr.bf16.gmra.mrb[0].mxu0 %v2556
      %v2601 = vpop.f32.mrb[0].mxu0
      %v2602 = vadd.f32 0.0, %v2601
      %v2603 = vpop.f32.mrb[0].mxu0
      %v2604 = vpop.f32.mrb[0].mxu0
      %v2605 = vadd.f32 0.0, %v2604
      %v2606 = vpop.f32.mrb[0].mxu0
      %2607 = vmatprep.mubr.bf16.mxu0 0
      %2608 = vmatmul.mubr.bf16.gmra.mrb[0].mxu0 %v2559
      %v2609 = vpop.f32.mrb[0].mxu0
      %v2610 = vadd.f32 0.0, %v2609
      %v2611 = vpop.f32.mrb[0].mxu0
      %v2612 = vpop.f32.mrb[0].mxu0
      %v2613 = vpop.f32.mrb[0].mxu0
      %2614 = vdwg.mxu0
      %2615 = vrot.lane.b32.xlu0 %v1202, 112
      %v2616 = vpop.permute.xlu0 %2615
      %2617 = vrot.lane.b32.xlu0 %v1203, 112
      %v2618 = vpop.permute.xlu0 %2617
      %2619 = vrot.lane.b32.xlu0 %v1202, 80
      %v2620 = vpop.permute.xlu0 %2619
      %2621 = vrot.lane.b32.xlu0 %v1203, 80
      %v2622 = vpop.permute.xlu0 %2621
      %v2624 = vsel %vm1214, %v2616, 0
      %v2627 = vsel %vm1214, %v2618, 0
      %v2630 = vsel %vm1214, %v2620, 0
      %v2633 = vsel %vm1214, %v2622, 0
      %2635 = vmatprep.subr.bf16.mxu0 0
      %2636 = vmatpush1.bf16.xpose.msra.mxu0 %v2630
      %2637 = vmatprep.subr.bf16.mxu0 0
      %2638 = vmatpush1.bf16.xpose.msra.mxu0 %v2633
      %2639 = vmatprep.subr.bf16.mxu0 0
      %2640 = vmatpush1.bf16.xpose.msra.mxu0 0
      %2641 = vmatprep.subr.bf16.mxu0 0
      %2642 = vmatpush1.bf16.xpose.msra.mxu0 0
      %2643 = vmatprep.subr.bf16.mxu0 0
      %2644 = vmatpush1.bf16.xpose.msra.mxu0 0
      %2645 = vmatprep.subr.bf16.mxu0 0
      %2646 = vmatpush1.bf16.xpose.msra.mxu0 0
      %2647 = vmatprep.subr.bf16.mxu0 0
      %2648 = vmatpush1.bf16.xpose.msra.mxu0 0
      %2649 = vmatprep.subr.bf16.mxu0 0
      %2650 = vmatpush1.bf16.xpose.msra.mxu0 0
      %2651 = vmatprep.subr.bf16.mxu0 0
      %2652 = vmatpush1.bf16.xpose.msra.mxu0 0
      %2653 = vmatprep.subr.bf16.mxu0 0
      %2654 = vmatpush1.bf16.xpose.msra.mxu0 0
      %2655 = vmatprep.subr.bf16.mxu0 0
      %2656 = vmatpush1.bf16.xpose.msra.mxu0 0
      %2657 = vmatprep.subr.bf16.mxu0 0
      %2658 = vmatpush1.bf16.xpose.msra.mxu0 0
      %2659 = vmatprep.subr.bf16.mxu0 0
      %2660 = vmatpush1.bf16.xpose.msra.mxu0 0
      %2661 = vmatprep.subr.bf16.mxu0 0
      %2662 = vmatpush1.bf16.xpose.msra.mxu0 0
      %2663 = vmatprep.subr.bf16.mxu0 0
      %2664 = vmatpush1.bf16.xpose.msra.mxu0 0
      %2665 = vmatprep.subr.bf16.mxu0 0
      %2666 = vmatpush1.bf16.xpose.msra.mxu0 0
      %2667 = vmatprep.mubr.bf16.mxu0 0
      %2668 = vmatmul.mubr.bf16.gmra.mrb[0].mxu0 %v2624
      %v2669 = vpop.f32.mrb[0].mxu0
      %v2670 = vadd.f32 0.0, %v2669
      %v2671 = vpop.f32.mrb[0].mxu0
      %v2672 = vpop.f32.mrb[0].mxu0
      %v2673 = vadd.f32 0.0, %v2672
      %v2674 = vpop.f32.mrb[0].mxu0
      %2675 = vmatprep.mubr.bf16.mxu0 0
      %2676 = vmatmul.mubr.bf16.gmra.mrb[0].mxu0 %v2627
      %v2677 = vpop.f32.mrb[0].mxu0
      %v2678 = vadd.f32 0.0, %v2677
      %v2679 = vpop.f32.mrb[0].mxu0
      %v2680 = vpop.f32.mrb[0].mxu0
      %v2681 = vpop.f32.mrb[0].mxu0
      %2682 = vdwg.mxu0
      %2683 = vrot.lane.b32.xlu0 %v1204, 112
      %v2684 = vpop.permute.xlu0 %2683
      %2685 = vrot.lane.b32.xlu0 %v1205, 112
      %v2686 = vpop.permute.xlu0 %2685
      %2687 = vrot.lane.b32.xlu0 %v1204, 80
      %v2688 = vpop.permute.xlu0 %2687
      %2689 = vrot.lane.b32.xlu0 %v1205, 80
      %v2690 = vpop.permute.xlu0 %2689
      %v2692 = vsel %vm1214, %v2684, 0
      %v2695 = vsel %vm1214, %v2686, 0
      %v2698 = vsel %vm1214, %v2688, 0
      %v2701 = vsel %vm1214, %v2690, 0
      %2703 = vmatprep.subr.bf16.mxu0 0
      %2704 = vmatpush1.bf16.xpose.msra.mxu0 %v2698
      %2705 = vmatprep.subr.bf16.mxu0 0
      %2706 = vmatpush1.bf16.xpose.msra.mxu0 %v2701
      %2707 = vmatprep.subr.bf16.mxu0 0
      %2708 = vmatpush1.bf16.xpose.msra.mxu0 0
      %2709 = vmatprep.subr.bf16.mxu0 0
      %2710 = vmatpush1.bf16.xpose.msra.mxu0 0
      %2711 = vmatprep.subr.bf16.mxu0 0
      %2712 = vmatpush1.bf16.xpose.msra.mxu0 0
      %2713 = vmatprep.subr.bf16.mxu0 0
      %2714 = vmatpush1.bf16.xpose.msra.mxu0 0
      %2715 = vmatprep.subr.bf16.mxu0 0
      %2716 = vmatpush1.bf16.xpose.msra.mxu0 0
      %2717 = vmatprep.subr.bf16.mxu0 0
      %2718 = vmatpush1.bf16.xpose.msra.mxu0 0
      %2719 = vmatprep.subr.bf16.mxu0 0
      %2720 = vmatpush1.bf16.xpose.msra.mxu0 0
      %2721 = vmatprep.subr.bf16.mxu0 0
      %2722 = vmatpush1.bf16.xpose.msra.mxu0 0
      %2723 = vmatprep.subr.bf16.mxu0 0
      %2724 = vmatpush1.bf16.xpose.msra.mxu0 0
      %2725 = vmatprep.subr.bf16.mxu0 0
      %2726 = vmatpush1.bf16.xpose.msra.mxu0 0
      %2727 = vmatprep.subr.bf16.mxu0 0
      %2728 = vmatpush1.bf16.xpose.msra.mxu0 0
      %2729 = vmatprep.subr.bf16.mxu0 0
      %2730 = vmatpush1.bf16.xpose.msra.mxu0 0
      %2731 = vmatprep.subr.bf16.mxu0 0
      %2732 = vmatpush1.bf16.xpose.msra.mxu0 0
      %2733 = vmatprep.subr.bf16.mxu0 0
      %2734 = vmatpush1.bf16.xpose.msra.mxu0 0
      %2735 = vmatprep.mubr.bf16.mxu0 0
      %2736 = vmatmul.mubr.bf16.gmra.mrb[0].mxu0 %v2692
      %v2737 = vpop.f32.mrb[0].mxu0
      %v2738 = vadd.f32 0.0, %v2737
      %v2739 = vpop.f32.mrb[0].mxu0
      %v2740 = vpop.f32.mrb[0].mxu0
      %v2741 = vadd.f32 0.0, %v2740
      %v2742 = vpop.f32.mrb[0].mxu0
      %2743 = vmatprep.mubr.bf16.mxu0 0
      %2744 = vmatmul.mubr.bf16.gmra.mrb[0].mxu0 %v2695
      %v2745 = vpop.f32.mrb[0].mxu0
      %v2746 = vadd.f32 0.0, %v2745
      %v2747 = vpop.f32.mrb[0].mxu0
      %v2748 = vpop.f32.mrb[0].mxu0
      %v2749 = vpop.f32.mrb[0].mxu0
      %2750 = vdwg.mxu0
      %2751 = vrot.lane.b32.xlu0 %v1206, 112
      %v2752 = vpop.permute.xlu0 %2751
      %2753 = vrot.lane.b32.xlu0 %v1207, 112
      %v2754 = vpop.permute.xlu0 %2753
      %2755 = vrot.lane.b32.xlu0 %v1206, 80
      %v2756 = vpop.permute.xlu0 %2755
      %2757 = vrot.lane.b32.xlu0 %v1207, 80
      %v2758 = vpop.permute.xlu0 %2757
      %v2760 = vsel %vm1214, %v2752, 0
      %v2763 = vsel %vm1214, %v2754, 0
      %v2766 = vsel %vm1214, %v2756, 0
      %v2769 = vsel %vm1214, %v2758, 0
      %2771 = vmatprep.subr.bf16.mxu0 0
      %2772 = vmatpush1.bf16.xpose.msra.mxu0 %v2766
      %2773 = vmatprep.subr.bf16.mxu0 0
      %2774 = vmatpush1.bf16.xpose.msra.mxu0 %v2769
      %2775 = vmatprep.subr.bf16.mxu0 0
      %2776 = vmatpush1.bf16.xpose.msra.mxu0 0
      %2777 = vmatprep.subr.bf16.mxu0 0
      %2778 = vmatpush1.bf16.xpose.msra.mxu0 0
      %2779 = vmatprep.subr.bf16.mxu0 0
      %2780 = vmatpush1.bf16.xpose.msra.mxu0 0
      %2781 = vmatprep.subr.bf16.mxu0 0
      %2782 = vmatpush1.bf16.xpose.msra.mxu0 0
      %2783 = vmatprep.subr.bf16.mxu0 0
      %2784 = vmatpush1.bf16.xpose.msra.mxu0 0
      %2785 = vmatprep.subr.bf16.mxu0 0
      %2786 = vmatpush1.bf16.xpose.msra.mxu0 0
      %2787 = vmatprep.subr.bf16.mxu0 0
      %2788 = vmatpush1.bf16.xpose.msra.mxu0 0
      %2789 = vmatprep.subr.bf16.mxu0 0
      %2790 = vmatpush1.bf16.xpose.msra.mxu0 0
      %2791 = vmatprep.subr.bf16.mxu0 0
      %2792 = vmatpush1.bf16.xpose.msra.mxu0 0
      %2793 = vmatprep.subr.bf16.mxu0 0
      %2794 = vmatpush1.bf16.xpose.msra.mxu0 0
      %2795 = vmatprep.subr.bf16.mxu0 0
      %2796 = vmatpush1.bf16.xpose.msra.mxu0 0
      %2797 = vmatprep.subr.bf16.mxu0 0
      %2798 = vmatpush1.bf16.xpose.msra.mxu0 0
      %2799 = vmatprep.subr.bf16.mxu0 0
      %2800 = vmatpush1.bf16.xpose.msra.mxu0 0
      %2801 = vmatprep.subr.bf16.mxu0 0
      %2802 = vmatpush1.bf16.xpose.msra.mxu0 0
      %2803 = vmatprep.mubr.bf16.mxu0 0
      %2804 = vmatmul.mubr.bf16.gmra.mrb[0].mxu0 %v2760
      %v2805 = vpop.f32.mrb[0].mxu0
      %v2806 = vadd.f32 0.0, %v2805
      %v2807 = vpop.f32.mrb[0].mxu0
      %v2808 = vpop.f32.mrb[0].mxu0
      %v2809 = vadd.f32 0.0, %v2808
      %v2810 = vpop.f32.mrb[0].mxu0
      %2811 = vmatprep.mubr.bf16.mxu0 0
      %2812 = vmatmul.mubr.bf16.gmra.mrb[0].mxu0 %v2763
      %v2813 = vpop.f32.mrb[0].mxu0
      %v2814 = vadd.f32 0.0, %v2813
      %v2815 = vpop.f32.mrb[0].mxu0
      %v2816 = vpop.f32.mrb[0].mxu0
      %v2817 = vpop.f32.mrb[0].mxu0
      %2818 = vdwg.mxu0
      %v2819 = vsel %vm882, %v2602, -1e+30
      %v2820 = vsel %vm882, %v2605, -1e+30
      %v2821 = vsel %vm882, %v2610, -1e+30
      %v2822 = vsel %vm882, %v2670, -1e+30
      %v2823 = vsel %vm882, %v2673, -1e+30
      %v2824 = vsel %vm882, %v2678, -1e+30
      %v2825 = vsel %vm882, %v2738, -1e+30
      %v2826 = vsel %vm882, %v2741, -1e+30
      %v2827 = vsel %vm882, %v2746, -1e+30
      %v2828 = vsel %vm882, %v2806, -1e+30
      %v2829 = vsel %vm882, %v2809, -1e+30
      %v2830 = vsel %vm882, %v2814, -1e+30
      %v2831 = vsel %vm1485, %v2819, -inf
      %2832 = vmax.xlane.f32.xlu0 %v2831
      %v2833 = vpop.xlane.xlu0 %2832
      %v2834 = vsel %vm1485, %v2820, -inf
      %2835 = vmax.xlane.f32.xlu0 %v2834
      %v2836 = vpop.xlane.xlu0 %2835
      %v2837 = vsel %vm1485, %v2821, -inf
      %2838 = vmax.xlane.f32.xlu0 %v2837
      %v2839 = vpop.xlane.xlu0 %2838
      %v2840 = vsel %vm1485, %v2822, -inf
      %2841 = vmax.xlane.f32.xlu0 %v2840
      %v2842 = vpop.xlane.xlu0 %2841
      %v2843 = vsel %vm1485, %v2823, -inf
      %2844 = vmax.xlane.f32.xlu0 %v2843
      %v2845 = vpop.xlane.xlu0 %2844
      %v2846 = vsel %vm1485, %v2824, -inf
      %2847 = vmax.xlane.f32.xlu0 %v2846
      %v2848 = vpop.xlane.xlu0 %2847
      %v2849 = vsel %vm1485, %v2825, -inf
      %2850 = vmax.xlane.f32.xlu0 %v2849
      %v2851 = vpop.xlane.xlu0 %2850
      %v2852 = vsel %vm1485, %v2826, -inf
      %2853 = vmax.xlane.f32.xlu0 %v2852
      %v2854 = vpop.xlane.xlu0 %2853
      %v2855 = vsel %vm1485, %v2827, -inf
      %2856 = vmax.xlane.f32.xlu0 %v2855
      %v2857 = vpop.xlane.xlu0 %2856
      %v2858 = vsel %vm1485, %v2828, -inf
      %2859 = vmax.xlane.f32.xlu0 %v2858
      %v2860 = vpop.xlane.xlu0 %2859
      %v2861 = vsel %vm1485, %v2829, -inf
      %2862 = vmax.xlane.f32.xlu0 %v2861
      %v2863 = vpop.xlane.xlu0 %2862
      %v2864 = vsel %vm1485, %v2830, -inf
      %2865 = vmax.xlane.f32.xlu0 %v2864
      %v2866 = vpop.xlane.xlu0 %2865
      %v2867 = vsub.f32 %v2819, %v2833
      %v2868 = vsub.f32 %v2820, %v2836
      %v2869 = vsub.f32 %v2821, %v2839
      %v2870 = vsub.f32 %v2822, %v2842
      %v2871 = vsub.f32 %v2823, %v2845
      %v2872 = vsub.f32 %v2824, %v2848
      %v2873 = vsub.f32 %v2825, %v2851
      %v2874 = vsub.f32 %v2826, %v2854
      %v2875 = vsub.f32 %v2827, %v2857
      %v2876 = vsub.f32 %v2828, %v2860
      %v2877 = vsub.f32 %v2829, %v2863
      %v2878 = vsub.f32 %v2830, %v2866
      %v2879 = vmul.f32 %v2867, 1.442695
      %v2880 = vpow.pop %v2879
      %v2881 = vmul.f32 %v2868, 1.442695
      %v2882 = vpow.pop %v2881
      %v2883 = vmul.f32 %v2869, 1.442695
      %v2884 = vpow.pop %v2883
      %v2885 = vmul.f32 %v2870, 1.442695
      %v2886 = vpow.pop %v2885
      %v2887 = vmul.f32 %v2871, 1.442695
      %v2888 = vpow.pop %v2887
      %v2889 = vmul.f32 %v2872, 1.442695
      %v2890 = vpow.pop %v2889
      %v2891 = vmul.f32 %v2873, 1.442695
      %v2892 = vpow.pop %v2891
      %v2893 = vmul.f32 %v2874, 1.442695
      %v2894 = vpow.pop %v2893
      %v2895 = vmul.f32 %v2875, 1.442695
      %v2896 = vpow.pop %v2895
      %v2897 = vmul.f32 %v2876, 1.442695
      %v2898 = vpow.pop %v2897
      %v2899 = vmul.f32 %v2877, 1.442695
      %v2900 = vpow.pop %v2899
      %v2901 = vmul.f32 %v2878, 1.442695
      %v2902 = vpow.pop %v2901
      %v2903 = vsel %vm1485, %v2880, 0.0
      %2904 = vadd.xlane.f32.xlu0 %v2903
      %v2905 = vpop.xlane.xlu0 %2904
      %v2906 = vsel %vm1485, %v2882, 0.0
      %2907 = vadd.xlane.f32.xlu0 %v2906
      %v2908 = vpop.xlane.xlu0 %2907
      %v2909 = vsel %vm1485, %v2884, 0.0
      %2910 = vadd.xlane.f32.xlu0 %v2909
      %v2911 = vpop.xlane.xlu0 %2910
      %v2912 = vsel %vm1485, %v2886, 0.0
      %2913 = vadd.xlane.f32.xlu0 %v2912
      %v2914 = vpop.xlane.xlu0 %2913
      %v2915 = vsel %vm1485, %v2888, 0.0
      %2916 = vadd.xlane.f32.xlu0 %v2915
      %v2917 = vpop.xlane.xlu0 %2916
      %v2918 = vsel %vm1485, %v2890, 0.0
      %2919 = vadd.xlane.f32.xlu0 %v2918
      %v2920 = vpop.xlane.xlu0 %2919
      %v2921 = vsel %vm1485, %v2892, 0.0
      %2922 = vadd.xlane.f32.xlu0 %v2921
      %v2923 = vpop.xlane.xlu0 %2922
      %v2924 = vsel %vm1485, %v2894, 0.0
      %2925 = vadd.xlane.f32.xlu0 %v2924
      %v2926 = vpop.xlane.xlu0 %2925
      %v2927 = vsel %vm1485, %v2896, 0.0
      %2928 = vadd.xlane.f32.xlu0 %v2927
      %v2929 = vpop.xlane.xlu0 %2928
      %v2930 = vsel %vm1485, %v2898, 0.0
      %2931 = vadd.xlane.f32.xlu0 %v2930
      %v2932 = vpop.xlane.xlu0 %2931
      %v2933 = vsel %vm1485, %v2900, 0.0
      %2934 = vadd.xlane.f32.xlu0 %v2933
      %v2935 = vpop.xlane.xlu0 %2934
      %v2936 = vsel %vm1485, %v2902, 0.0
      %2937 = vadd.xlane.f32.xlu0 %v2936
      %v2938 = vpop.xlane.xlu0 %2937
      %v2939 = vrcp.pop %v2905
      %v2940 = vrcp.pop %v2908
      %v2941 = vrcp.pop %v2911
      %v2942 = vrcp.pop %v2914
      %v2943 = vrcp.pop %v2917
      %v2944 = vrcp.pop %v2920
      %v2945 = vrcp.pop %v2923
      %v2946 = vrcp.pop %v2926
      %v2947 = vrcp.pop %v2929
      %v2948 = vrcp.pop %v2932
      %v2949 = vrcp.pop %v2935
      %v2950 = vrcp.pop %v2938
      %v2951 = vmul.f32 %v2880, %v2939
      %v2952 = vmul.f32 %v2882, %v2940
      %v2953 = vmul.f32 %v2884, %v2941
      %v2954 = vmul.f32 %v2886, %v2942
      %v2955 = vmul.f32 %v2888, %v2943
      %v2956 = vmul.f32 %v2890, %v2944
      %v2957 = vmul.f32 %v2892, %v2945
      %v2958 = vmul.f32 %v2894, %v2946
      %v2959 = vmul.f32 %v2896, %v2947
      %v2960 = vmul.f32 %v2898, %v2948
      %v2961 = vmul.f32 %v2900, %v2949
      %v2962 = vmul.f32 %v2902, %v2950
      %v2963 = vpack.c.bf16 %v2952, %v2951
      %v2964 = vpack.c.bf16 %v2953, %v2953
      %v2965 = vpack.c.bf16 %v2955, %v2954
      %v2966 = vpack.c.bf16 %v2956, %v2956
      %v2967 = vpack.c.bf16 %v2958, %v2957
      %v2968 = vpack.c.bf16 %v2959, %v2959
      %v2969 = vpack.c.bf16 %v2961, %v2960
      %v2970 = vpack.c.bf16 %v2962, %v2962
      %2971 = vrot.lane.b32.xlu0 %v1200, 48
      %v2972 = vpop.permute.xlu0 %2971
      %2973 = vrot.lane.b32.xlu0 %v1201, 48
      %v2974 = vpop.permute.xlu0 %2973
      %v2977 = vsel %vm1485, %v2963, 0
      %v2980 = vsel %vm1485, %v2964, 0
      %v2983 = vsel %vm1637, %v2974, 0
      %2985 = vmatprep.subr.bf16.mxu0 0
      %2986 = vmatpush1.bf16.msra.mxu0 %v2972
      %2987 = vmatprep.subr.bf16.mxu0 0
      %2988 = vmatpush1.bf16.msra.mxu0 %v2983
      %2989 = vmatprep.subr.bf16.mxu0 0
      %2990 = vmatpush1.bf16.msra.mxu0 0
      %2991 = vmatprep.subr.bf16.mxu0 0
      %2992 = vmatpush1.bf16.msra.mxu0 0
      %2993 = vmatprep.subr.bf16.mxu0 0
      %2994 = vmatpush1.bf16.msra.mxu0 0
      %2995 = vmatprep.subr.bf16.mxu0 0
      %2996 = vmatpush1.bf16.msra.mxu0 0
      %2997 = vmatprep.subr.bf16.mxu0 0
      %2998 = vmatpush1.bf16.msra.mxu0 0
      %2999 = vmatprep.subr.bf16.mxu0 0
      %3000 = vmatpush1.bf16.msra.mxu0 0
      %3001 = vmatprep.subr.bf16.mxu0 0
      %3002 = vmatpush1.bf16.msra.mxu0 0
      %3003 = vmatprep.subr.bf16.mxu0 0
      %3004 = vmatpush1.bf16.msra.mxu0 0
      %3005 = vmatprep.subr.bf16.mxu0 0
      %3006 = vmatpush1.bf16.msra.mxu0 0
      %3007 = vmatprep.subr.bf16.mxu0 0
      %3008 = vmatpush1.bf16.msra.mxu0 0
      %3009 = vmatprep.subr.bf16.mxu0 0
      %3010 = vmatpush1.bf16.msra.mxu0 0
      %3011 = vmatprep.subr.bf16.mxu0 0
      %3012 = vmatpush1.bf16.msra.mxu0 0
      %3013 = vmatprep.subr.bf16.mxu0 0
      %3014 = vmatpush1.bf16.msra.mxu0 0
      %3015 = vmatprep.subr.bf16.mxu0 0
      %3016 = vmatpush1.bf16.msra.mxu0 0
      %3017 = vmatprep.mubr.bf16.mxu0 0
      %3018 = vmatmul.mubr.bf16.gmra.mrb[0].mxu0 %v2977
      %v3019 = vpop.f32.mrb[0].mxu0
      %v3020 = vadd.f32 0.0, %v3019
      %v3021 = vpop.f32.mrb[0].mxu0
      %v3022 = vpop.f32.mrb[0].mxu0
      %v3023 = vadd.f32 0.0, %v3022
      %v3024 = vpop.f32.mrb[0].mxu0
      %3025 = vmatprep.mubr.bf16.mxu0 0
      %3026 = vmatmul.mubr.bf16.gmra.mrb[0].mxu0 %v2980
      %v3027 = vpop.f32.mrb[0].mxu0
      %v3028 = vadd.f32 0.0, %v3027
      %v3029 = vpop.f32.mrb[0].mxu0
      %v3030 = vpop.f32.mrb[0].mxu0
      %v3031 = vpop.f32.mrb[0].mxu0
      %3032 = vdwg.mxu0
      %3033 = vrot.lane.b32.xlu0 %v1202, 48
      %v3034 = vpop.permute.xlu0 %3033
      %3035 = vrot.lane.b32.xlu0 %v1203, 48
      %v3036 = vpop.permute.xlu0 %3035
      %v3039 = vsel %vm1485, %v2965, 0
      %v3042 = vsel %vm1485, %v2966, 0
      %v3045 = vsel %vm1637, %v3036, 0
      %3047 = vmatprep.subr.bf16.mxu0 0
      %3048 = vmatpush1.bf16.msra.mxu0 %v3034
      %3049 = vmatprep.subr.bf16.mxu0 0
      %3050 = vmatpush1.bf16.msra.mxu0 %v3045
      %3051 = vmatprep.subr.bf16.mxu0 0
      %3052 = vmatpush1.bf16.msra.mxu0 0
      %3053 = vmatprep.subr.bf16.mxu0 0
      %3054 = vmatpush1.bf16.msra.mxu0 0
      %3055 = vmatprep.subr.bf16.mxu0 0
      %3056 = vmatpush1.bf16.msra.mxu0 0
      %3057 = vmatprep.subr.bf16.mxu0 0
      %3058 = vmatpush1.bf16.msra.mxu0 0
      %3059 = vmatprep.subr.bf16.mxu0 0
      %3060 = vmatpush1.bf16.msra.mxu0 0
      %3061 = vmatprep.subr.bf16.mxu0 0
      %3062 = vmatpush1.bf16.msra.mxu0 0
      %3063 = vmatprep.subr.bf16.mxu0 0
      %3064 = vmatpush1.bf16.msra.mxu0 0
      %3065 = vmatprep.subr.bf16.mxu0 0
      %3066 = vmatpush1.bf16.msra.mxu0 0
      %3067 = vmatprep.subr.bf16.mxu0 0
      %3068 = vmatpush1.bf16.msra.mxu0 0
      %3069 = vmatprep.subr.bf16.mxu0 0
      %3070 = vmatpush1.bf16.msra.mxu0 0
      %3071 = vmatprep.subr.bf16.mxu0 0
      %3072 = vmatpush1.bf16.msra.mxu0 0
      %3073 = vmatprep.subr.bf16.mxu0 0
      %3074 = vmatpush1.bf16.msra.mxu0 0
      %3075 = vmatprep.subr.bf16.mxu0 0
      %3076 = vmatpush1.bf16.msra.mxu0 0
      %3077 = vmatprep.subr.bf16.mxu0 0
      %3078 = vmatpush1.bf16.msra.mxu0 0
      %3079 = vmatprep.mubr.bf16.mxu0 0
      %3080 = vmatmul.mubr.bf16.gmra.mrb[0].mxu0 %v3039
      %v3081 = vpop.f32.mrb[0].mxu0
      %v3082 = vadd.f32 0.0, %v3081
      %v3083 = vpop.f32.mrb[0].mxu0
      %v3084 = vpop.f32.mrb[0].mxu0
      %v3085 = vadd.f32 0.0, %v3084
      %v3086 = vpop.f32.mrb[0].mxu0
      %3087 = vmatprep.mubr.bf16.mxu0 0
      %3088 = vmatmul.mubr.bf16.gmra.mrb[0].mxu0 %v3042
      %v3089 = vpop.f32.mrb[0].mxu0
      %v3090 = vadd.f32 0.0, %v3089
      %v3091 = vpop.f32.mrb[0].mxu0
      %v3092 = vpop.f32.mrb[0].mxu0
      %v3093 = vpop.f32.mrb[0].mxu0
      %3094 = vdwg.mxu0
      %3095 = vrot.lane.b32.xlu0 %v1204, 48
      %v3096 = vpop.permute.xlu0 %3095
      %3097 = vrot.lane.b32.xlu0 %v1205, 48
      %v3098 = vpop.permute.xlu0 %3097
      %v3101 = vsel %vm1485, %v2967, 0
      %v3104 = vsel %vm1485, %v2968, 0
      %v3107 = vsel %vm1637, %v3098, 0
      %3109 = vmatprep.subr.bf16.mxu0 0
      %3110 = vmatpush1.bf16.msra.mxu0 %v3096
      %3111 = vmatprep.subr.bf16.mxu0 0
      %3112 = vmatpush1.bf16.msra.mxu0 %v3107
      %3113 = vmatprep.subr.bf16.mxu0 0
      %3114 = vmatpush1.bf16.msra.mxu0 0
      %3115 = vmatprep.subr.bf16.mxu0 0
      %3116 = vmatpush1.bf16.msra.mxu0 0
      %3117 = vmatprep.subr.bf16.mxu0 0
      %3118 = vmatpush1.bf16.msra.mxu0 0
      %3119 = vmatprep.subr.bf16.mxu0 0
      %3120 = vmatpush1.bf16.msra.mxu0 0
      %3121 = vmatprep.subr.bf16.mxu0 0
      %3122 = vmatpush1.bf16.msra.mxu0 0
      %3123 = vmatprep.subr.bf16.mxu0 0
      %3124 = vmatpush1.bf16.msra.mxu0 0
      %3125 = vmatprep.subr.bf16.mxu0 0
      %3126 = vmatpush1.bf16.msra.mxu0 0
      %3127 = vmatprep.subr.bf16.mxu0 0
      %3128 = vmatpush1.bf16.msra.mxu0 0
      %3129 = vmatprep.subr.bf16.mxu0 0
      %3130 = vmatpush1.bf16.msra.mxu0 0
      %3131 = vmatprep.subr.bf16.mxu0 0
      %3132 = vmatpush1.bf16.msra.mxu0 0
      %3133 = vmatprep.subr.bf16.mxu0 0
      %3134 = vmatpush1.bf16.msra.mxu0 0
      %3135 = vmatprep.subr.bf16.mxu0 0
      %3136 = vmatpush1.bf16.msra.mxu0 0
      %3137 = vmatprep.subr.bf16.mxu0 0
      %3138 = vmatpush1.bf16.msra.mxu0 0
      %3139 = vmatprep.subr.bf16.mxu0 0
      %3140 = vmatpush1.bf16.msra.mxu0 0
      %3141 = vmatprep.mubr.bf16.mxu0 0
      %3142 = vmatmul.mubr.bf16.gmra.mrb[0].mxu0 %v3101
      %v3143 = vpop.f32.mrb[0].mxu0
      %v3144 = vadd.f32 0.0, %v3143
      %v3145 = vpop.f32.mrb[0].mxu0
      %v3146 = vpop.f32.mrb[0].mxu0
      %v3147 = vadd.f32 0.0, %v3146
      %v3148 = vpop.f32.mrb[0].mxu0
      %3149 = vmatprep.mubr.bf16.mxu0 0
      %3150 = vmatmul.mubr.bf16.gmra.mrb[0].mxu0 %v3104
      %v3151 = vpop.f32.mrb[0].mxu0
      %v3152 = vadd.f32 0.0, %v3151
      %v3153 = vpop.f32.mrb[0].mxu0
      %v3154 = vpop.f32.mrb[0].mxu0
      %v3155 = vpop.f32.mrb[0].mxu0
      %3156 = vdwg.mxu0
      %3157 = vrot.lane.b32.xlu0 %v1206, 48
      %v3158 = vpop.permute.xlu0 %3157
      %3159 = vrot.lane.b32.xlu0 %v1207, 48
      %v3160 = vpop.permute.xlu0 %3159
      %v3163 = vsel %vm1485, %v2969, 0
      %v3166 = vsel %vm1485, %v2970, 0
      %v3169 = vsel %vm1637, %v3160, 0
      %3171 = vmatprep.subr.bf16.mxu0 0
      %3172 = vmatpush1.bf16.msra.mxu0 %v3158
      %3173 = vmatprep.subr.bf16.mxu0 0
      %3174 = vmatpush1.bf16.msra.mxu0 %v3169
      %3175 = vmatprep.subr.bf16.mxu0 0
      %3176 = vmatpush1.bf16.msra.mxu0 0
      %3177 = vmatprep.subr.bf16.mxu0 0
      %3178 = vmatpush1.bf16.msra.mxu0 0
      %3179 = vmatprep.subr.bf16.mxu0 0
      %3180 = vmatpush1.bf16.msra.mxu0 0
      %3181 = vmatprep.subr.bf16.mxu0 0
      %3182 = vmatpush1.bf16.msra.mxu0 0
      %3183 = vmatprep.subr.bf16.mxu0 0
      %3184 = vmatpush1.bf16.msra.mxu0 0
      %3185 = vmatprep.subr.bf16.mxu0 0
      %3186 = vmatpush1.bf16.msra.mxu0 0
      %3187 = vmatprep.subr.bf16.mxu0 0
      %3188 = vmatpush1.bf16.msra.mxu0 0
      %3189 = vmatprep.subr.bf16.mxu0 0
      %3190 = vmatpush1.bf16.msra.mxu0 0
      %3191 = vmatprep.subr.bf16.mxu0 0
      %3192 = vmatpush1.bf16.msra.mxu0 0
      %3193 = vmatprep.subr.bf16.mxu0 0
      %3194 = vmatpush1.bf16.msra.mxu0 0
      %3195 = vmatprep.subr.bf16.mxu0 0
      %3196 = vmatpush1.bf16.msra.mxu0 0
      %3197 = vmatprep.subr.bf16.mxu0 0
      %3198 = vmatpush1.bf16.msra.mxu0 0
      %3199 = vmatprep.subr.bf16.mxu0 0
      %3200 = vmatpush1.bf16.msra.mxu0 0
      %3201 = vmatprep.subr.bf16.mxu0 0
      %3202 = vmatpush1.bf16.msra.mxu0 0
      %3203 = vmatprep.mubr.bf16.mxu0 0
      %3204 = vmatmul.mubr.bf16.gmra.mrb[0].mxu0 %v3163
      %v3205 = vpop.f32.mrb[0].mxu0
      %v3206 = vadd.f32 0.0, %v3205
      %v3207 = vpop.f32.mrb[0].mxu0
      %v3208 = vpop.f32.mrb[0].mxu0
      %v3209 = vadd.f32 0.0, %v3208
      %v3210 = vpop.f32.mrb[0].mxu0
      %3211 = vmatprep.mubr.bf16.mxu0 0
      %3212 = vmatmul.mubr.bf16.gmra.mrb[0].mxu0 %v3166
      %v3213 = vpop.f32.mrb[0].mxu0
      %v3214 = vadd.f32 0.0, %v3213
      %v3215 = vpop.f32.mrb[0].mxu0
      %v3216 = vpop.f32.mrb[0].mxu0
      %v3217 = vpop.f32.mrb[0].mxu0
      %3218 = vdwg.mxu0
      %3219 = vrot.lane.b32.xlu0 %v1200, 104
      %v3220 = vpop.permute.xlu0 %3219
      %3221 = vrot.lane.b32.xlu0 %v1201, 104
      %v3222 = vpop.permute.xlu0 %3221
      %3223 = vrot.lane.b32.xlu0 %v1200, 72
      %v3224 = vpop.permute.xlu0 %3223
      %3225 = vrot.lane.b32.xlu0 %v1201, 72
      %v3226 = vpop.permute.xlu0 %3225
      %v3228 = vsel %vm1214, %v3220, 0
      %v3231 = vsel %vm1214, %v3222, 0
      %v3234 = vsel %vm1214, %v3224, 0
      %v3237 = vsel %vm1214, %v3226, 0
      %3239 = vmatprep.subr.bf16.mxu0 0
      %3240 = vmatpush1.bf16.xpose.msra.mxu0 %v3234
      %3241 = vmatprep.subr.bf16.mxu0 0
      %3242 = vmatpush1.bf16.xpose.msra.mxu0 %v3237
      %3243 = vmatprep.subr.bf16.mxu0 0
      %3244 = vmatpush1.bf16.xpose.msra.mxu0 0
      %3245 = vmatprep.subr.bf16.mxu0 0
      %3246 = vmatpush1.bf16.xpose.msra.mxu0 0
      %3247 = vmatprep.subr.bf16.mxu0 0
      %3248 = vmatpush1.bf16.xpose.msra.mxu0 0
      %3249 = vmatprep.subr.bf16.mxu0 0
      %3250 = vmatpush1.bf16.xpose.msra.mxu0 0
      %3251 = vmatprep.subr.bf16.mxu0 0
      %3252 = vmatpush1.bf16.xpose.msra.mxu0 0
      %3253 = vmatprep.subr.bf16.mxu0 0
      %3254 = vmatpush1.bf16.xpose.msra.mxu0 0
      %3255 = vmatprep.subr.bf16.mxu0 0
      %3256 = vmatpush1.bf16.xpose.msra.mxu0 0
      %3257 = vmatprep.subr.bf16.mxu0 0
      %3258 = vmatpush1.bf16.xpose.msra.mxu0 0
      %3259 = vmatprep.subr.bf16.mxu0 0
      %3260 = vmatpush1.bf16.xpose.msra.mxu0 0
      %3261 = vmatprep.subr.bf16.mxu0 0
      %3262 = vmatpush1.bf16.xpose.msra.mxu0 0
      %3263 = vmatprep.subr.bf16.mxu0 0
      %3264 = vmatpush1.bf16.xpose.msra.mxu0 0
      %3265 = vmatprep.subr.bf16.mxu0 0
      %3266 = vmatpush1.bf16.xpose.msra.mxu0 0
      %3267 = vmatprep.subr.bf16.mxu0 0
      %3268 = vmatpush1.bf16.xpose.msra.mxu0 0
      %3269 = vmatprep.subr.bf16.mxu0 0
      %3270 = vmatpush1.bf16.xpose.msra.mxu0 0
      %3271 = vmatprep.mubr.bf16.mxu0 0
      %3272 = vmatmul.mubr.bf16.gmra.mrb[0].mxu0 %v3228
      %v3273 = vpop.f32.mrb[0].mxu0
      %v3274 = vadd.f32 0.0, %v3273
      %v3275 = vpop.f32.mrb[0].mxu0
      %v3276 = vpop.f32.mrb[0].mxu0
      %v3277 = vadd.f32 0.0, %v3276
      %v3278 = vpop.f32.mrb[0].mxu0
      %3279 = vmatprep.mubr.bf16.mxu0 0
      %3280 = vmatmul.mubr.bf16.gmra.mrb[0].mxu0 %v3231
      %v3281 = vpop.f32.mrb[0].mxu0
      %v3282 = vadd.f32 0.0, %v3281
      %v3283 = vpop.f32.mrb[0].mxu0
      %v3284 = vpop.f32.mrb[0].mxu0
      %v3285 = vpop.f32.mrb[0].mxu0
      %3286 = vdwg.mxu0
      %3287 = vrot.lane.b32.xlu0 %v1202, 104
      %v3288 = vpop.permute.xlu0 %3287
      %3289 = vrot.lane.b32.xlu0 %v1203, 104
      %v3290 = vpop.permute.xlu0 %3289
      %3291 = vrot.lane.b32.xlu0 %v1202, 72
      %v3292 = vpop.permute.xlu0 %3291
      %3293 = vrot.lane.b32.xlu0 %v1203, 72
      %v3294 = vpop.permute.xlu0 %3293
      %v3296 = vsel %vm1214, %v3288, 0
      %v3299 = vsel %vm1214, %v3290, 0
      %v3302 = vsel %vm1214, %v3292, 0
      %v3305 = vsel %vm1214, %v3294, 0
      %3307 = vmatprep.subr.bf16.mxu0 0
      %3308 = vmatpush1.bf16.xpose.msra.mxu0 %v3302
      %3309 = vmatprep.subr.bf16.mxu0 0
      %3310 = vmatpush1.bf16.xpose.msra.mxu0 %v3305
      %3311 = vmatprep.subr.bf16.mxu0 0
      %3312 = vmatpush1.bf16.xpose.msra.mxu0 0
      %3313 = vmatprep.subr.bf16.mxu0 0
      %3314 = vmatpush1.bf16.xpose.msra.mxu0 0
      %3315 = vmatprep.subr.bf16.mxu0 0
      %3316 = vmatpush1.bf16.xpose.msra.mxu0 0
      %3317 = vmatprep.subr.bf16.mxu0 0
      %3318 = vmatpush1.bf16.xpose.msra.mxu0 0
      %3319 = vmatprep.subr.bf16.mxu0 0
      %3320 = vmatpush1.bf16.xpose.msra.mxu0 0
      %3321 = vmatprep.subr.bf16.mxu0 0
      %3322 = vmatpush1.bf16.xpose.msra.mxu0 0
      %3323 = vmatprep.subr.bf16.mxu0 0
      %3324 = vmatpush1.bf16.xpose.msra.mxu0 0
      %3325 = vmatprep.subr.bf16.mxu0 0
      %3326 = vmatpush1.bf16.xpose.msra.mxu0 0
      %3327 = vmatprep.subr.bf16.mxu0 0
      %3328 = vmatpush1.bf16.xpose.msra.mxu0 0
      %3329 = vmatprep.subr.bf16.mxu0 0
      %3330 = vmatpush1.bf16.xpose.msra.mxu0 0
      %3331 = vmatprep.subr.bf16.mxu0 0
      %3332 = vmatpush1.bf16.xpose.msra.mxu0 0
      %3333 = vmatprep.subr.bf16.mxu0 0
      %3334 = vmatpush1.bf16.xpose.msra.mxu0 0
      %3335 = vmatprep.subr.bf16.mxu0 0
      %3336 = vmatpush1.bf16.xpose.msra.mxu0 0
      %3337 = vmatprep.subr.bf16.mxu0 0
      %3338 = vmatpush1.bf16.xpose.msra.mxu0 0
      %3339 = vmatprep.mubr.bf16.mxu0 0
      %3340 = vmatmul.mubr.bf16.gmra.mrb[0].mxu0 %v3296
      %v3341 = vpop.f32.mrb[0].mxu0
      %v3342 = vadd.f32 0.0, %v3341
      %v3343 = vpop.f32.mrb[0].mxu0
      %v3344 = vpop.f32.mrb[0].mxu0
      %v3345 = vadd.f32 0.0, %v3344
      %v3346 = vpop.f32.mrb[0].mxu0
      %3347 = vmatprep.mubr.bf16.mxu0 0
      %3348 = vmatmul.mubr.bf16.gmra.mrb[0].mxu0 %v3299
      %v3349 = vpop.f32.mrb[0].mxu0
      %v3350 = vadd.f32 0.0, %v3349
      %v3351 = vpop.f32.mrb[0].mxu0
      %v3352 = vpop.f32.mrb[0].mxu0
      %v3353 = vpop.f32.mrb[0].mxu0
      %3354 = vdwg.mxu0
      %3355 = vrot.lane.b32.xlu0 %v1204, 104
      %v3356 = vpop.permute.xlu0 %3355
      %3357 = vrot.lane.b32.xlu0 %v1205, 104
      %v3358 = vpop.permute.xlu0 %3357
      %3359 = vrot.lane.b32.xlu0 %v1204, 72
      %v3360 = vpop.permute.xlu0 %3359
      %3361 = vrot.lane.b32.xlu0 %v1205, 72
      %v3362 = vpop.permute.xlu0 %3361
      %v3364 = vsel %vm1214, %v3356, 0
      %v3367 = vsel %vm1214, %v3358, 0
      %v3370 = vsel %vm1214, %v3360, 0
      %v3373 = vsel %vm1214, %v3362, 0
      %3375 = vmatprep.subr.bf16.mxu0 0
      %3376 = vmatpush1.bf16.xpose.msra.mxu0 %v3370
      %3377 = vmatprep.subr.bf16.mxu0 0
      %3378 = vmatpush1.bf16.xpose.msra.mxu0 %v3373
      %3379 = vmatprep.subr.bf16.mxu0 0
      %3380 = vmatpush1.bf16.xpose.msra.mxu0 0
      %3381 = vmatprep.subr.bf16.mxu0 0
      %3382 = vmatpush1.bf16.xpose.msra.mxu0 0
      %3383 = vmatprep.subr.bf16.mxu0 0
      %3384 = vmatpush1.bf16.xpose.msra.mxu0 0
      %3385 = vmatprep.subr.bf16.mxu0 0
      %3386 = vmatpush1.bf16.xpose.msra.mxu0 0
      %3387 = vmatprep.subr.bf16.mxu0 0
      %3388 = vmatpush1.bf16.xpose.msra.mxu0 0
      %3389 = vmatprep.subr.bf16.mxu0 0
      %3390 = vmatpush1.bf16.xpose.msra.mxu0 0
      %3391 = vmatprep.subr.bf16.mxu0 0
      %3392 = vmatpush1.bf16.xpose.msra.mxu0 0
      %3393 = vmatprep.subr.bf16.mxu0 0
      %3394 = vmatpush1.bf16.xpose.msra.mxu0 0
      %3395 = vmatprep.subr.bf16.mxu0 0
      %3396 = vmatpush1.bf16.xpose.msra.mxu0 0
      %3397 = vmatprep.subr.bf16.mxu0 0
      %3398 = vmatpush1.bf16.xpose.msra.mxu0 0
      %3399 = vmatprep.subr.bf16.mxu0 0
      %3400 = vmatpush1.bf16.xpose.msra.mxu0 0
      %3401 = vmatprep.subr.bf16.mxu0 0
      %3402 = vmatpush1.bf16.xpose.msra.mxu0 0
      %3403 = vmatprep.subr.bf16.mxu0 0
      %3404 = vmatpush1.bf16.xpose.msra.mxu0 0
      %3405 = vmatprep.subr.bf16.mxu0 0
      %3406 = vmatpush1.bf16.xpose.msra.mxu0 0
      %3407 = vmatprep.mubr.bf16.mxu0 0
      %3408 = vmatmul.mubr.bf16.gmra.mrb[0].mxu0 %v3364
      %v3409 = vpop.f32.mrb[0].mxu0
      %v3410 = vadd.f32 0.0, %v3409
      %v3411 = vpop.f32.mrb[0].mxu0
      %v3412 = vpop.f32.mrb[0].mxu0
      %v3413 = vadd.f32 0.0, %v3412
      %v3414 = vpop.f32.mrb[0].mxu0
      %3415 = vmatprep.mubr.bf16.mxu0 0
      %3416 = vmatmul.mubr.bf16.gmra.mrb[0].mxu0 %v3367
      %v3417 = vpop.f32.mrb[0].mxu0
      %v3418 = vadd.f32 0.0, %v3417
      %v3419 = vpop.f32.mrb[0].mxu0
      %v3420 = vpop.f32.mrb[0].mxu0
      %v3421 = vpop.f32.mrb[0].mxu0
      %3422 = vdwg.mxu0
      %3423 = vrot.lane.b32.xlu0 %v1206, 104
      %v3424 = vpop.permute.xlu0 %3423
      %3425 = vrot.lane.b32.xlu0 %v1207, 104
      %v3426 = vpop.permute.xlu0 %3425
      %3427 = vrot.lane.b32.xlu0 %v1206, 72
      %v3428 = vpop.permute.xlu0 %3427
      %3429 = vrot.lane.b32.xlu0 %v1207, 72
      %v3430 = vpop.permute.xlu0 %3429
      %v3432 = vsel %vm1214, %v3424, 0
      %v3435 = vsel %vm1214, %v3426, 0
      %v3438 = vsel %vm1214, %v3428, 0
      %v3441 = vsel %vm1214, %v3430, 0
      %3443 = vmatprep.subr.bf16.mxu0 0
      %3444 = vmatpush1.bf16.xpose.msra.mxu0 %v3438
      %3445 = vmatprep.subr.bf16.mxu0 0
      %3446 = vmatpush1.bf16.xpose.msra.mxu0 %v3441
      %3447 = vmatprep.subr.bf16.mxu0 0
      %3448 = vmatpush1.bf16.xpose.msra.mxu0 0
      %3449 = vmatprep.subr.bf16.mxu0 0
      %3450 = vmatpush1.bf16.xpose.msra.mxu0 0
      %3451 = vmatprep.subr.bf16.mxu0 0
      %3452 = vmatpush1.bf16.xpose.msra.mxu0 0
      %3453 = vmatprep.subr.bf16.mxu0 0
      %3454 = vmatpush1.bf16.xpose.msra.mxu0 0
      %3455 = vmatprep.subr.bf16.mxu0 0
      %3456 = vmatpush1.bf16.xpose.msra.mxu0 0
      %3457 = vmatprep.subr.bf16.mxu0 0
      %3458 = vmatpush1.bf16.xpose.msra.mxu0 0
      %3459 = vmatprep.subr.bf16.mxu0 0
      %3460 = vmatpush1.bf16.xpose.msra.mxu0 0
      %3461 = vmatprep.subr.bf16.mxu0 0
      %3462 = vmatpush1.bf16.xpose.msra.mxu0 0
      %3463 = vmatprep.subr.bf16.mxu0 0
      %3464 = vmatpush1.bf16.xpose.msra.mxu0 0
      %3465 = vmatprep.subr.bf16.mxu0 0
      %3466 = vmatpush1.bf16.xpose.msra.mxu0 0
      %3467 = vmatprep.subr.bf16.mxu0 0
      %3468 = vmatpush1.bf16.xpose.msra.mxu0 0
      %3469 = vmatprep.subr.bf16.mxu0 0
      %3470 = vmatpush1.bf16.xpose.msra.mxu0 0
      %3471 = vmatprep.subr.bf16.mxu0 0
      %3472 = vmatpush1.bf16.xpose.msra.mxu0 0
      %3473 = vmatprep.subr.bf16.mxu0 0
      %3474 = vmatpush1.bf16.xpose.msra.mxu0 0
      %3475 = vmatprep.mubr.bf16.mxu0 0
      %3476 = vmatmul.mubr.bf16.gmra.mrb[0].mxu0 %v3432
      %v3477 = vpop.f32.mrb[0].mxu0
      %v3478 = vadd.f32 0.0, %v3477
      %v3479 = vpop.f32.mrb[0].mxu0
      %v3480 = vpop.f32.mrb[0].mxu0
      %v3481 = vadd.f32 0.0, %v3480
      %v3482 = vpop.f32.mrb[0].mxu0
      %3483 = vmatprep.mubr.bf16.mxu0 0
      %3484 = vmatmul.mubr.bf16.gmra.mrb[0].mxu0 %v3435
      %v3485 = vpop.f32.mrb[0].mxu0
      %v3486 = vadd.f32 0.0, %v3485
      %v3487 = vpop.f32.mrb[0].mxu0
      %v3488 = vpop.f32.mrb[0].mxu0
      %v3489 = vpop.f32.mrb[0].mxu0
      %3490 = vdwg.mxu0
      %v3491 = vsel %vm882, %v3274, -1e+30
      %v3492 = vsel %vm882, %v3277, -1e+30
      %v3493 = vsel %vm882, %v3282, -1e+30
      %v3494 = vsel %vm882, %v3342, -1e+30
      %v3495 = vsel %vm882, %v3345, -1e+30
      %v3496 = vsel %vm882, %v3350, -1e+30
      %v3497 = vsel %vm882, %v3410, -1e+30
      %v3498 = vsel %vm882, %v3413, -1e+30
      %v3499 = vsel %vm882, %v3418, -1e+30
      %v3500 = vsel %vm882, %v3478, -1e+30
      %v3501 = vsel %vm882, %v3481, -1e+30
      %v3502 = vsel %vm882, %v3486, -1e+30
      %v3503 = vsel %vm1485, %v3491, -inf
      %3504 = vmax.xlane.f32.xlu0 %v3503
      %v3505 = vpop.xlane.xlu0 %3504
      %v3506 = vsel %vm1485, %v3492, -inf
      %3507 = vmax.xlane.f32.xlu0 %v3506
      %v3508 = vpop.xlane.xlu0 %3507
      %v3509 = vsel %vm1485, %v3493, -inf
      %3510 = vmax.xlane.f32.xlu0 %v3509
      %v3511 = vpop.xlane.xlu0 %3510
      %v3512 = vsel %vm1485, %v3494, -inf
      %3513 = vmax.xlane.f32.xlu0 %v3512
      %v3514 = vpop.xlane.xlu0 %3513
      %v3515 = vsel %vm1485, %v3495, -inf
      %3516 = vmax.xlane.f32.xlu0 %v3515
      %v3517 = vpop.xlane.xlu0 %3516
      %v3518 = vsel %vm1485, %v3496, -inf
      %3519 = vmax.xlane.f32.xlu0 %v3518
      %v3520 = vpop.xlane.xlu0 %3519
      %v3521 = vsel %vm1485, %v3497, -inf
      %3522 = vmax.xlane.f32.xlu0 %v3521
      %v3523 = vpop.xlane.xlu0 %3522
      %v3524 = vsel %vm1485, %v3498, -inf
      %3525 = vmax.xlane.f32.xlu0 %v3524
      %v3526 = vpop.xlane.xlu0 %3525
      %v3527 = vsel %vm1485, %v3499, -inf
      %3528 = vmax.xlane.f32.xlu0 %v3527
      %v3529 = vpop.xlane.xlu0 %3528
      %v3530 = vsel %vm1485, %v3500, -inf
      %3531 = vmax.xlane.f32.xlu0 %v3530
      %v3532 = vpop.xlane.xlu0 %3531
      %v3533 = vsel %vm1485, %v3501, -inf
      %3534 = vmax.xlane.f32.xlu0 %v3533
      %v3535 = vpop.xlane.xlu0 %3534
      %v3536 = vsel %vm1485, %v3502, -inf
      %3537 = vmax.xlane.f32.xlu0 %v3536
      %v3538 = vpop.xlane.xlu0 %3537
      %v3539 = vsub.f32 %v3491, %v3505
      %v3540 = vsub.f32 %v3492, %v3508
      %v3541 = vsub.f32 %v3493, %v3511
      %v3542 = vsub.f32 %v3494, %v3514
      %v3543 = vsub.f32 %v3495, %v3517
      %v3544 = vsub.f32 %v3496, %v3520
      %v3545 = vsub.f32 %v3497, %v3523
      %v3546 = vsub.f32 %v3498, %v3526
      %v3547 = vsub.f32 %v3499, %v3529
      %v3548 = vsub.f32 %v3500, %v3532
      %v3549 = vsub.f32 %v3501, %v3535
      %v3550 = vsub.f32 %v3502, %v3538
      %v3551 = vmul.f32 %v3539, 1.442695
      %v3552 = vpow.pop %v3551
      %v3553 = vmul.f32 %v3540, 1.442695
      %v3554 = vpow.pop %v3553
      %v3555 = vmul.f32 %v3541, 1.442695
      %v3556 = vpow.pop %v3555
      %v3557 = vmul.f32 %v3542, 1.442695
      %v3558 = vpow.pop %v3557
      %v3559 = vmul.f32 %v3543, 1.442695
      %v3560 = vpow.pop %v3559
      %v3561 = vmul.f32 %v3544, 1.442695
      %v3562 = vpow.pop %v3561
      %v3563 = vmul.f32 %v3545, 1.442695
      %v3564 = vpow.pop %v3563
      %v3565 = vmul.f32 %v3546, 1.442695
      %v3566 = vpow.pop %v3565
      %v3567 = vmul.f32 %v3547, 1.442695
      %v3568 = vpow.pop %v3567
      %v3569 = vmul.f32 %v3548, 1.442695
      %v3570 = vpow.pop %v3569
      %v3571 = vmul.f32 %v3549, 1.442695
      %v3572 = vpow.pop %v3571
      %v3573 = vmul.f32 %v3550, 1.442695
      %v3574 = vpow.pop %v3573
      %v3575 = vsel %vm1485, %v3552, 0.0
      %3576 = vadd.xlane.f32.xlu0 %v3575
      %v3577 = vpop.xlane.xlu0 %3576
      %v3578 = vsel %vm1485, %v3554, 0.0
      %3579 = vadd.xlane.f32.xlu0 %v3578
      %v3580 = vpop.xlane.xlu0 %3579
      %v3581 = vsel %vm1485, %v3556, 0.0
      %3582 = vadd.xlane.f32.xlu0 %v3581
      %v3583 = vpop.xlane.xlu0 %3582
      %v3584 = vsel %vm1485, %v3558, 0.0
      %3585 = vadd.xlane.f32.xlu0 %v3584
      %v3586 = vpop.xlane.xlu0 %3585
      %v3587 = vsel %vm1485, %v3560, 0.0
      %3588 = vadd.xlane.f32.xlu0 %v3587
      %v3589 = vpop.xlane.xlu0 %3588
      %v3590 = vsel %vm1485, %v3562, 0.0
      %3591 = vadd.xlane.f32.xlu0 %v3590
      %v3592 = vpop.xlane.xlu0 %3591
      %v3593 = vsel %vm1485, %v3564, 0.0
      %3594 = vadd.xlane.f32.xlu0 %v3593
      %v3595 = vpop.xlane.xlu0 %3594
      %v3596 = vsel %vm1485, %v3566, 0.0
      %3597 = vadd.xlane.f32.xlu0 %v3596
      %v3598 = vpop.xlane.xlu0 %3597
      %v3599 = vsel %vm1485, %v3568, 0.0
      %3600 = vadd.xlane.f32.xlu0 %v3599
      %v3601 = vpop.xlane.xlu0 %3600
      %v3602 = vsel %vm1485, %v3570, 0.0
      %3603 = vadd.xlane.f32.xlu0 %v3602
      %v3604 = vpop.xlane.xlu0 %3603
      %v3605 = vsel %vm1485, %v3572, 0.0
      %3606 = vadd.xlane.f32.xlu0 %v3605
      %v3607 = vpop.xlane.xlu0 %3606
      %v3608 = vsel %vm1485, %v3574, 0.0
      %3609 = vadd.xlane.f32.xlu0 %v3608
      %v3610 = vpop.xlane.xlu0 %3609
      %v3611 = vrcp.pop %v3577
      %v3612 = vrcp.pop %v3580
      %v3613 = vrcp.pop %v3583
      %v3614 = vrcp.pop %v3586
      %v3615 = vrcp.pop %v3589
      %v3616 = vrcp.pop %v3592
      %v3617 = vrcp.pop %v3595
      %v3618 = vrcp.pop %v3598
      %v3619 = vrcp.pop %v3601
      %v3620 = vrcp.pop %v3604
      %v3621 = vrcp.pop %v3607
      %v3622 = vrcp.pop %v3610
      %v3623 = vmul.f32 %v3552, %v3611
      %v3624 = vmul.f32 %v3554, %v3612
      %v3625 = vmul.f32 %v3556, %v3613
      %v3626 = vmul.f32 %v3558, %v3614
      %v3627 = vmul.f32 %v3560, %v3615
      %v3628 = vmul.f32 %v3562, %v3616
      %v3629 = vmul.f32 %v3564, %v3617
      %v3630 = vmul.f32 %v3566, %v3618
      %v3631 = vmul.f32 %v3568, %v3619
      %v3632 = vmul.f32 %v3570, %v3620
      %v3633 = vmul.f32 %v3572, %v3621
      %v3634 = vmul.f32 %v3574, %v3622
      %v3635 = vpack.c.bf16 %v3624, %v3623
      %v3636 = vpack.c.bf16 %v3625, %v3625
      %v3637 = vpack.c.bf16 %v3627, %v3626
      %v3638 = vpack.c.bf16 %v3628, %v3628
      %v3639 = vpack.c.bf16 %v3630, %v3629
      %v3640 = vpack.c.bf16 %v3631, %v3631
      %v3641 = vpack.c.bf16 %v3633, %v3632
      %v3642 = vpack.c.bf16 %v3634, %v3634
      %3643 = vrot.lane.b32.xlu0 %v1200, 40
      %v3644 = vpop.permute.xlu0 %3643
      %3645 = vrot.lane.b32.xlu0 %v1201, 40
      %v3646 = vpop.permute.xlu0 %3645
      %v3649 = vsel %vm1485, %v3635, 0
      %v3652 = vsel %vm1485, %v3636, 0
      %v3655 = vsel %vm1637, %v3646, 0
      %3657 = vmatprep.subr.bf16.mxu0 0
      %3658 = vmatpush1.bf16.msra.mxu0 %v3644
      %3659 = vmatprep.subr.bf16.mxu0 0
      %3660 = vmatpush1.bf16.msra.mxu0 %v3655
      %3661 = vmatprep.subr.bf16.mxu0 0
      %3662 = vmatpush1.bf16.msra.mxu0 0
      %3663 = vmatprep.subr.bf16.mxu0 0
      %3664 = vmatpush1.bf16.msra.mxu0 0
      %3665 = vmatprep.subr.bf16.mxu0 0
      %3666 = vmatpush1.bf16.msra.mxu0 0
      %3667 = vmatprep.subr.bf16.mxu0 0
      %3668 = vmatpush1.bf16.msra.mxu0 0
      %3669 = vmatprep.subr.bf16.mxu0 0
      %3670 = vmatpush1.bf16.msra.mxu0 0
      %3671 = vmatprep.subr.bf16.mxu0 0
      %3672 = vmatpush1.bf16.msra.mxu0 0
      %3673 = vmatprep.subr.bf16.mxu0 0
      %3674 = vmatpush1.bf16.msra.mxu0 0
      %3675 = vmatprep.subr.bf16.mxu0 0
      %3676 = vmatpush1.bf16.msra.mxu0 0
      %3677 = vmatprep.subr.bf16.mxu0 0
      %3678 = vmatpush1.bf16.msra.mxu0 0
      %3679 = vmatprep.subr.bf16.mxu0 0
      %3680 = vmatpush1.bf16.msra.mxu0 0
      %3681 = vmatprep.subr.bf16.mxu0 0
      %3682 = vmatpush1.bf16.msra.mxu0 0
      %3683 = vmatprep.subr.bf16.mxu0 0
      %3684 = vmatpush1.bf16.msra.mxu0 0
      %3685 = vmatprep.subr.bf16.mxu0 0
      %3686 = vmatpush1.bf16.msra.mxu0 0
      %3687 = vmatprep.subr.bf16.mxu0 0
      %3688 = vmatpush1.bf16.msra.mxu0 0
      %3689 = vmatprep.mubr.bf16.mxu0 0
      %3690 = vmatmul.mubr.bf16.gmra.mrb[0].mxu0 %v3649
      %v3691 = vpop.f32.mrb[0].mxu0
      %v3692 = vadd.f32 0.0, %v3691
      %v3693 = vpop.f32.mrb[0].mxu0
      %v3694 = vpop.f32.mrb[0].mxu0
      %v3695 = vadd.f32 0.0, %v3694
      %v3696 = vpop.f32.mrb[0].mxu0
      %3697 = vmatprep.mubr.bf16.mxu0 0
      %3698 = vmatmul.mubr.bf16.gmra.mrb[0].mxu0 %v3652
      %v3699 = vpop.f32.mrb[0].mxu0
      %v3700 = vadd.f32 0.0, %v3699
      %v3701 = vpop.f32.mrb[0].mxu0
      %v3702 = vpop.f32.mrb[0].mxu0
      %v3703 = vpop.f32.mrb[0].mxu0
      %3704 = vdwg.mxu0
      %3705 = vrot.lane.b32.xlu0 %v1202, 40
      %v3706 = vpop.permute.xlu0 %3705
      %3707 = vrot.lane.b32.xlu0 %v1203, 40
      %v3708 = vpop.permute.xlu0 %3707
      %v3711 = vsel %vm1485, %v3637, 0
      %v3714 = vsel %vm1485, %v3638, 0
      %v3717 = vsel %vm1637, %v3708, 0
      %3719 = vmatprep.subr.bf16.mxu0 0
      %3720 = vmatpush1.bf16.msra.mxu0 %v3706
      %3721 = vmatprep.subr.bf16.mxu0 0
      %3722 = vmatpush1.bf16.msra.mxu0 %v3717
      %3723 = vmatprep.subr.bf16.mxu0 0
      %3724 = vmatpush1.bf16.msra.mxu0 0
      %3725 = vmatprep.subr.bf16.mxu0 0
      %3726 = vmatpush1.bf16.msra.mxu0 0
      %3727 = vmatprep.subr.bf16.mxu0 0
      %3728 = vmatpush1.bf16.msra.mxu0 0
      %3729 = vmatprep.subr.bf16.mxu0 0
      %3730 = vmatpush1.bf16.msra.mxu0 0
      %3731 = vmatprep.subr.bf16.mxu0 0
      %3732 = vmatpush1.bf16.msra.mxu0 0
      %3733 = vmatprep.subr.bf16.mxu0 0
      %3734 = vmatpush1.bf16.msra.mxu0 0
      %3735 = vmatprep.subr.bf16.mxu0 0
      %3736 = vmatpush1.bf16.msra.mxu0 0
      %3737 = vmatprep.subr.bf16.mxu0 0
      %3738 = vmatpush1.bf16.msra.mxu0 0
      %3739 = vmatprep.subr.bf16.mxu0 0
      %3740 = vmatpush1.bf16.msra.mxu0 0
      %3741 = vmatprep.subr.bf16.mxu0 0
      %3742 = vmatpush1.bf16.msra.mxu0 0
      %3743 = vmatprep.subr.bf16.mxu0 0
      %3744 = vmatpush1.bf16.msra.mxu0 0
      %3745 = vmatprep.subr.bf16.mxu0 0
      %3746 = vmatpush1.bf16.msra.mxu0 0
      %3747 = vmatprep.subr.bf16.mxu0 0
      %3748 = vmatpush1.bf16.msra.mxu0 0
      %3749 = vmatprep.subr.bf16.mxu0 0
      %3750 = vmatpush1.bf16.msra.mxu0 0
      %3751 = vmatprep.mubr.bf16.mxu0 0
      %3752 = vmatmul.mubr.bf16.gmra.mrb[0].mxu0 %v3711
      %v3753 = vpop.f32.mrb[0].mxu0
      %v3754 = vadd.f32 0.0, %v3753
      %v3755 = vpop.f32.mrb[0].mxu0
      %v3756 = vpop.f32.mrb[0].mxu0
      %v3757 = vadd.f32 0.0, %v3756
      %v3758 = vpop.f32.mrb[0].mxu0
      %3759 = vmatprep.mubr.bf16.mxu0 0
      %3760 = vmatmul.mubr.bf16.gmra.mrb[0].mxu0 %v3714
      %v3761 = vpop.f32.mrb[0].mxu0
      %v3762 = vadd.f32 0.0, %v3761
      %v3763 = vpop.f32.mrb[0].mxu0
      %v3764 = vpop.f32.mrb[0].mxu0
      %v3765 = vpop.f32.mrb[0].mxu0
      %3766 = vdwg.mxu0
      %3767 = vrot.lane.b32.xlu0 %v1204, 40
      %v3768 = vpop.permute.xlu0 %3767
      %3769 = vrot.lane.b32.xlu0 %v1205, 40
      %v3770 = vpop.permute.xlu0 %3769
      %v3773 = vsel %vm1485, %v3639, 0
      %v3776 = vsel %vm1485, %v3640, 0
      %v3779 = vsel %vm1637, %v3770, 0
      %3781 = vmatprep.subr.bf16.mxu0 0
      %3782 = vmatpush1.bf16.msra.mxu0 %v3768
      %3783 = vmatprep.subr.bf16.mxu0 0
      %3784 = vmatpush1.bf16.msra.mxu0 %v3779
      %3785 = vmatprep.subr.bf16.mxu0 0
      %3786 = vmatpush1.bf16.msra.mxu0 0
      %3787 = vmatprep.subr.bf16.mxu0 0
      %3788 = vmatpush1.bf16.msra.mxu0 0
      %3789 = vmatprep.subr.bf16.mxu0 0
      %3790 = vmatpush1.bf16.msra.mxu0 0
      %3791 = vmatprep.subr.bf16.mxu0 0
      %3792 = vmatpush1.bf16.msra.mxu0 0
      %3793 = vmatprep.subr.bf16.mxu0 0
      %3794 = vmatpush1.bf16.msra.mxu0 0
      %3795 = vmatprep.subr.bf16.mxu0 0
      %3796 = vmatpush1.bf16.msra.mxu0 0
      %3797 = vmatprep.subr.bf16.mxu0 0
      %3798 = vmatpush1.bf16.msra.mxu0 0
      %3799 = vmatprep.subr.bf16.mxu0 0
      %3800 = vmatpush1.bf16.msra.mxu0 0
      %3801 = vmatprep.subr.bf16.mxu0 0
      %3802 = vmatpush1.bf16.msra.mxu0 0
      %3803 = vmatprep.subr.bf16.mxu0 0
      %3804 = vmatpush1.bf16.msra.mxu0 0
      %3805 = vmatprep.subr.bf16.mxu0 0
      %3806 = vmatpush1.bf16.msra.mxu0 0
      %3807 = vmatprep.subr.bf16.mxu0 0
      %3808 = vmatpush1.bf16.msra.mxu0 0
      %3809 = vmatprep.subr.bf16.mxu0 0
      %3810 = vmatpush1.bf16.msra.mxu0 0
      %3811 = vmatprep.subr.bf16.mxu0 0
      %3812 = vmatpush1.bf16.msra.mxu0 0
      %3813 = vmatprep.mubr.bf16.mxu0 0
      %3814 = vmatmul.mubr.bf16.gmra.mrb[0].mxu0 %v3773
      %v3815 = vpop.f32.mrb[0].mxu0
      %v3816 = vadd.f32 0.0, %v3815
      %v3817 = vpop.f32.mrb[0].mxu0
      %v3818 = vpop.f32.mrb[0].mxu0
      %v3819 = vadd.f32 0.0, %v3818
      %v3820 = vpop.f32.mrb[0].mxu0
      %3821 = vmatprep.mubr.bf16.mxu0 0
      %3822 = vmatmul.mubr.bf16.gmra.mrb[0].mxu0 %v3776
      %v3823 = vpop.f32.mrb[0].mxu0
      %v3824 = vadd.f32 0.0, %v3823
      %v3825 = vpop.f32.mrb[0].mxu0
      %v3826 = vpop.f32.mrb[0].mxu0
      %v3827 = vpop.f32.mrb[0].mxu0
      %3828 = vdwg.mxu0
      %3829 = vrot.lane.b32.xlu0 %v1206, 40
      %v3830 = vpop.permute.xlu0 %3829
      %3831 = vrot.lane.b32.xlu0 %v1207, 40
      %v3832 = vpop.permute.xlu0 %3831
      %v3835 = vsel %vm1485, %v3641, 0
      %v3838 = vsel %vm1485, %v3642, 0
      %v3841 = vsel %vm1637, %v3832, 0
      %3843 = vmatprep.subr.bf16.mxu0 0
      %3844 = vmatpush1.bf16.msra.mxu0 %v3830
      %3845 = vmatprep.subr.bf16.mxu0 0
      %3846 = vmatpush1.bf16.msra.mxu0 %v3841
      %3847 = vmatprep.subr.bf16.mxu0 0
      %3848 = vmatpush1.bf16.msra.mxu0 0
      %3849 = vmatprep.subr.bf16.mxu0 0
      %3850 = vmatpush1.bf16.msra.mxu0 0
      %3851 = vmatprep.subr.bf16.mxu0 0
      %3852 = vmatpush1.bf16.msra.mxu0 0
      %3853 = vmatprep.subr.bf16.mxu0 0
      %3854 = vmatpush1.bf16.msra.mxu0 0
      %3855 = vmatprep.subr.bf16.mxu0 0
      %3856 = vmatpush1.bf16.msra.mxu0 0
      %3857 = vmatprep.subr.bf16.mxu0 0
      %3858 = vmatpush1.bf16.msra.mxu0 0
      %3859 = vmatprep.subr.bf16.mxu0 0
      %3860 = vmatpush1.bf16.msra.mxu0 0
      %3861 = vmatprep.subr.bf16.mxu0 0
      %3862 = vmatpush1.bf16.msra.mxu0 0
      %3863 = vmatprep.subr.bf16.mxu0 0
      %3864 = vmatpush1.bf16.msra.mxu0 0
      %3865 = vmatprep.subr.bf16.mxu0 0
      %3866 = vmatpush1.bf16.msra.mxu0 0
      %3867 = vmatprep.subr.bf16.mxu0 0
      %3868 = vmatpush1.bf16.msra.mxu0 0
      %3869 = vmatprep.subr.bf16.mxu0 0
      %3870 = vmatpush1.bf16.msra.mxu0 0
      %3871 = vmatprep.subr.bf16.mxu0 0
      %3872 = vmatpush1.bf16.msra.mxu0 0
      %3873 = vmatprep.subr.bf16.mxu0 0
      %3874 = vmatpush1.bf16.msra.mxu0 0
      %3875 = vmatprep.mubr.bf16.mxu0 0
      %3876 = vmatmul.mubr.bf16.gmra.mrb[0].mxu0 %v3835
      %v3877 = vpop.f32.mrb[0].mxu0
      %v3878 = vadd.f32 0.0, %v3877
      %v3879 = vpop.f32.mrb[0].mxu0
      %v3880 = vpop.f32.mrb[0].mxu0
      %v3881 = vadd.f32 0.0, %v3880
      %v3882 = vpop.f32.mrb[0].mxu0
      %3883 = vmatprep.mubr.bf16.mxu0 0
      %3884 = vmatmul.mubr.bf16.gmra.mrb[0].mxu0 %v3838
      %v3885 = vpop.f32.mrb[0].mxu0
      %v3886 = vadd.f32 0.0, %v3885
      %v3887 = vpop.f32.mrb[0].mxu0
      %v3888 = vpop.f32.mrb[0].mxu0
      %v3889 = vpop.f32.mrb[0].mxu0
      %3890 = vdwg.mxu0
      %3903 = vrot.lane.b32.xlu0 %v2348, 8
      %v3904 = vpop.permute.xlu0 %3903
      %3905 = vrot.lane.b32.xlu0 %v2351, 8
      %v3906 = vpop.permute.xlu0 %3905
      %3907 = vrot.lane.b32.xlu0 %v2356, 8
      %v3908 = vpop.permute.xlu0 %3907
      %3909 = vrot.lane.b32.xlu0 %v2410, 8
      %v3910 = vpop.permute.xlu0 %3909
      %3911 = vrot.lane.b32.xlu0 %v2413, 8
      %v3912 = vpop.permute.xlu0 %3911
      %3913 = vrot.lane.b32.xlu0 %v2418, 8
      %v3914 = vpop.permute.xlu0 %3913
      %3915 = vrot.lane.b32.xlu0 %v2472, 8
      %v3916 = vpop.permute.xlu0 %3915
      %3917 = vrot.lane.b32.xlu0 %v2475, 8
      %v3918 = vpop.permute.xlu0 %3917
      %3919 = vrot.lane.b32.xlu0 %v2480, 8
      %v3920 = vpop.permute.xlu0 %3919
      %3921 = vrot.lane.b32.xlu0 %v2534, 8
      %v3922 = vpop.permute.xlu0 %3921
      %3923 = vrot.lane.b32.xlu0 %v2537, 8
      %v3924 = vpop.permute.xlu0 %3923
      %3925 = vrot.lane.b32.xlu0 %v2542, 8
      %v3926 = vpop.permute.xlu0 %3925
      %3951 = vrot.lane.b32.xlu0 %v3020, 16
      %v3952 = vpop.permute.xlu0 %3951
      %3953 = vrot.lane.b32.xlu0 %v3023, 16
      %v3954 = vpop.permute.xlu0 %3953
      %3955 = vrot.lane.b32.xlu0 %v3028, 16
      %v3956 = vpop.permute.xlu0 %3955
      %3957 = vrot.lane.b32.xlu0 %v3082, 16
      %v3958 = vpop.permute.xlu0 %3957
      %3959 = vrot.lane.b32.xlu0 %v3085, 16
      %v3960 = vpop.permute.xlu0 %3959
      %3961 = vrot.lane.b32.xlu0 %v3090, 16
      %v3962 = vpop.permute.xlu0 %3961
      %3963 = vrot.lane.b32.xlu0 %v3144, 16
      %v3964 = vpop.permute.xlu0 %3963
      %3965 = vrot.lane.b32.xlu0 %v3147, 16
      %v3966 = vpop.permute.xlu0 %3965
      %3967 = vrot.lane.b32.xlu0 %v3152, 16
      %v3968 = vpop.permute.xlu0 %3967
      %3969 = vrot.lane.b32.xlu0 %v3206, 16
      %v3970 = vpop.permute.xlu0 %3969
      %3971 = vrot.lane.b32.xlu0 %v3209, 16
      %v3972 = vpop.permute.xlu0 %3971
      %3973 = vrot.lane.b32.xlu0 %v3214, 16
      %v3974 = vpop.permute.xlu0 %3973
      %3999 = vrot.lane.b32.xlu0 %v3692, 24
      %v4000 = vpop.permute.xlu0 %3999
      %4001 = vrot.lane.b32.xlu0 %v3695, 24
      %v4002 = vpop.permute.xlu0 %4001
      %4003 = vrot.lane.b32.xlu0 %v3700, 24
      %v4004 = vpop.permute.xlu0 %4003
      %4005 = vrot.lane.b32.xlu0 %v3754, 24
      %v4006 = vpop.permute.xlu0 %4005
      %4007 = vrot.lane.b32.xlu0 %v3757, 24
      %v4008 = vpop.permute.xlu0 %4007
      %4009 = vrot.lane.b32.xlu0 %v3762, 24
      %v4010 = vpop.permute.xlu0 %4009
      %4011 = vrot.lane.b32.xlu0 %v3816, 24
      %v4012 = vpop.permute.xlu0 %4011
      %4013 = vrot.lane.b32.xlu0 %v3819, 24
      %v4014 = vpop.permute.xlu0 %4013
      %4015 = vrot.lane.b32.xlu0 %v3824, 24
      %v4016 = vpop.permute.xlu0 %4015
      %4017 = vrot.lane.b32.xlu0 %v3878, 24
      %v4018 = vpop.permute.xlu0 %4017
      %4019 = vrot.lane.b32.xlu0 %v3881, 24
      %v4020 = vpop.permute.xlu0 %4019
      %4021 = vrot.lane.b32.xlu0 %v3886, 24
      %v4022 = vpop.permute.xlu0 %4021
      %v4035 = vsel %vm1214, %v1676, %v3904
      %v4036 = vsel %vm1214, %v1679, %v3906
      %v4037 = vsel %vm1214, %v1684, %v3908
      %v4038 = vsel %vm1214, %v1738, %v3910
      %v4039 = vsel %vm1214, %v1741, %v3912
      %v4040 = vsel %vm1214, %v1746, %v3914
      %v4041 = vsel %vm1214, %v1800, %v3916
      %v4042 = vsel %vm1214, %v1803, %v3918
      %v4043 = vsel %vm1214, %v1808, %v3920
      %v4044 = vsel %vm1214, %v1862, %v3922
      %v4045 = vsel %vm1214, %v1865, %v3924
      %v4046 = vsel %vm1214, %v1870, %v3926
      %vm4047 = vcmask 130048
      %v4048 = vsel %vm4047, %v4035, %v3952
      %v4049 = vsel %vm4047, %v4036, %v3954
      %v4050 = vsel %vm4047, %v4037, %v3956
      %v4051 = vsel %vm4047, %v4038, %v3958
      %v4052 = vsel %vm4047, %v4039, %v3960
      %v4053 = vsel %vm4047, %v4040, %v3962
      %v4054 = vsel %vm4047, %v4041, %v3964
      %v4055 = vsel %vm4047, %v4042, %v3966
      %v4056 = vsel %vm4047, %v4043, %v3968
      %v4057 = vsel %vm4047, %v4044, %v3970
      %v4058 = vsel %vm4047, %v4045, %v3972
      %v4059 = vsel %vm4047, %v4046, %v3974
      %v4060 = vsel %vm1485, %v4048, %v4000
      %v4061 = vsel %vm1485, %v4049, %v4002
      %v4062 = vsel %vm1485, %v4050, %v4004
      %v4063 = vsel %vm1485, %v4051, %v4006
      %v4064 = vsel %vm1485, %v4052, %v4008
      %v4065 = vsel %vm1485, %v4053, %v4010
      %v4066 = vsel %vm1485, %v4054, %v4012
      %v4067 = vsel %vm1485, %v4055, %v4014
      %v4068 = vsel %vm1485, %v4056, %v4016
      %v4069 = vsel %vm1485, %v4057, %v4018
      %v4070 = vsel %vm1485, %v4058, %v4020
      %v4071 = vsel %vm1485, %v4059, %v4022
      %v4072 = vld [vmem:[%s9] sm:$0xf]
      %v4073 = vld [vmem:[%s9 + $0x4] sm:$0xf]
      %v4074 = vld [vmem:[%s9 + $0x8] sm:$0xf]
      %v4075 = vld [vmem:[%s9 + $0xc] sm:$0xf]
      %v4076 = vpack.c.bf16 %v4061, %v4060
      %v4077 = vpack.c.bf16 %v4063, %v4062
      %v4078 = vpack.c.bf16 %v4065, %v4064
      %v4079 = vpack.c.bf16 %v4067, %v4066
      %v4080 = vpack.c.bf16 %v4069, %v4068
      %v4081 = vpack.c.bf16 %v4071, %v4070
      %v4086 = vunpack.c.l.b16 %v4072
      %v4087 = vunpack.c.l.b16 %v4073
      %v4088 = vunpack.c.l.b16 %v4074
      %v4089 = vunpack.c.l.b16 %v4075
      %v4090 = vpack.c.b16 %v4087, %v4086
      %v4091 = vpack.c.b16 %v4089, %v4088
      %v4095 = vsel %vm690, %v4076, 0
      %v4098 = vsel %vm690, %v4077, 0
      %v4101 = vsel %vm690, %v4078, 0
      %v4104 = vsel %vm690, %v4079, 0
      %v4107 = vsel %vm690, %v4080, 0
      %v4110 = vsel %vm690, %v4081, 0
      %4112 = vmatprep.subr.bf16.mxu0 0
      %4113 = vmatpush1.bf16.msra.mxu0 %v4090
      %4114 = vmatprep.subr.bf16.mxu0 0
      %4115 = vmatpush1.bf16.msra.mxu0 %v4091
      %4116 = vmatprep.subr.bf16.mxu0 0
      %4117 = vmatpush1.bf16.msra.mxu0 0
      %4118 = vmatprep.subr.bf16.mxu0 0
      %4119 = vmatpush1.bf16.msra.mxu0 0
      %4120 = vmatprep.subr.bf16.mxu0 0
      %4121 = vmatpush1.bf16.msra.mxu0 0
      %4122 = vmatprep.subr.bf16.mxu0 0
      %4123 = vmatpush1.bf16.msra.mxu0 0
      %4124 = vmatprep.subr.bf16.mxu0 0
      %4125 = vmatpush1.bf16.msra.mxu0 0
      %4126 = vmatprep.subr.bf16.mxu0 0
      %4127 = vmatpush1.bf16.msra.mxu0 0
      %4128 = vmatprep.subr.bf16.mxu0 0
      %4129 = vmatpush1.bf16.msra.mxu0 0
      %4130 = vmatprep.subr.bf16.mxu0 0
      %4131 = vmatpush1.bf16.msra.mxu0 0
      %4132 = vmatprep.subr.bf16.mxu0 0
      %4133 = vmatpush1.bf16.msra.mxu0 0
      %4134 = vmatprep.subr.bf16.mxu0 0
      %4135 = vmatpush1.bf16.msra.mxu0 0
      %4136 = vmatprep.subr.bf16.mxu0 0
      %4137 = vmatpush1.bf16.msra.mxu0 0
      %4138 = vmatprep.subr.bf16.mxu0 0
      %4139 = vmatpush1.bf16.msra.mxu0 0
      %4140 = vmatprep.subr.bf16.mxu0 0
      %4141 = vmatpush1.bf16.msra.mxu0 0
      %4142 = vmatprep.subr.bf16.mxu0 0
      %4143 = vmatpush1.bf16.msra.mxu0 0
      %4144 = vmatprep.mubr.bf16.mxu0 0
      %4145 = vmatmul.mubr.bf16.gmra.mrb[0].mxu0 %v4095
      %v4146 = vpop.f32.mrb[0].mxu0
      %v4147 = vadd.f32 0.0, %v4146
      %v4148 = vpop.f32.mrb[0].mxu0
      %v4149 = vpop.f32.mrb[0].mxu0
      %v4150 = vadd.f32 0.0, %v4149
      %v4151 = vpop.f32.mrb[0].mxu0
      %4152 = vmatprep.mubr.bf16.mxu0 0
      %4153 = vmatmul.mubr.bf16.gmra.mrb[0].mxu0 %v4098
      %v4154 = vpop.f32.mrb[0].mxu0
      %v4155 = vadd.f32 0.0, %v4154
      %v4156 = vpop.f32.mrb[0].mxu0
      %v4157 = vpop.f32.mrb[0].mxu0
      %v4158 = vadd.f32 0.0, %v4157
      %v4159 = vpop.f32.mrb[0].mxu0
      %4160 = vmatprep.mubr.bf16.mxu0 0
      %4161 = vmatmul.mubr.bf16.gmra.mrb[0].mxu0 %v4101
      %v4162 = vpop.f32.mrb[0].mxu0
      %v4163 = vadd.f32 0.0, %v4162
      %v4164 = vpop.f32.mrb[0].mxu0
      %v4165 = vpop.f32.mrb[0].mxu0
      %v4166 = vadd.f32 0.0, %v4165
      %v4167 = vpop.f32.mrb[0].mxu0
      %4168 = vmatprep.mubr.bf16.mxu0 0
      %4169 = vmatmul.mubr.bf16.gmra.mrb[0].mxu0 %v4104
      %v4170 = vpop.f32.mrb[0].mxu0
      %v4171 = vadd.f32 0.0, %v4170
      %v4172 = vpop.f32.mrb[0].mxu0
      %v4173 = vpop.f32.mrb[0].mxu0
      %v4174 = vadd.f32 0.0, %v4173
      %v4175 = vpop.f32.mrb[0].mxu0
      %4176 = vmatprep.mubr.bf16.mxu0 0
      %4177 = vmatmul.mubr.bf16.gmra.mrb[0].mxu0 %v4107
      %v4178 = vpop.f32.mrb[0].mxu0
      %v4179 = vadd.f32 0.0, %v4178
      %v4180 = vpop.f32.mrb[0].mxu0
      %v4181 = vpop.f32.mrb[0].mxu0
      %v4182 = vadd.f32 0.0, %v4181
      %v4183 = vpop.f32.mrb[0].mxu0
      %4184 = vmatprep.mubr.bf16.mxu0 0
      %4185 = vmatmul.mubr.bf16.gmra.mrb[0].mxu0 %v4110
      %v4186 = vpop.f32.mrb[0].mxu0
      %v4187 = vadd.f32 0.0, %v4186
      %v4188 = vpop.f32.mrb[0].mxu0
      %v4189 = vpop.f32.mrb[0].mxu0
      %v4190 = vadd.f32 0.0, %v4189
      %v4191 = vpop.f32.mrb[0].mxu0
      %4192 = vdwg.mxu0
      %v4193 = vadd.f32 %v868, %v4147
      %v4194 = vadd.f32 %v869, %v4150
      %v4195 = vadd.f32 %v870, %v4155
      %v4196 = vadd.f32 %v871, %v4158
      %v4197 = vadd.f32 %v872, %v4163
      %v4198 = vadd.f32 %v873, %v4166
      %v4199 = vadd.f32 %v874, %v4171
      %v4200 = vadd.f32 %v875, %v4174
      %v4201 = vadd.f32 %v876, %v4179
      %v4202 = vadd.f32 %v877, %v4182
      %v4203 = vadd.f32 %v878, %v4187
      %v4204 = vadd.f32 %v879, %v4190
      %v4205 = vld [vmem:[%s10] sm:$0x1]
      %v4207 = vlaneseq
      %v4208 = vshrl.u32 %v4207, 7
      %v4209 = vsub.s32 0, %v4208
      %v4210 = vrot.slane %v4205, %v4209
      %v4212 = vadd.f32 %v4193, %v4210
      %v4213 = vadd.f32 %v4194, %v4210
      %v4214 = vadd.f32 %v4195, %v4210
      %v4215 = vadd.f32 %v4196, %v4210
      %v4216 = vadd.f32 %v4197, %v4210
      %v4217 = vadd.f32 %v4198, %v4210
      %v4218 = vadd.f32 %v4199, %v4210
      %v4219 = vadd.f32 %v4200, %v4210
      %v4220 = vadd.f32 %v4201, %v4210
      %v4221 = vadd.f32 %v4202, %v4210
      %v4222 = vadd.f32 %v4203, %v4210
      %v4223 = vadd.f32 %v4204, %v4210
      %v4224 = vld [vmem:[%s11] sm:$0x3]
      %v4225 = vsel %vm690, %v4212, 0.0
      %4226 = vadd.xlane.f32.xlu0 %v4225
      %v4227 = vpop.xlane.xlu0 %4226
      %v4228 = vsel %vm690, %v4213, 0.0
      %4229 = vadd.xlane.f32.xlu0 %v4228
      %v4230 = vpop.xlane.xlu0 %4229
      %v4231 = vsel %vm690, %v4214, 0.0
      %4232 = vadd.xlane.f32.xlu0 %v4231
      %v4233 = vpop.xlane.xlu0 %4232
      %v4234 = vsel %vm690, %v4215, 0.0
      %4235 = vadd.xlane.f32.xlu0 %v4234
      %v4236 = vpop.xlane.xlu0 %4235
      %v4237 = vsel %vm690, %v4216, 0.0
      %4238 = vadd.xlane.f32.xlu0 %v4237
      %v4239 = vpop.xlane.xlu0 %4238
      %v4240 = vsel %vm690, %v4217, 0.0
      %4241 = vadd.xlane.f32.xlu0 %v4240
      %v4242 = vpop.xlane.xlu0 %4241
      %v4243 = vsel %vm690, %v4218, 0.0
      %4244 = vadd.xlane.f32.xlu0 %v4243
      %v4245 = vpop.xlane.xlu0 %4244
      %v4246 = vsel %vm690, %v4219, 0.0
      %4247 = vadd.xlane.f32.xlu0 %v4246
      %v4248 = vpop.xlane.xlu0 %4247
      %v4249 = vsel %vm690, %v4220, 0.0
      %4250 = vadd.xlane.f32.xlu0 %v4249
      %v4251 = vpop.xlane.xlu0 %4250
      %v4252 = vsel %vm690, %v4221, 0.0
      %4253 = vadd.xlane.f32.xlu0 %v4252
      %v4254 = vpop.xlane.xlu0 %4253
      %v4255 = vsel %vm690, %v4222, 0.0
      %4256 = vadd.xlane.f32.xlu0 %v4255
      %v4257 = vpop.xlane.xlu0 %4256
      %v4258 = vsel %vm690, %v4223, 0.0
      %4259 = vadd.xlane.f32.xlu0 %v4258
      %v4260 = vpop.xlane.xlu0 %4259
      %v4261 = vmul.f32 %v4227, %v727
      %v4262 = vmul.f32 %v4230, %v727
      %v4263 = vmul.f32 %v4233, %v727
      %v4264 = vmul.f32 %v4236, %v727
      %v4265 = vmul.f32 %v4239, %v727
      %v4266 = vmul.f32 %v4242, %v727
      %v4267 = vmul.f32 %v4245, %v727
      %v4268 = vmul.f32 %v4248, %v727
      %v4269 = vmul.f32 %v4251, %v727
      %v4270 = vmul.f32 %v4254, %v727
      %v4271 = vmul.f32 %v4257, %v727
      %v4272 = vmul.f32 %v4260, %v727
      %v4273 = vsub.f32 %v4212, %v4261
      %v4274 = vsub.f32 %v4213, %v4262
      %v4275 = vsub.f32 %v4214, %v4263
      %v4276 = vsub.f32 %v4215, %v4264
      %v4277 = vsub.f32 %v4216, %v4265
      %v4278 = vsub.f32 %v4217, %v4266
      %v4279 = vsub.f32 %v4218, %v4267
      %v4280 = vsub.f32 %v4219, %v4268
      %v4281 = vsub.f32 %v4220, %v4269
      %v4282 = vsub.f32 %v4221, %v4270
      %v4283 = vsub.f32 %v4222, %v4271
      %v4284 = vsub.f32 %v4223, %v4272
      %v4285 = vmul.f32 %v4273, %v4273
      %v4286 = vmul.f32 %v4274, %v4274
      %v4287 = vmul.f32 %v4275, %v4275
      %v4288 = vmul.f32 %v4276, %v4276
      %v4289 = vmul.f32 %v4277, %v4277
      %v4290 = vmul.f32 %v4278, %v4278
      %v4291 = vmul.f32 %v4279, %v4279
      %v4292 = vmul.f32 %v4280, %v4280
      %v4293 = vmul.f32 %v4281, %v4281
      %v4294 = vmul.f32 %v4282, %v4282
      %v4295 = vmul.f32 %v4283, %v4283
      %v4296 = vmul.f32 %v4284, %v4284
      %v4297 = vsel %vm690, %v4285, 0.0
      %4298 = vadd.xlane.f32.xlu0 %v4297
      %v4299 = vpop.xlane.xlu0 %4298
      %v4300 = vsel %vm690, %v4286, 0.0
      %4301 = vadd.xlane.f32.xlu0 %v4300
      %v4302 = vpop.xlane.xlu0 %4301
      %v4303 = vsel %vm690, %v4287, 0.0
      %4304 = vadd.xlane.f32.xlu0 %v4303
      %v4305 = vpop.xlane.xlu0 %4304
      %v4306 = vsel %vm690, %v4288, 0.0
      %4307 = vadd.xlane.f32.xlu0 %v4306
      %v4308 = vpop.xlane.xlu0 %4307
      %v4309 = vsel %vm690, %v4289, 0.0
      %4310 = vadd.xlane.f32.xlu0 %v4309
      %v4311 = vpop.xlane.xlu0 %4310
      %v4312 = vsel %vm690, %v4290, 0.0
      %4313 = vadd.xlane.f32.xlu0 %v4312
      %v4314 = vpop.xlane.xlu0 %4313
      %v4315 = vsel %vm690, %v4291, 0.0
      %4316 = vadd.xlane.f32.xlu0 %v4315
      %v4317 = vpop.xlane.xlu0 %4316
      %v4318 = vsel %vm690, %v4292, 0.0
      %4319 = vadd.xlane.f32.xlu0 %v4318
      %v4320 = vpop.xlane.xlu0 %4319
      %v4321 = vsel %vm690, %v4293, 0.0
      %4322 = vadd.xlane.f32.xlu0 %v4321
      %v4323 = vpop.xlane.xlu0 %4322
      %v4324 = vsel %vm690, %v4294, 0.0
      %4325 = vadd.xlane.f32.xlu0 %v4324
      %v4326 = vpop.xlane.xlu0 %4325
      %v4327 = vsel %vm690, %v4295, 0.0
      %4328 = vadd.xlane.f32.xlu0 %v4327
      %v4329 = vpop.xlane.xlu0 %4328
      %v4330 = vsel %vm690, %v4296, 0.0
      %4331 = vadd.xlane.f32.xlu0 %v4330
      %v4332 = vpop.xlane.xlu0 %4331
      %v4333 = vmul.f32 %v4299, %v727
      %v4334 = vmul.f32 %v4302, %v727
      %v4335 = vmul.f32 %v4305, %v727
      %v4336 = vmul.f32 %v4308, %v727
      %v4337 = vmul.f32 %v4311, %v727
      %v4338 = vmul.f32 %v4314, %v727
      %v4339 = vmul.f32 %v4317, %v727
      %v4340 = vmul.f32 %v4320, %v727
      %v4341 = vmul.f32 %v4323, %v727
      %v4342 = vmul.f32 %v4326, %v727
      %v4343 = vmul.f32 %v4329, %v727
      %v4344 = vmul.f32 %v4332, %v727
      %v4345 = vadd.f32 %v4333, 1e-05
      %v4346 = vadd.f32 %v4334, 1e-05
      %v4347 = vadd.f32 %v4335, 1e-05
      %v4348 = vadd.f32 %v4336, 1e-05
      %v4349 = vadd.f32 %v4337, 1e-05
      %v4350 = vadd.f32 %v4338, 1e-05
      %v4351 = vadd.f32 %v4339, 1e-05
      %v4352 = vadd.f32 %v4340, 1e-05
      %v4353 = vadd.f32 %v4341, 1e-05
      %v4354 = vadd.f32 %v4342, 1e-05
      %v4355 = vadd.f32 %v4343, 1e-05
      %v4356 = vadd.f32 %v4344, 1e-05
      %v4357 = vrsqrt.pop %v4345
      %v4358 = vrsqrt.pop %v4346
      %v4359 = vrsqrt.pop %v4347
      %v4360 = vrsqrt.pop %v4348
      %v4361 = vrsqrt.pop %v4349
      %v4362 = vrsqrt.pop %v4350
      %v4363 = vrsqrt.pop %v4351
      %v4364 = vrsqrt.pop %v4352
      %v4365 = vrsqrt.pop %v4353
      %v4366 = vrsqrt.pop %v4354
      %v4367 = vrsqrt.pop %v4355
      %v4368 = vrsqrt.pop %v4356
      %v4369 = vmul.f32 %v4273, %v4357
      %v4370 = vmul.f32 %v4274, %v4358
      %v4371 = vmul.f32 %v4275, %v4359
      %v4372 = vmul.f32 %v4276, %v4360
      %v4373 = vmul.f32 %v4277, %v4361
      %v4374 = vmul.f32 %v4278, %v4362
      %v4375 = vmul.f32 %v4279, %v4363
      %v4376 = vmul.f32 %v4280, %v4364
      %v4377 = vmul.f32 %v4281, %v4365
      %v4378 = vmul.f32 %v4282, %v4366
      %v4379 = vmul.f32 %v4283, %v4367
      %v4380 = vmul.f32 %v4284, %v4368
      %v4381 = vlaneseq
      %v4382 = vshrl.u32 %v4381, 7
      %v4383 = vsub.s32 0, %v4382
      %v4384 = vrot.slane %v4224, %v4383
      %v4385 = vmul.f32 %v4369, %v4384
      %v4386 = vmul.f32 %v4370, %v4384
      %v4387 = vmul.f32 %v4371, %v4384
      %v4388 = vmul.f32 %v4372, %v4384
      %v4389 = vmul.f32 %v4373, %v4384
      %v4390 = vmul.f32 %v4374, %v4384
      %v4391 = vmul.f32 %v4375, %v4384
      %v4392 = vmul.f32 %v4376, %v4384
      %v4393 = vmul.f32 %v4377, %v4384
      %v4394 = vmul.f32 %v4378, %v4384
      %v4395 = vmul.f32 %v4379, %v4384
      %v4396 = vmul.f32 %v4380, %v4384
      %v4397 = vlaneseq
      %v4398 = vshrl.u32 %v4397, 7
      %v4399 = vsub.s32 1, %v4398
      %v4400 = vrot.slane %v4224, %v4399
      %v4401 = vadd.f32 %v4385, %v4400
      %v4402 = vadd.f32 %v4386, %v4400
      %v4403 = vadd.f32 %v4387, %v4400
      %v4404 = vadd.f32 %v4388, %v4400
      %v4405 = vadd.f32 %v4389, %v4400
      %v4406 = vadd.f32 %v4390, %v4400
      %v4407 = vadd.f32 %v4391, %v4400
      %v4408 = vadd.f32 %v4392, %v4400
      %v4409 = vadd.f32 %v4393, %v4400
      %v4410 = vadd.f32 %v4394, %v4400
      %v4411 = vadd.f32 %v4395, %v4400
      %v4412 = vadd.f32 %v4396, %v4400
      %v4413 = vld [vmem:[%s12] sm:$0xf]
      %v4414 = vld [vmem:[%s12 + $0x4] sm:$0xf]
      %v4415 = vld [vmem:[%s12 + $0x8] sm:$0xf]
      %v4416 = vld [vmem:[%s12 + $0xc] sm:$0xf]
      %v4417 = vpack.c.bf16 %v4402, %v4401
      %v4418 = vpack.c.bf16 %v4404, %v4403
      %v4419 = vpack.c.bf16 %v4406, %v4405
      %v4420 = vpack.c.bf16 %v4408, %v4407
      %v4421 = vpack.c.bf16 %v4410, %v4409
      %v4422 = vpack.c.bf16 %v4412, %v4411
      %v4423 = vld [vmem:[%s13] sm:$0x1]
      %v4425 = vlaneseq
      %v4426 = vshrl.u32 %v4425, 7
      %v4427 = vsub.s32 0, %v4426
      %v4428 = vrot.slane %v4423, %v4427
      %v4434 = vunpack.c.l.b16 %v4413
      %v4435 = vunpack.c.l.b16 %v4414
      %v4436 = vunpack.c.l.b16 %v4415
      %v4437 = vunpack.c.l.b16 %v4416
      %v4438 = vpack.c.b16 %v4435, %v4434
      %v4439 = vpack.c.b16 %v4437, %v4436
      %v4443 = vsel %vm690, %v4417, 0
      %v4446 = vsel %vm690, %v4418, 0
      %v4449 = vsel %vm690, %v4419, 0
      %v4452 = vsel %vm690, %v4420, 0
      %v4455 = vsel %vm690, %v4421, 0
      %v4458 = vsel %vm690, %v4422, 0
      %4460 = vmatprep.subr.bf16.mxu0 0
      %4461 = vmatpush1.bf16.msra.mxu0 %v4438
      %4462 = vmatprep.subr.bf16.mxu0 0
      %4463 = vmatpush1.bf16.msra.mxu0 %v4439
      %4464 = vmatprep.subr.bf16.mxu0 0
      %4465 = vmatpush1.bf16.msra.mxu0 0
      %4466 = vmatprep.subr.bf16.mxu0 0
      %4467 = vmatpush1.bf16.msra.mxu0 0
      %4468 = vmatprep.subr.bf16.mxu0 0
      %4469 = vmatpush1.bf16.msra.mxu0 0
      %4470 = vmatprep.subr.bf16.mxu0 0
      %4471 = vmatpush1.bf16.msra.mxu0 0
      %4472 = vmatprep.subr.bf16.mxu0 0
      %4473 = vmatpush1.bf16.msra.mxu0 0
      %4474 = vmatprep.subr.bf16.mxu0 0
      %4475 = vmatpush1.bf16.msra.mxu0 0
      %4476 = vmatprep.subr.bf16.mxu0 0
      %4477 = vmatpush1.bf16.msra.mxu0 0
      %4478 = vmatprep.subr.bf16.mxu0 0
      %4479 = vmatpush1.bf16.msra.mxu0 0
      %4480 = vmatprep.subr.bf16.mxu0 0
      %4481 = vmatpush1.bf16.msra.mxu0 0
      %4482 = vmatprep.subr.bf16.mxu0 0
      %4483 = vmatpush1.bf16.msra.mxu0 0
      %4484 = vmatprep.subr.bf16.mxu0 0
      %4485 = vmatpush1.bf16.msra.mxu0 0
      %4486 = vmatprep.subr.bf16.mxu0 0
      %4487 = vmatpush1.bf16.msra.mxu0 0
      %4488 = vmatprep.subr.bf16.mxu0 0
      %4489 = vmatpush1.bf16.msra.mxu0 0
      %4490 = vmatprep.subr.bf16.mxu0 0
      %4491 = vmatpush1.bf16.msra.mxu0 0
      %4492 = vmatprep.mubr.bf16.mxu0 0
      %4493 = vmatmul.mubr.bf16.gmra.mrb[0].mxu0 %v4443
      %v4494 = vpop.f32.mrb[0].mxu0
      %v4495 = vadd.f32 %v4428, %v4494
      %v4496 = vpop.f32.mrb[0].mxu0
      %v4497 = vpop.f32.mrb[0].mxu0
      %v4498 = vadd.f32 %v4428, %v4497
      %v4499 = vpop.f32.mrb[0].mxu0
      %4500 = vmatprep.mubr.bf16.mxu0 0
      %4501 = vmatmul.mubr.bf16.gmra.mrb[0].mxu0 %v4446
      %v4502 = vpop.f32.mrb[0].mxu0
      %v4503 = vadd.f32 %v4428, %v4502
      %v4504 = vpop.f32.mrb[0].mxu0
      %v4505 = vpop.f32.mrb[0].mxu0
      %v4506 = vadd.f32 %v4428, %v4505
      %v4507 = vpop.f32.mrb[0].mxu0
      %4508 = vmatprep.mubr.bf16.mxu0 0
      %4509 = vmatmul.mubr.bf16.gmra.mrb[0].mxu0 %v4449
      %v4510 = vpop.f32.mrb[0].mxu0
      %v4511 = vadd.f32 %v4428, %v4510
      %v4512 = vpop.f32.mrb[0].mxu0
      %v4513 = vpop.f32.mrb[0].mxu0
      %v4514 = vadd.f32 %v4428, %v4513
      %v4515 = vpop.f32.mrb[0].mxu0
      %4516 = vmatprep.mubr.bf16.mxu0 0
      %4517 = vmatmul.mubr.bf16.gmra.mrb[0].mxu0 %v4452
      %v4518 = vpop.f32.mrb[0].mxu0
      %v4519 = vadd.f32 %v4428, %v4518
      %v4520 = vpop.f32.mrb[0].mxu0
      %v4521 = vpop.f32.mrb[0].mxu0
      %v4522 = vadd.f32 %v4428, %v4521
      %v4523 = vpop.f32.mrb[0].mxu0
      %4524 = vmatprep.mubr.bf16.mxu0 0
      %4525 = vmatmul.mubr.bf16.gmra.mrb[0].mxu0 %v4455
      %v4526 = vpop.f32.mrb[0].mxu0
      %v4527 = vadd.f32 %v4428, %v4526
      %v4528 = vpop.f32.mrb[0].mxu0
      %v4529 = vpop.f32.mrb[0].mxu0
      %v4530 = vadd.f32 %v4428, %v4529
      %v4531 = vpop.f32.mrb[0].mxu0
      %4532 = vmatprep.mubr.bf16.mxu0 0
      %4533 = vmatmul.mubr.bf16.gmra.mrb[0].mxu0 %v4458
      %v4534 = vpop.f32.mrb[0].mxu0
      %v4535 = vadd.f32 %v4428, %v4534
      %v4536 = vpop.f32.mrb[0].mxu0
      %v4537 = vpop.f32.mrb[0].mxu0
      %v4538 = vadd.f32 %v4428, %v4537
      %v4539 = vpop.f32.mrb[0].mxu0
      %4540 = vdwg.mxu0
      %v4541 = vmul.f32 %v4495, 1.702
      %v4542 = vmul.f32 %v4498, 1.702
      %v4543 = vmul.f32 %v4503, 1.702
      %v4544 = vmul.f32 %v4506, 1.702
      %v4545 = vmul.f32 %v4511, 1.702
      %v4546 = vmul.f32 %v4514, 1.702
      %v4547 = vmul.f32 %v4519, 1.702
      %v4548 = vmul.f32 %v4522, 1.702
      %v4549 = vmul.f32 %v4527, 1.702
      %v4550 = vmul.f32 %v4530, 1.702
      %v4551 = vmul.f32 %v4535, 1.702
      %v4552 = vmul.f32 %v4538, 1.702
      %v4553 = vxor.u32 %v4541, 2147483648
      %v4554 = vxor.u32 %v4542, 2147483648
      %v4555 = vxor.u32 %v4543, 2147483648
      %v4556 = vxor.u32 %v4544, 2147483648
      %v4557 = vxor.u32 %v4545, 2147483648
      %v4558 = vxor.u32 %v4546, 2147483648
      %v4559 = vxor.u32 %v4547, 2147483648
      %v4560 = vxor.u32 %v4548, 2147483648
      %v4561 = vxor.u32 %v4549, 2147483648
      %v4562 = vxor.u32 %v4550, 2147483648
      %v4563 = vxor.u32 %v4551, 2147483648
      %v4564 = vxor.u32 %v4552, 2147483648
      %v4565 = vmul.f32 %v4553, 1.442695
      %v4566 = vpow.pop %v4565
      %v4567 = vmul.f32 %v4554, 1.442695
      %v4568 = vpow.pop %v4567
      %v4569 = vmul.f32 %v4555, 1.442695
      %v4570 = vpow.pop %v4569
      %v4571 = vmul.f32 %v4556, 1.442695
      %v4572 = vpow.pop %v4571
      %v4573 = vmul.f32 %v4557, 1.442695
      %v4574 = vpow.pop %v4573
      %v4575 = vmul.f32 %v4558, 1.442695
      %v4576 = vpow.pop %v4575
      %v4577 = vmul.f32 %v4559, 1.442695
      %v4578 = vpow.pop %v4577
      %v4579 = vmul.f32 %v4560, 1.442695
      %v4580 = vpow.pop %v4579
      %v4581 = vmul.f32 %v4561, 1.442695
      %v4582 = vpow.pop %v4581
      %v4583 = vmul.f32 %v4562, 1.442695
      %v4584 = vpow.pop %v4583
      %v4585 = vmul.f32 %v4563, 1.442695
      %v4586 = vpow.pop %v4585
      %v4587 = vmul.f32 %v4564, 1.442695
      %v4588 = vpow.pop %v4587
      %v4589 = vadd.f32 %v4566, 1.0
      %v4590 = vadd.f32 %v4568, 1.0
      %v4591 = vadd.f32 %v4570, 1.0
      %v4592 = vadd.f32 %v4572, 1.0
      %v4593 = vadd.f32 %v4574, 1.0
      %v4594 = vadd.f32 %v4576, 1.0
      %v4595 = vadd.f32 %v4578, 1.0
      %v4596 = vadd.f32 %v4580, 1.0
      %v4597 = vadd.f32 %v4582, 1.0
      %v4598 = vadd.f32 %v4584, 1.0
      %v4599 = vadd.f32 %v4586, 1.0
      %v4600 = vadd.f32 %v4588, 1.0
      %v4601 = vrcp.pop %v4589
      %v4602 = vmul.f32 1.0, %v4601
      %v4603 = vrcp.pop %v4590
      %v4604 = vmul.f32 1.0, %v4603
      %v4605 = vrcp.pop %v4591
      %v4606 = vmul.f32 1.0, %v4605
      %v4607 = vrcp.pop %v4592
      %v4608 = vmul.f32 1.0, %v4607
      %v4609 = vrcp.pop %v4593
      %v4610 = vmul.f32 1.0, %v4609
      %v4611 = vrcp.pop %v4594
      %v4612 = vmul.f32 1.0, %v4611
      %v4613 = vrcp.pop %v4595
      %v4614 = vmul.f32 1.0, %v4613
      %v4615 = vrcp.pop %v4596
      %v4616 = vmul.f32 1.0, %v4615
      %v4617 = vrcp.pop %v4597
      %v4618 = vmul.f32 1.0, %v4617
      %v4619 = vrcp.pop %v4598
      %v4620 = vmul.f32 1.0, %v4619
      %v4621 = vrcp.pop %v4599
      %v4622 = vmul.f32 1.0, %v4621
      %v4623 = vrcp.pop %v4600
      %v4624 = vmul.f32 1.0, %v4623
      %v4625 = vmul.f32 %v4495, %v4602
      %v4626 = vmul.f32 %v4498, %v4604
      %v4627 = vmul.f32 %v4503, %v4606
      %v4628 = vmul.f32 %v4506, %v4608
      %v4629 = vmul.f32 %v4511, %v4610
      %v4630 = vmul.f32 %v4514, %v4612
      %v4631 = vmul.f32 %v4519, %v4614
      %v4632 = vmul.f32 %v4522, %v4616
      %v4633 = vmul.f32 %v4527, %v4618
      %v4634 = vmul.f32 %v4530, %v4620
      %v4635 = vmul.f32 %v4535, %v4622
      %v4636 = vmul.f32 %v4538, %v4624
      %v4637 = vld [vmem:[%s14] sm:$0xf]
      %v4638 = vld [vmem:[%s14 + $0x4] sm:$0xf]
      %v4639 = vld [vmem:[%s14 + $0x8] sm:$0xf]
      %v4640 = vld [vmem:[%s14 + $0xc] sm:$0xf]
      %v4641 = vld [vmem:[%s14 + $0x10] sm:$0xf]
      %v4642 = vld [vmem:[%s14 + $0x14] sm:$0xf]
      %v4643 = vld [vmem:[%s14 + $0x18] sm:$0xf]
      %v4644 = vld [vmem:[%s14 + $0x1c] sm:$0xf]
      %v4645 = vld [vmem:[%s14 + $0x20] sm:$0xf]
      %v4646 = vld [vmem:[%s14 + $0x24] sm:$0xf]
      %v4647 = vld [vmem:[%s14 + $0x28] sm:$0xf]
      %v4648 = vld [vmem:[%s14 + $0x2c] sm:$0xf]
      %v4649 = vld [vmem:[%s14 + $0x30] sm:$0xf]
      %v4650 = vld [vmem:[%s14 + $0x34] sm:$0xf]
      %v4651 = vld [vmem:[%s14 + $0x38] sm:$0xf]
      %v4652 = vld [vmem:[%s14 + $0x3c] sm:$0xf]
      %v4653 = vpack.c.bf16 %v4626, %v4625
      %v4654 = vpack.c.bf16 %v4628, %v4627
      %v4655 = vpack.c.bf16 %v4630, %v4629
      %v4656 = vpack.c.bf16 %v4632, %v4631
      %v4657 = vpack.c.bf16 %v4634, %v4633
      %v4658 = vpack.c.bf16 %v4636, %v4635
      %v4675 = vunpack.c.l.b16 %v4637
      %v4676 = vunpack.c.l.b16 %v4638
      %v4677 = vunpack.c.l.b16 %v4639
      %v4678 = vunpack.c.l.b16 %v4640
      %v4679 = vunpack.c.l.b16 %v4641
      %v4680 = vunpack.c.l.b16 %v4642
      %v4681 = vunpack.c.l.b16 %v4643
      %v4682 = vunpack.c.l.b16 %v4644
      %v4683 = vunpack.c.l.b16 %v4645
      %v4684 = vunpack.c.l.b16 %v4646
      %v4685 = vunpack.c.l.b16 %v4647
      %v4686 = vunpack.c.l.b16 %v4648
      %v4687 = vunpack.c.l.b16 %v4649
      %v4688 = vunpack.c.l.b16 %v4650
      %v4689 = vunpack.c.l.b16 %v4651
      %v4690 = vunpack.c.l.b16 %v4652
      %v4691 = vpack.c.b16 %v4676, %v4675
      %v4692 = vpack.c.b16 %v4678, %v4677
      %v4693 = vpack.c.b16 %v4680, %v4679
      %v4694 = vpack.c.b16 %v4682, %v4681
      %v4695 = vpack.c.b16 %v4684, %v4683
      %v4696 = vpack.c.b16 %v4686, %v4685
      %v4697 = vpack.c.b16 %v4688, %v4687
      %v4698 = vpack.c.b16 %v4690, %v4689
      %4707 = vmatprep.subr.bf16.mxu0 0
      %4708 = vmatpush1.bf16.msra.mxu0 %v4691
      %4709 = vmatprep.subr.bf16.mxu0 0
      %4710 = vmatpush1.bf16.msra.mxu0 %v4692
      %4711 = vmatprep.subr.bf16.mxu0 0
      %4712 = vmatpush1.bf16.msra.mxu0 %v4693
      %4713 = vmatprep.subr.bf16.mxu0 0
      %4714 = vmatpush1.bf16.msra.mxu0 %v4694
      %4715 = vmatprep.subr.bf16.mxu0 0
      %4716 = vmatpush1.bf16.msra.mxu0 %v4695
      %4717 = vmatprep.subr.bf16.mxu0 0
      %4718 = vmatpush1.bf16.msra.mxu0 %v4696
      %4719 = vmatprep.subr.bf16.mxu0 0
      %4720 = vmatpush1.bf16.msra.mxu0 %v4697
      %4721 = vmatprep.subr.bf16.mxu0 0
      %4722 = vmatpush1.bf16.msra.mxu0 %v4698
      %4723 = vmatprep.subr.bf16.mxu0 0
      %4724 = vmatpush1.bf16.msra.mxu0 0
      %4725 = vmatprep.subr.bf16.mxu0 0
      %4726 = vmatpush1.bf16.msra.mxu0 0
      %4727 = vmatprep.subr.bf16.mxu0 0
      %4728 = vmatpush1.bf16.msra.mxu0 0
      %4729 = vmatprep.subr.bf16.mxu0 0
      %4730 = vmatpush1.bf16.msra.mxu0 0
      %4731 = vmatprep.subr.bf16.mxu0 0
      %4732 = vmatpush1.bf16.msra.mxu0 0
      %4733 = vmatprep.subr.bf16.mxu0 0
      %4734 = vmatpush1.bf16.msra.mxu0 0
      %4735 = vmatprep.subr.bf16.mxu0 0
      %4736 = vmatpush1.bf16.msra.mxu0 0
      %4737 = vmatprep.subr.bf16.mxu0 0
      %4738 = vmatpush1.bf16.msra.mxu0 0
      %4739 = vmatprep.mubr.bf16.mxu0 0
      %4740 = vmatmul.mubr.bf16.gmra.mrb[0].mxu0 %v4653
      %v4741 = vpop.f32.mrb[0].mxu0
      %v4742 = vadd.f32 0.0, %v4741
      %v4743 = vpop.f32.mrb[0].mxu0
      %v4744 = vpop.f32.mrb[0].mxu0
      %v4745 = vadd.f32 0.0, %v4744
      %v4746 = vpop.f32.mrb[0].mxu0
      %4747 = vmatprep.mubr.bf16.mxu0 0
      %4748 = vmatmul.mubr.bf16.gmra.mrb[0].mxu0 %v4654
      %v4749 = vpop.f32.mrb[0].mxu0
      %v4750 = vadd.f32 0.0, %v4749
      %v4751 = vpop.f32.mrb[0].mxu0
      %v4752 = vpop.f32.mrb[0].mxu0
      %v4753 = vadd.f32 0.0, %v4752
      %v4754 = vpop.f32.mrb[0].mxu0
      %4755 = vmatprep.mubr.bf16.mxu0 0
      %4756 = vmatmul.mubr.bf16.gmra.mrb[0].mxu0 %v4655
      %v4757 = vpop.f32.mrb[0].mxu0
      %v4758 = vadd.f32 0.0, %v4757
      %v4759 = vpop.f32.mrb[0].mxu0
      %v4760 = vpop.f32.mrb[0].mxu0
      %v4761 = vadd.f32 0.0, %v4760
      %v4762 = vpop.f32.mrb[0].mxu0
      %4763 = vmatprep.mubr.bf16.mxu0 0
      %4764 = vmatmul.mubr.bf16.gmra.mrb[0].mxu0 %v4656
      %v4765 = vpop.f32.mrb[0].mxu0
      %v4766 = vadd.f32 0.0, %v4765
      %v4767 = vpop.f32.mrb[0].mxu0
      %v4768 = vpop.f32.mrb[0].mxu0
      %v4769 = vadd.f32 0.0, %v4768
      %v4770 = vpop.f32.mrb[0].mxu0
      %4771 = vmatprep.mubr.bf16.mxu0 0
      %4772 = vmatmul.mubr.bf16.gmra.mrb[0].mxu0 %v4657
      %v4773 = vpop.f32.mrb[0].mxu0
      %v4774 = vadd.f32 0.0, %v4773
      %v4775 = vpop.f32.mrb[0].mxu0
      %v4776 = vpop.f32.mrb[0].mxu0
      %v4777 = vadd.f32 0.0, %v4776
      %v4778 = vpop.f32.mrb[0].mxu0
      %4779 = vmatprep.mubr.bf16.mxu0 0
      %4780 = vmatmul.mubr.bf16.gmra.mrb[0].mxu0 %v4658
      %v4781 = vpop.f32.mrb[0].mxu0
      %v4782 = vadd.f32 0.0, %v4781
      %v4783 = vpop.f32.mrb[0].mxu0
      %v4784 = vpop.f32.mrb[0].mxu0
      %v4785 = vadd.f32 0.0, %v4784
      %v4786 = vpop.f32.mrb[0].mxu0
      %4787 = vdwg.mxu0
      %v4788 = vadd.f32 %v4212, %v4742
      %v4789 = vadd.f32 %v4213, %v4745
      %v4790 = vadd.f32 %v4214, %v4750
      %v4791 = vadd.f32 %v4215, %v4753
      %v4792 = vadd.f32 %v4216, %v4758
      %v4793 = vadd.f32 %v4217, %v4761
      %v4794 = vadd.f32 %v4218, %v4766
      %v4795 = vadd.f32 %v4219, %v4769
      %v4796 = vadd.f32 %v4220, %v4774
      %v4797 = vadd.f32 %v4221, %v4777
      %v4798 = vadd.f32 %v4222, %v4782
      %v4799 = vadd.f32 %v4223, %v4785
      %v4800 = vld [vmem:[%s15] sm:$0x1]
      %v4802 = vlaneseq
      %v4803 = vshrl.u32 %v4802, 7
      %v4804 = vsub.s32 0, %v4803
      %v4805 = vrot.slane %v4800, %v4804
      %v4807 = vadd.f32 %v4788, %v4805
      %v4808 = vadd.f32 %v4789, %v4805
      %v4809 = vadd.f32 %v4790, %v4805
      %v4810 = vadd.f32 %v4791, %v4805
      %v4811 = vadd.f32 %v4792, %v4805
      %v4812 = vadd.f32 %v4793, %v4805
      %v4813 = vadd.f32 %v4794, %v4805
      %v4814 = vadd.f32 %v4795, %v4805
      %v4815 = vadd.f32 %v4796, %v4805
      %v4816 = vadd.f32 %v4797, %v4805
      %v4817 = vadd.f32 %v4798, %v4805
      %v4818 = vadd.f32 %v4799, %v4805
      %s4819 = scalar_lea.vmem %s6, 2
      %v4820 = vld [vmem:[%s4819] sm:$0x3]
      %v4821 = vsel %vm690, %v4807, 0.0
      %4822 = vadd.xlane.f32.xlu0 %v4821
      %v4823 = vpop.xlane.xlu0 %4822
      %v4824 = vsel %vm690, %v4808, 0.0
      %4825 = vadd.xlane.f32.xlu0 %v4824
      %v4826 = vpop.xlane.xlu0 %4825
      %v4827 = vsel %vm690, %v4809, 0.0
      %4828 = vadd.xlane.f32.xlu0 %v4827
      %v4829 = vpop.xlane.xlu0 %4828
      %v4830 = vsel %vm690, %v4810, 0.0
      %4831 = vadd.xlane.f32.xlu0 %v4830
      %v4832 = vpop.xlane.xlu0 %4831
      %v4833 = vsel %vm690, %v4811, 0.0
      %4834 = vadd.xlane.f32.xlu0 %v4833
      %v4835 = vpop.xlane.xlu0 %4834
      %v4836 = vsel %vm690, %v4812, 0.0
      %4837 = vadd.xlane.f32.xlu0 %v4836
      %v4838 = vpop.xlane.xlu0 %4837
      %v4839 = vsel %vm690, %v4813, 0.0
      %4840 = vadd.xlane.f32.xlu0 %v4839
      %v4841 = vpop.xlane.xlu0 %4840
      %v4842 = vsel %vm690, %v4814, 0.0
      %4843 = vadd.xlane.f32.xlu0 %v4842
      %v4844 = vpop.xlane.xlu0 %4843
      %v4845 = vsel %vm690, %v4815, 0.0
      %4846 = vadd.xlane.f32.xlu0 %v4845
      %v4847 = vpop.xlane.xlu0 %4846
      %v4848 = vsel %vm690, %v4816, 0.0
      %4849 = vadd.xlane.f32.xlu0 %v4848
      %v4850 = vpop.xlane.xlu0 %4849
      %v4851 = vsel %vm690, %v4817, 0.0
      %4852 = vadd.xlane.f32.xlu0 %v4851
      %v4853 = vpop.xlane.xlu0 %4852
      %v4854 = vsel %vm690, %v4818, 0.0
      %4855 = vadd.xlane.f32.xlu0 %v4854
      %v4856 = vpop.xlane.xlu0 %4855
      %v4857 = vmul.f32 %v4823, %v727
      %v4858 = vmul.f32 %v4826, %v727
      %v4859 = vmul.f32 %v4829, %v727
      %v4860 = vmul.f32 %v4832, %v727
      %v4861 = vmul.f32 %v4835, %v727
      %v4862 = vmul.f32 %v4838, %v727
      %v4863 = vmul.f32 %v4841, %v727
      %v4864 = vmul.f32 %v4844, %v727
      %v4865 = vmul.f32 %v4847, %v727
      %v4866 = vmul.f32 %v4850, %v727
      %v4867 = vmul.f32 %v4853, %v727
      %v4868 = vmul.f32 %v4856, %v727
      %v4869 = vsub.f32 %v4807, %v4857
      %v4870 = vsub.f32 %v4808, %v4858
      %v4871 = vsub.f32 %v4809, %v4859
      %v4872 = vsub.f32 %v4810, %v4860
      %v4873 = vsub.f32 %v4811, %v4861
      %v4874 = vsub.f32 %v4812, %v4862
      %v4875 = vsub.f32 %v4813, %v4863
      %v4876 = vsub.f32 %v4814, %v4864
      %v4877 = vsub.f32 %v4815, %v4865
      %v4878 = vsub.f32 %v4816, %v4866
      %v4879 = vsub.f32 %v4817, %v4867
      %v4880 = vsub.f32 %v4818, %v4868
      %v4881 = vmul.f32 %v4869, %v4869
      %v4882 = vmul.f32 %v4870, %v4870
      %v4883 = vmul.f32 %v4871, %v4871
      %v4884 = vmul.f32 %v4872, %v4872
      %v4885 = vmul.f32 %v4873, %v4873
      %v4886 = vmul.f32 %v4874, %v4874
      %v4887 = vmul.f32 %v4875, %v4875
      %v4888 = vmul.f32 %v4876, %v4876
      %v4889 = vmul.f32 %v4877, %v4877
      %v4890 = vmul.f32 %v4878, %v4878
      %v4891 = vmul.f32 %v4879, %v4879
      %v4892 = vmul.f32 %v4880, %v4880
      %v4893 = vsel %vm690, %v4881, 0.0
      %4894 = vadd.xlane.f32.xlu0 %v4893
      %v4895 = vpop.xlane.xlu0 %4894
      %v4896 = vsel %vm690, %v4882, 0.0
      %4897 = vadd.xlane.f32.xlu0 %v4896
      %v4898 = vpop.xlane.xlu0 %4897
      %v4899 = vsel %vm690, %v4883, 0.0
      %4900 = vadd.xlane.f32.xlu0 %v4899
      %v4901 = vpop.xlane.xlu0 %4900
      %v4902 = vsel %vm690, %v4884, 0.0
      %4903 = vadd.xlane.f32.xlu0 %v4902
      %v4904 = vpop.xlane.xlu0 %4903
      %v4905 = vsel %vm690, %v4885, 0.0
      %4906 = vadd.xlane.f32.xlu0 %v4905
      %v4907 = vpop.xlane.xlu0 %4906
      %v4908 = vsel %vm690, %v4886, 0.0
      %4909 = vadd.xlane.f32.xlu0 %v4908
      %v4910 = vpop.xlane.xlu0 %4909
      %v4911 = vsel %vm690, %v4887, 0.0
      %4912 = vadd.xlane.f32.xlu0 %v4911
      %v4913 = vpop.xlane.xlu0 %4912
      %v4914 = vsel %vm690, %v4888, 0.0
      %4915 = vadd.xlane.f32.xlu0 %v4914
      %v4916 = vpop.xlane.xlu0 %4915
      %v4917 = vsel %vm690, %v4889, 0.0
      %4918 = vadd.xlane.f32.xlu0 %v4917
      %v4919 = vpop.xlane.xlu0 %4918
      %v4920 = vsel %vm690, %v4890, 0.0
      %4921 = vadd.xlane.f32.xlu0 %v4920
      %v4922 = vpop.xlane.xlu0 %4921
      %v4923 = vsel %vm690, %v4891, 0.0
      %4924 = vadd.xlane.f32.xlu0 %v4923
      %v4925 = vpop.xlane.xlu0 %4924
      %v4926 = vsel %vm690, %v4892, 0.0
      %4927 = vadd.xlane.f32.xlu0 %v4926
      %v4928 = vpop.xlane.xlu0 %4927
      %v4929 = vmul.f32 %v4895, %v727
      %v4930 = vmul.f32 %v4898, %v727
      %v4931 = vmul.f32 %v4901, %v727
      %v4932 = vmul.f32 %v4904, %v727
      %v4933 = vmul.f32 %v4907, %v727
      %v4934 = vmul.f32 %v4910, %v727
      %v4935 = vmul.f32 %v4913, %v727
      %v4936 = vmul.f32 %v4916, %v727
      %v4937 = vmul.f32 %v4919, %v727
      %v4938 = vmul.f32 %v4922, %v727
      %v4939 = vmul.f32 %v4925, %v727
      %v4940 = vmul.f32 %v4928, %v727
      %v4941 = vadd.f32 %v4929, 1e-05
      %v4942 = vadd.f32 %v4930, 1e-05
      %v4943 = vadd.f32 %v4931, 1e-05
      %v4944 = vadd.f32 %v4932, 1e-05
      %v4945 = vadd.f32 %v4933, 1e-05
      %v4946 = vadd.f32 %v4934, 1e-05
      %v4947 = vadd.f32 %v4935, 1e-05
      %v4948 = vadd.f32 %v4936, 1e-05
      %v4949 = vadd.f32 %v4937, 1e-05
      %v4950 = vadd.f32 %v4938, 1e-05
      %v4951 = vadd.f32 %v4939, 1e-05
      %v4952 = vadd.f32 %v4940, 1e-05
      %v4953 = vrsqrt.pop %v4941
      %v4954 = vrsqrt.pop %v4942
      %v4955 = vrsqrt.pop %v4943
      %v4956 = vrsqrt.pop %v4944
      %v4957 = vrsqrt.pop %v4945
      %v4958 = vrsqrt.pop %v4946
      %v4959 = vrsqrt.pop %v4947
      %v4960 = vrsqrt.pop %v4948
      %v4961 = vrsqrt.pop %v4949
      %v4962 = vrsqrt.pop %v4950
      %v4963 = vrsqrt.pop %v4951
      %v4964 = vrsqrt.pop %v4952
      %v4965 = vmul.f32 %v4869, %v4953
      %v4966 = vmul.f32 %v4870, %v4954
      %v4967 = vmul.f32 %v4871, %v4955
      %v4968 = vmul.f32 %v4872, %v4956
      %v4969 = vmul.f32 %v4873, %v4957
      %v4970 = vmul.f32 %v4874, %v4958
      %v4971 = vmul.f32 %v4875, %v4959
      %v4972 = vmul.f32 %v4876, %v4960
      %v4973 = vmul.f32 %v4877, %v4961
      %v4974 = vmul.f32 %v4878, %v4962
      %v4975 = vmul.f32 %v4879, %v4963
      %v4976 = vmul.f32 %v4880, %v4964
      %v4977 = vlaneseq
      %v4978 = vshrl.u32 %v4977, 7
      %v4979 = vsub.s32 0, %v4978
      %v4980 = vrot.slane %v4820, %v4979
      %v4981 = vmul.f32 %v4965, %v4980
      %v4982 = vmul.f32 %v4966, %v4980
      %v4983 = vmul.f32 %v4967, %v4980
      %v4984 = vmul.f32 %v4968, %v4980
      %v4985 = vmul.f32 %v4969, %v4980
      %v4986 = vmul.f32 %v4970, %v4980
      %v4987 = vmul.f32 %v4971, %v4980
      %v4988 = vmul.f32 %v4972, %v4980
      %v4989 = vmul.f32 %v4973, %v4980
      %v4990 = vmul.f32 %v4974, %v4980
      %v4991 = vmul.f32 %v4975, %v4980
      %v4992 = vmul.f32 %v4976, %v4980
      %v4993 = vlaneseq
      %v4994 = vshrl.u32 %v4993, 7
      %v4995 = vsub.s32 1, %v4994
      %v4996 = vrot.slane %v4820, %v4995
      %v4997 = vadd.f32 %v4981, %v4996
      %v4998 = vadd.f32 %v4982, %v4996
      %v4999 = vadd.f32 %v4983, %v4996
      %v5000 = vadd.f32 %v4984, %v4996
      %v5001 = vadd.f32 %v4985, %v4996
      %v5002 = vadd.f32 %v4986, %v4996
      %v5003 = vadd.f32 %v4987, %v4996
      %v5004 = vadd.f32 %v4988, %v4996
      %v5005 = vadd.f32 %v4989, %v4996
      %v5006 = vadd.f32 %v4990, %v4996
      %v5007 = vadd.f32 %v4991, %v4996
      %v5008 = vadd.f32 %v4992, %v4996
      %s5009 = scalar_lea.vmem %s7, 16
      %v5010 = vld [vmem:[%s5009] sm:$0xf]
      %v5011 = vld [vmem:[%s5009 + $0x4] sm:$0xf]
      %v5012 = vld [vmem:[%s5009 + $0x8] sm:$0xf]
      %v5013 = vld [vmem:[%s5009 + $0xc] sm:$0xf]
      %v5014 = vpack.c.bf16 %v4998, %v4997
      %v5015 = vpack.c.bf16 %v5000, %v4999
      %v5016 = vpack.c.bf16 %v5002, %v5001
      %v5017 = vpack.c.bf16 %v5004, %v5003
      %v5018 = vpack.c.bf16 %v5006, %v5005
      %v5019 = vpack.c.bf16 %v5008, %v5007
      %s5020 = scalar_lea.vmem %s8, 1
      %v5021 = vld [vmem:[%s5020] sm:$0x1]
      %v5023 = vlaneseq
      %v5024 = vshrl.u32 %v5023, 7
      %v5025 = vsub.s32 0, %v5024
      %v5026 = vrot.slane %v5021, %v5025
      %v5032 = vunpack.c.l.b16 %v5010
      %v5033 = vunpack.c.l.b16 %v5011
      %v5034 = vunpack.c.l.b16 %v5012
      %v5035 = vunpack.c.l.b16 %v5013
      %v5036 = vpack.c.b16 %v5033, %v5032
      %v5037 = vpack.c.b16 %v5035, %v5034
      %v5041 = vsel %vm690, %v5014, 0
      %v5044 = vsel %vm690, %v5015, 0
      %v5047 = vsel %vm690, %v5016, 0
      %v5050 = vsel %vm690, %v5017, 0
      %v5053 = vsel %vm690, %v5018, 0
      %v5056 = vsel %vm690, %v5019, 0
      %5058 = vmatprep.subr.bf16.mxu0 0
      %5059 = vmatpush1.bf16.msra.mxu0 %v5036
      %5060 = vmatprep.subr.bf16.mxu0 0
      %5061 = vmatpush1.bf16.msra.mxu0 %v5037
      %5062 = vmatprep.subr.bf16.mxu0 0
      %5063 = vmatpush1.bf16.msra.mxu0 0
      %5064 = vmatprep.subr.bf16.mxu0 0
      %5065 = vmatpush1.bf16.msra.mxu0 0
      %5066 = vmatprep.subr.bf16.mxu0 0
      %5067 = vmatpush1.bf16.msra.mxu0 0
      %5068 = vmatprep.subr.bf16.mxu0 0
      %5069 = vmatpush1.bf16.msra.mxu0 0
      %5070 = vmatprep.subr.bf16.mxu0 0
      %5071 = vmatpush1.bf16.msra.mxu0 0
      %5072 = vmatprep.subr.bf16.mxu0 0
      %5073 = vmatpush1.bf16.msra.mxu0 0
      %5074 = vmatprep.subr.bf16.mxu0 0
      %5075 = vmatpush1.bf16.msra.mxu0 0
      %5076 = vmatprep.subr.bf16.mxu0 0
      %5077 = vmatpush1.bf16.msra.mxu0 0
      %5078 = vmatprep.subr.bf16.mxu0 0
      %5079 = vmatpush1.bf16.msra.mxu0 0
      %5080 = vmatprep.subr.bf16.mxu0 0
      %5081 = vmatpush1.bf16.msra.mxu0 0
      %5082 = vmatprep.subr.bf16.mxu0 0
      %5083 = vmatpush1.bf16.msra.mxu0 0
      %5084 = vmatprep.subr.bf16.mxu0 0
      %5085 = vmatpush1.bf16.msra.mxu0 0
      %5086 = vmatprep.subr.bf16.mxu0 0
      %5087 = vmatpush1.bf16.msra.mxu0 0
      %5088 = vmatprep.subr.bf16.mxu0 0
      %5089 = vmatpush1.bf16.msra.mxu0 0
      %5090 = vmatprep.mubr.bf16.mxu0 0
      %5091 = vmatmul.mubr.bf16.gmra.mrb[0].mxu0 %v5041
      %v5092 = vpop.f32.mrb[0].mxu0
      %v5093 = vadd.f32 %v5026, %v5092
      %v5094 = vpop.f32.mrb[0].mxu0
      %v5095 = vpop.f32.mrb[0].mxu0
      %v5096 = vadd.f32 %v5026, %v5095
      %v5097 = vpop.f32.mrb[0].mxu0
      %5098 = vmatprep.mubr.bf16.mxu0 0
      %5099 = vmatmul.mubr.bf16.gmra.mrb[0].mxu0 %v5044
      %v5100 = vpop.f32.mrb[0].mxu0
      %v5101 = vadd.f32 %v5026, %v5100
      %v5102 = vpop.f32.mrb[0].mxu0
      %v5103 = vpop.f32.mrb[0].mxu0
      %v5104 = vadd.f32 %v5026, %v5103
      %v5105 = vpop.f32.mrb[0].mxu0
      %5106 = vmatprep.mubr.bf16.mxu0 0
      %5107 = vmatmul.mubr.bf16.gmra.mrb[0].mxu0 %v5047
      %v5108 = vpop.f32.mrb[0].mxu0
      %v5109 = vadd.f32 %v5026, %v5108
      %v5110 = vpop.f32.mrb[0].mxu0
      %v5111 = vpop.f32.mrb[0].mxu0
      %v5112 = vadd.f32 %v5026, %v5111
      %v5113 = vpop.f32.mrb[0].mxu0
      %5114 = vmatprep.mubr.bf16.mxu0 0
      %5115 = vmatmul.mubr.bf16.gmra.mrb[0].mxu0 %v5050
      %v5116 = vpop.f32.mrb[0].mxu0
      %v5117 = vadd.f32 %v5026, %v5116
      %v5118 = vpop.f32.mrb[0].mxu0
      %v5119 = vpop.f32.mrb[0].mxu0
      %v5120 = vadd.f32 %v5026, %v5119
      %v5121 = vpop.f32.mrb[0].mxu0
      %5122 = vmatprep.mubr.bf16.mxu0 0
      %5123 = vmatmul.mubr.bf16.gmra.mrb[0].mxu0 %v5053
      %v5124 = vpop.f32.mrb[0].mxu0
      %v5125 = vadd.f32 %v5026, %v5124
      %v5126 = vpop.f32.mrb[0].mxu0
      %v5127 = vpop.f32.mrb[0].mxu0
      %v5128 = vadd.f32 %v5026, %v5127
      %v5129 = vpop.f32.mrb[0].mxu0
      %5130 = vmatprep.mubr.bf16.mxu0 0
      %5131 = vmatmul.mubr.bf16.gmra.mrb[0].mxu0 %v5056
      %v5132 = vpop.f32.mrb[0].mxu0
      %v5133 = vadd.f32 %v5026, %v5132
      %v5134 = vpop.f32.mrb[0].mxu0
      %v5135 = vpop.f32.mrb[0].mxu0
      %v5136 = vadd.f32 %v5026, %v5135
      %v5137 = vpop.f32.mrb[0].mxu0
      %5138 = vdwg.mxu0
      %v5139 = vpack.c.bf16 %v5096, %v5093
      %v5140 = vpack.c.bf16 %v5101, %v5101
      %v5141 = vpack.c.bf16 %v5109, %v5104
      %v5142 = vpack.c.bf16 %v5112, %v5112
      %v5143 = vpack.c.bf16 %v5120, %v5117
      %v5144 = vpack.c.bf16 %v5125, %v5125
      %v5145 = vpack.c.bf16 %v5133, %v5128
      %v5146 = vpack.c.bf16 %v5136, %v5136
      %5149 = vrot.lane.b32.xlu0 %v5139, 96
      %v5150 = vpop.permute.xlu0 %5149
      %5151 = vrot.lane.b32.xlu0 %v5140, 96
      %v5152 = vpop.permute.xlu0 %5151
      %v5154 = vsel %vm1214, %v5139, 0
      %v5157 = vsel %vm1214, %v5140, 0
      %v5160 = vsel %vm1214, %v5150, 0
      %v5163 = vsel %vm1214, %v5152, 0
      %5165 = vmatprep.subr.bf16.mxu0 0
      %5166 = vmatpush1.bf16.xpose.msra.mxu0 %v5160
      %5167 = vmatprep.subr.bf16.mxu0 0
      %5168 = vmatpush1.bf16.xpose.msra.mxu0 %v5163
      %5169 = vmatprep.subr.bf16.mxu0 0
      %5170 = vmatpush1.bf16.xpose.msra.mxu0 0
      %5171 = vmatprep.subr.bf16.mxu0 0
      %5172 = vmatpush1.bf16.xpose.msra.mxu0 0
      %5173 = vmatprep.subr.bf16.mxu0 0
      %5174 = vmatpush1.bf16.xpose.msra.mxu0 0
      %5175 = vmatprep.subr.bf16.mxu0 0
      %5176 = vmatpush1.bf16.xpose.msra.mxu0 0
      %5177 = vmatprep.subr.bf16.mxu0 0
      %5178 = vmatpush1.bf16.xpose.msra.mxu0 0
      %5179 = vmatprep.subr.bf16.mxu0 0
      %5180 = vmatpush1.bf16.xpose.msra.mxu0 0
      %5181 = vmatprep.subr.bf16.mxu0 0
      %5182 = vmatpush1.bf16.xpose.msra.mxu0 0
      %5183 = vmatprep.subr.bf16.mxu0 0
      %5184 = vmatpush1.bf16.xpose.msra.mxu0 0
      %5185 = vmatprep.subr.bf16.mxu0 0
      %5186 = vmatpush1.bf16.xpose.msra.mxu0 0
      %5187 = vmatprep.subr.bf16.mxu0 0
      %5188 = vmatpush1.bf16.xpose.msra.mxu0 0
      %5189 = vmatprep.subr.bf16.mxu0 0
      %5190 = vmatpush1.bf16.xpose.msra.mxu0 0
      %5191 = vmatprep.subr.bf16.mxu0 0
      %5192 = vmatpush1.bf16.xpose.msra.mxu0 0
      %5193 = vmatprep.subr.bf16.mxu0 0
      %5194 = vmatpush1.bf16.xpose.msra.mxu0 0
      %5195 = vmatprep.subr.bf16.mxu0 0
      %5196 = vmatpush1.bf16.xpose.msra.mxu0 0
      %5197 = vmatprep.mubr.bf16.mxu0 0
      %5198 = vmatmul.mubr.bf16.gmra.mrb[0].mxu0 %v5154
      %v5199 = vpop.f32.mrb[0].mxu0
      %v5200 = vadd.f32 0.0, %v5199
      %v5201 = vpop.f32.mrb[0].mxu0
      %v5202 = vpop.f32.mrb[0].mxu0
      %v5203 = vadd.f32 0.0, %v5202
      %v5204 = vpop.f32.mrb[0].mxu0
      %5205 = vmatprep.mubr.bf16.mxu0 0
      %5206 = vmatmul.mubr.bf16.gmra.mrb[0].mxu0 %v5157
      %v5207 = vpop.f32.mrb[0].mxu0
      %v5208 = vadd.f32 0.0, %v5207
      %v5209 = vpop.f32.mrb[0].mxu0
      %v5210 = vpop.f32.mrb[0].mxu0
      %v5211 = vpop.f32.mrb[0].mxu0
      %5212 = vdwg.mxu0
      %5215 = vrot.lane.b32.xlu0 %v5141, 96
      %v5216 = vpop.permute.xlu0 %5215
      %5217 = vrot.lane.b32.xlu0 %v5142, 96
      %v5218 = vpop.permute.xlu0 %5217
      %v5220 = vsel %vm1214, %v5141, 0
      %v5223 = vsel %vm1214, %v5142, 0
      %v5226 = vsel %vm1214, %v5216, 0
      %v5229 = vsel %vm1214, %v5218, 0
      %5231 = vmatprep.subr.bf16.mxu0 0
      %5232 = vmatpush1.bf16.xpose.msra.mxu0 %v5226
      %5233 = vmatprep.subr.bf16.mxu0 0
      %5234 = vmatpush1.bf16.xpose.msra.mxu0 %v5229
      %5235 = vmatprep.subr.bf16.mxu0 0
      %5236 = vmatpush1.bf16.xpose.msra.mxu0 0
      %5237 = vmatprep.subr.bf16.mxu0 0
      %5238 = vmatpush1.bf16.xpose.msra.mxu0 0
      %5239 = vmatprep.subr.bf16.mxu0 0
      %5240 = vmatpush1.bf16.xpose.msra.mxu0 0
      %5241 = vmatprep.subr.bf16.mxu0 0
      %5242 = vmatpush1.bf16.xpose.msra.mxu0 0
      %5243 = vmatprep.subr.bf16.mxu0 0
      %5244 = vmatpush1.bf16.xpose.msra.mxu0 0
      %5245 = vmatprep.subr.bf16.mxu0 0
      %5246 = vmatpush1.bf16.xpose.msra.mxu0 0
      %5247 = vmatprep.subr.bf16.mxu0 0
      %5248 = vmatpush1.bf16.xpose.msra.mxu0 0
      %5249 = vmatprep.subr.bf16.mxu0 0
      %5250 = vmatpush1.bf16.xpose.msra.mxu0 0
      %5251 = vmatprep.subr.bf16.mxu0 0
      %5252 = vmatpush1.bf16.xpose.msra.mxu0 0
      %5253 = vmatprep.subr.bf16.mxu0 0
      %5254 = vmatpush1.bf16.xpose.msra.mxu0 0
      %5255 = vmatprep.subr.bf16.mxu0 0
      %5256 = vmatpush1.bf16.xpose.msra.mxu0 0
      %5257 = vmatprep.subr.bf16.mxu0 0
      %5258 = vmatpush1.bf16.xpose.msra.mxu0 0
      %5259 = vmatprep.subr.bf16.mxu0 0
      %5260 = vmatpush1.bf16.xpose.msra.mxu0 0
      %5261 = vmatprep.subr.bf16.mxu0 0
      %5262 = vmatpush1.bf16.xpose.msra.mxu0 0
      %5263 = vmatprep.mubr.bf16.mxu0 0
      %5264 = vmatmul.mubr.bf16.gmra.mrb[0].mxu0 %v5220
      %v5265 = vpop.f32.mrb[0].mxu0
      %v5266 = vadd.f32 0.0, %v5265
      %v5267 = vpop.f32.mrb[0].mxu0
      %v5268 = vpop.f32.mrb[0].mxu0
      %v5269 = vadd.f32 0.0, %v5268
      %v5270 = vpop.f32.mrb[0].mxu0
      %5271 = vmatprep.mubr.bf16.mxu0 0
      %5272 = vmatmul.mubr.bf16.gmra.mrb[0].mxu0 %v5223
      %v5273 = vpop.f32.mrb[0].mxu0
      %v5274 = vadd.f32 0.0, %v5273
      %v5275 = vpop.f32.mrb[0].mxu0
      %v5276 = vpop.f32.mrb[0].mxu0
      %v5277 = vpop.f32.mrb[0].mxu0
      %5278 = vdwg.mxu0
      %5281 = vrot.lane.b32.xlu0 %v5143, 96
      %v5282 = vpop.permute.xlu0 %5281
      %5283 = vrot.lane.b32.xlu0 %v5144, 96
      %v5284 = vpop.permute.xlu0 %5283
      %v5286 = vsel %vm1214, %v5143, 0
      %v5289 = vsel %vm1214, %v5144, 0
      %v5292 = vsel %vm1214, %v5282, 0
      %v5295 = vsel %vm1214, %v5284, 0
      %5297 = vmatprep.subr.bf16.mxu0 0
      %5298 = vmatpush1.bf16.xpose.msra.mxu0 %v5292
      %5299 = vmatprep.subr.bf16.mxu0 0
      %5300 = vmatpush1.bf16.xpose.msra.mxu0 %v5295
      %5301 = vmatprep.subr.bf16.mxu0 0
      %5302 = vmatpush1.bf16.xpose.msra.mxu0 0
      %5303 = vmatprep.subr.bf16.mxu0 0
      %5304 = vmatpush1.bf16.xpose.msra.mxu0 0
      %5305 = vmatprep.subr.bf16.mxu0 0
      %5306 = vmatpush1.bf16.xpose.msra.mxu0 0
      %5307 = vmatprep.subr.bf16.mxu0 0
      %5308 = vmatpush1.bf16.xpose.msra.mxu0 0
      %5309 = vmatprep.subr.bf16.mxu0 0
      %5310 = vmatpush1.bf16.xpose.msra.mxu0 0
      %5311 = vmatprep.subr.bf16.mxu0 0
      %5312 = vmatpush1.bf16.xpose.msra.mxu0 0
      %5313 = vmatprep.subr.bf16.mxu0 0
      %5314 = vmatpush1.bf16.xpose.msra.mxu0 0
      %5315 = vmatprep.subr.bf16.mxu0 0
      %5316 = vmatpush1.bf16.xpose.msra.mxu0 0
      %5317 = vmatprep.subr.bf16.mxu0 0
      %5318 = vmatpush1.bf16.xpose.msra.mxu0 0
      %5319 = vmatprep.subr.bf16.mxu0 0
      %5320 = vmatpush1.bf16.xpose.msra.mxu0 0
      %5321 = vmatprep.subr.bf16.mxu0 0
      %5322 = vmatpush1.bf16.xpose.msra.mxu0 0
      %5323 = vmatprep.subr.bf16.mxu0 0
      %5324 = vmatpush1.bf16.xpose.msra.mxu0 0
      %5325 = vmatprep.subr.bf16.mxu0 0
      %5326 = vmatpush1.bf16.xpose.msra.mxu0 0
      %5327 = vmatprep.subr.bf16.mxu0 0
      %5328 = vmatpush1.bf16.xpose.msra.mxu0 0
      %5329 = vmatprep.mubr.bf16.mxu0 0
      %5330 = vmatmul.mubr.bf16.gmra.mrb[0].mxu0 %v5286
      %v5331 = vpop.f32.mrb[0].mxu0
      %v5332 = vadd.f32 0.0, %v5331
      %v5333 = vpop.f32.mrb[0].mxu0
      %v5334 = vpop.f32.mrb[0].mxu0
      %v5335 = vadd.f32 0.0, %v5334
      %v5336 = vpop.f32.mrb[0].mxu0
      %5337 = vmatprep.mubr.bf16.mxu0 0
      %5338 = vmatmul.mubr.bf16.gmra.mrb[0].mxu0 %v5289
      %v5339 = vpop.f32.mrb[0].mxu0
      %v5340 = vadd.f32 0.0, %v5339
      %v5341 = vpop.f32.mrb[0].mxu0
      %v5342 = vpop.f32.mrb[0].mxu0
      %v5343 = vpop.f32.mrb[0].mxu0
      %5344 = vdwg.mxu0
      %5347 = vrot.lane.b32.xlu0 %v5145, 96
      %v5348 = vpop.permute.xlu0 %5347
      %5349 = vrot.lane.b32.xlu0 %v5146, 96
      %v5350 = vpop.permute.xlu0 %5349
      %v5352 = vsel %vm1214, %v5145, 0
      %v5355 = vsel %vm1214, %v5146, 0
      %v5358 = vsel %vm1214, %v5348, 0
      %v5361 = vsel %vm1214, %v5350, 0
      %5363 = vmatprep.subr.bf16.mxu0 0
      %5364 = vmatpush1.bf16.xpose.msra.mxu0 %v5358
      %5365 = vmatprep.subr.bf16.mxu0 0
      %5366 = vmatpush1.bf16.xpose.msra.mxu0 %v5361
      %5367 = vmatprep.subr.bf16.mxu0 0
      %5368 = vmatpush1.bf16.xpose.msra.mxu0 0
      %5369 = vmatprep.subr.bf16.mxu0 0
      %5370 = vmatpush1.bf16.xpose.msra.mxu0 0
      %5371 = vmatprep.subr.bf16.mxu0 0
      %5372 = vmatpush1.bf16.xpose.msra.mxu0 0
      %5373 = vmatprep.subr.bf16.mxu0 0
      %5374 = vmatpush1.bf16.xpose.msra.mxu0 0
      %5375 = vmatprep.subr.bf16.mxu0 0
      %5376 = vmatpush1.bf16.xpose.msra.mxu0 0
      %5377 = vmatprep.subr.bf16.mxu0 0
      %5378 = vmatpush1.bf16.xpose.msra.mxu0 0
      %5379 = vmatprep.subr.bf16.mxu0 0
      %5380 = vmatpush1.bf16.xpose.msra.mxu0 0
      %5381 = vmatprep.subr.bf16.mxu0 0
      %5382 = vmatpush1.bf16.xpose.msra.mxu0 0
      %5383 = vmatprep.subr.bf16.mxu0 0
      %5384 = vmatpush1.bf16.xpose.msra.mxu0 0
      %5385 = vmatprep.subr.bf16.mxu0 0
      %5386 = vmatpush1.bf16.xpose.msra.mxu0 0
      %5387 = vmatprep.subr.bf16.mxu0 0
      %5388 = vmatpush1.bf16.xpose.msra.mxu0 0
      %5389 = vmatprep.subr.bf16.mxu0 0
      %5390 = vmatpush1.bf16.xpose.msra.mxu0 0
      %5391 = vmatprep.subr.bf16.mxu0 0
      %5392 = vmatpush1.bf16.xpose.msra.mxu0 0
      %5393 = vmatprep.subr.bf16.mxu0 0
      %5394 = vmatpush1.bf16.xpose.msra.mxu0 0
      %5395 = vmatprep.mubr.bf16.mxu0 0
      %5396 = vmatmul.mubr.bf16.gmra.mrb[0].mxu0 %v5352
      %v5397 = vpop.f32.mrb[0].mxu0
      %v5398 = vadd.f32 0.0, %v5397
      %v5399 = vpop.f32.mrb[0].mxu0
      %v5400 = vpop.f32.mrb[0].mxu0
      %v5401 = vadd.f32 0.0, %v5400
      %v5402 = vpop.f32.mrb[0].mxu0
      %5403 = vmatprep.mubr.bf16.mxu0 0
      %5404 = vmatmul.mubr.bf16.gmra.mrb[0].mxu0 %v5355
      %v5405 = vpop.f32.mrb[0].mxu0
      %v5406 = vadd.f32 0.0, %v5405
      %v5407 = vpop.f32.mrb[0].mxu0
      %v5408 = vpop.f32.mrb[0].mxu0
      %v5409 = vpop.f32.mrb[0].mxu0
      %5410 = vdwg.mxu0
      %v5411 = vsel %vm882, %v5200, -1e+30
      %v5412 = vsel %vm882, %v5203, -1e+30
      %v5413 = vsel %vm882, %v5208, -1e+30
      %v5414 = vsel %vm882, %v5266, -1e+30
      %v5415 = vsel %vm882, %v5269, -1e+30
      %v5416 = vsel %vm882, %v5274, -1e+30
      %v5417 = vsel %vm882, %v5332, -1e+30
      %v5418 = vsel %vm882, %v5335, -1e+30
      %v5419 = vsel %vm882, %v5340, -1e+30
      %v5420 = vsel %vm882, %v5398, -1e+30
      %v5421 = vsel %vm882, %v5401, -1e+30
      %v5422 = vsel %vm882, %v5406, -1e+30
      %v5423 = vsel %vm1485, %v5411, -inf
      %5424 = vmax.xlane.f32.xlu0 %v5423
      %v5425 = vpop.xlane.xlu0 %5424
      %v5426 = vsel %vm1485, %v5412, -inf
      %5427 = vmax.xlane.f32.xlu0 %v5426
      %v5428 = vpop.xlane.xlu0 %5427
      %v5429 = vsel %vm1485, %v5413, -inf
      %5430 = vmax.xlane.f32.xlu0 %v5429
      %v5431 = vpop.xlane.xlu0 %5430
      %v5432 = vsel %vm1485, %v5414, -inf
      %5433 = vmax.xlane.f32.xlu0 %v5432
      %v5434 = vpop.xlane.xlu0 %5433
      %v5435 = vsel %vm1485, %v5415, -inf
      %5436 = vmax.xlane.f32.xlu0 %v5435
      %v5437 = vpop.xlane.xlu0 %5436
      %v5438 = vsel %vm1485, %v5416, -inf
      %5439 = vmax.xlane.f32.xlu0 %v5438
      %v5440 = vpop.xlane.xlu0 %5439
      %v5441 = vsel %vm1485, %v5417, -inf
      %5442 = vmax.xlane.f32.xlu0 %v5441
      %v5443 = vpop.xlane.xlu0 %5442
      %v5444 = vsel %vm1485, %v5418, -inf
      %5445 = vmax.xlane.f32.xlu0 %v5444
      %v5446 = vpop.xlane.xlu0 %5445
      %v5447 = vsel %vm1485, %v5419, -inf
      %5448 = vmax.xlane.f32.xlu0 %v5447
      %v5449 = vpop.xlane.xlu0 %5448
      %v5450 = vsel %vm1485, %v5420, -inf
      %5451 = vmax.xlane.f32.xlu0 %v5450
      %v5452 = vpop.xlane.xlu0 %5451
      %v5453 = vsel %vm1485, %v5421, -inf
      %5454 = vmax.xlane.f32.xlu0 %v5453
      %v5455 = vpop.xlane.xlu0 %5454
      %v5456 = vsel %vm1485, %v5422, -inf
      %5457 = vmax.xlane.f32.xlu0 %v5456
      %v5458 = vpop.xlane.xlu0 %5457
      %v5459 = vsub.f32 %v5411, %v5425
      %v5460 = vsub.f32 %v5412, %v5428
      %v5461 = vsub.f32 %v5413, %v5431
      %v5462 = vsub.f32 %v5414, %v5434
      %v5463 = vsub.f32 %v5415, %v5437
      %v5464 = vsub.f32 %v5416, %v5440
      %v5465 = vsub.f32 %v5417, %v5443
      %v5466 = vsub.f32 %v5418, %v5446
      %v5467 = vsub.f32 %v5419, %v5449
      %v5468 = vsub.f32 %v5420, %v5452
      %v5469 = vsub.f32 %v5421, %v5455
      %v5470 = vsub.f32 %v5422, %v5458
      %v5471 = vmul.f32 %v5459, 1.442695
      %v5472 = vpow.pop %v5471
      %v5473 = vmul.f32 %v5460, 1.442695
      %v5474 = vpow.pop %v5473
      %v5475 = vmul.f32 %v5461, 1.442695
      %v5476 = vpow.pop %v5475
      %v5477 = vmul.f32 %v5462, 1.442695
      %v5478 = vpow.pop %v5477
      %v5479 = vmul.f32 %v5463, 1.442695
      %v5480 = vpow.pop %v5479
      %v5481 = vmul.f32 %v5464, 1.442695
      %v5482 = vpow.pop %v5481
      %v5483 = vmul.f32 %v5465, 1.442695
      %v5484 = vpow.pop %v5483
      %v5485 = vmul.f32 %v5466, 1.442695
      %v5486 = vpow.pop %v5485
      %v5487 = vmul.f32 %v5467, 1.442695
      %v5488 = vpow.pop %v5487
      %v5489 = vmul.f32 %v5468, 1.442695
      %v5490 = vpow.pop %v5489
      %v5491 = vmul.f32 %v5469, 1.442695
      %v5492 = vpow.pop %v5491
      %v5493 = vmul.f32 %v5470, 1.442695
      %v5494 = vpow.pop %v5493
      %v5495 = vsel %vm1485, %v5472, 0.0
      %5496 = vadd.xlane.f32.xlu0 %v5495
      %v5497 = vpop.xlane.xlu0 %5496
      %v5498 = vsel %vm1485, %v5474, 0.0
      %5499 = vadd.xlane.f32.xlu0 %v5498
      %v5500 = vpop.xlane.xlu0 %5499
      %v5501 = vsel %vm1485, %v5476, 0.0
      %5502 = vadd.xlane.f32.xlu0 %v5501
      %v5503 = vpop.xlane.xlu0 %5502
      %v5504 = vsel %vm1485, %v5478, 0.0
      %5505 = vadd.xlane.f32.xlu0 %v5504
      %v5506 = vpop.xlane.xlu0 %5505
      %v5507 = vsel %vm1485, %v5480, 0.0
      %5508 = vadd.xlane.f32.xlu0 %v5507
      %v5509 = vpop.xlane.xlu0 %5508
      %v5510 = vsel %vm1485, %v5482, 0.0
      %5511 = vadd.xlane.f32.xlu0 %v5510
      %v5512 = vpop.xlane.xlu0 %5511
      %v5513 = vsel %vm1485, %v5484, 0.0
      %5514 = vadd.xlane.f32.xlu0 %v5513
      %v5515 = vpop.xlane.xlu0 %5514
      %v5516 = vsel %vm1485, %v5486, 0.0
      %5517 = vadd.xlane.f32.xlu0 %v5516
      %v5518 = vpop.xlane.xlu0 %5517
      %v5519 = vsel %vm1485, %v5488, 0.0
      %5520 = vadd.xlane.f32.xlu0 %v5519
      %v5521 = vpop.xlane.xlu0 %5520
      %v5522 = vsel %vm1485, %v5490, 0.0
      %5523 = vadd.xlane.f32.xlu0 %v5522
      %v5524 = vpop.xlane.xlu0 %5523
      %v5525 = vsel %vm1485, %v5492, 0.0
      %5526 = vadd.xlane.f32.xlu0 %v5525
      %v5527 = vpop.xlane.xlu0 %5526
      %v5528 = vsel %vm1485, %v5494, 0.0
      %5529 = vadd.xlane.f32.xlu0 %v5528
      %v5530 = vpop.xlane.xlu0 %5529
      %v5531 = vrcp.pop %v5497
      %v5532 = vrcp.pop %v5500
      %v5533 = vrcp.pop %v5503
      %v5534 = vrcp.pop %v5506
      %v5535 = vrcp.pop %v5509
      %v5536 = vrcp.pop %v5512
      %v5537 = vrcp.pop %v5515
      %v5538 = vrcp.pop %v5518
      %v5539 = vrcp.pop %v5521
      %v5540 = vrcp.pop %v5524
      %v5541 = vrcp.pop %v5527
      %v5542 = vrcp.pop %v5530
      %v5543 = vmul.f32 %v5472, %v5531
      %v5544 = vmul.f32 %v5474, %v5532
      %v5545 = vmul.f32 %v5476, %v5533
      %v5546 = vmul.f32 %v5478, %v5534
      %v5547 = vmul.f32 %v5480, %v5535
      %v5548 = vmul.f32 %v5482, %v5536
      %v5549 = vmul.f32 %v5484, %v5537
      %v5550 = vmul.f32 %v5486, %v5538
      %v5551 = vmul.f32 %v5488, %v5539
      %v5552 = vmul.f32 %v5490, %v5540
      %v5553 = vmul.f32 %v5492, %v5541
      %v5554 = vmul.f32 %v5494, %v5542
      %v5555 = vpack.c.bf16 %v5544, %v5543
      %v5556 = vpack.c.bf16 %v5545, %v5545
      %v5557 = vpack.c.bf16 %v5547, %v5546
      %v5558 = vpack.c.bf16 %v5548, %v5548
      %v5559 = vpack.c.bf16 %v5550, %v5549
      %v5560 = vpack.c.bf16 %v5551, %v5551
      %v5561 = vpack.c.bf16 %v5553, %v5552
      %v5562 = vpack.c.bf16 %v5554, %v5554
      %5563 = vrot.lane.b32.xlu0 %v5139, 64
      %v5564 = vpop.permute.xlu0 %5563
      %5565 = vrot.lane.b32.xlu0 %v5140, 64
      %v5566 = vpop.permute.xlu0 %5565
      %v5569 = vsel %vm1485, %v5555, 0
      %v5572 = vsel %vm1485, %v5556, 0
      %v5575 = vsel %vm1637, %v5566, 0
      %5577 = vmatprep.subr.bf16.mxu0 0
      %5578 = vmatpush1.bf16.msra.mxu0 %v5564
      %5579 = vmatprep.subr.bf16.mxu0 0
      %5580 = vmatpush1.bf16.msra.mxu0 %v5575
      %5581 = vmatprep.subr.bf16.mxu0 0
      %5582 = vmatpush1.bf16.msra.mxu0 0
      %5583 = vmatprep.subr.bf16.mxu0 0
      %5584 = vmatpush1.bf16.msra.mxu0 0
      %5585 = vmatprep.subr.bf16.mxu0 0
      %5586 = vmatpush1.bf16.msra.mxu0 0
      %5587 = vmatprep.subr.bf16.mxu0 0
      %5588 = vmatpush1.bf16.msra.mxu0 0
      %5589 = vmatprep.subr.bf16.mxu0 0
      %5590 = vmatpush1.bf16.msra.mxu0 0
      %5591 = vmatprep.subr.bf16.mxu0 0
      %5592 = vmatpush1.bf16.msra.mxu0 0
      %5593 = vmatprep.subr.bf16.mxu0 0
      %5594 = vmatpush1.bf16.msra.mxu0 0
      %5595 = vmatprep.subr.bf16.mxu0 0
      %5596 = vmatpush1.bf16.msra.mxu0 0
      %5597 = vmatprep.subr.bf16.mxu0 0
      %5598 = vmatpush1.bf16.msra.mxu0 0
      %5599 = vmatprep.subr.bf16.mxu0 0
      %5600 = vmatpush1.bf16.msra.mxu0 0
      %5601 = vmatprep.subr.bf16.mxu0 0
      %5602 = vmatpush1.bf16.msra.mxu0 0
      %5603 = vmatprep.subr.bf16.mxu0 0
      %5604 = vmatpush1.bf16.msra.mxu0 0
      %5605 = vmatprep.subr.bf16.mxu0 0
      %5606 = vmatpush1.bf16.msra.mxu0 0
      %5607 = vmatprep.subr.bf16.mxu0 0
      %5608 = vmatpush1.bf16.msra.mxu0 0
      %5609 = vmatprep.mubr.bf16.mxu0 0
      %5610 = vmatmul.mubr.bf16.gmra.mrb[0].mxu0 %v5569
      %v5611 = vpop.f32.mrb[0].mxu0
      %v5612 = vadd.f32 0.0, %v5611
      %v5613 = vpop.f32.mrb[0].mxu0
      %v5614 = vpop.f32.mrb[0].mxu0
      %v5615 = vadd.f32 0.0, %v5614
      %v5616 = vpop.f32.mrb[0].mxu0
      %5617 = vmatprep.mubr.bf16.mxu0 0
      %5618 = vmatmul.mubr.bf16.gmra.mrb[0].mxu0 %v5572
      %v5619 = vpop.f32.mrb[0].mxu0
      %v5620 = vadd.f32 0.0, %v5619
      %v5621 = vpop.f32.mrb[0].mxu0
      %v5622 = vpop.f32.mrb[0].mxu0
      %v5623 = vpop.f32.mrb[0].mxu0
      %5624 = vdwg.mxu0
      %5625 = vrot.lane.b32.xlu0 %v5141, 64
      %v5626 = vpop.permute.xlu0 %5625
      %5627 = vrot.lane.b32.xlu0 %v5142, 64
      %v5628 = vpop.permute.xlu0 %5627
      %v5631 = vsel %vm1485, %v5557, 0
      %v5634 = vsel %vm1485, %v5558, 0
      %v5637 = vsel %vm1637, %v5628, 0
      %5639 = vmatprep.subr.bf16.mxu0 0
      %5640 = vmatpush1.bf16.msra.mxu0 %v5626
      %5641 = vmatprep.subr.bf16.mxu0 0
      %5642 = vmatpush1.bf16.msra.mxu0 %v5637
      %5643 = vmatprep.subr.bf16.mxu0 0
      %5644 = vmatpush1.bf16.msra.mxu0 0
      %5645 = vmatprep.subr.bf16.mxu0 0
      %5646 = vmatpush1.bf16.msra.mxu0 0
      %5647 = vmatprep.subr.bf16.mxu0 0
      %5648 = vmatpush1.bf16.msra.mxu0 0
      %5649 = vmatprep.subr.bf16.mxu0 0
      %5650 = vmatpush1.bf16.msra.mxu0 0
      %5651 = vmatprep.subr.bf16.mxu0 0
      %5652 = vmatpush1.bf16.msra.mxu0 0
      %5653 = vmatprep.subr.bf16.mxu0 0
      %5654 = vmatpush1.bf16.msra.mxu0 0
      %5655 = vmatprep.subr.bf16.mxu0 0
      %5656 = vmatpush1.bf16.msra.mxu0 0
      %5657 = vmatprep.subr.bf16.mxu0 0
      %5658 = vmatpush1.bf16.msra.mxu0 0
      %5659 = vmatprep.subr.bf16.mxu0 0
      %5660 = vmatpush1.bf16.msra.mxu0 0
      %5661 = vmatprep.subr.bf16.mxu0 0
      %5662 = vmatpush1.bf16.msra.mxu0 0
      %5663 = vmatprep.subr.bf16.mxu0 0
      %5664 = vmatpush1.bf16.msra.mxu0 0
      %5665 = vmatprep.subr.bf16.mxu0 0
      %5666 = vmatpush1.bf16.msra.mxu0 0
      %5667 = vmatprep.subr.bf16.mxu0 0
      %5668 = vmatpush1.bf16.msra.mxu0 0
      %5669 = vmatprep.subr.bf16.mxu0 0
      %5670 = vmatpush1.bf16.msra.mxu0 0
      %5671 = vmatprep.mubr.bf16.mxu0 0
      %5672 = vmatmul.mubr.bf16.gmra.mrb[0].mxu0 %v5631
      %v5673 = vpop.f32.mrb[0].mxu0
      %v5674 = vadd.f32 0.0, %v5673
      %v5675 = vpop.f32.mrb[0].mxu0
      %v5676 = vpop.f32.mrb[0].mxu0
      %v5677 = vadd.f32 0.0, %v5676
      %v5678 = vpop.f32.mrb[0].mxu0
      %5679 = vmatprep.mubr.bf16.mxu0 0
      %5680 = vmatmul.mubr.bf16.gmra.mrb[0].mxu0 %v5634
      %v5681 = vpop.f32.mrb[0].mxu0
      %v5682 = vadd.f32 0.0, %v5681
      %v5683 = vpop.f32.mrb[0].mxu0
      %v5684 = vpop.f32.mrb[0].mxu0
      %v5685 = vpop.f32.mrb[0].mxu0
      %5686 = vdwg.mxu0
      %5687 = vrot.lane.b32.xlu0 %v5143, 64
      %v5688 = vpop.permute.xlu0 %5687
      %5689 = vrot.lane.b32.xlu0 %v5144, 64
      %v5690 = vpop.permute.xlu0 %5689
      %v5693 = vsel %vm1485, %v5559, 0
      %v5696 = vsel %vm1485, %v5560, 0
      %v5699 = vsel %vm1637, %v5690, 0
      %5701 = vmatprep.subr.bf16.mxu0 0
      %5702 = vmatpush1.bf16.msra.mxu0 %v5688
      %5703 = vmatprep.subr.bf16.mxu0 0
      %5704 = vmatpush1.bf16.msra.mxu0 %v5699
      %5705 = vmatprep.subr.bf16.mxu0 0
      %5706 = vmatpush1.bf16.msra.mxu0 0
      %5707 = vmatprep.subr.bf16.mxu0 0
      %5708 = vmatpush1.bf16.msra.mxu0 0
      %5709 = vmatprep.subr.bf16.mxu0 0
      %5710 = vmatpush1.bf16.msra.mxu0 0
      %5711 = vmatprep.subr.bf16.mxu0 0
      %5712 = vmatpush1.bf16.msra.mxu0 0
      %5713 = vmatprep.subr.bf16.mxu0 0
      %5714 = vmatpush1.bf16.msra.mxu0 0
      %5715 = vmatprep.subr.bf16.mxu0 0
      %5716 = vmatpush1.bf16.msra.mxu0 0
      %5717 = vmatprep.subr.bf16.mxu0 0
      %5718 = vmatpush1.bf16.msra.mxu0 0
      %5719 = vmatprep.subr.bf16.mxu0 0
      %5720 = vmatpush1.bf16.msra.mxu0 0
      %5721 = vmatprep.subr.bf16.mxu0 0
      %5722 = vmatpush1.bf16.msra.mxu0 0
      %5723 = vmatprep.subr.bf16.mxu0 0
      %5724 = vmatpush1.bf16.msra.mxu0 0
      %5725 = vmatprep.subr.bf16.mxu0 0
      %5726 = vmatpush1.bf16.msra.mxu0 0
      %5727 = vmatprep.subr.bf16.mxu0 0
      %5728 = vmatpush1.bf16.msra.mxu0 0
      %5729 = vmatprep.subr.bf16.mxu0 0
      %5730 = vmatpush1.bf16.msra.mxu0 0
      %5731 = vmatprep.subr.bf16.mxu0 0
      %5732 = vmatpush1.bf16.msra.mxu0 0
      %5733 = vmatprep.mubr.bf16.mxu0 0
      %5734 = vmatmul.mubr.bf16.gmra.mrb[0].mxu0 %v5693
      %v5735 = vpop.f32.mrb[0].mxu0
      %v5736 = vadd.f32 0.0, %v5735
      %v5737 = vpop.f32.mrb[0].mxu0
      %v5738 = vpop.f32.mrb[0].mxu0
      %v5739 = vadd.f32 0.0, %v5738
      %v5740 = vpop.f32.mrb[0].mxu0
      %5741 = vmatprep.mubr.bf16.mxu0 0
      %5742 = vmatmul.mubr.bf16.gmra.mrb[0].mxu0 %v5696
      %v5743 = vpop.f32.mrb[0].mxu0
      %v5744 = vadd.f32 0.0, %v5743
      %v5745 = vpop.f32.mrb[0].mxu0
      %v5746 = vpop.f32.mrb[0].mxu0
      %v5747 = vpop.f32.mrb[0].mxu0
      %5748 = vdwg.mxu0
      %5749 = vrot.lane.b32.xlu0 %v5145, 64
      %v5750 = vpop.permute.xlu0 %5749
      %5751 = vrot.lane.b32.xlu0 %v5146, 64
      %v5752 = vpop.permute.xlu0 %5751
      %v5755 = vsel %vm1485, %v5561, 0
      %v5758 = vsel %vm1485, %v5562, 0
      %v5761 = vsel %vm1637, %v5752, 0
      %5763 = vmatprep.subr.bf16.mxu0 0
      %5764 = vmatpush1.bf16.msra.mxu0 %v5750
      %5765 = vmatprep.subr.bf16.mxu0 0
      %5766 = vmatpush1.bf16.msra.mxu0 %v5761
      %5767 = vmatprep.subr.bf16.mxu0 0
      %5768 = vmatpush1.bf16.msra.mxu0 0
      %5769 = vmatprep.subr.bf16.mxu0 0
      %5770 = vmatpush1.bf16.msra.mxu0 0
      %5771 = vmatprep.subr.bf16.mxu0 0
      %5772 = vmatpush1.bf16.msra.mxu0 0
      %5773 = vmatprep.subr.bf16.mxu0 0
      %5774 = vmatpush1.bf16.msra.mxu0 0
      %5775 = vmatprep.subr.bf16.mxu0 0
      %5776 = vmatpush1.bf16.msra.mxu0 0
      %5777 = vmatprep.subr.bf16.mxu0 0
      %5778 = vmatpush1.bf16.msra.mxu0 0
      %5779 = vmatprep.subr.bf16.mxu0 0
      %5780 = vmatpush1.bf16.msra.mxu0 0
      %5781 = vmatprep.subr.bf16.mxu0 0
      %5782 = vmatpush1.bf16.msra.mxu0 0
      %5783 = vmatprep.subr.bf16.mxu0 0
      %5784 = vmatpush1.bf16.msra.mxu0 0
      %5785 = vmatprep.subr.bf16.mxu0 0
      %5786 = vmatpush1.bf16.msra.mxu0 0
      %5787 = vmatprep.subr.bf16.mxu0 0
      %5788 = vmatpush1.bf16.msra.mxu0 0
      %5789 = vmatprep.subr.bf16.mxu0 0
      %5790 = vmatpush1.bf16.msra.mxu0 0
      %5791 = vmatprep.subr.bf16.mxu0 0
      %5792 = vmatpush1.bf16.msra.mxu0 0
      %5793 = vmatprep.subr.bf16.mxu0 0
      %5794 = vmatpush1.bf16.msra.mxu0 0
      %5795 = vmatprep.mubr.bf16.mxu0 0
      %5796 = vmatmul.mubr.bf16.gmra.mrb[0].mxu0 %v5755
      %v5797 = vpop.f32.mrb[0].mxu0
      %v5798 = vadd.f32 0.0, %v5797
      %v5799 = vpop.f32.mrb[0].mxu0
      %v5800 = vpop.f32.mrb[0].mxu0
      %v5801 = vadd.f32 0.0, %v5800
      %v5802 = vpop.f32.mrb[0].mxu0
      %5803 = vmatprep.mubr.bf16.mxu0 0
      %5804 = vmatmul.mubr.bf16.gmra.mrb[0].mxu0 %v5758
      %v5805 = vpop.f32.mrb[0].mxu0
      %v5806 = vadd.f32 0.0, %v5805
      %v5807 = vpop.f32.mrb[0].mxu0
      %v5808 = vpop.f32.mrb[0].mxu0
      %v5809 = vpop.f32.mrb[0].mxu0
      %5810 = vdwg.mxu0
      %5811 = vrot.lane.b32.xlu0 %v5139, 120
      %v5812 = vpop.permute.xlu0 %5811
      %5813 = vrot.lane.b32.xlu0 %v5140, 120
      %v5814 = vpop.permute.xlu0 %5813
      %5815 = vrot.lane.b32.xlu0 %v5139, 88
      %v5816 = vpop.permute.xlu0 %5815
      %5817 = vrot.lane.b32.xlu0 %v5140, 88
      %v5818 = vpop.permute.xlu0 %5817
      %v5820 = vsel %vm1214, %v5812, 0
      %v5823 = vsel %vm1214, %v5814, 0
      %v5826 = vsel %vm1214, %v5816, 0
      %v5829 = vsel %vm1214, %v5818, 0
      %5831 = vmatprep.subr.bf16.mxu0 0
      %5832 = vmatpush1.bf16.xpose.msra.mxu0 %v5826
      %5833 = vmatprep.subr.bf16.mxu0 0
      %5834 = vmatpush1.bf16.xpose.msra.mxu0 %v5829
      %5835 = vmatprep.subr.bf16.mxu0 0
      %5836 = vmatpush1.bf16.xpose.msra.mxu0 0
      %5837 = vmatprep.subr.bf16.mxu0 0
      %5838 = vmatpush1.bf16.xpose.msra.mxu0 0
      %5839 = vmatprep.subr.bf16.mxu0 0
      %5840 = vmatpush1.bf16.xpose.msra.mxu0 0
      %5841 = vmatprep.subr.bf16.mxu0 0
      %5842 = vmatpush1.bf16.xpose.msra.mxu0 0
      %5843 = vmatprep.subr.bf16.mxu0 0
      %5844 = vmatpush1.bf16.xpose.msra.mxu0 0
      %5845 = vmatprep.subr.bf16.mxu0 0
      %5846 = vmatpush1.bf16.xpose.msra.mxu0 0
      %5847 = vmatprep.subr.bf16.mxu0 0
      %5848 = vmatpush1.bf16.xpose.msra.mxu0 0
      %5849 = vmatprep.subr.bf16.mxu0 0
      %5850 = vmatpush1.bf16.xpose.msra.mxu0 0
      %5851 = vmatprep.subr.bf16.mxu0 0
      %5852 = vmatpush1.bf16.xpose.msra.mxu0 0
      %5853 = vmatprep.subr.bf16.mxu0 0
      %5854 = vmatpush1.bf16.xpose.msra.mxu0 0
      %5855 = vmatprep.subr.bf16.mxu0 0
      %5856 = vmatpush1.bf16.xpose.msra.mxu0 0
      %5857 = vmatprep.subr.bf16.mxu0 0
      %5858 = vmatpush1.bf16.xpose.msra.mxu0 0
      %5859 = vmatprep.subr.bf16.mxu0 0
      %5860 = vmatpush1.bf16.xpose.msra.mxu0 0
      %5861 = vmatprep.subr.bf16.mxu0 0
      %5862 = vmatpush1.bf16.xpose.msra.mxu0 0
      %5863 = vmatprep.mubr.bf16.mxu0 0
      %5864 = vmatmul.mubr.bf16.gmra.mrb[0].mxu0 %v5820
      %v5865 = vpop.f32.mrb[0].mxu0
      %v5866 = vadd.f32 0.0, %v5865
      %v5867 = vpop.f32.mrb[0].mxu0
      %v5868 = vpop.f32.mrb[0].mxu0
      %v5869 = vadd.f32 0.0, %v5868
      %v5870 = vpop.f32.mrb[0].mxu0
      %5871 = vmatprep.mubr.bf16.mxu0 0
      %5872 = vmatmul.mubr.bf16.gmra.mrb[0].mxu0 %v5823
      %v5873 = vpop.f32.mrb[0].mxu0
      %v5874 = vadd.f32 0.0, %v5873
      %v5875 = vpop.f32.mrb[0].mxu0
      %v5876 = vpop.f32.mrb[0].mxu0
      %v5877 = vpop.f32.mrb[0].mxu0
      %5878 = vdwg.mxu0
      %5879 = vrot.lane.b32.xlu0 %v5141, 120
      %v5880 = vpop.permute.xlu0 %5879
      %5881 = vrot.lane.b32.xlu0 %v5142, 120
      %v5882 = vpop.permute.xlu0 %5881
      %5883 = vrot.lane.b32.xlu0 %v5141, 88
      %v5884 = vpop.permute.xlu0 %5883
      %5885 = vrot.lane.b32.xlu0 %v5142, 88
      %v5886 = vpop.permute.xlu0 %5885
      %v5888 = vsel %vm1214, %v5880, 0
      %v5891 = vsel %vm1214, %v5882, 0
      %v5894 = vsel %vm1214, %v5884, 0
      %v5897 = vsel %vm1214, %v5886, 0
      %5899 = vmatprep.subr.bf16.mxu0 0
      %5900 = vmatpush1.bf16.xpose.msra.mxu0 %v5894
      %5901 = vmatprep.subr.bf16.mxu0 0
      %5902 = vmatpush1.bf16.xpose.msra.mxu0 %v5897
      %5903 = vmatprep.subr.bf16.mxu0 0
      %5904 = vmatpush1.bf16.xpose.msra.mxu0 0
      %5905 = vmatprep.subr.bf16.mxu0 0
      %5906 = vmatpush1.bf16.xpose.msra.mxu0 0
      %5907 = vmatprep.subr.bf16.mxu0 0
      %5908 = vmatpush1.bf16.xpose.msra.mxu0 0
      %5909 = vmatprep.subr.bf16.mxu0 0
      %5910 = vmatpush1.bf16.xpose.msra.mxu0 0
      %5911 = vmatprep.subr.bf16.mxu0 0
      %5912 = vmatpush1.bf16.xpose.msra.mxu0 0
      %5913 = vmatprep.subr.bf16.mxu0 0
      %5914 = vmatpush1.bf16.xpose.msra.mxu0 0
      %5915 = vmatprep.subr.bf16.mxu0 0
      %5916 = vmatpush1.bf16.xpose.msra.mxu0 0
      %5917 = vmatprep.subr.bf16.mxu0 0
      %5918 = vmatpush1.bf16.xpose.msra.mxu0 0
      %5919 = vmatprep.subr.bf16.mxu0 0
      %5920 = vmatpush1.bf16.xpose.msra.mxu0 0
      %5921 = vmatprep.subr.bf16.mxu0 0
      %5922 = vmatpush1.bf16.xpose.msra.mxu0 0
      %5923 = vmatprep.subr.bf16.mxu0 0
      %5924 = vmatpush1.bf16.xpose.msra.mxu0 0
      %5925 = vmatprep.subr.bf16.mxu0 0
      %5926 = vmatpush1.bf16.xpose.msra.mxu0 0
      %5927 = vmatprep.subr.bf16.mxu0 0
      %5928 = vmatpush1.bf16.xpose.msra.mxu0 0
      %5929 = vmatprep.subr.bf16.mxu0 0
      %5930 = vmatpush1.bf16.xpose.msra.mxu0 0
      %5931 = vmatprep.mubr.bf16.mxu0 0
      %5932 = vmatmul.mubr.bf16.gmra.mrb[0].mxu0 %v5888
      %v5933 = vpop.f32.mrb[0].mxu0
      %v5934 = vadd.f32 0.0, %v5933
      %v5935 = vpop.f32.mrb[0].mxu0
      %v5936 = vpop.f32.mrb[0].mxu0
      %v5937 = vadd.f32 0.0, %v5936
      %v5938 = vpop.f32.mrb[0].mxu0
      %5939 = vmatprep.mubr.bf16.mxu0 0
      %5940 = vmatmul.mubr.bf16.gmra.mrb[0].mxu0 %v5891
      %v5941 = vpop.f32.mrb[0].mxu0
      %v5942 = vadd.f32 0.0, %v5941
      %v5943 = vpop.f32.mrb[0].mxu0
      %v5944 = vpop.f32.mrb[0].mxu0
      %v5945 = vpop.f32.mrb[0].mxu0
      %5946 = vdwg.mxu0
      %5947 = vrot.lane.b32.xlu0 %v5143, 120
      %v5948 = vpop.permute.xlu0 %5947
      %5949 = vrot.lane.b32.xlu0 %v5144, 120
      %v5950 = vpop.permute.xlu0 %5949
      %5951 = vrot.lane.b32.xlu0 %v5143, 88
      %v5952 = vpop.permute.xlu0 %5951
      %5953 = vrot.lane.b32.xlu0 %v5144, 88
      %v5954 = vpop.permute.xlu0 %5953
      %v5956 = vsel %vm1214, %v5948, 0
      %v5959 = vsel %vm1214, %v5950, 0
      %v5962 = vsel %vm1214, %v5952, 0
      %v5965 = vsel %vm1214, %v5954, 0
      %5967 = vmatprep.subr.bf16.mxu0 0
      %5968 = vmatpush1.bf16.xpose.msra.mxu0 %v5962
      %5969 = vmatprep.subr.bf16.mxu0 0
      %5970 = vmatpush1.bf16.xpose.msra.mxu0 %v5965
      %5971 = vmatprep.subr.bf16.mxu0 0
      %5972 = vmatpush1.bf16.xpose.msra.mxu0 0
      %5973 = vmatprep.subr.bf16.mxu0 0
      %5974 = vmatpush1.bf16.xpose.msra.mxu0 0
      %5975 = vmatprep.subr.bf16.mxu0 0
      %5976 = vmatpush1.bf16.xpose.msra.mxu0 0
      %5977 = vmatprep.subr.bf16.mxu0 0
      %5978 = vmatpush1.bf16.xpose.msra.mxu0 0
      %5979 = vmatprep.subr.bf16.mxu0 0
      %5980 = vmatpush1.bf16.xpose.msra.mxu0 0
      %5981 = vmatprep.subr.bf16.mxu0 0
      %5982 = vmatpush1.bf16.xpose.msra.mxu0 0
      %5983 = vmatprep.subr.bf16.mxu0 0
      %5984 = vmatpush1.bf16.xpose.msra.mxu0 0
      %5985 = vmatprep.subr.bf16.mxu0 0
      %5986 = vmatpush1.bf16.xpose.msra.mxu0 0
      %5987 = vmatprep.subr.bf16.mxu0 0
      %5988 = vmatpush1.bf16.xpose.msra.mxu0 0
      %5989 = vmatprep.subr.bf16.mxu0 0
      %5990 = vmatpush1.bf16.xpose.msra.mxu0 0
      %5991 = vmatprep.subr.bf16.mxu0 0
      %5992 = vmatpush1.bf16.xpose.msra.mxu0 0
      %5993 = vmatprep.subr.bf16.mxu0 0
      %5994 = vmatpush1.bf16.xpose.msra.mxu0 0
      %5995 = vmatprep.subr.bf16.mxu0 0
      %5996 = vmatpush1.bf16.xpose.msra.mxu0 0
      %5997 = vmatprep.subr.bf16.mxu0 0
      %5998 = vmatpush1.bf16.xpose.msra.mxu0 0
      %5999 = vmatprep.mubr.bf16.mxu0 0
      %6000 = vmatmul.mubr.bf16.gmra.mrb[0].mxu0 %v5956
      %v6001 = vpop.f32.mrb[0].mxu0
      %v6002 = vadd.f32 0.0, %v6001
      %v6003 = vpop.f32.mrb[0].mxu0
      %v6004 = vpop.f32.mrb[0].mxu0
      %v6005 = vadd.f32 0.0, %v6004
      %v6006 = vpop.f32.mrb[0].mxu0
      %6007 = vmatprep.mubr.bf16.mxu0 0
      %6008 = vmatmul.mubr.bf16.gmra.mrb[0].mxu0 %v5959
      %v6009 = vpop.f32.mrb[0].mxu0
      %v6010 = vadd.f32 0.0, %v6009
      %v6011 = vpop.f32.mrb[0].mxu0
      %v6012 = vpop.f32.mrb[0].mxu0
      %v6013 = vpop.f32.mrb[0].mxu0
      %6014 = vdwg.mxu0
      %6015 = vrot.lane.b32.xlu0 %v5145, 120
      %v6016 = vpop.permute.xlu0 %6015
      %6017 = vrot.lane.b32.xlu0 %v5146, 120
      %v6018 = vpop.permute.xlu0 %6017
      %6019 = vrot.lane.b32.xlu0 %v5145, 88
      %v6020 = vpop.permute.xlu0 %6019
      %6021 = vrot.lane.b32.xlu0 %v5146, 88
      %v6022 = vpop.permute.xlu0 %6021
      %v6024 = vsel %vm1214, %v6016, 0
      %v6027 = vsel %vm1214, %v6018, 0
      %v6030 = vsel %vm1214, %v6020, 0
      %v6033 = vsel %vm1214, %v6022, 0
      %6035 = vmatprep.subr.bf16.mxu0 0
      %6036 = vmatpush1.bf16.xpose.msra.mxu0 %v6030
      %6037 = vmatprep.subr.bf16.mxu0 0
      %6038 = vmatpush1.bf16.xpose.msra.mxu0 %v6033
      %6039 = vmatprep.subr.bf16.mxu0 0
      %6040 = vmatpush1.bf16.xpose.msra.mxu0 0
      %6041 = vmatprep.subr.bf16.mxu0 0
      %6042 = vmatpush1.bf16.xpose.msra.mxu0 0
      %6043 = vmatprep.subr.bf16.mxu0 0
      %6044 = vmatpush1.bf16.xpose.msra.mxu0 0
      %6045 = vmatprep.subr.bf16.mxu0 0
      %6046 = vmatpush1.bf16.xpose.msra.mxu0 0
      %6047 = vmatprep.subr.bf16.mxu0 0
      %6048 = vmatpush1.bf16.xpose.msra.mxu0 0
      %6049 = vmatprep.subr.bf16.mxu0 0
      %6050 = vmatpush1.bf16.xpose.msra.mxu0 0
      %6051 = vmatprep.subr.bf16.mxu0 0
      %6052 = vmatpush1.bf16.xpose.msra.mxu0 0
      %6053 = vmatprep.subr.bf16.mxu0 0
      %6054 = vmatpush1.bf16.xpose.msra.mxu0 0
      %6055 = vmatprep.subr.bf16.mxu0 0
      %6056 = vmatpush1.bf16.xpose.msra.mxu0 0
      %6057 = vmatprep.subr.bf16.mxu0 0
      %6058 = vmatpush1.bf16.xpose.msra.mxu0 0
      %6059 = vmatprep.subr.bf16.mxu0 0
      %6060 = vmatpush1.bf16.xpose.msra.mxu0 0
      %6061 = vmatprep.subr.bf16.mxu0 0
      %6062 = vmatpush1.bf16.xpose.msra.mxu0 0
      %6063 = vmatprep.subr.bf16.mxu0 0
      %6064 = vmatpush1.bf16.xpose.msra.mxu0 0
      %6065 = vmatprep.subr.bf16.mxu0 0
      %6066 = vmatpush1.bf16.xpose.msra.mxu0 0
      %6067 = vmatprep.mubr.bf16.mxu0 0
      %6068 = vmatmul.mubr.bf16.gmra.mrb[0].mxu0 %v6024
      %v6069 = vpop.f32.mrb[0].mxu0
      %v6070 = vadd.f32 0.0, %v6069
      %v6071 = vpop.f32.mrb[0].mxu0
      %v6072 = vpop.f32.mrb[0].mxu0
      %v6073 = vadd.f32 0.0, %v6072
      %v6074 = vpop.f32.mrb[0].mxu0
      %6075 = vmatprep.mubr.bf16.mxu0 0
      %6076 = vmatmul.mubr.bf16.gmra.mrb[0].mxu0 %v6027
      %v6077 = vpop.f32.mrb[0].mxu0
      %v6078 = vadd.f32 0.0, %v6077
      %v6079 = vpop.f32.mrb[0].mxu0
      %v6080 = vpop.f32.mrb[0].mxu0
      %v6081 = vpop.f32.mrb[0].mxu0
      %6082 = vdwg.mxu0
      %v6083 = vsel %vm882, %v5866, -1e+30
      %v6084 = vsel %vm882, %v5869, -1e+30
      %v6085 = vsel %vm882, %v5874, -1e+30
      %v6086 = vsel %vm882, %v5934, -1e+30
      %v6087 = vsel %vm882, %v5937, -1e+30
      %v6088 = vsel %vm882, %v5942, -1e+30
      %v6089 = vsel %vm882, %v6002, -1e+30
      %v6090 = vsel %vm882, %v6005, -1e+30
      %v6091 = vsel %vm882, %v6010, -1e+30
      %v6092 = vsel %vm882, %v6070, -1e+30
      %v6093 = vsel %vm882, %v6073, -1e+30
      %v6094 = vsel %vm882, %v6078, -1e+30
      %v6095 = vsel %vm1485, %v6083, -inf
      %6096 = vmax.xlane.f32.xlu0 %v6095
      %v6097 = vpop.xlane.xlu0 %6096
      %v6098 = vsel %vm1485, %v6084, -inf
      %6099 = vmax.xlane.f32.xlu0 %v6098
      %v6100 = vpop.xlane.xlu0 %6099
      %v6101 = vsel %vm1485, %v6085, -inf
      %6102 = vmax.xlane.f32.xlu0 %v6101
      %v6103 = vpop.xlane.xlu0 %6102
      %v6104 = vsel %vm1485, %v6086, -inf
      %6105 = vmax.xlane.f32.xlu0 %v6104
      %v6106 = vpop.xlane.xlu0 %6105
      %v6107 = vsel %vm1485, %v6087, -inf
      %6108 = vmax.xlane.f32.xlu0 %v6107
      %v6109 = vpop.xlane.xlu0 %6108
      %v6110 = vsel %vm1485, %v6088, -inf
      %6111 = vmax.xlane.f32.xlu0 %v6110
      %v6112 = vpop.xlane.xlu0 %6111
      %v6113 = vsel %vm1485, %v6089, -inf
      %6114 = vmax.xlane.f32.xlu0 %v6113
      %v6115 = vpop.xlane.xlu0 %6114
      %v6116 = vsel %vm1485, %v6090, -inf
      %6117 = vmax.xlane.f32.xlu0 %v6116
      %v6118 = vpop.xlane.xlu0 %6117
      %v6119 = vsel %vm1485, %v6091, -inf
      %6120 = vmax.xlane.f32.xlu0 %v6119
      %v6121 = vpop.xlane.xlu0 %6120
      %v6122 = vsel %vm1485, %v6092, -inf
      %6123 = vmax.xlane.f32.xlu0 %v6122
      %v6124 = vpop.xlane.xlu0 %6123
      %v6125 = vsel %vm1485, %v6093, -inf
      %6126 = vmax.xlane.f32.xlu0 %v6125
      %v6127 = vpop.xlane.xlu0 %6126
      %v6128 = vsel %vm1485, %v6094, -inf
      %6129 = vmax.xlane.f32.xlu0 %v6128
      %v6130 = vpop.xlane.xlu0 %6129
      %v6131 = vsub.f32 %v6083, %v6097
      %v6132 = vsub.f32 %v6084, %v6100
      %v6133 = vsub.f32 %v6085, %v6103
      %v6134 = vsub.f32 %v6086, %v6106
      %v6135 = vsub.f32 %v6087, %v6109
      %v6136 = vsub.f32 %v6088, %v6112
      %v6137 = vsub.f32 %v6089, %v6115
      %v6138 = vsub.f32 %v6090, %v6118
      %v6139 = vsub.f32 %v6091, %v6121
      %v6140 = vsub.f32 %v6092, %v6124
      %v6141 = vsub.f32 %v6093, %v6127
      %v6142 = vsub.f32 %v6094, %v6130
      %v6143 = vmul.f32 %v6131, 1.442695
      %v6144 = vpow.pop %v6143
      %v6145 = vmul.f32 %v6132, 1.442695
      %v6146 = vpow.pop %v6145
      %v6147 = vmul.f32 %v6133, 1.442695
      %v6148 = vpow.pop %v6147
      %v6149 = vmul.f32 %v6134, 1.442695
      %v6150 = vpow.pop %v6149
      %v6151 = vmul.f32 %v6135, 1.442695
      %v6152 = vpow.pop %v6151
      %v6153 = vmul.f32 %v6136, 1.442695
      %v6154 = vpow.pop %v6153
      %v6155 = vmul.f32 %v6137, 1.442695
      %v6156 = vpow.pop %v6155
      %v6157 = vmul.f32 %v6138, 1.442695
      %v6158 = vpow.pop %v6157
      %v6159 = vmul.f32 %v6139, 1.442695
      %v6160 = vpow.pop %v6159
      %v6161 = vmul.f32 %v6140, 1.442695
      %v6162 = vpow.pop %v6161
      %v6163 = vmul.f32 %v6141, 1.442695
      %v6164 = vpow.pop %v6163
      %v6165 = vmul.f32 %v6142, 1.442695
      %v6166 = vpow.pop %v6165
      %v6167 = vsel %vm1485, %v6144, 0.0
      %6168 = vadd.xlane.f32.xlu0 %v6167
      %v6169 = vpop.xlane.xlu0 %6168
      %v6170 = vsel %vm1485, %v6146, 0.0
      %6171 = vadd.xlane.f32.xlu0 %v6170
      %v6172 = vpop.xlane.xlu0 %6171
      %v6173 = vsel %vm1485, %v6148, 0.0
      %6174 = vadd.xlane.f32.xlu0 %v6173
      %v6175 = vpop.xlane.xlu0 %6174
      %v6176 = vsel %vm1485, %v6150, 0.0
      %6177 = vadd.xlane.f32.xlu0 %v6176
      %v6178 = vpop.xlane.xlu0 %6177
      %v6179 = vsel %vm1485, %v6152, 0.0
      %6180 = vadd.xlane.f32.xlu0 %v6179
      %v6181 = vpop.xlane.xlu0 %6180
      %v6182 = vsel %vm1485, %v6154, 0.0
      %6183 = vadd.xlane.f32.xlu0 %v6182
      %v6184 = vpop.xlane.xlu0 %6183
      %v6185 = vsel %vm1485, %v6156, 0.0
      %6186 = vadd.xlane.f32.xlu0 %v6185
      %v6187 = vpop.xlane.xlu0 %6186
      %v6188 = vsel %vm1485, %v6158, 0.0
      %6189 = vadd.xlane.f32.xlu0 %v6188
      %v6190 = vpop.xlane.xlu0 %6189
      %v6191 = vsel %vm1485, %v6160, 0.0
      %6192 = vadd.xlane.f32.xlu0 %v6191
      %v6193 = vpop.xlane.xlu0 %6192
      %v6194 = vsel %vm1485, %v6162, 0.0
      %6195 = vadd.xlane.f32.xlu0 %v6194
      %v6196 = vpop.xlane.xlu0 %6195
      %v6197 = vsel %vm1485, %v6164, 0.0
      %6198 = vadd.xlane.f32.xlu0 %v6197
      %v6199 = vpop.xlane.xlu0 %6198
      %v6200 = vsel %vm1485, %v6166, 0.0
      %6201 = vadd.xlane.f32.xlu0 %v6200
      %v6202 = vpop.xlane.xlu0 %6201
      %v6203 = vrcp.pop %v6169
      %v6204 = vrcp.pop %v6172
      %v6205 = vrcp.pop %v6175
      %v6206 = vrcp.pop %v6178
      %v6207 = vrcp.pop %v6181
      %v6208 = vrcp.pop %v6184
      %v6209 = vrcp.pop %v6187
      %v6210 = vrcp.pop %v6190
      %v6211 = vrcp.pop %v6193
      %v6212 = vrcp.pop %v6196
      %v6213 = vrcp.pop %v6199
      %v6214 = vrcp.pop %v6202
      %v6215 = vmul.f32 %v6144, %v6203
      %v6216 = vmul.f32 %v6146, %v6204
      %v6217 = vmul.f32 %v6148, %v6205
      %v6218 = vmul.f32 %v6150, %v6206
      %v6219 = vmul.f32 %v6152, %v6207
      %v6220 = vmul.f32 %v6154, %v6208
      %v6221 = vmul.f32 %v6156, %v6209
      %v6222 = vmul.f32 %v6158, %v6210
      %v6223 = vmul.f32 %v6160, %v6211
      %v6224 = vmul.f32 %v6162, %v6212
      %v6225 = vmul.f32 %v6164, %v6213
      %v6226 = vmul.f32 %v6166, %v6214
      %v6227 = vpack.c.bf16 %v6216, %v6215
      %v6228 = vpack.c.bf16 %v6217, %v6217
      %v6229 = vpack.c.bf16 %v6219, %v6218
      %v6230 = vpack.c.bf16 %v6220, %v6220
      %v6231 = vpack.c.bf16 %v6222, %v6221
      %v6232 = vpack.c.bf16 %v6223, %v6223
      %v6233 = vpack.c.bf16 %v6225, %v6224
      %v6234 = vpack.c.bf16 %v6226, %v6226
      %6235 = vrot.lane.b32.xlu0 %v5139, 56
      %v6236 = vpop.permute.xlu0 %6235
      %6237 = vrot.lane.b32.xlu0 %v5140, 56
      %v6238 = vpop.permute.xlu0 %6237
      %v6241 = vsel %vm1485, %v6227, 0
      %v6244 = vsel %vm1485, %v6228, 0
      %v6247 = vsel %vm1637, %v6238, 0
      %6249 = vmatprep.subr.bf16.mxu0 0
      %6250 = vmatpush1.bf16.msra.mxu0 %v6236
      %6251 = vmatprep.subr.bf16.mxu0 0
      %6252 = vmatpush1.bf16.msra.mxu0 %v6247
      %6253 = vmatprep.subr.bf16.mxu0 0
      %6254 = vmatpush1.bf16.msra.mxu0 0
      %6255 = vmatprep.subr.bf16.mxu0 0
      %6256 = vmatpush1.bf16.msra.mxu0 0
      %6257 = vmatprep.subr.bf16.mxu0 0
      %6258 = vmatpush1.bf16.msra.mxu0 0
      %6259 = vmatprep.subr.bf16.mxu0 0
      %6260 = vmatpush1.bf16.msra.mxu0 0
      %6261 = vmatprep.subr.bf16.mxu0 0
      %6262 = vmatpush1.bf16.msra.mxu0 0
      %6263 = vmatprep.subr.bf16.mxu0 0
      %6264 = vmatpush1.bf16.msra.mxu0 0
      %6265 = vmatprep.subr.bf16.mxu0 0
      %6266 = vmatpush1.bf16.msra.mxu0 0
      %6267 = vmatprep.subr.bf16.mxu0 0
      %6268 = vmatpush1.bf16.msra.mxu0 0
      %6269 = vmatprep.subr.bf16.mxu0 0
      %6270 = vmatpush1.bf16.msra.mxu0 0
      %6271 = vmatprep.subr.bf16.mxu0 0
      %6272 = vmatpush1.bf16.msra.mxu0 0
      %6273 = vmatprep.subr.bf16.mxu0 0
      %6274 = vmatpush1.bf16.msra.mxu0 0
      %6275 = vmatprep.subr.bf16.mxu0 0
      %6276 = vmatpush1.bf16.msra.mxu0 0
      %6277 = vmatprep.subr.bf16.mxu0 0
      %6278 = vmatpush1.bf16.msra.mxu0 0
      %6279 = vmatprep.subr.bf16.mxu0 0
      %6280 = vmatpush1.bf16.msra.mxu0 0
      %6281 = vmatprep.mubr.bf16.mxu0 0
      %6282 = vmatmul.mubr.bf16.gmra.mrb[0].mxu0 %v6241
      %v6283 = vpop.f32.mrb[0].mxu0
      %v6284 = vadd.f32 0.0, %v6283
      %v6285 = vpop.f32.mrb[0].mxu0
      %v6286 = vpop.f32.mrb[0].mxu0
      %v6287 = vadd.f32 0.0, %v6286
      %v6288 = vpop.f32.mrb[0].mxu0
      %6289 = vmatprep.mubr.bf16.mxu0 0
      %6290 = vmatmul.mubr.bf16.gmra.mrb[0].mxu0 %v6244
      %v6291 = vpop.f32.mrb[0].mxu0
      %v6292 = vadd.f32 0.0, %v6291
      %v6293 = vpop.f32.mrb[0].mxu0
      %v6294 = vpop.f32.mrb[0].mxu0
      %v6295 = vpop.f32.mrb[0].mxu0
      %6296 = vdwg.mxu0
      %6297 = vrot.lane.b32.xlu0 %v5141, 56
      %v6298 = vpop.permute.xlu0 %6297
      %6299 = vrot.lane.b32.xlu0 %v5142, 56
      %v6300 = vpop.permute.xlu0 %6299
      %v6303 = vsel %vm1485, %v6229, 0
      %v6306 = vsel %vm1485, %v6230, 0
      %v6309 = vsel %vm1637, %v6300, 0
      %6311 = vmatprep.subr.bf16.mxu0 0
      %6312 = vmatpush1.bf16.msra.mxu0 %v6298
      %6313 = vmatprep.subr.bf16.mxu0 0
      %6314 = vmatpush1.bf16.msra.mxu0 %v6309
      %6315 = vmatprep.subr.bf16.mxu0 0
      %6316 = vmatpush1.bf16.msra.mxu0 0
      %6317 = vmatprep.subr.bf16.mxu0 0
      %6318 = vmatpush1.bf16.msra.mxu0 0
      %6319 = vmatprep.subr.bf16.mxu0 0
      %6320 = vmatpush1.bf16.msra.mxu0 0
      %6321 = vmatprep.subr.bf16.mxu0 0
      %6322 = vmatpush1.bf16.msra.mxu0 0
      %6323 = vmatprep.subr.bf16.mxu0 0
      %6324 = vmatpush1.bf16.msra.mxu0 0
      %6325 = vmatprep.subr.bf16.mxu0 0
      %6326 = vmatpush1.bf16.msra.mxu0 0
      %6327 = vmatprep.subr.bf16.mxu0 0
      %6328 = vmatpush1.bf16.msra.mxu0 0
      %6329 = vmatprep.subr.bf16.mxu0 0
      %6330 = vmatpush1.bf16.msra.mxu0 0
      %6331 = vmatprep.subr.bf16.mxu0 0
      %6332 = vmatpush1.bf16.msra.mxu0 0
      %6333 = vmatprep.subr.bf16.mxu0 0
      %6334 = vmatpush1.bf16.msra.mxu0 0
      %6335 = vmatprep.subr.bf16.mxu0 0
      %6336 = vmatpush1.bf16.msra.mxu0 0
      %6337 = vmatprep.subr.bf16.mxu0 0
      %6338 = vmatpush1.bf16.msra.mxu0 0
      %6339 = vmatprep.subr.bf16.mxu0 0
      %6340 = vmatpush1.bf16.msra.mxu0 0
      %6341 = vmatprep.subr.bf16.mxu0 0
      %6342 = vmatpush1.bf16.msra.mxu0 0
      %6343 = vmatprep.mubr.bf16.mxu0 0
      %6344 = vmatmul.mubr.bf16.gmra.mrb[0].mxu0 %v6303
      %v6345 = vpop.f32.mrb[0].mxu0
      %v6346 = vadd.f32 0.0, %v6345
      %v6347 = vpop.f32.mrb[0].mxu0
      %v6348 = vpop.f32.mrb[0].mxu0
      %v6349 = vadd.f32 0.0, %v6348
      %v6350 = vpop.f32.mrb[0].mxu0
      %6351 = vmatprep.mubr.bf16.mxu0 0
      %6352 = vmatmul.mubr.bf16.gmra.mrb[0].mxu0 %v6306
      %v6353 = vpop.f32.mrb[0].mxu0
      %v6354 = vadd.f32 0.0, %v6353
      %v6355 = vpop.f32.mrb[0].mxu0
      %v6356 = vpop.f32.mrb[0].mxu0
      %v6357 = vpop.f32.mrb[0].mxu0
      %6358 = vdwg.mxu0
      %6359 = vrot.lane.b32.xlu0 %v5143, 56
      %v6360 = vpop.permute.xlu0 %6359
      %6361 = vrot.lane.b32.xlu0 %v5144, 56
      %v6362 = vpop.permute.xlu0 %6361
      %v6365 = vsel %vm1485, %v6231, 0
      %v6368 = vsel %vm1485, %v6232, 0
      %v6371 = vsel %vm1637, %v6362, 0
      %6373 = vmatprep.subr.bf16.mxu0 0
      %6374 = vmatpush1.bf16.msra.mxu0 %v6360
      %6375 = vmatprep.subr.bf16.mxu0 0
      %6376 = vmatpush1.bf16.msra.mxu0 %v6371
      %6377 = vmatprep.subr.bf16.mxu0 0
      %6378 = vmatpush1.bf16.msra.mxu0 0
      %6379 = vmatprep.subr.bf16.mxu0 0
      %6380 = vmatpush1.bf16.msra.mxu0 0
      %6381 = vmatprep.subr.bf16.mxu0 0
      %6382 = vmatpush1.bf16.msra.mxu0 0
      %6383 = vmatprep.subr.bf16.mxu0 0
      %6384 = vmatpush1.bf16.msra.mxu0 0
      %6385 = vmatprep.subr.bf16.mxu0 0
      %6386 = vmatpush1.bf16.msra.mxu0 0
      %6387 = vmatprep.subr.bf16.mxu0 0
      %6388 = vmatpush1.bf16.msra.mxu0 0
      %6389 = vmatprep.subr.bf16.mxu0 0
      %6390 = vmatpush1.bf16.msra.mxu0 0
      %6391 = vmatprep.subr.bf16.mxu0 0
      %6392 = vmatpush1.bf16.msra.mxu0 0
      %6393 = vmatprep.subr.bf16.mxu0 0
      %6394 = vmatpush1.bf16.msra.mxu0 0
      %6395 = vmatprep.subr.bf16.mxu0 0
      %6396 = vmatpush1.bf16.msra.mxu0 0
      %6397 = vmatprep.subr.bf16.mxu0 0
      %6398 = vmatpush1.bf16.msra.mxu0 0
      %6399 = vmatprep.subr.bf16.mxu0 0
      %6400 = vmatpush1.bf16.msra.mxu0 0
      %6401 = vmatprep.subr.bf16.mxu0 0
      %6402 = vmatpush1.bf16.msra.mxu0 0
      %6403 = vmatprep.subr.bf16.mxu0 0
      %6404 = vmatpush1.bf16.msra.mxu0 0
      %6405 = vmatprep.mubr.bf16.mxu0 0
      %6406 = vmatmul.mubr.bf16.gmra.mrb[0].mxu0 %v6365
      %v6407 = vpop.f32.mrb[0].mxu0
      %v6408 = vadd.f32 0.0, %v6407
      %v6409 = vpop.f32.mrb[0].mxu0
      %v6410 = vpop.f32.mrb[0].mxu0
      %v6411 = vadd.f32 0.0, %v6410
      %v6412 = vpop.f32.mrb[0].mxu0
      %6413 = vmatprep.mubr.bf16.mxu0 0
      %6414 = vmatmul.mubr.bf16.gmra.mrb[0].mxu0 %v6368
      %v6415 = vpop.f32.mrb[0].mxu0
      %v6416 = vadd.f32 0.0, %v6415
      %v6417 = vpop.f32.mrb[0].mxu0
      %v6418 = vpop.f32.mrb[0].mxu0
      %v6419 = vpop.f32.mrb[0].mxu0
      %6420 = vdwg.mxu0
      %6421 = vrot.lane.b32.xlu0 %v5145, 56
      %v6422 = vpop.permute.xlu0 %6421
      %6423 = vrot.lane.b32.xlu0 %v5146, 56
      %v6424 = vpop.permute.xlu0 %6423
      %v6427 = vsel %vm1485, %v6233, 0
      %v6430 = vsel %vm1485, %v6234, 0
      %v6433 = vsel %vm1637, %v6424, 0
      %6435 = vmatprep.subr.bf16.mxu0 0
      %6436 = vmatpush1.bf16.msra.mxu0 %v6422
      %6437 = vmatprep.subr.bf16.mxu0 0
      %6438 = vmatpush1.bf16.msra.mxu0 %v6433
      %6439 = vmatprep.subr.bf16.mxu0 0
      %6440 = vmatpush1.bf16.msra.mxu0 0
      %6441 = vmatprep.subr.bf16.mxu0 0
      %6442 = vmatpush1.bf16.msra.mxu0 0
      %6443 = vmatprep.subr.bf16.mxu0 0
      %6444 = vmatpush1.bf16.msra.mxu0 0
      %6445 = vmatprep.subr.bf16.mxu0 0
      %6446 = vmatpush1.bf16.msra.mxu0 0
      %6447 = vmatprep.subr.bf16.mxu0 0
      %6448 = vmatpush1.bf16.msra.mxu0 0
      %6449 = vmatprep.subr.bf16.mxu0 0
      %6450 = vmatpush1.bf16.msra.mxu0 0
      %6451 = vmatprep.subr.bf16.mxu0 0
      %6452 = vmatpush1.bf16.msra.mxu0 0
      %6453 = vmatprep.subr.bf16.mxu0 0
      %6454 = vmatpush1.bf16.msra.mxu0 0
      %6455 = vmatprep.subr.bf16.mxu0 0
      %6456 = vmatpush1.bf16.msra.mxu0 0
      %6457 = vmatprep.subr.bf16.mxu0 0
      %6458 = vmatpush1.bf16.msra.mxu0 0
      %6459 = vmatprep.subr.bf16.mxu0 0
      %6460 = vmatpush1.bf16.msra.mxu0 0
      %6461 = vmatprep.subr.bf16.mxu0 0
      %6462 = vmatpush1.bf16.msra.mxu0 0
      %6463 = vmatprep.subr.bf16.mxu0 0
      %6464 = vmatpush1.bf16.msra.mxu0 0
      %6465 = vmatprep.subr.bf16.mxu0 0
      %6466 = vmatpush1.bf16.msra.mxu0 0
      %6467 = vmatprep.mubr.bf16.mxu0 0
      %6468 = vmatmul.mubr.bf16.gmra.mrb[0].mxu0 %v6427
      %v6469 = vpop.f32.mrb[0].mxu0
      %v6470 = vadd.f32 0.0, %v6469
      %v6471 = vpop.f32.mrb[0].mxu0
      %v6472 = vpop.f32.mrb[0].mxu0
      %v6473 = vadd.f32 0.0, %v6472
      %v6474 = vpop.f32.mrb[0].mxu0
      %6475 = vmatprep.mubr.bf16.mxu0 0
      %6476 = vmatmul.mubr.bf16.gmra.mrb[0].mxu0 %v6430
      %v6477 = vpop.f32.mrb[0].mxu0
      %v6478 = vadd.f32 0.0, %v6477
      %v6479 = vpop.f32.mrb[0].mxu0
      %v6480 = vpop.f32.mrb[0].mxu0
      %v6481 = vpop.f32.mrb[0].mxu0
      %6482 = vdwg.mxu0
      %6483 = vrot.lane.b32.xlu0 %v5139, 112
      %v6484 = vpop.permute.xlu0 %6483
      %6485 = vrot.lane.b32.xlu0 %v5140, 112
      %v6486 = vpop.permute.xlu0 %6485
      %6487 = vrot.lane.b32.xlu0 %v5139, 80
      %v6488 = vpop.permute.xlu0 %6487
      %6489 = vrot.lane.b32.xlu0 %v5140, 80
      %v6490 = vpop.permute.xlu0 %6489
      %v6492 = vsel %vm1214, %v6484, 0
      %v6495 = vsel %vm1214, %v6486, 0
      %v6498 = vsel %vm1214, %v6488, 0
      %v6501 = vsel %vm1214, %v6490, 0
      %6503 = vmatprep.subr.bf16.mxu0 0
      %6504 = vmatpush1.bf16.xpose.msra.mxu0 %v6498
      %6505 = vmatprep.subr.bf16.mxu0 0
      %6506 = vmatpush1.bf16.xpose.msra.mxu0 %v6501
      %6507 = vmatprep.subr.bf16.mxu0 0
      %6508 = vmatpush1.bf16.xpose.msra.mxu0 0
      %6509 = vmatprep.subr.bf16.mxu0 0
      %6510 = vmatpush1.bf16.xpose.msra.mxu0 0
      %6511 = vmatprep.subr.bf16.mxu0 0
      %6512 = vmatpush1.bf16.xpose.msra.mxu0 0
      %6513 = vmatprep.subr.bf16.mxu0 0
      %6514 = vmatpush1.bf16.xpose.msra.mxu0 0
      %6515 = vmatprep.subr.bf16.mxu0 0
      %6516 = vmatpush1.bf16.xpose.msra.mxu0 0
      %6517 = vmatprep.subr.bf16.mxu0 0
      %6518 = vmatpush1.bf16.xpose.msra.mxu0 0
      %6519 = vmatprep.subr.bf16.mxu0 0
      %6520 = vmatpush1.bf16.xpose.msra.mxu0 0
      %6521 = vmatprep.subr.bf16.mxu0 0
      %6522 = vmatpush1.bf16.xpose.msra.mxu0 0
      %6523 = vmatprep.subr.bf16.mxu0 0
      %6524 = vmatpush1.bf16.xpose.msra.mxu0 0
      %6525 = vmatprep.subr.bf16.mxu0 0
      %6526 = vmatpush1.bf16.xpose.msra.mxu0 0
      %6527 = vmatprep.subr.bf16.mxu0 0
      %6528 = vmatpush1.bf16.xpose.msra.mxu0 0
      %6529 = vmatprep.subr.bf16.mxu0 0
      %6530 = vmatpush1.bf16.xpose.msra.mxu0 0
      %6531 = vmatprep.subr.bf16.mxu0 0
      %6532 = vmatpush1.bf16.xpose.msra.mxu0 0
      %6533 = vmatprep.subr.bf16.mxu0 0
      %6534 = vmatpush1.bf16.xpose.msra.mxu0 0
      %6535 = vmatprep.mubr.bf16.mxu0 0
      %6536 = vmatmul.mubr.bf16.gmra.mrb[0].mxu0 %v6492
      %v6537 = vpop.f32.mrb[0].mxu0
      %v6538 = vadd.f32 0.0, %v6537
      %v6539 = vpop.f32.mrb[0].mxu0
      %v6540 = vpop.f32.mrb[0].mxu0
      %v6541 = vadd.f32 0.0, %v6540
      %v6542 = vpop.f32.mrb[0].mxu0
      %6543 = vmatprep.mubr.bf16.mxu0 0
      %6544 = vmatmul.mubr.bf16.gmra.mrb[0].mxu0 %v6495
      %v6545 = vpop.f32.mrb[0].mxu0
      %v6546 = vadd.f32 0.0, %v6545
      %v6547 = vpop.f32.mrb[0].mxu0
      %v6548 = vpop.f32.mrb[0].mxu0
      %v6549 = vpop.f32.mrb[0].mxu0
      %6550 = vdwg.mxu0
      %6551 = vrot.lane.b32.xlu0 %v5141, 112
      %v6552 = vpop.permute.xlu0 %6551
      %6553 = vrot.lane.b32.xlu0 %v5142, 112
      %v6554 = vpop.permute.xlu0 %6553
      %6555 = vrot.lane.b32.xlu0 %v5141, 80
      %v6556 = vpop.permute.xlu0 %6555
      %6557 = vrot.lane.b32.xlu0 %v5142, 80
      %v6558 = vpop.permute.xlu0 %6557
      %v6560 = vsel %vm1214, %v6552, 0
      %v6563 = vsel %vm1214, %v6554, 0
      %v6566 = vsel %vm1214, %v6556, 0
      %v6569 = vsel %vm1214, %v6558, 0
      %6571 = vmatprep.subr.bf16.mxu0 0
      %6572 = vmatpush1.bf16.xpose.msra.mxu0 %v6566
      %6573 = vmatprep.subr.bf16.mxu0 0
      %6574 = vmatpush1.bf16.xpose.msra.mxu0 %v6569
      %6575 = vmatprep.subr.bf16.mxu0 0
      %6576 = vmatpush1.bf16.xpose.msra.mxu0 0
      %6577 = vmatprep.subr.bf16.mxu0 0
      %6578 = vmatpush1.bf16.xpose.msra.mxu0 0
      %6579 = vmatprep.subr.bf16.mxu0 0
      %6580 = vmatpush1.bf16.xpose.msra.mxu0 0
      %6581 = vmatprep.subr.bf16.mxu0 0
      %6582 = vmatpush1.bf16.xpose.msra.mxu0 0
      %6583 = vmatprep.subr.bf16.mxu0 0
      %6584 = vmatpush1.bf16.xpose.msra.mxu0 0
      %6585 = vmatprep.subr.bf16.mxu0 0
      %6586 = vmatpush1.bf16.xpose.msra.mxu0 0
      %6587 = vmatprep.subr.bf16.mxu0 0
      %6588 = vmatpush1.bf16.xpose.msra.mxu0 0
      %6589 = vmatprep.subr.bf16.mxu0 0
      %6590 = vmatpush1.bf16.xpose.msra.mxu0 0
      %6591 = vmatprep.subr.bf16.mxu0 0
      %6592 = vmatpush1.bf16.xpose.msra.mxu0 0
      %6593 = vmatprep.subr.bf16.mxu0 0
      %6594 = vmatpush1.bf16.xpose.msra.mxu0 0
      %6595 = vmatprep.subr.bf16.mxu0 0
      %6596 = vmatpush1.bf16.xpose.msra.mxu0 0
      %6597 = vmatprep.subr.bf16.mxu0 0
      %6598 = vmatpush1.bf16.xpose.msra.mxu0 0
      %6599 = vmatprep.subr.bf16.mxu0 0
      %6600 = vmatpush1.bf16.xpose.msra.mxu0 0
      %6601 = vmatprep.subr.bf16.mxu0 0
      %6602 = vmatpush1.bf16.xpose.msra.mxu0 0
      %6603 = vmatprep.mubr.bf16.mxu0 0
      %6604 = vmatmul.mubr.bf16.gmra.mrb[0].mxu0 %v6560
      %v6605 = vpop.f32.mrb[0].mxu0
      %v6606 = vadd.f32 0.0, %v6605
      %v6607 = vpop.f32.mrb[0].mxu0
      %v6608 = vpop.f32.mrb[0].mxu0
      %v6609 = vadd.f32 0.0, %v6608
      %v6610 = vpop.f32.mrb[0].mxu0
      %6611 = vmatprep.mubr.bf16.mxu0 0
      %6612 = vmatmul.mubr.bf16.gmra.mrb[0].mxu0 %v6563
      %v6613 = vpop.f32.mrb[0].mxu0
      %v6614 = vadd.f32 0.0, %v6613
      %v6615 = vpop.f32.mrb[0].mxu0
      %v6616 = vpop.f32.mrb[0].mxu0
      %v6617 = vpop.f32.mrb[0].mxu0
      %6618 = vdwg.mxu0
      %6619 = vrot.lane.b32.xlu0 %v5143, 112
      %v6620 = vpop.permute.xlu0 %6619
      %6621 = vrot.lane.b32.xlu0 %v5144, 112
      %v6622 = vpop.permute.xlu0 %6621
      %6623 = vrot.lane.b32.xlu0 %v5143, 80
      %v6624 = vpop.permute.xlu0 %6623
      %6625 = vrot.lane.b32.xlu0 %v5144, 80
      %v6626 = vpop.permute.xlu0 %6625
      %v6628 = vsel %vm1214, %v6620, 0
      %v6631 = vsel %vm1214, %v6622, 0
      %v6634 = vsel %vm1214, %v6624, 0
      %v6637 = vsel %vm1214, %v6626, 0
      %6639 = vmatprep.subr.bf16.mxu0 0
      %6640 = vmatpush1.bf16.xpose.msra.mxu0 %v6634
      %6641 = vmatprep.subr.bf16.mxu0 0
      %6642 = vmatpush1.bf16.xpose.msra.mxu0 %v6637
      %6643 = vmatprep.subr.bf16.mxu0 0
      %6644 = vmatpush1.bf16.xpose.msra.mxu0 0
      %6645 = vmatprep.subr.bf16.mxu0 0
      %6646 = vmatpush1.bf16.xpose.msra.mxu0 0
      %6647 = vmatprep.subr.bf16.mxu0 0
      %6648 = vmatpush1.bf16.xpose.msra.mxu0 0
      %6649 = vmatprep.subr.bf16.mxu0 0
      %6650 = vmatpush1.bf16.xpose.msra.mxu0 0
      %6651 = vmatprep.subr.bf16.mxu0 0
      %6652 = vmatpush1.bf16.xpose.msra.mxu0 0
      %6653 = vmatprep.subr.bf16.mxu0 0
      %6654 = vmatpush1.bf16.xpose.msra.mxu0 0
      %6655 = vmatprep.subr.bf16.mxu0 0
      %6656 = vmatpush1.bf16.xpose.msra.mxu0 0
      %6657 = vmatprep.subr.bf16.mxu0 0
      %6658 = vmatpush1.bf16.xpose.msra.mxu0 0
      %6659 = vmatprep.subr.bf16.mxu0 0
      %6660 = vmatpush1.bf16.xpose.msra.mxu0 0
      %6661 = vmatprep.subr.bf16.mxu0 0
      %6662 = vmatpush1.bf16.xpose.msra.mxu0 0
      %6663 = vmatprep.subr.bf16.mxu0 0
      %6664 = vmatpush1.bf16.xpose.msra.mxu0 0
      %6665 = vmatprep.subr.bf16.mxu0 0
      %6666 = vmatpush1.bf16.xpose.msra.mxu0 0
      %6667 = vmatprep.subr.bf16.mxu0 0
      %6668 = vmatpush1.bf16.xpose.msra.mxu0 0
      %6669 = vmatprep.subr.bf16.mxu0 0
      %6670 = vmatpush1.bf16.xpose.msra.mxu0 0
      %6671 = vmatprep.mubr.bf16.mxu0 0
      %6672 = vmatmul.mubr.bf16.gmra.mrb[0].mxu0 %v6628
      %v6673 = vpop.f32.mrb[0].mxu0
      %v6674 = vadd.f32 0.0, %v6673
      %v6675 = vpop.f32.mrb[0].mxu0
      %v6676 = vpop.f32.mrb[0].mxu0
      %v6677 = vadd.f32 0.0, %v6676
      %v6678 = vpop.f32.mrb[0].mxu0
      %6679 = vmatprep.mubr.bf16.mxu0 0
      %6680 = vmatmul.mubr.bf16.gmra.mrb[0].mxu0 %v6631
      %v6681 = vpop.f32.mrb[0].mxu0
      %v6682 = vadd.f32 0.0, %v6681
      %v6683 = vpop.f32.mrb[0].mxu0
      %v6684 = vpop.f32.mrb[0].mxu0
      %v6685 = vpop.f32.mrb[0].mxu0
      %6686 = vdwg.mxu0
      %6687 = vrot.lane.b32.xlu0 %v5145, 112
      %v6688 = vpop.permute.xlu0 %6687
      %6689 = vrot.lane.b32.xlu0 %v5146, 112
      %v6690 = vpop.permute.xlu0 %6689
      %6691 = vrot.lane.b32.xlu0 %v5145, 80
      %v6692 = vpop.permute.xlu0 %6691
      %6693 = vrot.lane.b32.xlu0 %v5146, 80
      %v6694 = vpop.permute.xlu0 %6693
      %v6696 = vsel %vm1214, %v6688, 0
      %v6699 = vsel %vm1214, %v6690, 0
      %v6702 = vsel %vm1214, %v6692, 0
      %v6705 = vsel %vm1214, %v6694, 0
      %6707 = vmatprep.subr.bf16.mxu0 0
      %6708 = vmatpush1.bf16.xpose.msra.mxu0 %v6702
      %6709 = vmatprep.subr.bf16.mxu0 0
      %6710 = vmatpush1.bf16.xpose.msra.mxu0 %v6705
      %6711 = vmatprep.subr.bf16.mxu0 0
      %6712 = vmatpush1.bf16.xpose.msra.mxu0 0
      %6713 = vmatprep.subr.bf16.mxu0 0
      %6714 = vmatpush1.bf16.xpose.msra.mxu0 0
      %6715 = vmatprep.subr.bf16.mxu0 0
      %6716 = vmatpush1.bf16.xpose.msra.mxu0 0
      %6717 = vmatprep.subr.bf16.mxu0 0
      %6718 = vmatpush1.bf16.xpose.msra.mxu0 0
      %6719 = vmatprep.subr.bf16.mxu0 0
      %6720 = vmatpush1.bf16.xpose.msra.mxu0 0
      %6721 = vmatprep.subr.bf16.mxu0 0
      %6722 = vmatpush1.bf16.xpose.msra.mxu0 0
      %6723 = vmatprep.subr.bf16.mxu0 0
      %6724 = vmatpush1.bf16.xpose.msra.mxu0 0
      %6725 = vmatprep.subr.bf16.mxu0 0
      %6726 = vmatpush1.bf16.xpose.msra.mxu0 0
      %6727 = vmatprep.subr.bf16.mxu0 0
      %6728 = vmatpush1.bf16.xpose.msra.mxu0 0
      %6729 = vmatprep.subr.bf16.mxu0 0
      %6730 = vmatpush1.bf16.xpose.msra.mxu0 0
      %6731 = vmatprep.subr.bf16.mxu0 0
      %6732 = vmatpush1.bf16.xpose.msra.mxu0 0
      %6733 = vmatprep.subr.bf16.mxu0 0
      %6734 = vmatpush1.bf16.xpose.msra.mxu0 0
      %6735 = vmatprep.subr.bf16.mxu0 0
      %6736 = vmatpush1.bf16.xpose.msra.mxu0 0
      %6737 = vmatprep.subr.bf16.mxu0 0
      %6738 = vmatpush1.bf16.xpose.msra.mxu0 0
      %6739 = vmatprep.mubr.bf16.mxu0 0
      %6740 = vmatmul.mubr.bf16.gmra.mrb[0].mxu0 %v6696
      %v6741 = vpop.f32.mrb[0].mxu0
      %v6742 = vadd.f32 0.0, %v6741
      %v6743 = vpop.f32.mrb[0].mxu0
      %v6744 = vpop.f32.mrb[0].mxu0
      %v6745 = vadd.f32 0.0, %v6744
      %v6746 = vpop.f32.mrb[0].mxu0
      %6747 = vmatprep.mubr.bf16.mxu0 0
      %6748 = vmatmul.mubr.bf16.gmra.mrb[0].mxu0 %v6699
      %v6749 = vpop.f32.mrb[0].mxu0
      %v6750 = vadd.f32 0.0, %v6749
      %v6751 = vpop.f32.mrb[0].mxu0
      %v6752 = vpop.f32.mrb[0].mxu0
      %v6753 = vpop.f32.mrb[0].mxu0
      %6754 = vdwg.mxu0
      %v6755 = vsel %vm882, %v6538, -1e+30
      %v6756 = vsel %vm882, %v6541, -1e+30
      %v6757 = vsel %vm882, %v6546, -1e+30
      %v6758 = vsel %vm882, %v6606, -1e+30
      %v6759 = vsel %vm882, %v6609, -1e+30
      %v6760 = vsel %vm882, %v6614, -1e+30
      %v6761 = vsel %vm882, %v6674, -1e+30
      %v6762 = vsel %vm882, %v6677, -1e+30
      %v6763 = vsel %vm882, %v6682, -1e+30
      %v6764 = vsel %vm882, %v6742, -1e+30
      %v6765 = vsel %vm882, %v6745, -1e+30
      %v6766 = vsel %vm882, %v6750, -1e+30
      %v6767 = vsel %vm1485, %v6755, -inf
      %6768 = vmax.xlane.f32.xlu0 %v6767
      %v6769 = vpop.xlane.xlu0 %6768
      %v6770 = vsel %vm1485, %v6756, -inf
      %6771 = vmax.xlane.f32.xlu0 %v6770
      %v6772 = vpop.xlane.xlu0 %6771
      %v6773 = vsel %vm1485, %v6757, -inf
      %6774 = vmax.xlane.f32.xlu0 %v6773
      %v6775 = vpop.xlane.xlu0 %6774
      %v6776 = vsel %vm1485, %v6758, -inf
      %6777 = vmax.xlane.f32.xlu0 %v6776
      %v6778 = vpop.xlane.xlu0 %6777
      %v6779 = vsel %vm1485, %v6759, -inf
      %6780 = vmax.xlane.f32.xlu0 %v6779
      %v6781 = vpop.xlane.xlu0 %6780
      %v6782 = vsel %vm1485, %v6760, -inf
      %6783 = vmax.xlane.f32.xlu0 %v6782
      %v6784 = vpop.xlane.xlu0 %6783
      %v6785 = vsel %vm1485, %v6761, -inf
      %6786 = vmax.xlane.f32.xlu0 %v6785
      %v6787 = vpop.xlane.xlu0 %6786
      %v6788 = vsel %vm1485, %v6762, -inf
      %6789 = vmax.xlane.f32.xlu0 %v6788
      %v6790 = vpop.xlane.xlu0 %6789
      %v6791 = vsel %vm1485, %v6763, -inf
      %6792 = vmax.xlane.f32.xlu0 %v6791
      %v6793 = vpop.xlane.xlu0 %6792
      %v6794 = vsel %vm1485, %v6764, -inf
      %6795 = vmax.xlane.f32.xlu0 %v6794
      %v6796 = vpop.xlane.xlu0 %6795
      %v6797 = vsel %vm1485, %v6765, -inf
      %6798 = vmax.xlane.f32.xlu0 %v6797
      %v6799 = vpop.xlane.xlu0 %6798
      %v6800 = vsel %vm1485, %v6766, -inf
      %6801 = vmax.xlane.f32.xlu0 %v6800
      %v6802 = vpop.xlane.xlu0 %6801
      %v6803 = vsub.f32 %v6755, %v6769
      %v6804 = vsub.f32 %v6756, %v6772
      %v6805 = vsub.f32 %v6757, %v6775
      %v6806 = vsub.f32 %v6758, %v6778
      %v6807 = vsub.f32 %v6759, %v6781
      %v6808 = vsub.f32 %v6760, %v6784
      %v6809 = vsub.f32 %v6761, %v6787
      %v6810 = vsub.f32 %v6762, %v6790
      %v6811 = vsub.f32 %v6763, %v6793
      %v6812 = vsub.f32 %v6764, %v6796
      %v6813 = vsub.f32 %v6765, %v6799
      %v6814 = vsub.f32 %v6766, %v6802
      %v6815 = vmul.f32 %v6803, 1.442695
      %v6816 = vpow.pop %v6815
      %v6817 = vmul.f32 %v6804, 1.442695
      %v6818 = vpow.pop %v6817
      %v6819 = vmul.f32 %v6805, 1.442695
      %v6820 = vpow.pop %v6819
      %v6821 = vmul.f32 %v6806, 1.442695
      %v6822 = vpow.pop %v6821
      %v6823 = vmul.f32 %v6807, 1.442695
      %v6824 = vpow.pop %v6823
      %v6825 = vmul.f32 %v6808, 1.442695
      %v6826 = vpow.pop %v6825
      %v6827 = vmul.f32 %v6809, 1.442695
      %v6828 = vpow.pop %v6827
      %v6829 = vmul.f32 %v6810, 1.442695
      %v6830 = vpow.pop %v6829
      %v6831 = vmul.f32 %v6811, 1.442695
      %v6832 = vpow.pop %v6831
      %v6833 = vmul.f32 %v6812, 1.442695
      %v6834 = vpow.pop %v6833
      %v6835 = vmul.f32 %v6813, 1.442695
      %v6836 = vpow.pop %v6835
      %v6837 = vmul.f32 %v6814, 1.442695
      %v6838 = vpow.pop %v6837
      %v6839 = vsel %vm1485, %v6816, 0.0
      %6840 = vadd.xlane.f32.xlu0 %v6839
      %v6841 = vpop.xlane.xlu0 %6840
      %v6842 = vsel %vm1485, %v6818, 0.0
      %6843 = vadd.xlane.f32.xlu0 %v6842
      %v6844 = vpop.xlane.xlu0 %6843
      %v6845 = vsel %vm1485, %v6820, 0.0
      %6846 = vadd.xlane.f32.xlu0 %v6845
      %v6847 = vpop.xlane.xlu0 %6846
      %v6848 = vsel %vm1485, %v6822, 0.0
      %6849 = vadd.xlane.f32.xlu0 %v6848
      %v6850 = vpop.xlane.xlu0 %6849
      %v6851 = vsel %vm1485, %v6824, 0.0
      %6852 = vadd.xlane.f32.xlu0 %v6851
      %v6853 = vpop.xlane.xlu0 %6852
      %v6854 = vsel %vm1485, %v6826, 0.0
      %6855 = vadd.xlane.f32.xlu0 %v6854
      %v6856 = vpop.xlane.xlu0 %6855
      %v6857 = vsel %vm1485, %v6828, 0.0
      %6858 = vadd.xlane.f32.xlu0 %v6857
      %v6859 = vpop.xlane.xlu0 %6858
      %v6860 = vsel %vm1485, %v6830, 0.0
      %6861 = vadd.xlane.f32.xlu0 %v6860
      %v6862 = vpop.xlane.xlu0 %6861
      %v6863 = vsel %vm1485, %v6832, 0.0
      %6864 = vadd.xlane.f32.xlu0 %v6863
      %v6865 = vpop.xlane.xlu0 %6864
      %v6866 = vsel %vm1485, %v6834, 0.0
      %6867 = vadd.xlane.f32.xlu0 %v6866
      %v6868 = vpop.xlane.xlu0 %6867
      %v6869 = vsel %vm1485, %v6836, 0.0
      %6870 = vadd.xlane.f32.xlu0 %v6869
      %v6871 = vpop.xlane.xlu0 %6870
      %v6872 = vsel %vm1485, %v6838, 0.0
      %6873 = vadd.xlane.f32.xlu0 %v6872
      %v6874 = vpop.xlane.xlu0 %6873
      %v6875 = vrcp.pop %v6841
      %v6876 = vrcp.pop %v6844
      %v6877 = vrcp.pop %v6847
      %v6878 = vrcp.pop %v6850
      %v6879 = vrcp.pop %v6853
      %v6880 = vrcp.pop %v6856
      %v6881 = vrcp.pop %v6859
      %v6882 = vrcp.pop %v6862
      %v6883 = vrcp.pop %v6865
      %v6884 = vrcp.pop %v6868
      %v6885 = vrcp.pop %v6871
      %v6886 = vrcp.pop %v6874
      %v6887 = vmul.f32 %v6816, %v6875
      %v6888 = vmul.f32 %v6818, %v6876
      %v6889 = vmul.f32 %v6820, %v6877
      %v6890 = vmul.f32 %v6822, %v6878
      %v6891 = vmul.f32 %v6824, %v6879
      %v6892 = vmul.f32 %v6826, %v6880
      %v6893 = vmul.f32 %v6828, %v6881
      %v6894 = vmul.f32 %v6830, %v6882
      %v6895 = vmul.f32 %v6832, %v6883
      %v6896 = vmul.f32 %v6834, %v6884
      %v6897 = vmul.f32 %v6836, %v6885
      %v6898 = vmul.f32 %v6838, %v6886
      %v6899 = vpack.c.bf16 %v6888, %v6887
      %v6900 = vpack.c.bf16 %v6889, %v6889
      %v6901 = vpack.c.bf16 %v6891, %v6890
      %v6902 = vpack.c.bf16 %v6892, %v6892
      %v6903 = vpack.c.bf16 %v6894, %v6893
      %v6904 = vpack.c.bf16 %v6895, %v6895
      %v6905 = vpack.c.bf16 %v6897, %v6896
      %v6906 = vpack.c.bf16 %v6898, %v6898
      %6907 = vrot.lane.b32.xlu0 %v5139, 48
      %v6908 = vpop.permute.xlu0 %6907
      %6909 = vrot.lane.b32.xlu0 %v5140, 48
      %v6910 = vpop.permute.xlu0 %6909
      %v6913 = vsel %vm1485, %v6899, 0
      %v6916 = vsel %vm1485, %v6900, 0
      %v6919 = vsel %vm1637, %v6910, 0
      %6921 = vmatprep.subr.bf16.mxu0 0
      %6922 = vmatpush1.bf16.msra.mxu0 %v6908
      %6923 = vmatprep.subr.bf16.mxu0 0
      %6924 = vmatpush1.bf16.msra.mxu0 %v6919
      %6925 = vmatprep.subr.bf16.mxu0 0
      %6926 = vmatpush1.bf16.msra.mxu0 0
      %6927 = vmatprep.subr.bf16.mxu0 0
      %6928 = vmatpush1.bf16.msra.mxu0 0
      %6929 = vmatprep.subr.bf16.mxu0 0
      %6930 = vmatpush1.bf16.msra.mxu0 0
      %6931 = vmatprep.subr.bf16.mxu0 0
      %6932 = vmatpush1.bf16.msra.mxu0 0
      %6933 = vmatprep.subr.bf16.mxu0 0
      %6934 = vmatpush1.bf16.msra.mxu0 0
      %6935 = vmatprep.subr.bf16.mxu0 0
      %6936 = vmatpush1.bf16.msra.mxu0 0
      %6937 = vmatprep.subr.bf16.mxu0 0
      %6938 = vmatpush1.bf16.msra.mxu0 0
      %6939 = vmatprep.subr.bf16.mxu0 0
      %6940 = vmatpush1.bf16.msra.mxu0 0
      %6941 = vmatprep.subr.bf16.mxu0 0
      %6942 = vmatpush1.bf16.msra.mxu0 0
      %6943 = vmatprep.subr.bf16.mxu0 0
      %6944 = vmatpush1.bf16.msra.mxu0 0
      %6945 = vmatprep.subr.bf16.mxu0 0
      %6946 = vmatpush1.bf16.msra.mxu0 0
      %6947 = vmatprep.subr.bf16.mxu0 0
      %6948 = vmatpush1.bf16.msra.mxu0 0
      %6949 = vmatprep.subr.bf16.mxu0 0
      %6950 = vmatpush1.bf16.msra.mxu0 0
      %6951 = vmatprep.subr.bf16.mxu0 0
      %6952 = vmatpush1.bf16.msra.mxu0 0
      %6953 = vmatprep.mubr.bf16.mxu0 0
      %6954 = vmatmul.mubr.bf16.gmra.mrb[0].mxu0 %v6913
      %v6955 = vpop.f32.mrb[0].mxu0
      %v6956 = vadd.f32 0.0, %v6955
      %v6957 = vpop.f32.mrb[0].mxu0
      %v6958 = vpop.f32.mrb[0].mxu0
      %v6959 = vadd.f32 0.0, %v6958
      %v6960 = vpop.f32.mrb[0].mxu0
      %6961 = vmatprep.mubr.bf16.mxu0 0
      %6962 = vmatmul.mubr.bf16.gmra.mrb[0].mxu0 %v6916
      %v6963 = vpop.f32.mrb[0].mxu0
      %v6964 = vadd.f32 0.0, %v6963
      %v6965 = vpop.f32.mrb[0].mxu0
      %v6966 = vpop.f32.mrb[0].mxu0
      %v6967 = vpop.f32.mrb[0].mxu0
      %6968 = vdwg.mxu0
      %6969 = vrot.lane.b32.xlu0 %v5141, 48
      %v6970 = vpop.permute.xlu0 %6969
      %6971 = vrot.lane.b32.xlu0 %v5142, 48
      %v6972 = vpop.permute.xlu0 %6971
      %v6975 = vsel %vm1485, %v6901, 0
      %v6978 = vsel %vm1485, %v6902, 0
      %v6981 = vsel %vm1637, %v6972, 0
      %6983 = vmatprep.subr.bf16.mxu0 0
      %6984 = vmatpush1.bf16.msra.mxu0 %v6970
      %6985 = vmatprep.subr.bf16.mxu0 0
      %6986 = vmatpush1.bf16.msra.mxu0 %v6981
      %6987 = vmatprep.subr.bf16.mxu0 0
      %6988 = vmatpush1.bf16.msra.mxu0 0
      %6989 = vmatprep.subr.bf16.mxu0 0
      %6990 = vmatpush1.bf16.msra.mxu0 0
      %6991 = vmatprep.subr.bf16.mxu0 0
      %6992 = vmatpush1.bf16.msra.mxu0 0
      %6993 = vmatprep.subr.bf16.mxu0 0
      %6994 = vmatpush1.bf16.msra.mxu0 0
      %6995 = vmatprep.subr.bf16.mxu0 0
      %6996 = vmatpush1.bf16.msra.mxu0 0
      %6997 = vmatprep.subr.bf16.mxu0 0
      %6998 = vmatpush1.bf16.msra.mxu0 0
      %6999 = vmatprep.subr.bf16.mxu0 0
      %7000 = vmatpush1.bf16.msra.mxu0 0
      %7001 = vmatprep.subr.bf16.mxu0 0
      %7002 = vmatpush1.bf16.msra.mxu0 0
      %7003 = vmatprep.subr.bf16.mxu0 0
      %7004 = vmatpush1.bf16.msra.mxu0 0
      %7005 = vmatprep.subr.bf16.mxu0 0
      %7006 = vmatpush1.bf16.msra.mxu0 0
      %7007 = vmatprep.subr.bf16.mxu0 0
      %7008 = vmatpush1.bf16.msra.mxu0 0
      %7009 = vmatprep.subr.bf16.mxu0 0
      %7010 = vmatpush1.bf16.msra.mxu0 0
      %7011 = vmatprep.subr.bf16.mxu0 0
      %7012 = vmatpush1.bf16.msra.mxu0 0
      %7013 = vmatprep.subr.bf16.mxu0 0
      %7014 = vmatpush1.bf16.msra.mxu0 0
      %7015 = vmatprep.mubr.bf16.mxu0 0
      %7016 = vmatmul.mubr.bf16.gmra.mrb[0].mxu0 %v6975
      %v7017 = vpop.f32.mrb[0].mxu0
      %v7018 = vadd.f32 0.0, %v7017
      %v7019 = vpop.f32.mrb[0].mxu0
      %v7020 = vpop.f32.mrb[0].mxu0
      %v7021 = vadd.f32 0.0, %v7020
      %v7022 = vpop.f32.mrb[0].mxu0
      %7023 = vmatprep.mubr.bf16.mxu0 0
      %7024 = vmatmul.mubr.bf16.gmra.mrb[0].mxu0 %v6978
      %v7025 = vpop.f32.mrb[0].mxu0
      %v7026 = vadd.f32 0.0, %v7025
      %v7027 = vpop.f32.mrb[0].mxu0
      %v7028 = vpop.f32.mrb[0].mxu0
      %v7029 = vpop.f32.mrb[0].mxu0
      %7030 = vdwg.mxu0
      %7031 = vrot.lane.b32.xlu0 %v5143, 48
      %v7032 = vpop.permute.xlu0 %7031
      %7033 = vrot.lane.b32.xlu0 %v5144, 48
      %v7034 = vpop.permute.xlu0 %7033
      %v7037 = vsel %vm1485, %v6903, 0
      %v7040 = vsel %vm1485, %v6904, 0
      %v7043 = vsel %vm1637, %v7034, 0
      %7045 = vmatprep.subr.bf16.mxu0 0
      %7046 = vmatpush1.bf16.msra.mxu0 %v7032
      %7047 = vmatprep.subr.bf16.mxu0 0
      %7048 = vmatpush1.bf16.msra.mxu0 %v7043
      %7049 = vmatprep.subr.bf16.mxu0 0
      %7050 = vmatpush1.bf16.msra.mxu0 0
      %7051 = vmatprep.subr.bf16.mxu0 0
      %7052 = vmatpush1.bf16.msra.mxu0 0
      %7053 = vmatprep.subr.bf16.mxu0 0
      %7054 = vmatpush1.bf16.msra.mxu0 0
      %7055 = vmatprep.subr.bf16.mxu0 0
      %7056 = vmatpush1.bf16.msra.mxu0 0
      %7057 = vmatprep.subr.bf16.mxu0 0
      %7058 = vmatpush1.bf16.msra.mxu0 0
      %7059 = vmatprep.subr.bf16.mxu0 0
      %7060 = vmatpush1.bf16.msra.mxu0 0
      %7061 = vmatprep.subr.bf16.mxu0 0
      %7062 = vmatpush1.bf16.msra.mxu0 0
      %7063 = vmatprep.subr.bf16.mxu0 0
      %7064 = vmatpush1.bf16.msra.mxu0 0
      %7065 = vmatprep.subr.bf16.mxu0 0
      %7066 = vmatpush1.bf16.msra.mxu0 0
      %7067 = vmatprep.subr.bf16.mxu0 0
      %7068 = vmatpush1.bf16.msra.mxu0 0
      %7069 = vmatprep.subr.bf16.mxu0 0
      %7070 = vmatpush1.bf16.msra.mxu0 0
      %7071 = vmatprep.subr.bf16.mxu0 0
      %7072 = vmatpush1.bf16.msra.mxu0 0
      %7073 = vmatprep.subr.bf16.mxu0 0
      %7074 = vmatpush1.bf16.msra.mxu0 0
      %7075 = vmatprep.subr.bf16.mxu0 0
      %7076 = vmatpush1.bf16.msra.mxu0 0
      %7077 = vmatprep.mubr.bf16.mxu0 0
      %7078 = vmatmul.mubr.bf16.gmra.mrb[0].mxu0 %v7037
      %v7079 = vpop.f32.mrb[0].mxu0
      %v7080 = vadd.f32 0.0, %v7079
      %v7081 = vpop.f32.mrb[0].mxu0
      %v7082 = vpop.f32.mrb[0].mxu0
      %v7083 = vadd.f32 0.0, %v7082
      %v7084 = vpop.f32.mrb[0].mxu0
      %7085 = vmatprep.mubr.bf16.mxu0 0
      %7086 = vmatmul.mubr.bf16.gmra.mrb[0].mxu0 %v7040
      %v7087 = vpop.f32.mrb[0].mxu0
      %v7088 = vadd.f32 0.0, %v7087
      %v7089 = vpop.f32.mrb[0].mxu0
      %v7090 = vpop.f32.mrb[0].mxu0
      %v7091 = vpop.f32.mrb[0].mxu0
      %7092 = vdwg.mxu0
      %7093 = vrot.lane.b32.xlu0 %v5145, 48
      %v7094 = vpop.permute.xlu0 %7093
      %7095 = vrot.lane.b32.xlu0 %v5146, 48
      %v7096 = vpop.permute.xlu0 %7095
      %v7099 = vsel %vm1485, %v6905, 0
      %v7102 = vsel %vm1485, %v6906, 0
      %v7105 = vsel %vm1637, %v7096, 0
      %7107 = vmatprep.subr.bf16.mxu0 0
      %7108 = vmatpush1.bf16.msra.mxu0 %v7094
      %7109 = vmatprep.subr.bf16.mxu0 0
      %7110 = vmatpush1.bf16.msra.mxu0 %v7105
      %7111 = vmatprep.subr.bf16.mxu0 0
      %7112 = vmatpush1.bf16.msra.mxu0 0
      %7113 = vmatprep.subr.bf16.mxu0 0
      %7114 = vmatpush1.bf16.msra.mxu0 0
      %7115 = vmatprep.subr.bf16.mxu0 0
      %7116 = vmatpush1.bf16.msra.mxu0 0
      %7117 = vmatprep.subr.bf16.mxu0 0
      %7118 = vmatpush1.bf16.msra.mxu0 0
      %7119 = vmatprep.subr.bf16.mxu0 0
      %7120 = vmatpush1.bf16.msra.mxu0 0
      %7121 = vmatprep.subr.bf16.mxu0 0
      %7122 = vmatpush1.bf16.msra.mxu0 0
      %7123 = vmatprep.subr.bf16.mxu0 0
      %7124 = vmatpush1.bf16.msra.mxu0 0
      %7125 = vmatprep.subr.bf16.mxu0 0
      %7126 = vmatpush1.bf16.msra.mxu0 0
      %7127 = vmatprep.subr.bf16.mxu0 0
      %7128 = vmatpush1.bf16.msra.mxu0 0
      %7129 = vmatprep.subr.bf16.mxu0 0
      %7130 = vmatpush1.bf16.msra.mxu0 0
      %7131 = vmatprep.subr.bf16.mxu0 0
      %7132 = vmatpush1.bf16.msra.mxu0 0
      %7133 = vmatprep.subr.bf16.mxu0 0
      %7134 = vmatpush1.bf16.msra.mxu0 0
      %7135 = vmatprep.subr.bf16.mxu0 0
      %7136 = vmatpush1.bf16.msra.mxu0 0
      %7137 = vmatprep.subr.bf16.mxu0 0
      %7138 = vmatpush1.bf16.msra.mxu0 0
      %7139 = vmatprep.mubr.bf16.mxu0 0
      %7140 = vmatmul.mubr.bf16.gmra.mrb[0].mxu0 %v7099
      %v7141 = vpop.f32.mrb[0].mxu0
      %v7142 = vadd.f32 0.0, %v7141
      %v7143 = vpop.f32.mrb[0].mxu0
      %v7144 = vpop.f32.mrb[0].mxu0
      %v7145 = vadd.f32 0.0, %v7144
      %v7146 = vpop.f32.mrb[0].mxu0
      %7147 = vmatprep.mubr.bf16.mxu0 0
      %7148 = vmatmul.mubr.bf16.gmra.mrb[0].mxu0 %v7102
      %v7149 = vpop.f32.mrb[0].mxu0
      %v7150 = vadd.f32 0.0, %v7149
      %v7151 = vpop.f32.mrb[0].mxu0
      %v7152 = vpop.f32.mrb[0].mxu0
      %v7153 = vpop.f32.mrb[0].mxu0
      %7154 = vdwg.mxu0
      %7155 = vrot.lane.b32.xlu0 %v5139, 104
      %v7156 = vpop.permute.xlu0 %7155
      %7157 = vrot.lane.b32.xlu0 %v5140, 104
      %v7158 = vpop.permute.xlu0 %7157
      %7159 = vrot.lane.b32.xlu0 %v5139, 72
      %v7160 = vpop.permute.xlu0 %7159
      %7161 = vrot.lane.b32.xlu0 %v5140, 72
      %v7162 = vpop.permute.xlu0 %7161
      %v7164 = vsel %vm1214, %v7156, 0
      %v7167 = vsel %vm1214, %v7158, 0
      %v7170 = vsel %vm1214, %v7160, 0
      %v7173 = vsel %vm1214, %v7162, 0
      %7175 = vmatprep.subr.bf16.mxu0 0
      %7176 = vmatpush1.bf16.xpose.msra.mxu0 %v7170
      %7177 = vmatprep.subr.bf16.mxu0 0
      %7178 = vmatpush1.bf16.xpose.msra.mxu0 %v7173
      %7179 = vmatprep.subr.bf16.mxu0 0
      %7180 = vmatpush1.bf16.xpose.msra.mxu0 0
      %7181 = vmatprep.subr.bf16.mxu0 0
      %7182 = vmatpush1.bf16.xpose.msra.mxu0 0
      %7183 = vmatprep.subr.bf16.mxu0 0
      %7184 = vmatpush1.bf16.xpose.msra.mxu0 0
      %7185 = vmatprep.subr.bf16.mxu0 0
      %7186 = vmatpush1.bf16.xpose.msra.mxu0 0
      %7187 = vmatprep.subr.bf16.mxu0 0
      %7188 = vmatpush1.bf16.xpose.msra.mxu0 0
      %7189 = vmatprep.subr.bf16.mxu0 0
      %7190 = vmatpush1.bf16.xpose.msra.mxu0 0
      %7191 = vmatprep.subr.bf16.mxu0 0
      %7192 = vmatpush1.bf16.xpose.msra.mxu0 0
      %7193 = vmatprep.subr.bf16.mxu0 0
      %7194 = vmatpush1.bf16.xpose.msra.mxu0 0
      %7195 = vmatprep.subr.bf16.mxu0 0
      %7196 = vmatpush1.bf16.xpose.msra.mxu0 0
      %7197 = vmatprep.subr.bf16.mxu0 0
      %7198 = vmatpush1.bf16.xpose.msra.mxu0 0
      %7199 = vmatprep.subr.bf16.mxu0 0
      %7200 = vmatpush1.bf16.xpose.msra.mxu0 0
      %7201 = vmatprep.subr.bf16.mxu0 0
      %7202 = vmatpush1.bf16.xpose.msra.mxu0 0
      %7203 = vmatprep.subr.bf16.mxu0 0
      %7204 = vmatpush1.bf16.xpose.msra.mxu0 0
      %7205 = vmatprep.subr.bf16.mxu0 0
      %7206 = vmatpush1.bf16.xpose.msra.mxu0 0
      %7207 = vmatprep.mubr.bf16.mxu0 0
      %7208 = vmatmul.mubr.bf16.gmra.mrb[0].mxu0 %v7164
      %v7209 = vpop.f32.mrb[0].mxu0
      %v7210 = vadd.f32 0.0, %v7209
      %v7211 = vpop.f32.mrb[0].mxu0
      %v7212 = vpop.f32.mrb[0].mxu0
      %v7213 = vadd.f32 0.0, %v7212
      %v7214 = vpop.f32.mrb[0].mxu0
      %7215 = vmatprep.mubr.bf16.mxu0 0
      %7216 = vmatmul.mubr.bf16.gmra.mrb[0].mxu0 %v7167
      %v7217 = vpop.f32.mrb[0].mxu0
      %v7218 = vadd.f32 0.0, %v7217
      %v7219 = vpop.f32.mrb[0].mxu0
      %v7220 = vpop.f32.mrb[0].mxu0
      %v7221 = vpop.f32.mrb[0].mxu0
      %7222 = vdwg.mxu0
      %7223 = vrot.lane.b32.xlu0 %v5141, 104
      %v7224 = vpop.permute.xlu0 %7223
      %7225 = vrot.lane.b32.xlu0 %v5142, 104
      %v7226 = vpop.permute.xlu0 %7225
      %7227 = vrot.lane.b32.xlu0 %v5141, 72
      %v7228 = vpop.permute.xlu0 %7227
      %7229 = vrot.lane.b32.xlu0 %v5142, 72
      %v7230 = vpop.permute.xlu0 %7229
      %v7232 = vsel %vm1214, %v7224, 0
      %v7235 = vsel %vm1214, %v7226, 0
      %v7238 = vsel %vm1214, %v7228, 0
      %v7241 = vsel %vm1214, %v7230, 0
      %7243 = vmatprep.subr.bf16.mxu0 0
      %7244 = vmatpush1.bf16.xpose.msra.mxu0 %v7238
      %7245 = vmatprep.subr.bf16.mxu0 0
      %7246 = vmatpush1.bf16.xpose.msra.mxu0 %v7241
      %7247 = vmatprep.subr.bf16.mxu0 0
      %7248 = vmatpush1.bf16.xpose.msra.mxu0 0
      %7249 = vmatprep.subr.bf16.mxu0 0
      %7250 = vmatpush1.bf16.xpose.msra.mxu0 0
      %7251 = vmatprep.subr.bf16.mxu0 0
      %7252 = vmatpush1.bf16.xpose.msra.mxu0 0
      %7253 = vmatprep.subr.bf16.mxu0 0
      %7254 = vmatpush1.bf16.xpose.msra.mxu0 0
      %7255 = vmatprep.subr.bf16.mxu0 0
      %7256 = vmatpush1.bf16.xpose.msra.mxu0 0
      %7257 = vmatprep.subr.bf16.mxu0 0
      %7258 = vmatpush1.bf16.xpose.msra.mxu0 0
      %7259 = vmatprep.subr.bf16.mxu0 0
      %7260 = vmatpush1.bf16.xpose.msra.mxu0 0
      %7261 = vmatprep.subr.bf16.mxu0 0
      %7262 = vmatpush1.bf16.xpose.msra.mxu0 0
      %7263 = vmatprep.subr.bf16.mxu0 0
      %7264 = vmatpush1.bf16.xpose.msra.mxu0 0
      %7265 = vmatprep.subr.bf16.mxu0 0
      %7266 = vmatpush1.bf16.xpose.msra.mxu0 0
      %7267 = vmatprep.subr.bf16.mxu0 0
      %7268 = vmatpush1.bf16.xpose.msra.mxu0 0
      %7269 = vmatprep.subr.bf16.mxu0 0
      %7270 = vmatpush1.bf16.xpose.msra.mxu0 0
      %7271 = vmatprep.subr.bf16.mxu0 0
      %7272 = vmatpush1.bf16.xpose.msra.mxu0 0
      %7273 = vmatprep.subr.bf16.mxu0 0
      %7274 = vmatpush1.bf16.xpose.msra.mxu0 0
      %7275 = vmatprep.mubr.bf16.mxu0 0
      %7276 = vmatmul.mubr.bf16.gmra.mrb[0].mxu0 %v7232
      %v7277 = vpop.f32.mrb[0].mxu0
      %v7278 = vadd.f32 0.0, %v7277
      %v7279 = vpop.f32.mrb[0].mxu0
      %v7280 = vpop.f32.mrb[0].mxu0
      %v7281 = vadd.f32 0.0, %v7280
      %v7282 = vpop.f32.mrb[0].mxu0
      %7283 = vmatprep.mubr.bf16.mxu0 0
      %7284 = vmatmul.mubr.bf16.gmra.mrb[0].mxu0 %v7235
      %v7285 = vpop.f32.mrb[0].mxu0
      %v7286 = vadd.f32 0.0, %v7285
      %v7287 = vpop.f32.mrb[0].mxu0
      %v7288 = vpop.f32.mrb[0].mxu0
      %v7289 = vpop.f32.mrb[0].mxu0
      %7290 = vdwg.mxu0
      %7291 = vrot.lane.b32.xlu0 %v5143, 104
      %v7292 = vpop.permute.xlu0 %7291
      %7293 = vrot.lane.b32.xlu0 %v5144, 104
      %v7294 = vpop.permute.xlu0 %7293
      %7295 = vrot.lane.b32.xlu0 %v5143, 72
      %v7296 = vpop.permute.xlu0 %7295
      %7297 = vrot.lane.b32.xlu0 %v5144, 72
      %v7298 = vpop.permute.xlu0 %7297
      %v7300 = vsel %vm1214, %v7292, 0
      %v7303 = vsel %vm1214, %v7294, 0
      %v7306 = vsel %vm1214, %v7296, 0
      %v7309 = vsel %vm1214, %v7298, 0
      %7311 = vmatprep.subr.bf16.mxu0 0
      %7312 = vmatpush1.bf16.xpose.msra.mxu0 %v7306
      %7313 = vmatprep.subr.bf16.mxu0 0
      %7314 = vmatpush1.bf16.xpose.msra.mxu0 %v7309
      %7315 = vmatprep.subr.bf16.mxu0 0
      %7316 = vmatpush1.bf16.xpose.msra.mxu0 0
      %7317 = vmatprep.subr.bf16.mxu0 0
      %7318 = vmatpush1.bf16.xpose.msra.mxu0 0
      %7319 = vmatprep.subr.bf16.mxu0 0
      %7320 = vmatpush1.bf16.xpose.msra.mxu0 0
      %7321 = vmatprep.subr.bf16.mxu0 0
      %7322 = vmatpush1.bf16.xpose.msra.mxu0 0
      %7323 = vmatprep.subr.bf16.mxu0 0
      %7324 = vmatpush1.bf16.xpose.msra.mxu0 0
      %7325 = vmatprep.subr.bf16.mxu0 0
      %7326 = vmatpush1.bf16.xpose.msra.mxu0 0
      %7327 = vmatprep.subr.bf16.mxu0 0
      %7328 = vmatpush1.bf16.xpose.msra.mxu0 0
      %7329 = vmatprep.subr.bf16.mxu0 0
      %7330 = vmatpush1.bf16.xpose.msra.mxu0 0
      %7331 = vmatprep.subr.bf16.mxu0 0
      %7332 = vmatpush1.bf16.xpose.msra.mxu0 0
      %7333 = vmatprep.subr.bf16.mxu0 0
      %7334 = vmatpush1.bf16.xpose.msra.mxu0 0
      %7335 = vmatprep.subr.bf16.mxu0 0
      %7336 = vmatpush1.bf16.xpose.msra.mxu0 0
      %7337 = vmatprep.subr.bf16.mxu0 0
      %7338 = vmatpush1.bf16.xpose.msra.mxu0 0
      %7339 = vmatprep.subr.bf16.mxu0 0
      %7340 = vmatpush1.bf16.xpose.msra.mxu0 0
      %7341 = vmatprep.subr.bf16.mxu0 0
      %7342 = vmatpush1.bf16.xpose.msra.mxu0 0
      %7343 = vmatprep.mubr.bf16.mxu0 0
      %7344 = vmatmul.mubr.bf16.gmra.mrb[0].mxu0 %v7300
      %v7345 = vpop.f32.mrb[0].mxu0
      %v7346 = vadd.f32 0.0, %v7345
      %v7347 = vpop.f32.mrb[0].mxu0
      %v7348 = vpop.f32.mrb[0].mxu0
      %v7349 = vadd.f32 0.0, %v7348
      %v7350 = vpop.f32.mrb[0].mxu0
      %7351 = vmatprep.mubr.bf16.mxu0 0
      %7352 = vmatmul.mubr.bf16.gmra.mrb[0].mxu0 %v7303
      %v7353 = vpop.f32.mrb[0].mxu0
      %v7354 = vadd.f32 0.0, %v7353
      %v7355 = vpop.f32.mrb[0].mxu0
      %v7356 = vpop.f32.mrb[0].mxu0
      %v7357 = vpop.f32.mrb[0].mxu0
      %7358 = vdwg.mxu0
      %7359 = vrot.lane.b32.xlu0 %v5145, 104
      %v7360 = vpop.permute.xlu0 %7359
      %7361 = vrot.lane.b32.xlu0 %v5146, 104
      %v7362 = vpop.permute.xlu0 %7361
      %7363 = vrot.lane.b32.xlu0 %v5145, 72
      %v7364 = vpop.permute.xlu0 %7363
      %7365 = vrot.lane.b32.xlu0 %v5146, 72
      %v7366 = vpop.permute.xlu0 %7365
      %v7368 = vsel %vm1214, %v7360, 0
      %v7371 = vsel %vm1214, %v7362, 0
      %v7374 = vsel %vm1214, %v7364, 0
      %v7377 = vsel %vm1214, %v7366, 0
      %7379 = vmatprep.subr.bf16.mxu0 0
      %7380 = vmatpush1.bf16.xpose.msra.mxu0 %v7374
      %7381 = vmatprep.subr.bf16.mxu0 0
      %7382 = vmatpush1.bf16.xpose.msra.mxu0 %v7377
      %7383 = vmatprep.subr.bf16.mxu0 0
      %7384 = vmatpush1.bf16.xpose.msra.mxu0 0
      %7385 = vmatprep.subr.bf16.mxu0 0
      %7386 = vmatpush1.bf16.xpose.msra.mxu0 0
      %7387 = vmatprep.subr.bf16.mxu0 0
      %7388 = vmatpush1.bf16.xpose.msra.mxu0 0
      %7389 = vmatprep.subr.bf16.mxu0 0
      %7390 = vmatpush1.bf16.xpose.msra.mxu0 0
      %7391 = vmatprep.subr.bf16.mxu0 0
      %7392 = vmatpush1.bf16.xpose.msra.mxu0 0
      %7393 = vmatprep.subr.bf16.mxu0 0
      %7394 = vmatpush1.bf16.xpose.msra.mxu0 0
      %7395 = vmatprep.subr.bf16.mxu0 0
      %7396 = vmatpush1.bf16.xpose.msra.mxu0 0
      %7397 = vmatprep.subr.bf16.mxu0 0
      %7398 = vmatpush1.bf16.xpose.msra.mxu0 0
      %7399 = vmatprep.subr.bf16.mxu0 0
      %7400 = vmatpush1.bf16.xpose.msra.mxu0 0
      %7401 = vmatprep.subr.bf16.mxu0 0
      %7402 = vmatpush1.bf16.xpose.msra.mxu0 0
      %7403 = vmatprep.subr.bf16.mxu0 0
      %7404 = vmatpush1.bf16.xpose.msra.mxu0 0
      %7405 = vmatprep.subr.bf16.mxu0 0
      %7406 = vmatpush1.bf16.xpose.msra.mxu0 0
      %7407 = vmatprep.subr.bf16.mxu0 0
      %7408 = vmatpush1.bf16.xpose.msra.mxu0 0
      %7409 = vmatprep.subr.bf16.mxu0 0
      %7410 = vmatpush1.bf16.xpose.msra.mxu0 0
      %7411 = vmatprep.mubr.bf16.mxu0 0
      %7412 = vmatmul.mubr.bf16.gmra.mrb[0].mxu0 %v7368
      %v7413 = vpop.f32.mrb[0].mxu0
      %v7414 = vadd.f32 0.0, %v7413
      %v7415 = vpop.f32.mrb[0].mxu0
      %v7416 = vpop.f32.mrb[0].mxu0
      %v7417 = vadd.f32 0.0, %v7416
      %v7418 = vpop.f32.mrb[0].mxu0
      %7419 = vmatprep.mubr.bf16.mxu0 0
      %7420 = vmatmul.mubr.bf16.gmra.mrb[0].mxu0 %v7371
      %v7421 = vpop.f32.mrb[0].mxu0
      %v7422 = vadd.f32 0.0, %v7421
      %v7423 = vpop.f32.mrb[0].mxu0
      %v7424 = vpop.f32.mrb[0].mxu0
      %v7425 = vpop.f32.mrb[0].mxu0
      %7426 = vdwg.mxu0
      %v7427 = vsel %vm882, %v7210, -1e+30
      %v7428 = vsel %vm882, %v7213, -1e+30
      %v7429 = vsel %vm882, %v7218, -1e+30
      %v7430 = vsel %vm882, %v7278, -1e+30
      %v7431 = vsel %vm882, %v7281, -1e+30
      %v7432 = vsel %vm882, %v7286, -1e+30
      %v7433 = vsel %vm882, %v7346, -1e+30
      %v7434 = vsel %vm882, %v7349, -1e+30
      %v7435 = vsel %vm882, %v7354, -1e+30
      %v7436 = vsel %vm882, %v7414, -1e+30
      %v7437 = vsel %vm882, %v7417, -1e+30
      %v7438 = vsel %vm882, %v7422, -1e+30
      %v7439 = vsel %vm1485, %v7427, -inf
      %7440 = vmax.xlane.f32.xlu0 %v7439
      %v7441 = vpop.xlane.xlu0 %7440
      %v7442 = vsel %vm1485, %v7428, -inf
      %7443 = vmax.xlane.f32.xlu0 %v7442
      %v7444 = vpop.xlane.xlu0 %7443
      %v7445 = vsel %vm1485, %v7429, -inf
      %7446 = vmax.xlane.f32.xlu0 %v7445
      %v7447 = vpop.xlane.xlu0 %7446
      %v7448 = vsel %vm1485, %v7430, -inf
      %7449 = vmax.xlane.f32.xlu0 %v7448
      %v7450 = vpop.xlane.xlu0 %7449
      %v7451 = vsel %vm1485, %v7431, -inf
      %7452 = vmax.xlane.f32.xlu0 %v7451
      %v7453 = vpop.xlane.xlu0 %7452
      %v7454 = vsel %vm1485, %v7432, -inf
      %7455 = vmax.xlane.f32.xlu0 %v7454
      %v7456 = vpop.xlane.xlu0 %7455
      %v7457 = vsel %vm1485, %v7433, -inf
      %7458 = vmax.xlane.f32.xlu0 %v7457
      %v7459 = vpop.xlane.xlu0 %7458
      %v7460 = vsel %vm1485, %v7434, -inf
      %7461 = vmax.xlane.f32.xlu0 %v7460
      %v7462 = vpop.xlane.xlu0 %7461
      %v7463 = vsel %vm1485, %v7435, -inf
      %7464 = vmax.xlane.f32.xlu0 %v7463
      %v7465 = vpop.xlane.xlu0 %7464
      %v7466 = vsel %vm1485, %v7436, -inf
      %7467 = vmax.xlane.f32.xlu0 %v7466
      %v7468 = vpop.xlane.xlu0 %7467
      %v7469 = vsel %vm1485, %v7437, -inf
      %7470 = vmax.xlane.f32.xlu0 %v7469
      %v7471 = vpop.xlane.xlu0 %7470
      %v7472 = vsel %vm1485, %v7438, -inf
      %7473 = vmax.xlane.f32.xlu0 %v7472
      %v7474 = vpop.xlane.xlu0 %7473
      %v7475 = vsub.f32 %v7427, %v7441
      %v7476 = vsub.f32 %v7428, %v7444
      %v7477 = vsub.f32 %v7429, %v7447
      %v7478 = vsub.f32 %v7430, %v7450
      %v7479 = vsub.f32 %v7431, %v7453
      %v7480 = vsub.f32 %v7432, %v7456
      %v7481 = vsub.f32 %v7433, %v7459
      %v7482 = vsub.f32 %v7434, %v7462
      %v7483 = vsub.f32 %v7435, %v7465
      %v7484 = vsub.f32 %v7436, %v7468
      %v7485 = vsub.f32 %v7437, %v7471
      %v7486 = vsub.f32 %v7438, %v7474
      %v7487 = vmul.f32 %v7475, 1.442695
      %v7488 = vpow.pop %v7487
      %v7489 = vmul.f32 %v7476, 1.442695
      %v7490 = vpow.pop %v7489
      %v7491 = vmul.f32 %v7477, 1.442695
      %v7492 = vpow.pop %v7491
      %v7493 = vmul.f32 %v7478, 1.442695
      %v7494 = vpow.pop %v7493
      %v7495 = vmul.f32 %v7479, 1.442695
      %v7496 = vpow.pop %v7495
      %v7497 = vmul.f32 %v7480, 1.442695
      %v7498 = vpow.pop %v7497
      %v7499 = vmul.f32 %v7481, 1.442695
      %v7500 = vpow.pop %v7499
      %v7501 = vmul.f32 %v7482, 1.442695
      %v7502 = vpow.pop %v7501
      %v7503 = vmul.f32 %v7483, 1.442695
      %v7504 = vpow.pop %v7503
      %v7505 = vmul.f32 %v7484, 1.442695
      %v7506 = vpow.pop %v7505
      %v7507 = vmul.f32 %v7485, 1.442695
      %v7508 = vpow.pop %v7507
      %v7509 = vmul.f32 %v7486, 1.442695
      %v7510 = vpow.pop %v7509
      %v7511 = vsel %vm1485, %v7488, 0.0
      %7512 = vadd.xlane.f32.xlu0 %v7511
      %v7513 = vpop.xlane.xlu0 %7512
      %v7514 = vsel %vm1485, %v7490, 0.0
      %7515 = vadd.xlane.f32.xlu0 %v7514
      %v7516 = vpop.xlane.xlu0 %7515
      %v7517 = vsel %vm1485, %v7492, 0.0
      %7518 = vadd.xlane.f32.xlu0 %v7517
      %v7519 = vpop.xlane.xlu0 %7518
      %v7520 = vsel %vm1485, %v7494, 0.0
      %7521 = vadd.xlane.f32.xlu0 %v7520
      %v7522 = vpop.xlane.xlu0 %7521
      %v7523 = vsel %vm1485, %v7496, 0.0
      %7524 = vadd.xlane.f32.xlu0 %v7523
      %v7525 = vpop.xlane.xlu0 %7524
      %v7526 = vsel %vm1485, %v7498, 0.0
      %7527 = vadd.xlane.f32.xlu0 %v7526
      %v7528 = vpop.xlane.xlu0 %7527
      %v7529 = vsel %vm1485, %v7500, 0.0
      %7530 = vadd.xlane.f32.xlu0 %v7529
      %v7531 = vpop.xlane.xlu0 %7530
      %v7532 = vsel %vm1485, %v7502, 0.0
      %7533 = vadd.xlane.f32.xlu0 %v7532
      %v7534 = vpop.xlane.xlu0 %7533
      %v7535 = vsel %vm1485, %v7504, 0.0
      %7536 = vadd.xlane.f32.xlu0 %v7535
      %v7537 = vpop.xlane.xlu0 %7536
      %v7538 = vsel %vm1485, %v7506, 0.0
      %7539 = vadd.xlane.f32.xlu0 %v7538
      %v7540 = vpop.xlane.xlu0 %7539
      %v7541 = vsel %vm1485, %v7508, 0.0
      %7542 = vadd.xlane.f32.xlu0 %v7541
      %v7543 = vpop.xlane.xlu0 %7542
      %v7544 = vsel %vm1485, %v7510, 0.0
      %7545 = vadd.xlane.f32.xlu0 %v7544
      %v7546 = vpop.xlane.xlu0 %7545
      %v7547 = vrcp.pop %v7513
      %v7548 = vrcp.pop %v7516
      %v7549 = vrcp.pop %v7519
      %v7550 = vrcp.pop %v7522
      %v7551 = vrcp.pop %v7525
      %v7552 = vrcp.pop %v7528
      %v7553 = vrcp.pop %v7531
      %v7554 = vrcp.pop %v7534
      %v7555 = vrcp.pop %v7537
      %v7556 = vrcp.pop %v7540
      %v7557 = vrcp.pop %v7543
      %v7558 = vrcp.pop %v7546
      %v7559 = vmul.f32 %v7488, %v7547
      %v7560 = vmul.f32 %v7490, %v7548
      %v7561 = vmul.f32 %v7492, %v7549
      %v7562 = vmul.f32 %v7494, %v7550
      %v7563 = vmul.f32 %v7496, %v7551
      %v7564 = vmul.f32 %v7498, %v7552
      %v7565 = vmul.f32 %v7500, %v7553
      %v7566 = vmul.f32 %v7502, %v7554
      %v7567 = vmul.f32 %v7504, %v7555
      %v7568 = vmul.f32 %v7506, %v7556
      %v7569 = vmul.f32 %v7508, %v7557
      %v7570 = vmul.f32 %v7510, %v7558
      %v7571 = vpack.c.bf16 %v7560, %v7559
      %v7572 = vpack.c.bf16 %v7561, %v7561
      %v7573 = vpack.c.bf16 %v7563, %v7562
      %v7574 = vpack.c.bf16 %v7564, %v7564
      %v7575 = vpack.c.bf16 %v7566, %v7565
      %v7576 = vpack.c.bf16 %v7567, %v7567
      %v7577 = vpack.c.bf16 %v7569, %v7568
      %v7578 = vpack.c.bf16 %v7570, %v7570
      %7579 = vrot.lane.b32.xlu0 %v5139, 40
      %v7580 = vpop.permute.xlu0 %7579
      %7581 = vrot.lane.b32.xlu0 %v5140, 40
      %v7582 = vpop.permute.xlu0 %7581
      %v7585 = vsel %vm1485, %v7571, 0
      %v7588 = vsel %vm1485, %v7572, 0
      %v7591 = vsel %vm1637, %v7582, 0
      %7593 = vmatprep.subr.bf16.mxu0 0
      %7594 = vmatpush1.bf16.msra.mxu0 %v7580
      %7595 = vmatprep.subr.bf16.mxu0 0
      %7596 = vmatpush1.bf16.msra.mxu0 %v7591
      %7597 = vmatprep.subr.bf16.mxu0 0
      %7598 = vmatpush1.bf16.msra.mxu0 0
      %7599 = vmatprep.subr.bf16.mxu0 0
      %7600 = vmatpush1.bf16.msra.mxu0 0
      %7601 = vmatprep.subr.bf16.mxu0 0
      %7602 = vmatpush1.bf16.msra.mxu0 0
      %7603 = vmatprep.subr.bf16.mxu0 0
      %7604 = vmatpush1.bf16.msra.mxu0 0
      %7605 = vmatprep.subr.bf16.mxu0 0
      %7606 = vmatpush1.bf16.msra.mxu0 0
      %7607 = vmatprep.subr.bf16.mxu0 0
      %7608 = vmatpush1.bf16.msra.mxu0 0
      %7609 = vmatprep.subr.bf16.mxu0 0
      %7610 = vmatpush1.bf16.msra.mxu0 0
      %7611 = vmatprep.subr.bf16.mxu0 0
      %7612 = vmatpush1.bf16.msra.mxu0 0
      %7613 = vmatprep.subr.bf16.mxu0 0
      %7614 = vmatpush1.bf16.msra.mxu0 0
      %7615 = vmatprep.subr.bf16.mxu0 0
      %7616 = vmatpush1.bf16.msra.mxu0 0
      %7617 = vmatprep.subr.bf16.mxu0 0
      %7618 = vmatpush1.bf16.msra.mxu0 0
      %7619 = vmatprep.subr.bf16.mxu0 0
      %7620 = vmatpush1.bf16.msra.mxu0 0
      %7621 = vmatprep.subr.bf16.mxu0 0
      %7622 = vmatpush1.bf16.msra.mxu0 0
      %7623 = vmatprep.subr.bf16.mxu0 0
      %7624 = vmatpush1.bf16.msra.mxu0 0
      %7625 = vmatprep.mubr.bf16.mxu0 0
      %7626 = vmatmul.mubr.bf16.gmra.mrb[0].mxu0 %v7585
      %v7627 = vpop.f32.mrb[0].mxu0
      %v7628 = vadd.f32 0.0, %v7627
      %v7629 = vpop.f32.mrb[0].mxu0
      %v7630 = vpop.f32.mrb[0].mxu0
      %v7631 = vadd.f32 0.0, %v7630
      %v7632 = vpop.f32.mrb[0].mxu0
      %7633 = vmatprep.mubr.bf16.mxu0 0
      %7634 = vmatmul.mubr.bf16.gmra.mrb[0].mxu0 %v7588
      %v7635 = vpop.f32.mrb[0].mxu0
      %v7636 = vadd.f32 0.0, %v7635
      %v7637 = vpop.f32.mrb[0].mxu0
      %v7638 = vpop.f32.mrb[0].mxu0
      %v7639 = vpop.f32.mrb[0].mxu0
      %7640 = vdwg.mxu0
      %7641 = vrot.lane.b32.xlu0 %v5141, 40
      %v7642 = vpop.permute.xlu0 %7641
      %7643 = vrot.lane.b32.xlu0 %v5142, 40
      %v7644 = vpop.permute.xlu0 %7643
      %v7647 = vsel %vm1485, %v7573, 0
      %v7650 = vsel %vm1485, %v7574, 0
      %v7653 = vsel %vm1637, %v7644, 0
      %7655 = vmatprep.subr.bf16.mxu0 0
      %7656 = vmatpush1.bf16.msra.mxu0 %v7642
      %7657 = vmatprep.subr.bf16.mxu0 0
      %7658 = vmatpush1.bf16.msra.mxu0 %v7653
      %7659 = vmatprep.subr.bf16.mxu0 0
      %7660 = vmatpush1.bf16.msra.mxu0 0
      %7661 = vmatprep.subr.bf16.mxu0 0
      %7662 = vmatpush1.bf16.msra.mxu0 0
      %7663 = vmatprep.subr.bf16.mxu0 0
      %7664 = vmatpush1.bf16.msra.mxu0 0
      %7665 = vmatprep.subr.bf16.mxu0 0
      %7666 = vmatpush1.bf16.msra.mxu0 0
      %7667 = vmatprep.subr.bf16.mxu0 0
      %7668 = vmatpush1.bf16.msra.mxu0 0
      %7669 = vmatprep.subr.bf16.mxu0 0
      %7670 = vmatpush1.bf16.msra.mxu0 0
      %7671 = vmatprep.subr.bf16.mxu0 0
      %7672 = vmatpush1.bf16.msra.mxu0 0
      %7673 = vmatprep.subr.bf16.mxu0 0
      %7674 = vmatpush1.bf16.msra.mxu0 0
      %7675 = vmatprep.subr.bf16.mxu0 0
      %7676 = vmatpush1.bf16.msra.mxu0 0
      %7677 = vmatprep.subr.bf16.mxu0 0
      %7678 = vmatpush1.bf16.msra.mxu0 0
      %7679 = vmatprep.subr.bf16.mxu0 0
      %7680 = vmatpush1.bf16.msra.mxu0 0
      %7681 = vmatprep.subr.bf16.mxu0 0
      %7682 = vmatpush1.bf16.msra.mxu0 0
      %7683 = vmatprep.subr.bf16.mxu0 0
      %7684 = vmatpush1.bf16.msra.mxu0 0
      %7685 = vmatprep.subr.bf16.mxu0 0
      %7686 = vmatpush1.bf16.msra.mxu0 0
      %7687 = vmatprep.mubr.bf16.mxu0 0
      %7688 = vmatmul.mubr.bf16.gmra.mrb[0].mxu0 %v7647
      %v7689 = vpop.f32.mrb[0].mxu0
      %v7690 = vadd.f32 0.0, %v7689
      %v7691 = vpop.f32.mrb[0].mxu0
      %v7692 = vpop.f32.mrb[0].mxu0
      %v7693 = vadd.f32 0.0, %v7692
      %v7694 = vpop.f32.mrb[0].mxu0
      %7695 = vmatprep.mubr.bf16.mxu0 0
      %7696 = vmatmul.mubr.bf16.gmra.mrb[0].mxu0 %v7650
      %v7697 = vpop.f32.mrb[0].mxu0
      %v7698 = vadd.f32 0.0, %v7697
      %v7699 = vpop.f32.mrb[0].mxu0
      %v7700 = vpop.f32.mrb[0].mxu0
      %v7701 = vpop.f32.mrb[0].mxu0
      %7702 = vdwg.mxu0
      %7703 = vrot.lane.b32.xlu0 %v5143, 40
      %v7704 = vpop.permute.xlu0 %7703
      %7705 = vrot.lane.b32.xlu0 %v5144, 40
      %v7706 = vpop.permute.xlu0 %7705
      %v7709 = vsel %vm1485, %v7575, 0
      %v7712 = vsel %vm1485, %v7576, 0
      %v7715 = vsel %vm1637, %v7706, 0
      %7717 = vmatprep.subr.bf16.mxu0 0
      %7718 = vmatpush1.bf16.msra.mxu0 %v7704
      %7719 = vmatprep.subr.bf16.mxu0 0
      %7720 = vmatpush1.bf16.msra.mxu0 %v7715
      %7721 = vmatprep.subr.bf16.mxu0 0
      %7722 = vmatpush1.bf16.msra.mxu0 0
      %7723 = vmatprep.subr.bf16.mxu0 0
      %7724 = vmatpush1.bf16.msra.mxu0 0
      %7725 = vmatprep.subr.bf16.mxu0 0
      %7726 = vmatpush1.bf16.msra.mxu0 0
      %7727 = vmatprep.subr.bf16.mxu0 0
      %7728 = vmatpush1.bf16.msra.mxu0 0
      %7729 = vmatprep.subr.bf16.mxu0 0
      %7730 = vmatpush1.bf16.msra.mxu0 0
      %7731 = vmatprep.subr.bf16.mxu0 0
      %7732 = vmatpush1.bf16.msra.mxu0 0
      %7733 = vmatprep.subr.bf16.mxu0 0
      %7734 = vmatpush1.bf16.msra.mxu0 0
      %7735 = vmatprep.subr.bf16.mxu0 0
      %7736 = vmatpush1.bf16.msra.mxu0 0
      %7737 = vmatprep.subr.bf16.mxu0 0
      %7738 = vmatpush1.bf16.msra.mxu0 0
      %7739 = vmatprep.subr.bf16.mxu0 0
      %7740 = vmatpush1.bf16.msra.mxu0 0
      %7741 = vmatprep.subr.bf16.mxu0 0
      %7742 = vmatpush1.bf16.msra.mxu0 0
      %7743 = vmatprep.subr.bf16.mxu0 0
      %7744 = vmatpush1.bf16.msra.mxu0 0
      %7745 = vmatprep.subr.bf16.mxu0 0
      %7746 = vmatpush1.bf16.msra.mxu0 0
      %7747 = vmatprep.subr.bf16.mxu0 0
      %7748 = vmatpush1.bf16.msra.mxu0 0
      %7749 = vmatprep.mubr.bf16.mxu0 0
      %7750 = vmatmul.mubr.bf16.gmra.mrb[0].mxu0 %v7709
      %v7751 = vpop.f32.mrb[0].mxu0
      %v7752 = vadd.f32 0.0, %v7751
      %v7753 = vpop.f32.mrb[0].mxu0
      %v7754 = vpop.f32.mrb[0].mxu0
      %v7755 = vadd.f32 0.0, %v7754
      %v7756 = vpop.f32.mrb[0].mxu0
      %7757 = vmatprep.mubr.bf16.mxu0 0
      %7758 = vmatmul.mubr.bf16.gmra.mrb[0].mxu0 %v7712
      %v7759 = vpop.f32.mrb[0].mxu0
      %v7760 = vadd.f32 0.0, %v7759
      %v7761 = vpop.f32.mrb[0].mxu0
      %v7762 = vpop.f32.mrb[0].mxu0
      %v7763 = vpop.f32.mrb[0].mxu0
      %7764 = vdwg.mxu0
      %7765 = vrot.lane.b32.xlu0 %v5145, 40
      %v7766 = vpop.permute.xlu0 %7765
      %7767 = vrot.lane.b32.xlu0 %v5146, 40
      %v7768 = vpop.permute.xlu0 %7767
      %v7771 = vsel %vm1485, %v7577, 0
      %v7774 = vsel %vm1485, %v7578, 0
      %v7777 = vsel %vm1637, %v7768, 0
      %7779 = vmatprep.subr.bf16.mxu0 0
      %7780 = vmatpush1.bf16.msra.mxu0 %v7766
      %7781 = vmatprep.subr.bf16.mxu0 0
      %7782 = vmatpush1.bf16.msra.mxu0 %v7777
      %7783 = vmatprep.subr.bf16.mxu0 0
      %7784 = vmatpush1.bf16.msra.mxu0 0
      %7785 = vmatprep.subr.bf16.mxu0 0
      %7786 = vmatpush1.bf16.msra.mxu0 0
      %7787 = vmatprep.subr.bf16.mxu0 0
      %7788 = vmatpush1.bf16.msra.mxu0 0
      %7789 = vmatprep.subr.bf16.mxu0 0
      %7790 = vmatpush1.bf16.msra.mxu0 0
      %7791 = vmatprep.subr.bf16.mxu0 0
      %7792 = vmatpush1.bf16.msra.mxu0 0
      %7793 = vmatprep.subr.bf16.mxu0 0
      %7794 = vmatpush1.bf16.msra.mxu0 0
      %7795 = vmatprep.subr.bf16.mxu0 0
      %7796 = vmatpush1.bf16.msra.mxu0 0
      %7797 = vmatprep.subr.bf16.mxu0 0
      %7798 = vmatpush1.bf16.msra.mxu0 0
      %7799 = vmatprep.subr.bf16.mxu0 0
      %7800 = vmatpush1.bf16.msra.mxu0 0
      %7801 = vmatprep.subr.bf16.mxu0 0
      %7802 = vmatpush1.bf16.msra.mxu0 0
      %7803 = vmatprep.subr.bf16.mxu0 0
      %7804 = vmatpush1.bf16.msra.mxu0 0
      %7805 = vmatprep.subr.bf16.mxu0 0
      %7806 = vmatpush1.bf16.msra.mxu0 0
      %7807 = vmatprep.subr.bf16.mxu0 0
      %7808 = vmatpush1.bf16.msra.mxu0 0
      %7809 = vmatprep.subr.bf16.mxu0 0
      %7810 = vmatpush1.bf16.msra.mxu0 0
      %7811 = vmatprep.mubr.bf16.mxu0 0
      %7812 = vmatmul.mubr.bf16.gmra.mrb[0].mxu0 %v7771
      %v7813 = vpop.f32.mrb[0].mxu0
      %v7814 = vadd.f32 0.0, %v7813
      %v7815 = vpop.f32.mrb[0].mxu0
      %v7816 = vpop.f32.mrb[0].mxu0
      %v7817 = vadd.f32 0.0, %v7816
      %v7818 = vpop.f32.mrb[0].mxu0
      %7819 = vmatprep.mubr.bf16.mxu0 0
      %7820 = vmatmul.mubr.bf16.gmra.mrb[0].mxu0 %v7774
      %v7821 = vpop.f32.mrb[0].mxu0
      %v7822 = vadd.f32 0.0, %v7821
      %v7823 = vpop.f32.mrb[0].mxu0
      %v7824 = vpop.f32.mrb[0].mxu0
      %v7825 = vpop.f32.mrb[0].mxu0
      %7826 = vdwg.mxu0
      %7839 = vrot.lane.b32.xlu0 %v6284, 8
      %v7840 = vpop.permute.xlu0 %7839
      %7841 = vrot.lane.b32.xlu0 %v6287, 8
      %v7842 = vpop.permute.xlu0 %7841
      %7843 = vrot.lane.b32.xlu0 %v6292, 8
      %v7844 = vpop.permute.xlu0 %7843
      %7845 = vrot.lane.b32.xlu0 %v6346, 8
      %v7846 = vpop.permute.xlu0 %7845
      %7847 = vrot.lane.b32.xlu0 %v6349, 8
      %v7848 = vpop.permute.xlu0 %7847
      %7849 = vrot.lane.b32.xlu0 %v6354, 8
      %v7850 = vpop.permute.xlu0 %7849
      %7851 = vrot.lane.b32.xlu0 %v6408, 8
      %v7852 = vpop.permute.xlu0 %7851
      %7853 = vrot.lane.b32.xlu0 %v6411, 8
      %v7854 = vpop.permute.xlu0 %7853
      %7855 = vrot.lane.b32.xlu0 %v6416, 8
      %v7856 = vpop.permute.xlu0 %7855
      %7857 = vrot.lane.b32.xlu0 %v6470, 8
      %v7858 = vpop.permute.xlu0 %7857
      %7859 = vrot.lane.b32.xlu0 %v6473, 8
      %v7860 = vpop.permute.xlu0 %7859
      %7861 = vrot.lane.b32.xlu0 %v6478, 8
      %v7862 = vpop.permute.xlu0 %7861
      %7887 = vrot.lane.b32.xlu0 %v6956, 16
      %v7888 = vpop.permute.xlu0 %7887
      %7889 = vrot.lane.b32.xlu0 %v6959, 16
      %v7890 = vpop.permute.xlu0 %7889
      %7891 = vrot.lane.b32.xlu0 %v6964, 16
      %v7892 = vpop.permute.xlu0 %7891
      %7893 = vrot.lane.b32.xlu0 %v7018, 16
      %v7894 = vpop.permute.xlu0 %7893
      %7895 = vrot.lane.b32.xlu0 %v7021, 16
      %v7896 = vpop.permute.xlu0 %7895
      %7897 = vrot.lane.b32.xlu0 %v7026, 16
      %v7898 = vpop.permute.xlu0 %7897
      %7899 = vrot.lane.b32.xlu0 %v7080, 16
      %v7900 = vpop.permute.xlu0 %7899
      %7901 = vrot.lane.b32.xlu0 %v7083, 16
      %v7902 = vpop.permute.xlu0 %7901
      %7903 = vrot.lane.b32.xlu0 %v7088, 16
      %v7904 = vpop.permute.xlu0 %7903
      %7905 = vrot.lane.b32.xlu0 %v7142, 16
      %v7906 = vpop.permute.xlu0 %7905
      %7907 = vrot.lane.b32.xlu0 %v7145, 16
      %v7908 = vpop.permute.xlu0 %7907
      %7909 = vrot.lane.b32.xlu0 %v7150, 16
      %v7910 = vpop.permute.xlu0 %7909
      %7935 = vrot.lane.b32.xlu0 %v7628, 24
      %v7936 = vpop.permute.xlu0 %7935
      %7937 = vrot.lane.b32.xlu0 %v7631, 24
      %v7938 = vpop.permute.xlu0 %7937
      %7939 = vrot.lane.b32.xlu0 %v7636, 24
      %v7940 = vpop.permute.xlu0 %7939
      %7941 = vrot.lane.b32.xlu0 %v7690, 24
      %v7942 = vpop.permute.xlu0 %7941
      %7943 = vrot.lane.b32.xlu0 %v7693, 24
      %v7944 = vpop.permute.xlu0 %7943
      %7945 = vrot.lane.b32.xlu0 %v7698, 24
      %v7946 = vpop.permute.xlu0 %7945
      %7947 = vrot.lane.b32.xlu0 %v7752, 24
      %v7948 = vpop.permute.xlu0 %7947
      %7949 = vrot.lane.b32.xlu0 %v7755, 24
      %v7950 = vpop.permute.xlu0 %7949
      %7951 = vrot.lane.b32.xlu0 %v7760, 24
      %v7952 = vpop.permute.xlu0 %7951
      %7953 = vrot.lane.b32.xlu0 %v7814, 24
      %v7954 = vpop.permute.xlu0 %7953
      %7955 = vrot.lane.b32.xlu0 %v7817, 24
      %v7956 = vpop.permute.xlu0 %7955
      %7957 = vrot.lane.b32.xlu0 %v7822, 24
      %v7958 = vpop.permute.xlu0 %7957
      %v7971 = vsel %vm1214, %v5612, %v7840
      %v7972 = vsel %vm1214, %v5615, %v7842
      %v7973 = vsel %vm1214, %v5620, %v7844
      %v7974 = vsel %vm1214, %v5674, %v7846
      %v7975 = vsel %vm1214, %v5677, %v7848
      %v7976 = vsel %vm1214, %v5682, %v7850
      %v7977 = vsel %vm1214, %v5736, %v7852
      %v7978 = vsel %vm1214, %v5739, %v7854
      %v7979 = vsel %vm1214, %v5744, %v7856
      %v7980 = vsel %vm1214, %v5798, %v7858
      %v7981 = vsel %vm1214, %v5801, %v7860
      %v7982 = vsel %vm1214, %v5806, %v7862
      %v7983 = vsel %vm4047, %v7971, %v7888
      %v7984 = vsel %vm4047, %v7972, %v7890
      %v7985 = vsel %vm4047, %v7973, %v7892
      %v7986 = vsel %vm4047, %v7974, %v7894
      %v7987 = vsel %vm4047, %v7975, %v7896
      %v7988 = vsel %vm4047, %v7976, %v7898
      %v7989 = vsel %vm4047, %v7977, %v7900
      %v7990 = vsel %vm4047, %v7978, %v7902
      %v7991 = vsel %vm4047, %v7979, %v7904
      %v7992 = vsel %vm4047, %v7980, %v7906
      %v7993 = vsel %vm4047, %v7981, %v7908
      %v7994 = vsel %vm4047, %v7982, %v7910
      %v7995 = vsel %vm1485, %v7983, %v7936
      %v7996 = vsel %vm1485, %v7984, %v7938
      %v7997 = vsel %vm1485, %v7985, %v7940
      %v7998 = vsel %vm1485, %v7986, %v7942
      %v7999 = vsel %vm1485, %v7987, %v7944
      %v8000 = vsel %vm1485, %v7988, %v7946
      %v8001 = vsel %vm1485, %v7989, %v7948
      %v8002 = vsel %vm1485, %v7990, %v7950
      %v8003 = vsel %vm1485, %v7991, %v7952
      %v8004 = vsel %vm1485, %v7992, %v7954
      %v8005 = vsel %vm1485, %v7993, %v7956
      %v8006 = vsel %vm1485, %v7994, %v7958
      %s8007 = scalar_lea.vmem %s9, 16
      %v8008 = vld [vmem:[%s8007] sm:$0xf]
      %v8009 = vld [vmem:[%s8007 + $0x4] sm:$0xf]
      %v8010 = vld [vmem:[%s8007 + $0x8] sm:$0xf]
      %v8011 = vld [vmem:[%s8007 + $0xc] sm:$0xf]
      %v8012 = vpack.c.bf16 %v7996, %v7995
      %v8013 = vpack.c.bf16 %v7998, %v7997
      %v8014 = vpack.c.bf16 %v8000, %v7999
      %v8015 = vpack.c.bf16 %v8002, %v8001
      %v8016 = vpack.c.bf16 %v8004, %v8003
      %v8017 = vpack.c.bf16 %v8006, %v8005
      %v8022 = vunpack.c.l.b16 %v8008
      %v8023 = vunpack.c.l.b16 %v8009
      %v8024 = vunpack.c.l.b16 %v8010
      %v8025 = vunpack.c.l.b16 %v8011
      %v8026 = vpack.c.b16 %v8023, %v8022
      %v8027 = vpack.c.b16 %v8025, %v8024
      %v8031 = vsel %vm690, %v8012, 0
      %v8034 = vsel %vm690, %v8013, 0
      %v8037 = vsel %vm690, %v8014, 0
      %v8040 = vsel %vm690, %v8015, 0
      %v8043 = vsel %vm690, %v8016, 0
      %v8046 = vsel %vm690, %v8017, 0
      %8048 = vmatprep.subr.bf16.mxu0 0
      %8049 = vmatpush1.bf16.msra.mxu0 %v8026
      %8050 = vmatprep.subr.bf16.mxu0 0
      %8051 = vmatpush1.bf16.msra.mxu0 %v8027
      %8052 = vmatprep.subr.bf16.mxu0 0
      %8053 = vmatpush1.bf16.msra.mxu0 0
      %8054 = vmatprep.subr.bf16.mxu0 0
      %8055 = vmatpush1.bf16.msra.mxu0 0
      %8056 = vmatprep.subr.bf16.mxu0 0
      %8057 = vmatpush1.bf16.msra.mxu0 0
      %8058 = vmatprep.subr.bf16.mxu0 0
      %8059 = vmatpush1.bf16.msra.mxu0 0
      %8060 = vmatprep.subr.bf16.mxu0 0
      %8061 = vmatpush1.bf16.msra.mxu0 0
      %8062 = vmatprep.subr.bf16.mxu0 0
      %8063 = vmatpush1.bf16.msra.mxu0 0
      %8064 = vmatprep.subr.bf16.mxu0 0
      %8065 = vmatpush1.bf16.msra.mxu0 0
      %8066 = vmatprep.subr.bf16.mxu0 0
      %8067 = vmatpush1.bf16.msra.mxu0 0
      %8068 = vmatprep.subr.bf16.mxu0 0
      %8069 = vmatpush1.bf16.msra.mxu0 0
      %8070 = vmatprep.subr.bf16.mxu0 0
      %8071 = vmatpush1.bf16.msra.mxu0 0
      %8072 = vmatprep.subr.bf16.mxu0 0
      %8073 = vmatpush1.bf16.msra.mxu0 0
      %8074 = vmatprep.subr.bf16.mxu0 0
      %8075 = vmatpush1.bf16.msra.mxu0 0
      %8076 = vmatprep.subr.bf16.mxu0 0
      %8077 = vmatpush1.bf16.msra.mxu0 0
      %8078 = vmatprep.subr.bf16.mxu0 0
      %8079 = vmatpush1.bf16.msra.mxu0 0
      %8080 = vmatprep.mubr.bf16.mxu0 0
      %8081 = vmatmul.mubr.bf16.gmra.mrb[0].mxu0 %v8031
      %v8082 = vpop.f32.mrb[0].mxu0
      %v8083 = vadd.f32 0.0, %v8082
      %v8084 = vpop.f32.mrb[0].mxu0
      %v8085 = vpop.f32.mrb[0].mxu0
      %v8086 = vpop.f32.mrb[0].mxu0
      %8087 = vmatprep.mubr.bf16.mxu0 0
      %8088 = vmatmul.mubr.bf16.gmra.mrb[0].mxu0 %v8034
      %v8089 = vpop.f32.mrb[0].mxu0
      %v8090 = vpop.f32.mrb[0].mxu0
      %v8091 = vpop.f32.mrb[0].mxu0
      %v8092 = vadd.f32 0.0, %v8091
      %v8093 = vpop.f32.mrb[0].mxu0
      %8094 = vmatprep.mubr.bf16.mxu0 0
      %8095 = vmatmul.mubr.bf16.gmra.mrb[0].mxu0 %v8037
      %v8096 = vpop.f32.mrb[0].mxu0
      %v8097 = vpop.f32.mrb[0].mxu0
      %v8098 = vpop.f32.mrb[0].mxu0
      %v8099 = vpop.f32.mrb[0].mxu0
      %8100 = vmatprep.mubr.bf16.mxu0 0
      %8101 = vmatmul.mubr.bf16.gmra.mrb[0].mxu0 %v8040
      %v8102 = vpop.f32.mrb[0].mxu0
      %v8103 = vadd.f32 0.0, %v8102
      %v8104 = vpop.f32.mrb[0].mxu0
      %v8105 = vpop.f32.mrb[0].mxu0
      %v8106 = vpop.f32.mrb[0].mxu0
      %8107 = vmatprep.mubr.bf16.mxu0 0
      %8108 = vmatmul.mubr.bf16.gmra.mrb[0].mxu0 %v8043
      %v8109 = vpop.f32.mrb[0].mxu0
      %v8110 = vpop.f32.mrb[0].mxu0
      %v8111 = vpop.f32.mrb[0].mxu0
      %v8112 = vadd.f32 0.0, %v8111
      %v8113 = vpop.f32.mrb[0].mxu0
      %8114 = vmatprep.mubr.bf16.mxu0 0
      %8115 = vmatmul.mubr.bf16.gmra.mrb[0].mxu0 %v8046
      %v8116 = vpop.f32.mrb[0].mxu0
      %v8117 = vpop.f32.mrb[0].mxu0
      %v8118 = vpop.f32.mrb[0].mxu0
      %v8119 = vpop.f32.mrb[0].mxu0
      %8120 = vdwg.mxu0
      %v8121 = vadd.f32 %v4807, %v8083
      %v8122 = vadd.f32 %v4810, %v8092
      %v8123 = vadd.f32 %v4813, %v8103
      %v8124 = vadd.f32 %v4816, %v8112
      %s8125 = scalar_lea.vmem %s10, 1
      %v8126 = vld [vmem:[%s8125] sm:$0x1]
      %v8128 = vlaneseq
      %v8129 = vshrl.u32 %v8128, 7
      %v8130 = vsub.s32 0, %v8129
      %v8131 = vrot.slane %v8126, %v8130
      %v8133 = vadd.f32 %v8121, %v8131
      %v8134 = vadd.f32 %v8122, %v8131
      %v8135 = vadd.f32 %v8123, %v8131
      %v8136 = vadd.f32 %v8124, %v8131
      %s8137 = scalar_lea.vmem %s11, 2
      %v8138 = vld [vmem:[%s8137] sm:$0x3]
      %v8143 = vrot.slane %v8134, 7
      %vm8144 = vcmask 1041409
      %v8145 = vsel %vm8144, %v8143, %v8133
      %v8146 = vrot.slane %v8135, 6
      %vm8147 = vcmask 1042434
      %v8148 = vsel %vm8147, %v8146, %v8145
      %v8149 = vrot.slane %v8136, 5
      %vm8150 = vcmask 1043459
      %v8151 = vsel %vm8150, %v8149, %v8148
      %vm8153 = vcmask 257024
      %v8154 = vsel %vm8153, %v8151, 0.0
      %8155 = vadd.xlane.f32.xlu0 %v8154
      %v8156 = vpop.xlane.xlu0 %8155
      %v8157 = vmul.f32 %v8156, %v727
      %v8159 = vrot.slane %v8157, 1
      %v8160 = vrot.slane %v8157, 2
      %v8161 = vrot.slane %v8157, 3
      %v8166 = vsub.f32 %v8133, %v8157
      %v8167 = vsub.f32 %v8134, %v8159
      %v8168 = vsub.f32 %v8135, %v8160
      %v8169 = vsub.f32 %v8136, %v8161
      %v8170 = vmul.f32 %v8166, %v8166
      %v8171 = vmul.f32 %v8167, %v8167
      %v8172 = vmul.f32 %v8168, %v8168
      %v8173 = vmul.f32 %v8169, %v8169
      %v8178 = vrot.slane %v8171, 7
      %v8179 = vsel %vm8144, %v8178, %v8170
      %v8180 = vrot.slane %v8172, 6
      %v8181 = vsel %vm8147, %v8180, %v8179
      %v8182 = vrot.slane %v8173, 5
      %v8183 = vsel %vm8150, %v8182, %v8181
      %v8185 = vsel %vm8153, %v8183, 0.0
      %8186 = vadd.xlane.f32.xlu0 %v8185
      %v8187 = vpop.xlane.xlu0 %8186
      %v8188 = vmul.f32 %v8187, %v727
      %v8189 = vadd.f32 %v8188, 1e-05
      %v8190 = vrsqrt.pop %v8189
      %v8192 = vrot.slane %v8190, 1
      %v8193 = vrot.slane %v8190, 2
      %v8194 = vrot.slane %v8190, 3
      %v8199 = vmul.f32 %v8166, %v8190
      %v8200 = vmul.f32 %v8167, %v8192
      %v8201 = vmul.f32 %v8168, %v8193
      %v8202 = vmul.f32 %v8169, %v8194
      %v8203 = vlaneseq
      %v8204 = vshrl.u32 %v8203, 7
      %v8205 = vsub.s32 0, %v8204
      %v8206 = vrot.slane %v8138, %v8205
      %v8207 = vmul.f32 %v8199, %v8206
      %v8208 = vmul.f32 %v8200, %v8206
      %v8209 = vmul.f32 %v8201, %v8206
      %v8210 = vmul.f32 %v8202, %v8206
      %v8211 = vlaneseq
      %v8212 = vshrl.u32 %v8211, 7
      %v8213 = vsub.s32 1, %v8212
      %v8214 = vrot.slane %v8138, %v8213
      %v8215 = vadd.f32 %v8207, %v8214
      %v8216 = vadd.f32 %v8208, %v8214
      %v8217 = vadd.f32 %v8209, %v8214
      %v8218 = vadd.f32 %v8210, %v8214
      %s8219 = scalar_lea.vmem %s12, 16
      %v8220 = vld [vmem:[%s8219] sm:$0xf]
      %v8221 = vld [vmem:[%s8219 + $0x4] sm:$0xf]
      %v8222 = vld [vmem:[%s8219 + $0x8] sm:$0xf]
      %v8223 = vld [vmem:[%s8219 + $0xc] sm:$0xf]
      %v8224 = vpack.c.bf16 %v8215, %v8215
      %v8225 = vpack.c.bf16 %v8216, %v8216
      %v8226 = vpack.c.bf16 %v8217, %v8217
      %v8227 = vpack.c.bf16 %v8218, %v8218
      %s8228 = scalar_lea.vmem %s13, 1
      %v8229 = vld [vmem:[%s8228] sm:$0x1]
      %v8231 = vlaneseq
      %v8232 = vshrl.u32 %v8231, 7
      %v8233 = vsub.s32 0, %v8232
      %v8234 = vrot.slane %v8229, %v8233
      %v8240 = vunpack.c.l.b16 %v8224
      %v8241 = vunpack.c.l.b16 %v8225
      %v8242 = vunpack.c.l.b16 %v8226
      %v8243 = vunpack.c.l.b16 %v8227
      %v8244 = vrot.slane %v8241, 7
      %v8245 = vsel %vm8144, %v8244, %v8240
      %v8246 = vrot.slane %v8242, 6
      %v8247 = vsel %vm8147, %v8246, %v8245
      %v8248 = vrot.slane %v8243, 5
      %v8249 = vsel %vm8150, %v8248, %v8247
      %v8250 = vpack.c.b16 %v8249, %v8249
      %v8255 = vunpack.c.l.b16 %v8220
      %v8256 = vunpack.c.l.b16 %v8221
      %v8257 = vunpack.c.l.b16 %v8222
      %v8258 = vunpack.c.l.b16 %v8223
      %v8259 = vpack.c.b16 %v8256, %v8255
      %v8260 = vpack.c.b16 %v8258, %v8257
      %v8264 = vsel %vm690, %v8250, 0
      %8266 = vmatprep.subr.bf16.mxu0 0
      %8267 = vmatpush1.bf16.msra.mxu0 %v8259
      %8268 = vmatprep.subr.bf16.mxu0 0
      %8269 = vmatpush1.bf16.msra.mxu0 %v8260
      %8270 = vmatprep.subr.bf16.mxu0 0
      %8271 = vmatpush1.bf16.msra.mxu0 0
      %8272 = vmatprep.subr.bf16.mxu0 0
      %8273 = vmatpush1.bf16.msra.mxu0 0
      %8274 = vmatprep.subr.bf16.mxu0 0
      %8275 = vmatpush1.bf16.msra.mxu0 0
      %8276 = vmatprep.subr.bf16.mxu0 0
      %8277 = vmatpush1.bf16.msra.mxu0 0
      %8278 = vmatprep.subr.bf16.mxu0 0
      %8279 = vmatpush1.bf16.msra.mxu0 0
      %8280 = vmatprep.subr.bf16.mxu0 0
      %8281 = vmatpush1.bf16.msra.mxu0 0
      %8282 = vmatprep.subr.bf16.mxu0 0
      %8283 = vmatpush1.bf16.msra.mxu0 0
      %8284 = vmatprep.subr.bf16.mxu0 0
      %8285 = vmatpush1.bf16.msra.mxu0 0
      %8286 = vmatprep.subr.bf16.mxu0 0
      %8287 = vmatpush1.bf16.msra.mxu0 0
      %8288 = vmatprep.subr.bf16.mxu0 0
      %8289 = vmatpush1.bf16.msra.mxu0 0
      %8290 = vmatprep.subr.bf16.mxu0 0
      %8291 = vmatpush1.bf16.msra.mxu0 0
      %8292 = vmatprep.subr.bf16.mxu0 0
      %8293 = vmatpush1.bf16.msra.mxu0 0
      %8294 = vmatprep.subr.bf16.mxu0 0
      %8295 = vmatpush1.bf16.msra.mxu0 0
      %8296 = vmatprep.subr.bf16.mxu0 0
      %8297 = vmatpush1.bf16.msra.mxu0 0
      %8298 = vmatprep.mubr.bf16.mxu0 0
      %8299 = vmatmul.mubr.bf16.gmra.mrb[0].mxu0 %v8264
      %v8300 = vpop.f32.mrb[0].mxu0
      %v8301 = vadd.f32 %v8234, %v8300
      %v8302 = vpop.f32.mrb[0].mxu0
      %v8303 = vpop.f32.mrb[0].mxu0
      %v8304 = vpop.f32.mrb[0].mxu0
      %8305 = vdwg.mxu0
      %v8306 = vmul.f32 %v8301, 1.702
      %v8307 = vxor.u32 %v8306, 2147483648
      %v8308 = vmul.f32 %v8307, 1.442695
      %v8309 = vpow.pop %v8308
      %v8310 = vadd.f32 %v8309, 1.0
      %v8311 = vrcp.pop %v8310
      %v8312 = vmul.f32 1.0, %v8311
      %v8313 = vmul.f32 %v8301, %v8312
      %s8314 = scalar_lea.vmem %s14, 64
      %v8315 = vld [vmem:[%s8314] sm:$0xf]
      %v8316 = vld [vmem:[%s8314 + $0x4] sm:$0xf]
      %v8317 = vld [vmem:[%s8314 + $0x8] sm:$0xf]
      %v8318 = vld [vmem:[%s8314 + $0xc] sm:$0xf]
      %v8319 = vld [vmem:[%s8314 + $0x10] sm:$0xf]
      %v8320 = vld [vmem:[%s8314 + $0x14] sm:$0xf]
      %v8321 = vld [vmem:[%s8314 + $0x18] sm:$0xf]
      %v8322 = vld [vmem:[%s8314 + $0x1c] sm:$0xf]
      %v8323 = vld [vmem:[%s8314 + $0x20] sm:$0xf]
      %v8324 = vld [vmem:[%s8314 + $0x24] sm:$0xf]
      %v8325 = vld [vmem:[%s8314 + $0x28] sm:$0xf]
      %v8326 = vld [vmem:[%s8314 + $0x2c] sm:$0xf]
      %v8327 = vld [vmem:[%s8314 + $0x30] sm:$0xf]
      %v8328 = vld [vmem:[%s8314 + $0x34] sm:$0xf]
      %v8329 = vld [vmem:[%s8314 + $0x38] sm:$0xf]
      %v8330 = vld [vmem:[%s8314 + $0x3c] sm:$0xf]
      %v8331 = vpack.c.bf16 %v8313, %v8313
      %v8348 = vunpack.c.l.b16 %v8315
      %v8349 = vunpack.c.l.b16 %v8316
      %v8350 = vunpack.c.l.b16 %v8317
      %v8351 = vunpack.c.l.b16 %v8318
      %v8352 = vunpack.c.l.b16 %v8319
      %v8353 = vunpack.c.l.b16 %v8320
      %v8354 = vunpack.c.l.b16 %v8321
      %v8355 = vunpack.c.l.b16 %v8322
      %v8356 = vunpack.c.l.b16 %v8323
      %v8357 = vunpack.c.l.b16 %v8324
      %v8358 = vunpack.c.l.b16 %v8325
      %v8359 = vunpack.c.l.b16 %v8326
      %v8360 = vunpack.c.l.b16 %v8327
      %v8361 = vunpack.c.l.b16 %v8328
      %v8362 = vunpack.c.l.b16 %v8329
      %v8363 = vunpack.c.l.b16 %v8330
      %v8364 = vpack.c.b16 %v8349, %v8348
      %v8365 = vpack.c.b16 %v8351, %v8350
      %v8366 = vpack.c.b16 %v8353, %v8352
      %v8367 = vpack.c.b16 %v8355, %v8354
      %v8368 = vpack.c.b16 %v8357, %v8356
      %v8369 = vpack.c.b16 %v8359, %v8358
      %v8370 = vpack.c.b16 %v8361, %v8360
      %v8371 = vpack.c.b16 %v8363, %v8362
      %8380 = vmatprep.subr.bf16.mxu0 0
      %8381 = vmatpush1.bf16.msra.mxu0 %v8364
      %8382 = vmatprep.subr.bf16.mxu0 0
      %8383 = vmatpush1.bf16.msra.mxu0 %v8365
      %8384 = vmatprep.subr.bf16.mxu0 0
      %8385 = vmatpush1.bf16.msra.mxu0 %v8366
      %8386 = vmatprep.subr.bf16.mxu0 0
      %8387 = vmatpush1.bf16.msra.mxu0 %v8367
      %8388 = vmatprep.subr.bf16.mxu0 0
      %8389 = vmatpush1.bf16.msra.mxu0 %v8368
      %8390 = vmatprep.subr.bf16.mxu0 0
      %8391 = vmatpush1.bf16.msra.mxu0 %v8369
      %8392 = vmatprep.subr.bf16.mxu0 0
      %8393 = vmatpush1.bf16.msra.mxu0 %v8370
      %8394 = vmatprep.subr.bf16.mxu0 0
      %8395 = vmatpush1.bf16.msra.mxu0 %v8371
      %8396 = vmatprep.subr.bf16.mxu0 0
      %8397 = vmatpush1.bf16.msra.mxu0 0
      %8398 = vmatprep.subr.bf16.mxu0 0
      %8399 = vmatpush1.bf16.msra.mxu0 0
      %8400 = vmatprep.subr.bf16.mxu0 0
      %8401 = vmatpush1.bf16.msra.mxu0 0
      %8402 = vmatprep.subr.bf16.mxu0 0
      %8403 = vmatpush1.bf16.msra.mxu0 0
      %8404 = vmatprep.subr.bf16.mxu0 0
      %8405 = vmatpush1.bf16.msra.mxu0 0
      %8406 = vmatprep.subr.bf16.mxu0 0
      %8407 = vmatpush1.bf16.msra.mxu0 0
      %8408 = vmatprep.subr.bf16.mxu0 0
      %8409 = vmatpush1.bf16.msra.mxu0 0
      %8410 = vmatprep.subr.bf16.mxu0 0
      %8411 = vmatpush1.bf16.msra.mxu0 0
      %8412 = vmatprep.mubr.bf16.mxu0 0
      %8413 = vmatmul.mubr.bf16.gmra.mrb[0].mxu0 %v8331
      %v8414 = vpop.f32.mrb[0].mxu0
      %v8415 = vadd.f32 0.0, %v8414
      %v8416 = vpop.f32.mrb[0].mxu0
      %v8417 = vpop.f32.mrb[0].mxu0
      %v8418 = vpop.f32.mrb[0].mxu0
      %8419 = vdwg.mxu0
      %v8421 = vrot.slane %v8415, 1
      %v8422 = vrot.slane %v8415, 2
      %v8423 = vrot.slane %v8415, 3
      %v8428 = vadd.f32 %v8133, %v8415
      %v8429 = vadd.f32 %v8134, %v8421
      %v8430 = vadd.f32 %v8135, %v8422
      %v8431 = vadd.f32 %v8136, %v8423
      %s8432 = scalar_lea.vmem %s15, 1
      %v8433 = vld [vmem:[%s8432] sm:$0x1]
      %v8435 = vlaneseq
      %v8436 = vshrl.u32 %v8435, 7
      %v8437 = vsub.s32 0, %v8436
      %v8438 = vrot.slane %v8433, %v8437
      %v8440 = vadd.f32 %v8428, %v8438
      %v8441 = vadd.f32 %v8429, %v8438
      %v8442 = vadd.f32 %v8430, %v8438
      %v8443 = vadd.f32 %v8431, %v8438
      %v8444 = vld [vmem:[%s4] sm:$0x3]
      %v8449 = vrot.slane %v8441, 7
      %v8450 = vsel %vm8144, %v8449, %v8440
      %v8451 = vrot.slane %v8442, 6
      %v8452 = vsel %vm8147, %v8451, %v8450
      %v8453 = vrot.slane %v8443, 5
      %v8454 = vsel %vm8150, %v8453, %v8452
      %v8456 = vsel %vm8153, %v8454, 0.0
      %8457 = vadd.xlane.f32.xlu0 %v8456
      %v8458 = vpop.xlane.xlu0 %8457
      %v8459 = vmul.f32 %v8458, %v727
      %v8461 = vrot.slane %v8459, 1
      %v8462 = vrot.slane %v8459, 2
      %v8463 = vrot.slane %v8459, 3
      %v8468 = vsub.f32 %v8440, %v8459
      %v8469 = vsub.f32 %v8441, %v8461
      %v8470 = vsub.f32 %v8442, %v8462
      %v8471 = vsub.f32 %v8443, %v8463
      %v8472 = vmul.f32 %v8468, %v8468
      %v8473 = vmul.f32 %v8469, %v8469
      %v8474 = vmul.f32 %v8470, %v8470
      %v8475 = vmul.f32 %v8471, %v8471
      %v8480 = vrot.slane %v8473, 7
      %v8481 = vsel %vm8144, %v8480, %v8472
      %v8482 = vrot.slane %v8474, 6
      %v8483 = vsel %vm8147, %v8482, %v8481
      %v8484 = vrot.slane %v8475, 5
      %v8485 = vsel %vm8150, %v8484, %v8483
      %v8487 = vsel %vm8153, %v8485, 0.0
      %8488 = vadd.xlane.f32.xlu0 %v8487
      %v8489 = vpop.xlane.xlu0 %8488
      %v8490 = vmul.f32 %v8489, %v727
      %v8491 = vadd.f32 %v8490, 1e-05
      %v8492 = vrsqrt.pop %v8491
      %v8494 = vrot.slane %v8492, 1
      %v8495 = vrot.slane %v8492, 2
      %v8496 = vrot.slane %v8492, 3
      %v8501 = vmul.f32 %v8468, %v8492
      %v8502 = vmul.f32 %v8469, %v8494
      %v8503 = vmul.f32 %v8470, %v8495
      %v8504 = vmul.f32 %v8471, %v8496
      %v8505 = vlaneseq
      %v8506 = vshrl.u32 %v8505, 7
      %v8507 = vsub.s32 0, %v8506
      %v8508 = vrot.slane %v8444, %v8507
      %v8509 = vmul.f32 %v8501, %v8508
      %v8510 = vmul.f32 %v8502, %v8508
      %v8511 = vmul.f32 %v8503, %v8508
      %v8512 = vmul.f32 %v8504, %v8508
      %v8513 = vlaneseq
      %v8514 = vshrl.u32 %v8513, 7
      %v8515 = vsub.s32 1, %v8514
      %v8516 = vrot.slane %v8444, %v8515
      %v8517 = vadd.f32 %v8509, %v8516
      %v8518 = vadd.f32 %v8510, %v8516
      %v8519 = vadd.f32 %v8511, %v8516
      %v8520 = vadd.f32 %v8512, %v8516
      %v8521 = vld [vmem:[%s5] sm:$0xf]
      %v8522 = vld [vmem:[%s5 + $0x4] sm:$0xf]
      %v8523 = vld [vmem:[%s5 + $0x8] sm:$0xf]
      %v8524 = vld [vmem:[%s5 + $0xc] sm:$0xf]
      %v8525 = vpack.c.bf16 %v8517, %v8517
      %v8526 = vpack.c.bf16 %v8518, %v8518
      %v8527 = vpack.c.bf16 %v8519, %v8519
      %v8528 = vpack.c.bf16 %v8520, %v8520
      %v8533 = vunpack.c.l.b16 %v8525
      %v8534 = vunpack.c.l.b16 %v8526
      %v8535 = vunpack.c.l.b16 %v8527
      %v8536 = vunpack.c.l.b16 %v8528
      %v8537 = vrot.slane %v8534, 7
      %v8538 = vsel %vm8144, %v8537, %v8533
      %v8539 = vrot.slane %v8535, 6
      %v8540 = vsel %vm8147, %v8539, %v8538
      %v8541 = vrot.slane %v8536, 5
      %v8542 = vsel %vm8150, %v8541, %v8540
      %v8543 = vpack.c.b16 %v8542, %v8542
      %v8548 = vunpack.c.l.b16 %v8521
      %v8549 = vunpack.c.l.b16 %v8522
      %v8550 = vunpack.c.l.b16 %v8523
      %v8551 = vunpack.c.l.b16 %v8524
      %v8552 = vpack.c.b16 %v8549, %v8548
      %v8553 = vpack.c.b16 %v8551, %v8550
      %v8557 = vsel %vm690, %v8543, 0
      %8559 = vmatprep.subr.bf16.mxu0 0
      %8560 = vmatpush1.bf16.msra.mxu0 %v8552
      %8561 = vmatprep.subr.bf16.mxu0 0
      %8562 = vmatpush1.bf16.msra.mxu0 %v8553
      %8563 = vmatprep.subr.bf16.mxu0 0
      %8564 = vmatpush1.bf16.msra.mxu0 0
      %8565 = vmatprep.subr.bf16.mxu0 0
      %8566 = vmatpush1.bf16.msra.mxu0 0
      %8567 = vmatprep.subr.bf16.mxu0 0
      %8568 = vmatpush1.bf16.msra.mxu0 0
      %8569 = vmatprep.subr.bf16.mxu0 0
      %8570 = vmatpush1.bf16.msra.mxu0 0
      %8571 = vmatprep.subr.bf16.mxu0 0
      %8572 = vmatpush1.bf16.msra.mxu0 0
      %8573 = vmatprep.subr.bf16.mxu0 0
      %8574 = vmatpush1.bf16.msra.mxu0 0
      %8575 = vmatprep.subr.bf16.mxu0 0
      %8576 = vmatpush1.bf16.msra.mxu0 0
      %8577 = vmatprep.subr.bf16.mxu0 0
      %8578 = vmatpush1.bf16.msra.mxu0 0
      %8579 = vmatprep.subr.bf16.mxu0 0
      %8580 = vmatpush1.bf16.msra.mxu0 0
      %8581 = vmatprep.subr.bf16.mxu0 0
      %8582 = vmatpush1.bf16.msra.mxu0 0
      %8583 = vmatprep.subr.bf16.mxu0 0
      %8584 = vmatpush1.bf16.msra.mxu0 0
      %8585 = vmatprep.subr.bf16.mxu0 0
      %8586 = vmatpush1.bf16.msra.mxu0 0
      %8587 = vmatprep.subr.bf16.mxu0 0
      %8588 = vmatpush1.bf16.msra.mxu0 0
      %8589 = vmatprep.subr.bf16.mxu0 0
      %8590 = vmatpush1.bf16.msra.mxu0 0
      %8591 = vmatprep.mubr.bf16.mxu0 0
      %8592 = vmatmul.mubr.bf16.gmra.mrb[0].mxu0 %v8557
      %v8593 = vpop.f32.mrb[0].mxu0
      %v8594 = vadd.f32 0.0, %v8593
      %v8595 = vpop.f32.mrb[0].mxu0
      %v8596 = vpop.f32.mrb[0].mxu0
      %v8597 = vpop.f32.mrb[0].mxu0
      %8598 = vdwg.mxu0
      %8600 = vrot.lane.b32.xlu0 %v8594, 32
      %v8601 = vpop.permute.xlu0 %8600
      %v8603 = vsel %vm690, %v8454, %v8601
      %vm8604 = vcmask 388096
      %8605 = vst.msk [vmem:[%s521] sm:$0xf] %vm8604, %v8603
      %p8606 = scmp.lt.s32.totalorder %s27, 1
      %s8607 = scalar_select %p8606, %s27, 1
      %s8608 = smul.addr %s8607, 4
      %s8609 = scalar_lea.vmem %s16, %s8608
      // Predicated region
      $region85: #{vision_transformer_forward.1} parent=83 // pred_check
        %p8610 = pneg %p386
      $region86: #{vision_transformer_forward.1} parent=83 // pred_check_branch
        %8612 = sbr.rel (%p8610) target = $region88
      $region87: #{vision_transformer_forward.1} parent=83 // pred_region
        _
      $region88: #{vision_transformer_forward.1} parent=83 // pred_fallthru
        _
    $region84: #{vision_transformer_forward.1} parent=5 // pred_fallthru
      _
    %p8613 = scmp.le.s32.totalorder 2, %s22
    // Predicated region
    $region89: #{vision_transformer_forward.1} parent=5 // pred_check
      %p8614 = pneg %p8613
    $region90: #{vision_transformer_forward.1} parent=5 // pred_check_branch
      %8616 = sbr.rel (%p8614) target = $region92
    $region91: #{vision_transformer_forward.1} parent=5 // pred_region
      %s8617 = ssub.s32 %s22, 2
      // Predicated region
      $region93: #{vision_transformer_forward.1} parent=91 // pred_check
        %p8618 = pneg %p392
      $region94: #{vision_transformer_forward.1} parent=91 // pred_check_branch
        %8620 = sbr.rel (%p8618) target = $region96
      $region95: #{vision_transformer_forward.1} parent=91 // pred_region
        %p8621 = scmp.lt.s32.totalorder %s28, 1
        %s8622 = scalar_select %p8621, %s28, 1
        %s8623 = smul.addr %s8622, 4
        %s8624 = scalar_lea.vmem %s16, %s8623
      $region96: #{vision_transformer_forward.1} parent=91 // pred_fallthru
        _
    $region92: #{vision_transformer_forward.1} parent=5 // pred_fallthru
      _
  $region6: #{vision_transformer_forward.1} parent=0 // loop_footer
    %s26 = sadd.s32 1, %s22
  $region7: #{vision_transformer_forward.1} parent=0 // loop_footer_branch
    %21 = sbr.rel target = $region3
  $region8: #{vision_transformer_forward.1} parent=0 // loop_exit
    _

</llo_original>
